<compile_context>
chip_gen: v6e
topology: v6e:2x2x1
jax: 0.10.0
libtpu: 0.0.40
codegen_flags: <defaults>
</compile_context>

<pallas_src>
import jax
import jax.numpy as jnp
import numpy as np
from jax.experimental import pallas as pl
from jax.experimental.pallas import tpu as pltpu

_LANE = 128            # TPU lane width: feature dims padded to multiples of this
_SRC_CHUNK = 128       # source nodes processed per reduction grid step
_LEAKY_SLOPE = 0.01    # F.leaky_relu default
_NEG_BIG = -1e30       # finite "-inf" for the masked running max (f32-safe)


def _round_up(n, m):
    return ((n + m - 1) // m) * m


def _pick_tile(n, cap):
    """Largest multiple of 8 that divides `n` and is <= cap."""
    cap = max(8, min(n, cap))
    best, d = 8, 8
    while d <= cap:
        if n % d == 0:
            best = d
        d += 8
    return best


def _vmem_limit_bytes():
    """Per-generation VMEM budget: ~77 MiB on 128-MiB parts, ~38 MiB on v7x (64 MiB)."""
    try:
        cap = int(pltpu.get_tpu_info().vmem_capacity_bytes)
    except Exception:  # off-TPU tracing / older API: fall back to the safest assumption
        cap = 64 * 1024 * 1024
    return max(32 * 1024 * 1024, min((cap * 3) // 5, 96 * 1024 * 1024))


def _agg_tile(np_, hp, vmem_limit):
    """Target-tile rows for the aggregation kernel, sized against the VMEM budget."""
    budget = vmem_limit // 2
    resident = 2 * np_ * hp * 4                       # VMEM-resident msg (allow 2 buffers)
    per_row = 4 * (2 * _SRC_CHUNK + 5 * hp + 2 * _LANE)  # adj tile (x2) + dense/out/scratch/deg
    cap = (budget - resident) // max(per_row, 1)
    # <=64 keeps the unrolled running-max body small and the accumulator in vregs;
    # np_//8 keeps >=8 parallel grid steps for megacore / v7x dual-TC sharding.
    return _pick_tile(np_, max(8, min(64, np_ // 8, cap)))


# --------------------------------------------------------------------------------------
# kernels
# --------------------------------------------------------------------------------------
def _edgeconv_linear_kernel(x_ref, w_ref, b_ref, dense_ref, msg_ref):
    """One fused MXU matmul X @ [Wa-Wb | Wb]; split into dense (+bias) and msg outputs."""
    y = jnp.dot(x_ref[...], w_ref[...], preferred_element_type=jnp.float32)
    hp = dense_ref.shape[1]
    dense_ref[...] = (y[:, :hp] + b_ref[...]).astype(dense_ref.dtype)
    msg_ref[...] = y[:, hp:].astype(msg_ref.dtype)


def _edgeconv_agg_kernel(adj_ref, deg_ref, dense_ref, msg_ref, out_ref, max_sc):
    """x_k = leaky_relu(where(deg>0, dense + max over neighbours of msg, 0)).

    Grid axis 0: target tiles (parallel).  Grid axis 1: source chunks (arbitrary,
    reduction).  `msg_ref` is the full (Np, Hp) message table, VMEM-resident; the
    current chunk's rows are sliced in-kernel so msg is never re-DMA'd per target tile.
    """
    c = pl.program_id(1)

    @pl.when(c == 0)
    def _init():
        max_sc[...] = jnp.full(max_sc.shape, _NEG_BIG, max_sc.dtype)

    a = adj_ref[...]                                     # (tm, SRC_CHUNK), values 0/1
    base = pl.multiple_of(c * _SRC_CHUNK, _SRC_CHUNK)
    m = msg_ref[pl.ds(base, _SRC_CHUNK), :]              # (SRC_CHUNK, Hp)

    neg = jnp.float32(_NEG_BIG)
    acc = max_sc[...]
    # Running masked max, one source lane at a time: no (tm, SRC_CHUNK, Hp)
    # intermediate is ever materialized, so the accumulator stays in vregs.
    for k in range(_SRC_CHUNK):
        acc = jnp.maximum(acc, jnp.where(a[:, k:k + 1] > 0.0, m[k:k + 1, :], neg))
    max_sc[...] = acc

    @pl.when(c == pl.num_programs(1) - 1)
    def _finalize():
        # PyG max-aggregation: a node with no incoming edge gets 0 for the whole conv out.
        z = jnp.where(deg_ref[...] > 0.0, dense_ref[...] + max_sc[...], 0.0)
        out_ref[...] = jnp.where(z >= 0.0, z, _LEAKY_SLOPE * z).astype(out_ref.dtype)


def _mlp_head_kernel(x_ref, w1_ref, b1_ref, w2_ref, b2_ref, o_ref):
    """Fused mlp2(mlp1(x)); the reference has no activation between the two Linears."""
    h = jnp.dot(x_ref[...], w1_ref[...], preferred_element_type=jnp.float32) + b1_ref[...]
    out = jnp.dot(h, w2_ref[...], preferred_element_type=jnp.float32) + b2_ref[...]
    o_ref[...] = out.astype(o_ref.dtype)


# --------------------------------------------------------------------------------------
# pallas_call wrappers
# --------------------------------------------------------------------------------------
def _edgeconv_linear(x_all, w_cat, b_pad, in_w, hp, tm, vmem_limit):
    np_ = x_all.shape[0]
    cost = pl.CostEstimate(
        flops=int(2 * np_ * in_w * 2 * hp),
        transcendentals=0,
        bytes_accessed=int(4 * (np_ * in_w + in_w * 2 * hp + hp + 2 * np_ * hp)),
    )
    return pl.pallas_call(
        _edgeconv_linear_kernel,
        grid=(np_ // tm,),
        in_specs=[
            pl.BlockSpec((tm, in_w), lambda i: (i, 0)),       # prefix columns of feature slab
            pl.BlockSpec((in_w, 2 * hp), lambda i: (0, 0)),   # fused [Wa-Wb | Wb], resident
            pl.BlockSpec((1, hp), lambda i: (0, 0)),
        ],
        out_specs=[
            pl.BlockSpec((tm, hp), lambda i: (i, 0)),
            pl.BlockSpec((tm, hp), lambda i: (i, 0)),
        ],
        out_shape=[
            jax.ShapeDtypeStruct((np_, hp), jnp.float32),
            jax.ShapeDtypeStruct((np_, hp), jnp.float32),
        ],
        compiler_params=pltpu.CompilerParams(
            dimension_semantics=("parallel",), vmem_limit_bytes=vmem_limit),
        cost_estimate=cost,
    )(x_all, w_cat, b_pad)


def _edgeconv_aggregate(adj, deg, dense, msg, tm_agg, vmem_limit):
    np_, hp = msg.shape
    cost = pl.CostEstimate(
        flops=int(3 * np_ * np_ * hp),
        transcendentals=0,
        bytes_accessed=int(4 * (np_ * np_ + 3 * np_ * hp + np_)),
    )
    return pl.pallas_call(
        _edgeconv_agg_kernel,
        grid=(np_ // tm_agg, np_ // _SRC_CHUNK),
        in_specs=[
            pl.BlockSpec((tm_agg, _SRC_CHUNK), lambda i, c: (i, c)),  # 2-D adjacency tile
            pl.BlockSpec((tm_agg, 1), lambda i, c: (i, 0)),           # in-degree
            pl.BlockSpec((tm_agg, hp), lambda i, c: (i, 0)),          # dense term
            pl.BlockSpec((np_, hp), lambda i, c: (0, 0)),             # msg: VMEM-resident
        ],
        out_specs=pl.BlockSpec((tm_agg, hp), lambda i, c: (i, 0)),
        out_shape=jax.ShapeDtypeStruct((np_, hp), jnp.float32),
        scratch_shapes=[pltpu.VMEM((tm_agg, hp), jnp.float32)],       # running max
        compiler_params=pltpu.CompilerParams(
            dimension_semantics=("parallel", "arbitrary"), vmem_limit_bytes=vmem_limit),
        cost_estimate=cost,
    )(adj, deg, dense, msg)


def _mlp_head(x_all, w1, b1, w2, b2, tm, vmem_limit):
    np_, cw = x_all.shape
    h1p, outp = w1.shape[1], w2.shape[1]
    cost = pl.CostEstimate(
        flops=int(2 * np_ * (cw * h1p + h1p * outp)),
        transcendentals=0,
        bytes_accessed=int(4 * (np_ * cw + cw * h1p + h1p * outp + h1p + outp + np_ * outp)),
    )
    return pl.pallas_call(
        _mlp_head_kernel,
        grid=(np_ // tm,),
        in_specs=[
            pl.BlockSpec((tm, cw), lambda i: (i, 0)),
            pl.BlockSpec((cw, h1p), lambda i: (0, 0)),
            pl.BlockSpec((1, h1p), lambda i: (0, 0)),
            pl.BlockSpec((h1p, outp), lambda i: (0, 0)),
            pl.BlockSpec((1, outp), lambda i: (0, 0)),
        ],
        out_specs=pl.BlockSpec((tm, outp), lambda i: (i, 0)),
        out_shape=jax.ShapeDtypeStruct((np_, outp), jnp.float32),
        compiler_params=pltpu.CompilerParams(
            dimension_semantics=("parallel",), vmem_limit_bytes=vmem_limit),
        cost_estimate=cost,
    )(x_all, w1, b1, w2, b2)


# --------------------------------------------------------------------------------------
# full forward
# --------------------------------------------------------------------------------------
def net_forward(params, data_x, edge_index, *, in_channels, conv="edge"):
    """Pallas equivalent of Net.forward(data) for the conv='edge' branch (inference mode)."""
    if conv != "edge":
        # TODO(synk): PointTransformerConv branch has no Pallas implementation here.
        raise NotImplementedError("only the conv='edge' branch is implemented")

    x = data_x[:, :in_channels].astype(jnp.float32)
    # pos = data_x[:, :3] and data.batch are unused by the 'edge' branch of the reference.
    n = x.shape[0]
    np_ = _round_up(n, _LANE)

    hidden = [int(layer["w"].shape[1]) for layer in params["convs"]]
    seg_real = [in_channels] + hidden                      # real widths of [x, x1, .., x4]
    seg_pad = [_round_up(c, _LANE) for c in seg_real]      # lane-aligned segment widths
    seg_off = [0]
    for w_ in seg_pad:
        seg_off.append(seg_off[-1] + w_)
    total_w = seg_off[-1]

    # Single lane-padded feature slab [x | x1 | x2 | x3 | x4]; each layer writes its
    # output into its 128-aligned column segment, so no per-layer concat/re-pad copies.
    x_all = jnp.zeros((np_, total_w), jnp.float32).at[:n, :in_channels].set(x)

    # dense adjacency: adj[i, j] = 1 iff edge j -> i (target i max-aggregates sources j)
    src, tgt = edge_index[0], edge_index[1]
    adj = jnp.zeros((np_, np_), jnp.float32).at[tgt, src].set(1.0)
    deg = jnp.sum(adj, axis=1, keepdims=True)              # (Np, 1) in-degree

    vmem_limit = _vmem_limit_bytes()
    # keep >= 8 parallel grid steps so megacore / v7x's 2 TensorCores get work
    tm = _pick_tile(np_, max(8, min(512, np_ // 8)))

    for j, layer in enumerate(params["convs"]):
        w, b = layer["w"], layer["b"]
        h = int(w.shape[1])
        hp = seg_pad[j + 1]
        in_w = seg_off[j + 1]
        c_real = sum(seg_real[: j + 1])
        wa, wb = w[:c_real], w[c_real:]

        # scatter weight rows to the 128-aligned segment offsets; padded slab columns are
        # zero and hit zero weight rows, so they contribute nothing.  Fuse [Wa-Wb | Wb].
        wd_s = jnp.zeros((in_w, hp), jnp.float32)
        wb_s = jnp.zeros((in_w, hp), jnp.float32)
        r = 0
        for s in range(j + 1):
            rw, off = seg_real[s], seg_off[s]
            wd_s = wd_s.at[off:off + rw, :h].set((wa - wb)[r:r + rw])
            wb_s = wb_s.at[off:off + rw, :h].set(wb[r:r + rw])
            r += rw
        w_cat = jnp.concatenate([wd_s, wb_s], axis=1)        # (in_w, 2*hp)
        b_pad = jnp.zeros((1, hp), jnp.float32).at[0, :h].set(b)

        dense, msg = _edgeconv_linear(x_all, w_cat, b_pad, in_w, hp, tm, vmem_limit)

        tm_agg = _agg_tile(np_, hp, vmem_limit)
        xk = _edgeconv_aggregate(adj, deg, dense, msg, tm_agg, vmem_limit)  # (Np, hp)
        x_all = jax.lax.dynamic_update_slice(x_all, xk, (0, seg_off[j + 1]))

    # fused mlp1 -> mlp2 head on the full feature slab
    w1, b1 = params["mlp1"]["w"], params["mlp1"]["b"]
    w2, b2 = params["mlp2"]["w"], params["mlp2"]["b"]
    h1, out_c = int(w1.shape[1]), int(w2.shape[1])
    h1p, outp = _round_up(h1, _LANE), _round_up(out_c, _LANE)

    w1_s = jnp.zeros((total_w, h1p), jnp.float32)
    r = 0
    for s in range(len(seg_real)):
        rw, off = seg_real[s], seg_off[s]
        w1_s = w1_s.at[off:off + rw, :h1].set(w1[r:r + rw])
        r += rw
    b1_p = jnp.zeros((1, h1p), jnp.float32).at[0, :h1].set(b1)
    w2_p = jnp.zeros((h1p, outp), jnp.float32).at[:h1, :out_c].set(w2)
    b2_p = jnp.zeros((1, outp), jnp.float32).at[0, :out_c].set(b2)

    out_p = _mlp_head(x_all, w1_s, b1_p, w2_p, b2_p, tm, vmem_limit)
    return out_p[:n, :out_c]


# --------------------------------------------------------------------------------------
# params + pure-JAX reference
# --------------------------------------------------------------------------------------
def init_params(key, in_channels, hidden_channels, out_channels, dtype=jnp.float32):
    """nn.Linear-style U(-1/sqrt(fan_in), 1/sqrt(fan_in)) init; W stored as (fan_in, fan_out)."""
    keys = jax.random.split(key, len(hidden_channels) + 2)

    def linear(k, fan_in, fan_out):
        lim = float(fan_in) ** -0.5
        kw, kb = jax.random.split(k)
        return {
            "w": jax.random.uniform(kw, (fan_in, fan_out), dtype, -lim, lim),
            "b": jax.random.uniform(kb, (fan_out,), dtype, -lim, lim),
        }

    convs, c = [], in_channels
    for i, h in enumerate(hidden_channels):
        convs.append(linear(keys[i], 2 * c, h))   # EdgeConv nn: Linear(2*C_in, H)
        c += h
    return {
        "convs": convs,
        "mlp1": linear(keys[-2], c, 64),
        "mlp2": linear(keys[-1], 64, out_channels),
    }


def reference_forward(params, data_x, edge_index, *, in_channels):
    """Plain-JAX reference: per-edge messages + scatter-max (PyG EdgeConv, aggr='max')."""
    x = data_x[:, :in_channels].astype(jnp.float32)
    n = x.shape[0]
    src, tgt = edge_index[0], edge_index[1]

    def leaky(v):
        return jnp.where(v >= 0.0, v, _LEAKY_SLOPE * v)

    def edge_conv(xc, w, b):
        msgs = jnp.concatenate([xc[tgt], xc[src] - xc[tgt]], axis=1) @ w + b   # (E, H)
        init = jnp.full((n, msgs.shape[1]), -jnp.inf, msgs.dtype)
        agg = init.at[tgt].max(msgs)
        return jnp.where(jnp.isneginf(agg), 0.0, agg)      # isolated nodes -> 0

    feats = [x]
    for layer in params["convs"]:
        xc = jnp.concatenate(feats, axis=1)
        feats.append(leaky(edge_conv(xc, layer["w"], layer["b"])))
    out = jnp.concatenate(feats, axis=1)
    out = out @ params["mlp1"]["w"] + params["mlp1"]["b"]
    out = out @ params["mlp2"]["w"] + params["mlp2"]["b"]
    return out


# --------------------------------------------------------------------------------------
# demo
# --------------------------------------------------------------------------------------
if __name__ == "__main__":
    key = jax.random.PRNGKey(0)
    k_feat, k_par = jax.random.split(key)

    num_nodes = 256
    feat_cols = 16                  # data.x width; first 3 cols double as `pos`
    in_channels = 8
    hidden_channels = (16, 16, 32, 32)
    out_channels = 8
    k_nbrs = 4

    data_x = jax.random.normal(k_feat, (num_nodes, feat_cols), jnp.float32)

    # ring graph: each node receives edges from its 4 nearest ring neighbours;
    # node 7 is made edge-less to exercise the isolated-node (degree 0 -> 0) path.
    offs = np.array([-2, -1, 1, 2], np.int32)
    tgt_np = np.repeat(np.arange(num_nodes, dtype=np.int32), k_nbrs)
    src_np = (tgt_np + np.tile(offs, num_nodes)) % num_nodes
    keep = tgt_np != 7
    edge_index = jnp.asarray(np.stack([src_np[keep], tgt_np[keep]]))  # (2, E): src, tgt

    params = init_params(k_par, in_channels, hidden_channels, out_channels)

    @jax.jit
    def fwd(p, xf, ei):
        return net_forward(p, xf, ei, in_channels=in_channels)

    out = jax.block_until_ready(fwd(params, data_x, edge_index))

    ref = reference_forward(params, data_x, edge_index, in_channels=in_channels)
    assert out.shape == (num_nodes, out_channels), out.shape
    assert bool(jnp.all(jnp.isfinite(out)))
    err = float(jnp.max(jnp.abs(out - ref)))
    assert jnp.allclose(out, ref, atol=1e-3, rtol=1e-3), f"max abs err {err}"

    print("KERNEL_OK")
</pallas_src>

<mosaic_0001>
module attributes {stable_mosaic.version = 11 : i64} {
  func.func @_edgeconv_linear_kernel(%arg0: i32, %arg1: memref<32x128xf32, #tpu.memory_space<vmem>>, %arg2: memref<128x256xf32, #tpu.memory_space<vmem>>, %arg3: memref<1x128xf32, #tpu.memory_space<vmem>>, %arg4: memref<32x128xf32, #tpu.memory_space<vmem>>, %arg5: memref<32x128xf32, #tpu.memory_space<vmem>>) attributes {dimension_semantics = [#tpu.dimension_semantics<parallel>], iteration_bounds = array<i64: 8>, scalar_prefetch = 0 : i64, scratch_operands = 0 : i64, tpu.core_type = #tpu.core_type<tc>, window_params = [{transform_indices = @transform_0, window_bounds = array<i64: 32, 128>}, {pipeline_mode = #tpu.pipeline_mode<synchronous>, transform_indices = @transform_1, window_bounds = array<i64: 128, 256>}, {pipeline_mode = #tpu.pipeline_mode<synchronous>, transform_indices = @transform_2, window_bounds = array<i64: 1, 128>}, {transform_indices = @transform_3, window_bounds = array<i64: 32, 128>}, {transform_indices = @transform_4, window_bounds = array<i64: 32, 128>}]} {
    %c0 = arith.constant 0 : index
    %c0_0 = arith.constant 0 : index
    %0 = vector.load %arg1[%c0, %c0_0] : memref<32x128xf32, #tpu.memory_space<vmem>>, vector<32x128xf32>
    %c0_1 = arith.constant 0 : index
    %c0_2 = arith.constant 0 : index
    %1 = vector.load %arg2[%c0_1, %c0_2] : memref<128x256xf32, #tpu.memory_space<vmem>>, vector<128x256xf32>
    %cst = arith.constant dense<0.000000e+00> : vector<32x256xf32>
    %2 = tpu.matmul %0, %1, %cst {dimension_numbers = #tpu.dot_dimension_numbers<[1], [0], [0], [1], [0, 0, 1, 1], [], []>} : vector<32x128xf32>, vector<128x256xf32>, vector<32x256xf32> -> vector<32x256xf32>
    %3 = vector.extract_strided_slice %2 {offsets = [0, 0], sizes = [32, 128], strides = [1, 1]} : vector<32x256xf32> to vector<32x128xf32>
    %c0_3 = arith.constant 0 : index
    %c0_4 = arith.constant 0 : index
    %4 = vector.load %arg3[%c0_3, %c0_4] : memref<1x128xf32, #tpu.memory_space<vmem>>, vector<1x128xf32>
    %5 = vector.broadcast %4 : vector<1x128xf32> to vector<32x128xf32>
    %6 = arith.addf %3, %5 : vector<32x128xf32>
    %c0_5 = arith.constant 0 : index
    %c0_6 = arith.constant 0 : index
    %7 = vector.load %arg4[%c0_5, %c0_6] : memref<32x128xf32, #tpu.memory_space<vmem>>, vector<32x128xf32>
    tpu.vector_store %arg4[%c0_5, %c0_6], %6 {strides = array<i32>} : memref<32x128xf32, #tpu.memory_space<vmem>>, vector<32x128xf32>,
    %8 = vector.extract_strided_slice %2 {offsets = [0, 128], sizes = [32, 128], strides = [1, 1]} : vector<32x256xf32> to vector<32x128xf32>
    %c0_7 = arith.constant 0 : index
    %c0_8 = arith.constant 0 : index
    %9 = vector.load %arg5[%c0_7, %c0_8] : memref<32x128xf32, #tpu.memory_space<vmem>>, vector<32x128xf32>
    tpu.vector_store %arg5[%c0_7, %c0_8], %8 {strides = array<i32>} : memref<32x128xf32, #tpu.memory_space<vmem>>, vector<32x128xf32>,
    return
  }
  func.func @transform_0(%arg0: i32) -> (i32, i32) {
    %c0_i32 = arith.constant 0 : i32
    %c0_i32_0 = arith.constant 0 : i32
    return %arg0, %c0_i32 : i32, i32
  }
  func.func @transform_1(%arg0: i32) -> (i32, i32) {
    %c0_i32 = arith.constant 0 : i32
    %c0_i32_0 = arith.constant 0 : i32
    %c0_i32_1 = arith.constant 0 : i32
    return %c0_i32, %c0_i32_0 : i32, i32
  }
  func.func @transform_2(%arg0: i32) -> (i32, i32) {
    %c0_i32 = arith.constant 0 : i32
    %c0_i32_0 = arith.constant 0 : i32
    %c0_i32_1 = arith.constant 0 : i32
    return %c0_i32, %c0_i32_0 : i32, i32
  }
  func.func @transform_3(%arg0: i32) -> (i32, i32) {
    %c0_i32 = arith.constant 0 : i32
    %c0_i32_0 = arith.constant 0 : i32
    return %arg0, %c0_i32 : i32, i32
  }
  func.func @transform_4(%arg0: i32) -> (i32, i32) {
    %c0_i32 = arith.constant 0 : i32
    %c0_i32_0 = arith.constant 0 : i32
    return %arg0, %c0_i32 : i32, i32
  }
}

module attributes {stable_mosaic.version = 11 : i64} {
  func.func @_edgeconv_agg_kernel(%arg0: i32, %arg1: i32, %arg2: memref<32x128xf32, #tpu.memory_space<vmem>>, %arg3: memref<32x1xf32, #tpu.memory_space<vmem>>, %arg4: memref<32x128xf32, #tpu.memory_space<vmem>>, %arg5: memref<256x128xf32, #tpu.memory_space<vmem>>, %arg6: memref<32x128xf32, #tpu.memory_space<vmem>>, %arg7: memref<32x128xf32, #tpu.memory_space<vmem>>) attributes {dimension_semantics = [#tpu.dimension_semantics<parallel>, #tpu.dimension_semantics<arbitrary>], iteration_bounds = array<i64: 8, 2>, scalar_prefetch = 0 : i64, scratch_operands = 1 : i64, tpu.core_type = #tpu.core_type<tc>, window_params = [{transform_indices = @transform_0, window_bounds = array<i64: 32, 128>}, {transform_indices = @transform_1, window_bounds = array<i64: 32, 1>}, {transform_indices = @transform_2, window_bounds = array<i64: 32, 128>}, {pipeline_mode = #tpu.pipeline_mode<synchronous>, transform_indices = @transform_3, window_bounds = array<i64: 256, 128>}, {transform_indices = @transform_4, window_bounds = array<i64: 32, 128>}]} {
    %c0_i32 = arith.constant 0 : i32
    %0 = arith.cmpi eq, %arg1, %c0_i32 : i32
    %1 = arith.extui %0 : i1 to i32
    %c0_i32_0 = arith.constant 0 : i32
    %2 = arith.cmpi ne, %1, %c0_i32_0 : i32
    scf.if %2 {
      %cst_263 = arith.constant -1.000000e+30 : f32
      %1421 = vector.broadcast %cst_263 : f32 to vector<32x128xf32>
      %c0_264 = arith.constant 0 : index
      %c0_265 = arith.constant 0 : index
      %1422 = vector.load %arg7[%c0_264, %c0_265] : memref<32x128xf32, #tpu.memory_space<vmem>>, vector<32x128xf32>
      tpu.vector_store %arg7[%c0_264, %c0_265], %1421 {strides = array<i32>} : memref<32x128xf32, #tpu.memory_space<vmem>>, vector<32x128xf32>,
    } else {
    }
    %c0 = arith.constant 0 : index
    %c0_1 = arith.constant 0 : index
    %3 = vector.load %arg2[%c0, %c0_1] : memref<32x128xf32, #tpu.memory_space<vmem>>, vector<32x128xf32>
    %c128_i32 = arith.constant 128 : i32
    %4 = arith.muli %arg1, %c128_i32 : i32
    %5 = tpu.assume_multiple %4, 128 : i32
    %6 = arith.index_cast %5 : i32 to index
    %c0_2 = arith.constant 0 : index
    %7 = vector.load %arg5[%6, %c0_2] : memref<256x128xf32, #tpu.memory_space<vmem>>, vector<128x128xf32>
    %c0_3 = arith.constant 0 : index
    %c0_4 = arith.constant 0 : index
    %8 = vector.load %arg7[%c0_3, %c0_4] : memref<32x128xf32, #tpu.memory_space<vmem>>, vector<32x128xf32>
    %9 = vector.extract_strided_slice %3 {offsets = [0, 0], sizes = [32, 1], strides = [1, 1]} : vector<32x128xf32> to vector<32x1xf32>
    %cst = arith.constant 0.000000e+00 : f32
    %10 = vector.broadcast %cst : f32 to vector<32x1xf32>
    %11 = arith.cmpf ogt, %9, %10 : vector<32x1xf32>
    %12 = vector.extract_strided_slice %7 {offsets = [0, 0], sizes = [1, 128], strides = [1, 1]} : vector<128x128xf32> to vector<1x128xf32>
    %cst_5 = arith.constant -1.000000e+30 : f32
    %13 = vector.shape_cast %11 : vector<32x1xi1> to vector<32x1xi1>
    %14 = vector.broadcast %13 : vector<32x1xi1> to vector<32x128xi1>
    %15 = vector.shape_cast %12 : vector<1x128xf32> to vector<1x128xf32>
    %16 = vector.broadcast %15 : vector<1x128xf32> to vector<32x128xf32>
    %17 = vector.broadcast %cst_5 : f32 to vector<32x128xf32>
    %18 = arith.select %14, %16, %17 : vector<32x128xi1>, vector<32x128xf32>
    %19 = arith.maximumf %8, %18 : vector<32x128xf32>
    %20 = vector.extract_strided_slice %3 {offsets = [0, 1], sizes = [32, 1], strides = [1, 1]} : vector<32x128xf32> to vector<32x1xf32>
    %cst_6 = arith.constant 0.000000e+00 : f32
    %21 = vector.broadcast %cst_6 : f32 to vector<32x1xf32>
    %22 = arith.cmpf ogt, %20, %21 : vector<32x1xf32>
    %23 = vector.extract_strided_slice %7 {offsets = [1, 0], sizes = [1, 128], strides = [1, 1]} : vector<128x128xf32> to vector<1x128xf32>
    %cst_7 = arith.constant -1.000000e+30 : f32
    %24 = vector.shape_cast %22 : vector<32x1xi1> to vector<32x1xi1>
    %25 = vector.broadcast %24 : vector<32x1xi1> to vector<32x128xi1>
    %26 = vector.shape_cast %23 : vector<1x128xf32> to vector<1x128xf32>
    %27 = vector.broadcast %26 : vector<1x128xf32> to vector<32x128xf32>
    %28 = vector.broadcast %cst_7 : f32 to vector<32x128xf32>
    %29 = arith.select %25, %27, %28 : vector<32x128xi1>, vector<32x128xf32>
    %30 = arith.maximumf %19, %29 : vector<32x128xf32>
    %31 = vector.extract_strided_slice %3 {offsets = [0, 2], sizes = [32, 1], strides = [1, 1]} : vector<32x128xf32> to vector<32x1xf32>
    %cst_8 = arith.constant 0.000000e+00 : f32
    %32 = vector.broadcast %cst_8 : f32 to vector<32x1xf32>
    %33 = arith.cmpf ogt, %31, %32 : vector<32x1xf32>
    %34 = vector.extract_strided_slice %7 {offsets = [2, 0], sizes = [1, 128], strides = [1, 1]} : vector<128x128xf32> to vector<1x128xf32>
    %cst_9 = arith.constant -1.000000e+30 : f32
    %35 = vector.shape_cast %33 : vector<32x1xi1> to vector<32x1xi1>
    %36 = vector.broadcast %35 : vector<32x1xi1> to vector<32x128xi1>
    %37 = vector.shape_cast %34 : vector<1x128xf32> to vector<1x128xf32>
    %38 = vector.broadcast %37 : vector<1x128xf32> to vector<32x128xf32>
    %39 = vector.broadcast %cst_9 : f32 to vector<32x128xf32>
    %40 = arith.select %36, %38, %39 : vector<32x128xi1>, vector<32x128xf32>
    %41 = arith.maximumf %30, %40 : vector<32x128xf32>
    %42 = vector.extract_strided_slice %3 {offsets = [0, 3], sizes = [32, 1], strides = [1, 1]} : vector<32x128xf32> to vector<32x1xf32>
    %cst_10 = arith.constant 0.000000e+00 : f32
    %43 = vector.broadcast %cst_10 : f32 to vector<32x1xf32>
    %44 = arith.cmpf ogt, %42, %43 : vector<32x1xf32>
    %45 = vector.extract_strided_slice %7 {offsets = [3, 0], sizes = [1, 128], strides = [1, 1]} : vector<128x128xf32> to vector<1x128xf32>
    %cst_11 = arith.constant -1.000000e+30 : f32
    %46 = vector.shape_cast %44 : vector<32x1xi1> to vector<32x1xi1>
    %47 = vector.broadcast %46 : vector<32x1xi1> to vector<32x128xi1>
    %48 = vector.shape_cast %45 : vector<1x128xf32> to vector<1x128xf32>
    %49 = vector.broadcast %48 : vector<1x128xf32> to vector<32x128xf32>
    %50 = vector.broadcast %cst_11 : f32 to vector<32x128xf32>
    %51 = arith.select %47, %49, %50 : vector<32x128xi1>, vector<32x128xf32>
    %52 = arith.maximumf %41, %51 : vector<32x128xf32>
    %53 = vector.extract_strided_slice %3 {offsets = [0, 4], sizes = [32, 1], strides = [1, 1]} : vector<32x128xf32> to vector<32x1xf32>
    %cst_12 = arith.constant 0.000000e+00 : f32
    %54 = vector.broadcast %cst_12 : f32 to vector<32x1xf32>
    %55 = arith.cmpf ogt, %53, %54 : vector<32x1xf32>
    %56 = vector.extract_strided_slice %7 {offsets = [4, 0], sizes = [1, 128], strides = [1, 1]} : vector<128x128xf32> to vector<1x128xf32>
    %cst_13 = arith.constant -1.000000e+30 : f32
    %57 = vector.shape_cast %55 : vector<32x1xi1> to vector<32x1xi1>
    %58 = vector.broadcast %57 : vector<32x1xi1> to vector<32x128xi1>
    %59 = vector.shape_cast %56 : vector<1x128xf32> to vector<1x128xf32>
    %60 = vector.broadcast %59 : vector<1x128xf32> to vector<32x128xf32>
    %61 = vector.broadcast %cst_13 : f32 to vector<32x128xf32>
    %62 = arith.select %58, %60, %61 : vector<32x128xi1>, vector<32x128xf32>
    %63 = arith.maximumf %52, %62 : vector<32x128xf32>
    %64 = vector.extract_strided_slice %3 {offsets = [0, 5], sizes = [32, 1], strides = [1, 1]} : vector<32x128xf32> to vector<32x1xf32>
    %cst_14 = arith.constant 0.000000e+00 : f32
    %65 = vector.broadcast %cst_14 : f32 to vector<32x1xf32>
    %66 = arith.cmpf ogt, %64, %65 : vector<32x1xf32>
    %67 = vector.extract_strided_slice %7 {offsets = [5, 0], sizes = [1, 128], strides = [1, 1]} : vector<128x128xf32> to vector<1x128xf32>
    %cst_15 = arith.constant -1.000000e+30 : f32
    %68 = vector.shape_cast %66 : vector<32x1xi1> to vector<32x1xi1>
    %69 = vector.broadcast %68 : vector<32x1xi1> to vector<32x128xi1>
    %70 = vector.shape_cast %67 : vector<1x128xf32> to vector<1x128xf32>
    %71 = vector.broadcast %70 : vector<1x128xf32> to vector<32x128xf32>
    %72 = vector.broadcast %cst_15 : f32 to vector<32x128xf32>
    %73 = arith.select %69, %71, %72 : vector<32x128xi1>, vector<32x128xf32>
    %74 = arith.maximumf %63, %73 : vector<32x128xf32>
    %75 = vector.extract_strided_slice %3 {offsets = [0, 6], sizes = [32, 1], strides = [1, 1]} : vector<32x128xf32> to vector<32x1xf32>
    %cst_16 = arith.constant 0.000000e+00 : f32
    %76 = vector.broadcast %cst_16 : f32 to vector<32x1xf32>
    %77 = arith.cmpf ogt, %75, %76 : vector<32x1xf32>
    %78 = vector.extract_strided_slice %7 {offsets = [6, 0], sizes = [1, 128], strides = [1, 1]} : vector<128x128xf32> to vector<1x128xf32>
    %cst_17 = arith.constant -1.000000e+30 : f32
    %79 = vector.shape_cast %77 : vector<32x1xi1> to vector<32x1xi1>
    %80 = vector.broadcast %79 : vector<32x1xi1> to vector<32x128xi1>
    %81 = vector.shape_cast %78 : vector<1x128xf32> to vector<1x128xf32>
    %82 = vector.broadcast %81 : vector<1x128xf32> to vector<32x128xf32>
    %83 = vector.broadcast %cst_17 : f32 to vector<32x128xf32>
    %84 = arith.select %80, %82, %83 : vector<32x128xi1>, vector<32x128xf32>
    %85 = arith.maximumf %74, %84 : vector<32x128xf32>
    %86 = vector.extract_strided_slice %3 {offsets = [0, 7], sizes = [32, 1], strides = [1, 1]} : vector<32x128xf32> to vector<32x1xf32>
    %cst_18 = arith.constant 0.000000e+00 : f32
    %87 = vector.broadcast %cst_18 : f32 to vector<32x1xf32>
    %88 = arith.cmpf ogt, %86, %87 : vector<32x1xf32>
    %89 = vector.extract_strided_slice %7 {offsets = [7, 0], sizes = [1, 128], strides = [1, 1]} : vector<128x128xf32> to vector<1x128xf32>
    %cst_19 = arith.constant -1.000000e+30 : f32
    %90 = vector.shape_cast %88 : vector<32x1xi1> to vector<32x1xi1>
    %91 = vector.broadcast %90 : vector<32x1xi1> to vector<32x128xi1>
    %92 = vector.shape_cast %89 : vector<1x128xf32> to vector<1x128xf32>
    %93 = vector.broadcast %92 : vector<1x128xf32> to vector<32x128xf32>
    %94 = vector.broadcast %cst_19 : f32 to vector<32x128xf32>
    %95 = arith.select %91, %93, %94 : vector<32x128xi1>, vector<32x128xf32>
    %96 = arith.maximumf %85, %95 : vector<32x128xf32>
    %97 = vector.extract_strided_slice %3 {offsets = [0, 8], sizes = [32, 1], strides = [1, 1]} : vector<32x128xf32> to vector<32x1xf32>
    %cst_20 = arith.constant 0.000000e+00 : f32
    %98 = vector.broadcast %cst_20 : f32 to vector<32x1xf32>
    %99 = arith.cmpf ogt, %97, %98 : vector<32x1xf32>
    %100 = vector.extract_strided_slice %7 {offsets = [8, 0], sizes = [1, 128], strides = [1, 1]} : vector<128x128xf32> to vector<1x128xf32>
    %cst_21 = arith.constant -1.000000e+30 : f32
    %101 = vector.shape_cast %99 : vector<32x1xi1> to vector<32x1xi1>
    %102 = vector.broadcast %101 : vector<32x1xi1> to vector<32x128xi1>
    %103 = vector.shape_cast %100 : vector<1x128xf32> to vector<1x128xf32>
    %104 = vector.broadcast %103 : vector<1x128xf32> to vector<32x128xf32>
    %105 = vector.broadcast %cst_21 : f32 to vector<32x128xf32>
    %106 = arith.select %102, %104, %105 : vector<32x128xi1>, vector<32x128xf32>
    %107 = arith.maximumf %96, %106 : vector<32x128xf32>
    %108 = vector.extract_strided_slice %3 {offsets = [0, 9], sizes = [32, 1], strides = [1, 1]} : vector<32x128xf32> to vector<32x1xf32>
    %cst_22 = arith.constant 0.000000e+00 : f32
    %109 = vector.broadcast %cst_22 : f32 to vector<32x1xf32>
    %110 = arith.cmpf ogt, %108, %109 : vector<32x1xf32>
    %111 = vector.extract_strided_slice %7 {offsets = [9, 0], sizes = [1, 128], strides = [1, 1]} : vector<128x128xf32> to vector<1x128xf32>
    %cst_23 = arith.constant -1.000000e+30 : f32
    %112 = vector.shape_cast %110 : vector<32x1xi1> to vector<32x1xi1>
    %113 = vector.broadcast %112 : vector<32x1xi1> to vector<32x128xi1>
    %114 = vector.shape_cast %111 : vector<1x128xf32> to vector<1x128xf32>
    %115 = vector.broadcast %114 : vector<1x128xf32> to vector<32x128xf32>
    %116 = vector.broadcast %cst_23 : f32 to vector<32x128xf32>
    %117 = arith.select %113, %115, %116 : vector<32x128xi1>, vector<32x128xf32>
    %118 = arith.maximumf %107, %117 : vector<32x128xf32>
    %119 = vector.extract_strided_slice %3 {offsets = [0, 10], sizes = [32, 1], strides = [1, 1]} : vector<32x128xf32> to vector<32x1xf32>
    %cst_24 = arith.constant 0.000000e+00 : f32
    %120 = vector.broadcast %cst_24 : f32 to vector<32x1xf32>
    %121 = arith.cmpf ogt, %119, %120 : vector<32x1xf32>
    %122 = vector.extract_strided_slice %7 {offsets = [10, 0], sizes = [1, 128], strides = [1, 1]} : vector<128x128xf32> to vector<1x128xf32>
    %cst_25 = arith.constant -1.000000e+30 : f32
    %123 = vector.shape_cast %121 : vector<32x1xi1> to vector<32x1xi1>
    %124 = vector.broadcast %123 : vector<32x1xi1> to vector<32x128xi1>
    %125 = vector.shape_cast %122 : vector<1x128xf32> to vector<1x128xf32>
    %126 = vector.broadcast %125 : vector<1x128xf32> to vector<32x128xf32>
    %127 = vector.broadcast %cst_25 : f32 to vector<32x128xf32>
    %128 = arith.select %124, %126, %127 : vector<32x128xi1>, vector<32x128xf32>
    %129 = arith.maximumf %118, %128 : vector<32x128xf32>
    %130 = vector.extract_strided_slice %3 {offsets = [0, 11], sizes = [32, 1], strides = [1, 1]} : vector<32x128xf32> to vector<32x1xf32>
    %cst_26 = arith.constant 0.000000e+00 : f32
    %131 = vector.broadcast %cst_26 : f32 to vector<32x1xf32>
    %132 = arith.cmpf ogt, %130, %131 : vector<32x1xf32>
    %133 = vector.extract_strided_slice %7 {offsets = [11, 0], sizes = [1, 128], strides = [1, 1]} : vector<128x128xf32> to vector<1x128xf32>
    %cst_27 = arith.constant -1.000000e+30 : f32
    %134 = vector.shape_cast %132 : vector<32x1xi1> to vector<32x1xi1>
    %135 = vector.broadcast %134 : vector<32x1xi1> to vector<32x128xi1>
    %136 = vector.shape_cast %133 : vector<1x128xf32> to vector<1x128xf32>
    %137 = vector.broadcast %136 : vector<1x128xf32> to vector<32x128xf32>
    %138 = vector.broadcast %cst_27 : f32 to vector<32x128xf32>
    %139 = arith.select %135, %137, %138 : vector<32x128xi1>, vector<32x128xf32>
    %140 = arith.maximumf %129, %139 : vector<32x128xf32>
    %141 = vector.extract_strided_slice %3 {offsets = [0, 12], sizes = [32, 1], strides = [1, 1]} : vector<32x128xf32> to vector<32x1xf32>
    %cst_28 = arith.constant 0.000000e+00 : f32
    %142 = vector.broadcast %cst_28 : f32 to vector<32x1xf32>
    %143 = arith.cmpf ogt, %141, %142 : vector<32x1xf32>
    %144 = vector.extract_strided_slice %7 {offsets = [12, 0], sizes = [1, 128], strides = [1, 1]} : vector<128x128xf32> to vector<1x128xf32>
    %cst_29 = arith.constant -1.000000e+30 : f32
    %145 = vector.shape_cast %143 : vector<32x1xi1> to vector<32x1xi1>
    %146 = vector.broadcast %145 : vector<32x1xi1> to vector<32x128xi1>
    %147 = vector.shape_cast %144 : vector<1x128xf32> to vector<1x128xf32>
    %148 = vector.broadcast %147 : vector<1x128xf32> to vector<32x128xf32>
    %149 = vector.broadcast %cst_29 : f32 to vector<32x128xf32>
    %150 = arith.select %146, %148, %149 : vector<32x128xi1>, vector<32x128xf32>
    %151 = arith.maximumf %140, %150 : vector<32x128xf32>
    %152 = vector.extract_strided_slice %3 {offsets = [0, 13], sizes = [32, 1], strides = [1, 1]} : vector<32x128xf32> to vector<32x1xf32>
    %cst_30 = arith.constant 0.000000e+00 : f32
    %153 = vector.broadcast %cst_30 : f32 to vector<32x1xf32>
    %154 = arith.cmpf ogt, %152, %153 : vector<32x1xf32>
    %155 = vector.extract_strided_slice %7 {offsets = [13, 0], sizes = [1, 128], strides = [1, 1]} : vector<128x128xf32> to vector<1x128xf32>
    %cst_31 = arith.constant -1.000000e+30 : f32
    %156 = vector.shape_cast %154 : vector<32x1xi1> to vector<32x1xi1>
    %157 = vector.broadcast %156 : vector<32x1xi1> to vector<32x128xi1>
    %158 = vector.shape_cast %155 : vector<1x128xf32> to vector<1x128xf32>
    %159 = vector.broadcast %158 : vector<1x128xf32> to vector<32x128xf32>
    %160 = vector.broadcast %cst_31 : f32 to vector<32x128xf32>
    %161 = arith.select %157, %159, %160 : vector<32x128xi1>, vector<32x128xf32>
    %162 = arith.maximumf %151, %161 : vector<32x128xf32>
    %163 = vector.extract_strided_slice %3 {offsets = [0, 14], sizes = [32, 1], strides = [1, 1]} : vector<32x128xf32> to vector<32x1xf32>
    %cst_32 = arith.constant 0.000000e+00 : f32
    %164 = vector.broadcast %cst_32 : f32 to vector<32x1xf32>
    %165 = arith.cmpf ogt, %163, %164 : vector<32x1xf32>
    %166 = vector.extract_strided_slice %7 {offsets = [14, 0], sizes = [1, 128], strides = [1, 1]} : vector<128x128xf32> to vector<1x128xf32>
    %cst_33 = arith.constant -1.000000e+30 : f32
    %167 = vector.shape_cast %165 : vector<32x1xi1> to vector<32x1xi1>
    %168 = vector.broadcast %167 : vector<32x1xi1> to vector<32x128xi1>
    %169 = vector.shape_cast %166 : vector<1x128xf32> to vector<1x128xf32>
    %170 = vector.broadcast %169 : vector<1x128xf32> to vector<32x128xf32>
    %171 = vector.broadcast %cst_33 : f32 to vector<32x128xf32>
    %172 = arith.select %168, %170, %171 : vector<32x128xi1>, vector<32x128xf32>
    %173 = arith.maximumf %162, %172 : vector<32x128xf32>
    %174 = vector.extract_strided_slice %3 {offsets = [0, 15], sizes = [32, 1], strides = [1, 1]} : vector<32x128xf32> to vector<32x1xf32>
    %cst_34 = arith.constant 0.000000e+00 : f32
    %175 = vector.broadcast %cst_34 : f32 to vector<32x1xf32>
    %176 = arith.cmpf ogt, %174, %175 : vector<32x1xf32>
    %177 = vector.extract_strided_slice %7 {offsets = [15, 0], sizes = [1, 128], strides = [1, 1]} : vector<128x128xf32> to vector<1x128xf32>
    %cst_35 = arith.constant -1.000000e+30 : f32
    %178 = vector.shape_cast %176 : vector<32x1xi1> to vector<32x1xi1>
    %179 = vector.broadcast %178 : vector<32x1xi1> to vector<32x128xi1>
    %180 = vector.shape_cast %177 : vector<1x128xf32> to vector<1x128xf32>
    %181 = vector.broadcast %180 : vector<1x128xf32> to vector<32x128xf32>
    %182 = vector.broadcast %cst_35 : f32 to vector<32x128xf32>
    %183 = arith.select %179, %181, %182 : vector<32x128xi1>, vector<32x128xf32>
    %184 = arith.maximumf %173, %183 : vector<32x128xf32>
    %185 = vector.extract_strided_slice %3 {offsets = [0, 16], sizes = [32, 1], strides = [1, 1]} : vector<32x128xf32> to vector<32x1xf32>
    %cst_36 = arith.constant 0.000000e+00 : f32
    %186 = vector.broadcast %cst_36 : f32 to vector<32x1xf32>
    %187 = arith.cmpf ogt, %185, %186 : vector<32x1xf32>
    %188 = vector.extract_strided_slice %7 {offsets = [16, 0], sizes = [1, 128], strides = [1, 1]} : vector<128x128xf32> to vector<1x128xf32>
    %cst_37 = arith.constant -1.000000e+30 : f32
    %189 = vector.shape_cast %187 : vector<32x1xi1> to vector<32x1xi1>
    %190 = vector.broadcast %189 : vector<32x1xi1> to vector<32x128xi1>
    %191 = vector.shape_cast %188 : vector<1x128xf32> to vector<1x128xf32>
    %192 = vector.broadcast %191 : vector<1x128xf32> to vector<32x128xf32>
    %193 = vector.broadcast %cst_37 : f32 to vector<32x128xf32>
    %194 = arith.select %190, %192, %193 : vector<32x128xi1>, vector<32x128xf32>
    %195 = arith.maximumf %184, %194 : vector<32x128xf32>
    %196 = vector.extract_strided_slice %3 {offsets = [0, 17], sizes = [32, 1], strides = [1, 1]} : vector<32x128xf32> to vector<32x1xf32>
    %cst_38 = arith.constant 0.000000e+00 : f32
    %197 = vector.broadcast %cst_38 : f32 to vector<32x1xf32>
    %198 = arith.cmpf ogt, %196, %197 : vector<32x1xf32>
    %199 = vector.extract_strided_slice %7 {offsets = [17, 0], sizes = [1, 128], strides = [1, 1]} : vector<128x128xf32> to vector<1x128xf32>
    %cst_39 = arith.constant -1.000000e+30 : f32
    %200 = vector.shape_cast %198 : vector<32x1xi1> to vector<32x1xi1>
    %201 = vector.broadcast %200 : vector<32x1xi1> to vector<32x128xi1>
    %202 = vector.shape_cast %199 : vector<1x128xf32> to vector<1x128xf32>
    %203 = vector.broadcast %202 : vector<1x128xf32> to vector<32x128xf32>
    %204 = vector.broadcast %cst_39 : f32 to vector<32x128xf32>
    %205 = arith.select %201, %203, %204 : vector<32x128xi1>, vector<32x128xf32>
    %206 = arith.maximumf %195, %205 : vector<32x128xf32>
    %207 = vector.extract_strided_slice %3 {offsets = [0, 18], sizes = [32, 1], strides = [1, 1]} : vector<32x128xf32> to vector<32x1xf32>
    %cst_40 = arith.constant 0.000000e+00 : f32
    %208 = vector.broadcast %cst_40 : f32 to vector<32x1xf32>
    %209 = arith.cmpf ogt, %207, %208 : vector<32x1xf32>
    %210 = vector.extract_strided_slice %7 {offsets = [18, 0], sizes = [1, 128], strides = [1, 1]} : vector<128x128xf32> to vector<1x128xf32>
    %cst_41 = arith.constant -1.000000e+30 : f32
    %211 = vector.shape_cast %209 : vector<32x1xi1> to vector<32x1xi1>
    %212 = vector.broadcast %211 : vector<32x1xi1> to vector<32x128xi1>
    %213 = vector.shape_cast %210 : vector<1x128xf32> to vector<1x128xf32>
    %214 = vector.broadcast %213 : vector<1x128xf32> to vector<32x128xf32>
    %215 = vector.broadcast %cst_41 : f32 to vector<32x128xf32>
    %216 = arith.select %212, %214, %215 : vector<32x128xi1>, vector<32x128xf32>
    %217 = arith.maximumf %206, %216 : vector<32x128xf32>
    %218 = vector.extract_strided_slice %3 {offsets = [0, 19], sizes = [32, 1], strides = [1, 1]} : vector<32x128xf32> to vector<32x1xf32>
    %cst_42 = arith.constant 0.000000e+00 : f32
    %219 = vector.broadcast %cst_42 : f32 to vector<32x1xf32>
    %220 = arith.cmpf ogt, %218, %219 : vector<32x1xf32>
    %221 = vector.extract_strided_slice %7 {offsets = [19, 0], sizes = [1, 128], strides = [1, 1]} : vector<128x128xf32> to vector<1x128xf32>
    %cst_43 = arith.constant -1.000000e+30 : f32
    %222 = vector.shape_cast %220 : vector<32x1xi1> to vector<32x1xi1>
    %223 = vector.broadcast %222 : vector<32x1xi1> to vector<32x128xi1>
    %224 = vector.shape_cast %221 : vector<1x128xf32> to vector<1x128xf32>
    %225 = vector.broadcast %224 : vector<1x128xf32> to vector<32x128xf32>
    %226 = vector.broadcast %cst_43 : f32 to vector<32x128xf32>
    %227 = arith.select %223, %225, %226 : vector<32x128xi1>, vector<32x128xf32>
    %228 = arith.maximumf %217, %227 : vector<32x128xf32>
    %229 = vector.extract_strided_slice %3 {offsets = [0, 20], sizes = [32, 1], strides = [1, 1]} : vector<32x128xf32> to vector<32x1xf32>
    %cst_44 = arith.constant 0.000000e+00 : f32
    %230 = vector.broadcast %cst_44 : f32 to vector<32x1xf32>
    %231 = arith.cmpf ogt, %229, %230 : vector<32x1xf32>
    %232 = vector.extract_strided_slice %7 {offsets = [20, 0], sizes = [1, 128], strides = [1, 1]} : vector<128x128xf32> to vector<1x128xf32>
    %cst_45 = arith.constant -1.000000e+30 : f32
    %233 = vector.shape_cast %231 : vector<32x1xi1> to vector<32x1xi1>
    %234 = vector.broadcast %233 : vector<32x1xi1> to vector<32x128xi1>
    %235 = vector.shape_cast %232 : vector<1x128xf32> to vector<1x128xf32>
    %236 = vector.broadcast %235 : vector<1x128xf32> to vector<32x128xf32>
    %237 = vector.broadcast %cst_45 : f32 to vector<32x128xf32>
    %238 = arith.select %234, %236, %237 : vector<32x128xi1>, vector<32x128xf32>
    %239 = arith.maximumf %228, %238 : vector<32x128xf32>
    %240 = vector.extract_strided_slice %3 {offsets = [0, 21], sizes = [32, 1], strides = [1, 1]} : vector<32x128xf32> to vector<32x1xf32>
    %cst_46 = arith.constant 0.000000e+00 : f32
    %241 = vector.broadcast %cst_46 : f32 to vector<32x1xf32>
    %242 = arith.cmpf ogt, %240, %241 : vector<32x1xf32>
    %243 = vector.extract_strided_slice %7 {offsets = [21, 0], sizes = [1, 128], strides = [1, 1]} : vector<128x128xf32> to vector<1x128xf32>
    %cst_47 = arith.constant -1.000000e+30 : f32
    %244 = vector.shape_cast %242 : vector<32x1xi1> to vector<32x1xi1>
    %245 = vector.broadcast %244 : vector<32x1xi1> to vector<32x128xi1>
    %246 = vector.shape_cast %243 : vector<1x128xf32> to vector<1x128xf32>
    %247 = vector.broadcast %246 : vector<1x128xf32> to vector<32x128xf32>
    %248 = vector.broadcast %cst_47 : f32 to vector<32x128xf32>
    %249 = arith.select %245, %247, %248 : vector<32x128xi1>, vector<32x128xf32>
    %250 = arith.maximumf %239, %249 : vector<32x128xf32>
    %251 = vector.extract_strided_slice %3 {offsets = [0, 22], sizes = [32, 1], strides = [1, 1]} : vector<32x128xf32> to vector<32x1xf32>
    %cst_48 = arith.constant 0.000000e+00 : f32
    %252 = vector.broadcast %cst_48 : f32 to vector<32x1xf32>
    %253 = arith.cmpf ogt, %251, %252 : vector<32x1xf32>
    %254 = vector.extract_strided_slice %7 {offsets = [22, 0], sizes = [1, 128], strides = [1, 1]} : vector<128x128xf32> to vector<1x128xf32>
    %cst_49 = arith.constant -1.000000e+30 : f32
    %255 = vector.shape_cast %253 : vector<32x1xi1> to vector<32x1xi1>
    %256 = vector.broadcast %255 : vector<32x1xi1> to vector<32x128xi1>
    %257 = vector.shape_cast %254 : vector<1x128xf32> to vector<1x128xf32>
    %258 = vector.broadcast %257 : vector<1x128xf32> to vector<32x128xf32>
    %259 = vector.broadcast %cst_49 : f32 to vector<32x128xf32>
    %260 = arith.select %256, %258, %259 : vector<32x128xi1>, vector<32x128xf32>
    %261 = arith.maximumf %250, %260 : vector<32x128xf32>
    %262 = vector.extract_strided_slice %3 {offsets = [0, 23], sizes = [32, 1], strides = [1, 1]} : vector<32x128xf32> to vector<32x1xf32>
    %cst_50 = arith.constant 0.000000e+00 : f32
    %263 = vector.broadcast %cst_50 : f32 to vector<32x1xf32>
    %264 = arith.cmpf ogt, %262, %263 : vector<32x1xf32>
    %265 = vector.extract_strided_slice %7 {offsets = [23, 0], sizes = [1, 128], strides = [1, 1]} : vector<128x128xf32> to vector<1x128xf32>
    %cst_51 = arith.constant -1.000000e+30 : f32
    %266 = vector.shape_cast %264 : vector<32x1xi1> to vector<32x1xi1>
    %267 = vector.broadcast %266 : vector<32x1xi1> to vector<32x128xi1>
    %268 = vector.shape_cast %265 : vector<1x128xf32> to vector<1x128xf32>
    %269 = vector.broadcast %268 : vector<1x128xf32> to vector<32x128xf32>
    %270 = vector.broadcast %cst_51 : f32 to vector<32x128xf32>
    %271 = arith.select %267, %269, %270 : vector<32x128xi1>, vector<32x128xf32>
    %272 = arith.maximumf %261, %271 : vector<32x128xf32>
    %273 = vector.extract_strided_slice %3 {offsets = [0, 24], sizes = [32, 1], strides = [1, 1]} : vector<32x128xf32> to vector<32x1xf32>
    %cst_52 = arith.constant 0.000000e+00 : f32
    %274 = vector.broadcast %cst_52 : f32 to vector<32x1xf32>
    %275 = arith.cmpf ogt, %273, %274 : vector<32x1xf32>
    %276 = vector.extract_strided_slice %7 {offsets = [24, 0], sizes = [1, 128], strides = [1, 1]} : vector<128x128xf32> to vector<1x128xf32>
    %cst_53 = arith.constant -1.000000e+30 : f32
    %277 = vector.shape_cast %275 : vector<32x1xi1> to vector<32x1xi1>
    %278 = vector.broadcast %277 : vector<32x1xi1> to vector<32x128xi1>
    %279 = vector.shape_cast %276 : vector<1x128xf32> to vector<1x128xf32>
    %280 = vector.broadcast %279 : vector<1x128xf32> to vector<32x128xf32>
    %281 = vector.broadcast %cst_53 : f32 to vector<32x128xf32>
    %282 = arith.select %278, %280, %281 : vector<32x128xi1>, vector<32x128xf32>
    %283 = arith.maximumf %272, %282 : vector<32x128xf32>
    %284 = vector.extract_strided_slice %3 {offsets = [0, 25], sizes = [32, 1], strides = [1, 1]} : vector<32x128xf32> to vector<32x1xf32>
    %cst_54 = arith.constant 0.000000e+00 : f32
    %285 = vector.broadcast %cst_54 : f32 to vector<32x1xf32>
    %286 = arith.cmpf ogt, %284, %285 : vector<32x1xf32>
    %287 = vector.extract_strided_slice %7 {offsets = [25, 0], sizes = [1, 128], strides = [1, 1]} : vector<128x128xf32> to vector<1x128xf32>
    %cst_55 = arith.constant -1.000000e+30 : f32
    %288 = vector.shape_cast %286 : vector<32x1xi1> to vector<32x1xi1>
    %289 = vector.broadcast %288 : vector<32x1xi1> to vector<32x128xi1>
    %290 = vector.shape_cast %287 : vector<1x128xf32> to vector<1x128xf32>
    %291 = vector.broadcast %290 : vector<1x128xf32> to vector<32x128xf32>
    %292 = vector.broadcast %cst_55 : f32 to vector<32x128xf32>
    %293 = arith.select %289, %291, %292 : vector<32x128xi1>, vector<32x128xf32>
    %294 = arith.maximumf %283, %293 : vector<32x128xf32>
    %295 = vector.extract_strided_slice %3 {offsets = [0, 26], sizes = [32, 1], strides = [1, 1]} : vector<32x128xf32> to vector<32x1xf32>
    %cst_56 = arith.constant 0.000000e+00 : f32
    %296 = vector.broadcast %cst_56 : f32 to vector<32x1xf32>
    %297 = arith.cmpf ogt, %295, %296 : vector<32x1xf32>
    %298 = vector.extract_strided_slice %7 {offsets = [26, 0], sizes = [1, 128], strides = [1, 1]} : vector<128x128xf32> to vector<1x128xf32>
    %cst_57 = arith.constant -1.000000e+30 : f32
    %299 = vector.shape_cast %297 : vector<32x1xi1> to vector<32x1xi1>
    %300 = vector.broadcast %299 : vector<32x1xi1> to vector<32x128xi1>
    %301 = vector.shape_cast %298 : vector<1x128xf32> to vector<1x128xf32>
    %302 = vector.broadcast %301 : vector<1x128xf32> to vector<32x128xf32>
    %303 = vector.broadcast %cst_57 : f32 to vector<32x128xf32>
    %304 = arith.select %300, %302, %303 : vector<32x128xi1>, vector<32x128xf32>
    %305 = arith.maximumf %294, %304 : vector<32x128xf32>
    %306 = vector.extract_strided_slice %3 {offsets = [0, 27], sizes = [32, 1], strides = [1, 1]} : vector<32x128xf32> to vector<32x1xf32>
    %cst_58 = arith.constant 0.000000e+00 : f32
    %307 = vector.broadcast %cst_58 : f32 to vector<32x1xf32>
    %308 = arith.cmpf ogt, %306, %307 : vector<32x1xf32>
    %309 = vector.extract_strided_slice %7 {offsets = [27, 0], sizes = [1, 128], strides = [1, 1]} : vector<128x128xf32> to vector<1x128xf32>
    %cst_59 = arith.constant -1.000000e+30 : f32
    %310 = vector.shape_cast %308 : vector<32x1xi1> to vector<32x1xi1>
    %311 = vector.broadcast %310 : vector<32x1xi1> to vector<32x128xi1>
    %312 = vector.shape_cast %309 : vector<1x128xf32> to vector<1x128xf32>
    %313 = vector.broadcast %312 : vector<1x128xf32> to vector<32x128xf32>
    %314 = vector.broadcast %cst_59 : f32 to vector<32x128xf32>
    %315 = arith.select %311, %313, %314 : vector<32x128xi1>, vector<32x128xf32>
    %316 = arith.maximumf %305, %315 : vector<32x128xf32>
    %317 = vector.extract_strided_slice %3 {offsets = [0, 28], sizes = [32, 1], strides = [1, 1]} : vector<32x128xf32> to vector<32x1xf32>
    %cst_60 = arith.constant 0.000000e+00 : f32
    %318 = vector.broadcast %cst_60 : f32 to vector<32x1xf32>
    %319 = arith.cmpf ogt, %317, %318 : vector<32x1xf32>
    %320 = vector.extract_strided_slice %7 {offsets = [28, 0], sizes = [1, 128], strides = [1, 1]} : vector<128x128xf32> to vector<1x128xf32>
    %cst_61 = arith.constant -1.000000e+30 : f32
    %321 = vector.shape_cast %319 : vector<32x1xi1> to vector<32x1xi1>
    %322 = vector.broadcast %321 : vector<32x1xi1> to vector<32x128xi1>
    %323 = vector.shape_cast %320 : vector<1x128xf32> to vector<1x128xf32>
    %324 = vector.broadcast %323 : vector<1x128xf32> to vector<32x128xf32>
    %325 = vector.broadcast %cst_61 : f32 to vector<32x128xf32>
    %326 = arith.select %322, %324, %325 : vector<32x128xi1>, vector<32x128xf32>
    %327 = arith.maximumf %316, %326 : vector<32x128xf32>
    %328 = vector.extract_strided_slice %3 {offsets = [0, 29], sizes = [32, 1], strides = [1, 1]} : vector<32x128xf32> to vector<32x1xf32>
    %cst_62 = arith.constant 0.000000e+00 : f32
    %329 = vector.broadcast %cst_62 : f32 to vector<32x1xf32>
    %330 = arith.cmpf ogt, %328, %329 : vector<32x1xf32>
    %331 = vector.extract_strided_slice %7 {offsets = [29, 0], sizes = [1, 128], strides = [1, 1]} : vector<128x128xf32> to vector<1x128xf32>
    %cst_63 = arith.constant -1.000000e+30 : f32
    %332 = vector.shape_cast %330 : vector<32x1xi1> to vector<32x1xi1>
    %333 = vector.broadcast %332 : vector<32x1xi1> to vector<32x128xi1>
    %334 = vector.shape_cast %331 : vector<1x128xf32> to vector<1x128xf32>
    %335 = vector.broadcast %334 : vector<1x128xf32> to vector<32x128xf32>
    %336 = vector.broadcast %cst_63 : f32 to vector<32x128xf32>
    %337 = arith.select %333, %335, %336 : vector<32x128xi1>, vector<32x128xf32>
    %338 = arith.maximumf %327, %337 : vector<32x128xf32>
    %339 = vector.extract_strided_slice %3 {offsets = [0, 30], sizes = [32, 1], strides = [1, 1]} : vector<32x128xf32> to vector<32x1xf32>
    %cst_64 = arith.constant 0.000000e+00 : f32
    %340 = vector.broadcast %cst_64 : f32 to vector<32x1xf32>
    %341 = arith.cmpf ogt, %339, %340 : vector<32x1xf32>
    %342 = vector.extract_strided_slice %7 {offsets = [30, 0], sizes = [1, 128], strides = [1, 1]} : vector<128x128xf32> to vector<1x128xf32>
    %cst_65 = arith.constant -1.000000e+30 : f32
    %343 = vector.shape_cast %341 : vector<32x1xi1> to vector<32x1xi1>
    %344 = vector.broadcast %343 : vector<32x1xi1> to vector<32x128xi1>
    %345 = vector.shape_cast %342 : vector<1x128xf32> to vector<1x128xf32>
    %346 = vector.broadcast %345 : vector<1x128xf32> to vector<32x128xf32>
    %347 = vector.broadcast %cst_65 : f32 to vector<32x128xf32>
    %348 = arith.select %344, %346, %347 : vector<32x128xi1>, vector<32x128xf32>
    %349 = arith.maximumf %338, %348 : vector<32x128xf32>
    %350 = vector.extract_strided_slice %3 {offsets = [0, 31], sizes = [32, 1], strides = [1, 1]} : vector<32x128xf32> to vector<32x1xf32>
    %cst_66 = arith.constant 0.000000e+00 : f32
    %351 = vector.broadcast %cst_66 : f32 to vector<32x1xf32>
    %352 = arith.cmpf ogt, %350, %351 : vector<32x1xf32>
    %353 = vector.extract_strided_slice %7 {offsets = [31, 0], sizes = [1, 128], strides = [1, 1]} : vector<128x128xf32> to vector<1x128xf32>
    %cst_67 = arith.constant -1.000000e+30 : f32
    %354 = vector.shape_cast %352 : vector<32x1xi1> to vector<32x1xi1>
    %355 = vector.broadcast %354 : vector<32x1xi1> to vector<32x128xi1>
    %356 = vector.shape_cast %353 : vector<1x128xf32> to vector<1x128xf32>
    %357 = vector.broadcast %356 : vector<1x128xf32> to vector<32x128xf32>
    %358 = vector.broadcast %cst_67 : f32 to vector<32x128xf32>
    %359 = arith.select %355, %357, %358 : vector<32x128xi1>, vector<32x128xf32>
    %360 = arith.maximumf %349, %359 : vector<32x128xf32>
    %361 = vector.extract_strided_slice %3 {offsets = [0, 32], sizes = [32, 1], strides = [1, 1]} : vector<32x128xf32> to vector<32x1xf32>
    %cst_68 = arith.constant 0.000000e+00 : f32
    %362 = vector.broadcast %cst_68 : f32 to vector<32x1xf32>
    %363 = arith.cmpf ogt, %361, %362 : vector<32x1xf32>
    %364 = vector.extract_strided_slice %7 {offsets = [32, 0], sizes = [1, 128], strides = [1, 1]} : vector<128x128xf32> to vector<1x128xf32>
    %cst_69 = arith.constant -1.000000e+30 : f32
    %365 = vector.shape_cast %363 : vector<32x1xi1> to vector<32x1xi1>
    %366 = vector.broadcast %365 : vector<32x1xi1> to vector<32x128xi1>
    %367 = vector.shape_cast %364 : vector<1x128xf32> to vector<1x128xf32>
    %368 = vector.broadcast %367 : vector<1x128xf32> to vector<32x128xf32>
    %369 = vector.broadcast %cst_69 : f32 to vector<32x128xf32>
    %370 = arith.select %366, %368, %369 : vector<32x128xi1>, vector<32x128xf32>
    %371 = arith.maximumf %360, %370 : vector<32x128xf32>
    %372 = vector.extract_strided_slice %3 {offsets = [0, 33], sizes = [32, 1], strides = [1, 1]} : vector<32x128xf32> to vector<32x1xf32>
    %cst_70 = arith.constant 0.000000e+00 : f32
    %373 = vector.broadcast %cst_70 : f32 to vector<32x1xf32>
    %374 = arith.cmpf ogt, %372, %373 : vector<32x1xf32>
    %375 = vector.extract_strided_slice %7 {offsets = [33, 0], sizes = [1, 128], strides = [1, 1]} : vector<128x128xf32> to vector<1x128xf32>
    %cst_71 = arith.constant -1.000000e+30 : f32
    %376 = vector.shape_cast %374 : vector<32x1xi1> to vector<32x1xi1>
    %377 = vector.broadcast %376 : vector<32x1xi1> to vector<32x128xi1>
    %378 = vector.shape_cast %375 : vector<1x128xf32> to vector<1x128xf32>
    %379 = vector.broadcast %378 : vector<1x128xf32> to vector<32x128xf32>
    %380 = vector.broadcast %cst_71 : f32 to vector<32x128xf32>
    %381 = arith.select %377, %379, %380 : vector<32x128xi1>, vector<32x128xf32>
    %382 = arith.maximumf %371, %381 : vector<32x128xf32>
    %383 = vector.extract_strided_slice %3 {offsets = [0, 34], sizes = [32, 1], strides = [1, 1]} : vector<32x128xf32> to vector<32x1xf32>
    %cst_72 = arith.constant 0.000000e+00 : f32
    %384 = vector.broadcast %cst_72 : f32 to vector<32x1xf32>
    %385 = arith.cmpf ogt, %383, %384 : vector<32x1xf32>
    %386 = vector.extract_strided_slice %7 {offsets = [34, 0], sizes = [1, 128], strides = [1, 1]} : vector<128x128xf32> to vector<1x128xf32>
    %cst_73 = arith.constant -1.000000e+30 : f32
    %387 = vector.shape_cast %385 : vector<32x1xi1> to vector<32x1xi1>
    %388 = vector.broadcast %387 : vector<32x1xi1> to vector<32x128xi1>
    %389 = vector.shape_cast %386 : vector<1x128xf32> to vector<1x128xf32>
    %390 = vector.broadcast %389 : vector<1x128xf32> to vector<32x128xf32>
    %391 = vector.broadcast %cst_73 : f32 to vector<32x128xf32>
    %392 = arith.select %388, %390, %391 : vector<32x128xi1>, vector<32x128xf32>
    %393 = arith.maximumf %382, %392 : vector<32x128xf32>
    %394 = vector.extract_strided_slice %3 {offsets = [0, 35], sizes = [32, 1], strides = [1, 1]} : vector<32x128xf32> to vector<32x1xf32>
    %cst_74 = arith.constant 0.000000e+00 : f32
    %395 = vector.broadcast %cst_74 : f32 to vector<32x1xf32>
    %396 = arith.cmpf ogt, %394, %395 : vector<32x1xf32>
    %397 = vector.extract_strided_slice %7 {offsets = [35, 0], sizes = [1, 128], strides = [1, 1]} : vector<128x128xf32> to vector<1x128xf32>
    %cst_75 = arith.constant -1.000000e+30 : f32
    %398 = vector.shape_cast %396 : vector<32x1xi1> to vector<32x1xi1>
    %399 = vector.broadcast %398 : vector<32x1xi1> to vector<32x128xi1>
    %400 = vector.shape_cast %397 : vector<1x128xf32> to vector<1x128xf32>
    %401 = vector.broadcast %400 : vector<1x128xf32> to vector<32x128xf32>
    %402 = vector.broadcast %cst_75 : f32 to vector<32x128xf32>
    %403 = arith.select %399, %401, %402 : vector<32x128xi1>, vector<32x128xf32>
    %404 = arith.maximumf %393, %403 : vector<32x128xf32>
    %405 = vector.extract_strided_slice %3 {offsets = [0, 36], sizes = [32, 1], strides = [1, 1]} : vector<32x128xf32> to vector<32x1xf32>
    %cst_76 = arith.constant 0.000000e+00 : f32
    %406 = vector.broadcast %cst_76 : f32 to vector<32x1xf32>
    %407 = arith.cmpf ogt, %405, %406 : vector<32x1xf32>
    %408 = vector.extract_strided_slice %7 {offsets = [36, 0], sizes = [1, 128], strides = [1, 1]} : vector<128x128xf32> to vector<1x128xf32>
    %cst_77 = arith.constant -1.000000e+30 : f32
    %409 = vector.shape_cast %407 : vector<32x1xi1> to vector<32x1xi1>
    %410 = vector.broadcast %409 : vector<32x1xi1> to vector<32x128xi1>
    %411 = vector.shape_cast %408 : vector<1x128xf32> to vector<1x128xf32>
    %412 = vector.broadcast %411 : vector<1x128xf32> to vector<32x128xf32>
    %413 = vector.broadcast %cst_77 : f32 to vector<32x128xf32>
    %414 = arith.select %410, %412, %413 : vector<32x128xi1>, vector<32x128xf32>
    %415 = arith.maximumf %404, %414 : vector<32x128xf32>
    %416 = vector.extract_strided_slice %3 {offsets = [0, 37], sizes = [32, 1], strides = [1, 1]} : vector<32x128xf32> to vector<32x1xf32>
    %cst_78 = arith.constant 0.000000e+00 : f32
    %417 = vector.broadcast %cst_78 : f32 to vector<32x1xf32>
    %418 = arith.cmpf ogt, %416, %417 : vector<32x1xf32>
    %419 = vector.extract_strided_slice %7 {offsets = [37, 0], sizes = [1, 128], strides = [1, 1]} : vector<128x128xf32> to vector<1x128xf32>
    %cst_79 = arith.constant -1.000000e+30 : f32
    %420 = vector.shape_cast %418 : vector<32x1xi1> to vector<32x1xi1>
    %421 = vector.broadcast %420 : vector<32x1xi1> to vector<32x128xi1>
    %422 = vector.shape_cast %419 : vector<1x128xf32> to vector<1x128xf32>
    %423 = vector.broadcast %422 : vector<1x128xf32> to vector<32x128xf32>
    %424 = vector.broadcast %cst_79 : f32 to vector<32x128xf32>
    %425 = arith.select %421, %423, %424 : vector<32x128xi1>, vector<32x128xf32>
    %426 = arith.maximumf %415, %425 : vector<32x128xf32>
    %427 = vector.extract_strided_slice %3 {offsets = [0, 38], sizes = [32, 1], strides = [1, 1]} : vector<32x128xf32> to vector<32x1xf32>
    %cst_80 = arith.constant 0.000000e+00 : f32
    %428 = vector.broadcast %cst_80 : f32 to vector<32x1xf32>
    %429 = arith.cmpf ogt, %427, %428 : vector<32x1xf32>
    %430 = vector.extract_strided_slice %7 {offsets = [38, 0], sizes = [1, 128], strides = [1, 1]} : vector<128x128xf32> to vector<1x128xf32>
    %cst_81 = arith.constant -1.000000e+30 : f32
    %431 = vector.shape_cast %429 : vector<32x1xi1> to vector<32x1xi1>
    %432 = vector.broadcast %431 : vector<32x1xi1> to vector<32x128xi1>
    %433 = vector.shape_cast %430 : vector<1x128xf32> to vector<1x128xf32>
    %434 = vector.broadcast %433 : vector<1x128xf32> to vector<32x128xf32>
    %435 = vector.broadcast %cst_81 : f32 to vector<32x128xf32>
    %436 = arith.select %432, %434, %435 : vector<32x128xi1>, vector<32x128xf32>
    %437 = arith.maximumf %426, %436 : vector<32x128xf32>
    %438 = vector.extract_strided_slice %3 {offsets = [0, 39], sizes = [32, 1], strides = [1, 1]} : vector<32x128xf32> to vector<32x1xf32>
    %cst_82 = arith.constant 0.000000e+00 : f32
    %439 = vector.broadcast %cst_82 : f32 to vector<32x1xf32>
    %440 = arith.cmpf ogt, %438, %439 : vector<32x1xf32>
    %441 = vector.extract_strided_slice %7 {offsets = [39, 0], sizes = [1, 128], strides = [1, 1]} : vector<128x128xf32> to vector<1x128xf32>
    %cst_83 = arith.constant -1.000000e+30 : f32
    %442 = vector.shape_cast %440 : vector<32x1xi1> to vector<32x1xi1>
    %443 = vector.broadcast %442 : vector<32x1xi1> to vector<32x128xi1>
    %444 = vector.shape_cast %441 : vector<1x128xf32> to vector<1x128xf32>
    %445 = vector.broadcast %444 : vector<1x128xf32> to vector<32x128xf32>
    %446 = vector.broadcast %cst_83 : f32 to vector<32x128xf32>
    %447 = arith.select %443, %445, %446 : vector<32x128xi1>, vector<32x128xf32>
    %448 = arith.maximumf %437, %447 : vector<32x128xf32>
    %449 = vector.extract_strided_slice %3 {offsets = [0, 40], sizes = [32, 1], strides = [1, 1]} : vector<32x128xf32> to vector<32x1xf32>
    %cst_84 = arith.constant 0.000000e+00 : f32
    %450 = vector.broadcast %cst_84 : f32 to vector<32x1xf32>
    %451 = arith.cmpf ogt, %449, %450 : vector<32x1xf32>
    %452 = vector.extract_strided_slice %7 {offsets = [40, 0], sizes = [1, 128], strides = [1, 1]} : vector<128x128xf32> to vector<1x128xf32>
    %cst_85 = arith.constant -1.000000e+30 : f32
    %453 = vector.shape_cast %451 : vector<32x1xi1> to vector<32x1xi1>
    %454 = vector.broadcast %453 : vector<32x1xi1> to vector<32x128xi1>
    %455 = vector.shape_cast %452 : vector<1x128xf32> to vector<1x128xf32>
    %456 = vector.broadcast %455 : vector<1x128xf32> to vector<32x128xf32>
    %457 = vector.broadcast %cst_85 : f32 to vector<32x128xf32>
    %458 = arith.select %454, %456, %457 : vector<32x128xi1>, vector<32x128xf32>
    %459 = arith.maximumf %448, %458 : vector<32x128xf32>
    %460 = vector.extract_strided_slice %3 {offsets = [0, 41], sizes = [32, 1], strides = [1, 1]} : vector<32x128xf32> to vector<32x1xf32>
    %cst_86 = arith.constant 0.000000e+00 : f32
    %461 = vector.broadcast %cst_86 : f32 to vector<32x1xf32>
    %462 = arith.cmpf ogt, %460, %461 : vector<32x1xf32>
    %463 = vector.extract_strided_slice %7 {offsets = [41, 0], sizes = [1, 128], strides = [1, 1]} : vector<128x128xf32> to vector<1x128xf32>
    %cst_87 = arith.constant -1.000000e+30 : f32
    %464 = vector.shape_cast %462 : vector<32x1xi1> to vector<32x1xi1>
    %465 = vector.broadcast %464 : vector<32x1xi1> to vector<32x128xi1>
    %466 = vector.shape_cast %463 : vector<1x128xf32> to vector<1x128xf32>
    %467 = vector.broadcast %466 : vector<1x128xf32> to vector<32x128xf32>
    %468 = vector.broadcast %cst_87 : f32 to vector<32x128xf32>
    %469 = arith.select %465, %467, %468 : vector<32x128xi1>, vector<32x128xf32>
    %470 = arith.maximumf %459, %469 : vector<32x128xf32>
    %471 = vector.extract_strided_slice %3 {offsets = [0, 42], sizes = [32, 1], strides = [1, 1]} : vector<32x128xf32> to vector<32x1xf32>
    %cst_88 = arith.constant 0.000000e+00 : f32
    %472 = vector.broadcast %cst_88 : f32 to vector<32x1xf32>
    %473 = arith.cmpf ogt, %471, %472 : vector<32x1xf32>
    %474 = vector.extract_strided_slice %7 {offsets = [42, 0], sizes = [1, 128], strides = [1, 1]} : vector<128x128xf32> to vector<1x128xf32>
    %cst_89 = arith.constant -1.000000e+30 : f32
    %475 = vector.shape_cast %473 : vector<32x1xi1> to vector<32x1xi1>
    %476 = vector.broadcast %475 : vector<32x1xi1> to vector<32x128xi1>
    %477 = vector.shape_cast %474 : vector<1x128xf32> to vector<1x128xf32>
    %478 = vector.broadcast %477 : vector<1x128xf32> to vector<32x128xf32>
    %479 = vector.broadcast %cst_89 : f32 to vector<32x128xf32>
    %480 = arith.select %476, %478, %479 : vector<32x128xi1>, vector<32x128xf32>
    %481 = arith.maximumf %470, %480 : vector<32x128xf32>
    %482 = vector.extract_strided_slice %3 {offsets = [0, 43], sizes = [32, 1], strides = [1, 1]} : vector<32x128xf32> to vector<32x1xf32>
    %cst_90 = arith.constant 0.000000e+00 : f32
    %483 = vector.broadcast %cst_90 : f32 to vector<32x1xf32>
    %484 = arith.cmpf ogt, %482, %483 : vector<32x1xf32>
    %485 = vector.extract_strided_slice %7 {offsets = [43, 0], sizes = [1, 128], strides = [1, 1]} : vector<128x128xf32> to vector<1x128xf32>
    %cst_91 = arith.constant -1.000000e+30 : f32
    %486 = vector.shape_cast %484 : vector<32x1xi1> to vector<32x1xi1>
    %487 = vector.broadcast %486 : vector<32x1xi1> to vector<32x128xi1>
    %488 = vector.shape_cast %485 : vector<1x128xf32> to vector<1x128xf32>
    %489 = vector.broadcast %488 : vector<1x128xf32> to vector<32x128xf32>
    %490 = vector.broadcast %cst_91 : f32 to vector<32x128xf32>
    %491 = arith.select %487, %489, %490 : vector<32x128xi1>, vector<32x128xf32>
    %492 = arith.maximumf %481, %491 : vector<32x128xf32>
    %493 = vector.extract_strided_slice %3 {offsets = [0, 44], sizes = [32, 1], strides = [1, 1]} : vector<32x128xf32> to vector<32x1xf32>
    %cst_92 = arith.constant 0.000000e+00 : f32
    %494 = vector.broadcast %cst_92 : f32 to vector<32x1xf32>
    %495 = arith.cmpf ogt, %493, %494 : vector<32x1xf32>
    %496 = vector.extract_strided_slice %7 {offsets = [44, 0], sizes = [1, 128], strides = [1, 1]} : vector<128x128xf32> to vector<1x128xf32>
    %cst_93 = arith.constant -1.000000e+30 : f32
    %497 = vector.shape_cast %495 : vector<32x1xi1> to vector<32x1xi1>
    %498 = vector.broadcast %497 : vector<32x1xi1> to vector<32x128xi1>
    %499 = vector.shape_cast %496 : vector<1x128xf32> to vector<1x128xf32>
    %500 = vector.broadcast %499 : vector<1x128xf32> to vector<32x128xf32>
    %501 = vector.broadcast %cst_93 : f32 to vector<32x128xf32>
    %502 = arith.select %498, %500, %501 : vector<32x128xi1>, vector<32x128xf32>
    %503 = arith.maximumf %492, %502 : vector<32x128xf32>
    %504 = vector.extract_strided_slice %3 {offsets = [0, 45], sizes = [32, 1], strides = [1, 1]} : vector<32x128xf32> to vector<32x1xf32>
    %cst_94 = arith.constant 0.000000e+00 : f32
    %505 = vector.broadcast %cst_94 : f32 to vector<32x1xf32>
    %506 = arith.cmpf ogt, %504, %505 : vector<32x1xf32>
    %507 = vector.extract_strided_slice %7 {offsets = [45, 0], sizes = [1, 128], strides = [1, 1]} : vector<128x128xf32> to vector<1x128xf32>
    %cst_95 = arith.constant -1.000000e+30 : f32
    %508 = vector.shape_cast %506 : vector<32x1xi1> to vector<32x1xi1>
    %509 = vector.broadcast %508 : vector<32x1xi1> to vector<32x128xi1>
    %510 = vector.shape_cast %507 : vector<1x128xf32> to vector<1x128xf32>
    %511 = vector.broadcast %510 : vector<1x128xf32> to vector<32x128xf32>
    %512 = vector.broadcast %cst_95 : f32 to vector<32x128xf32>
    %513 = arith.select %509, %511, %512 : vector<32x128xi1>, vector<32x128xf32>
    %514 = arith.maximumf %503, %513 : vector<32x128xf32>
    %515 = vector.extract_strided_slice %3 {offsets = [0, 46], sizes = [32, 1], strides = [1, 1]} : vector<32x128xf32> to vector<32x1xf32>
    %cst_96 = arith.constant 0.000000e+00 : f32
    %516 = vector.broadcast %cst_96 : f32 to vector<32x1xf32>
    %517 = arith.cmpf ogt, %515, %516 : vector<32x1xf32>
    %518 = vector.extract_strided_slice %7 {offsets = [46, 0], sizes = [1, 128], strides = [1, 1]} : vector<128x128xf32> to vector<1x128xf32>
    %cst_97 = arith.constant -1.000000e+30 : f32
    %519 = vector.shape_cast %517 : vector<32x1xi1> to vector<32x1xi1>
    %520 = vector.broadcast %519 : vector<32x1xi1> to vector<32x128xi1>
    %521 = vector.shape_cast %518 : vector<1x128xf32> to vector<1x128xf32>
    %522 = vector.broadcast %521 : vector<1x128xf32> to vector<32x128xf32>
    %523 = vector.broadcast %cst_97 : f32 to vector<32x128xf32>
    %524 = arith.select %520, %522, %523 : vector<32x128xi1>, vector<32x128xf32>
    %525 = arith.maximumf %514, %524 : vector<32x128xf32>
    %526 = vector.extract_strided_slice %3 {offsets = [0, 47], sizes = [32, 1], strides = [1, 1]} : vector<32x128xf32> to vector<32x1xf32>
    %cst_98 = arith.constant 0.000000e+00 : f32
    %527 = vector.broadcast %cst_98 : f32 to vector<32x1xf32>
    %528 = arith.cmpf ogt, %526, %527 : vector<32x1xf32>
    %529 = vector.extract_strided_slice %7 {offsets = [47, 0], sizes = [1, 128], strides = [1, 1]} : vector<128x128xf32> to vector<1x128xf32>
    %cst_99 = arith.constant -1.000000e+30 : f32
    %530 = vector.shape_cast %528 : vector<32x1xi1> to vector<32x1xi1>
    %531 = vector.broadcast %530 : vector<32x1xi1> to vector<32x128xi1>
    %532 = vector.shape_cast %529 : vector<1x128xf32> to vector<1x128xf32>
    %533 = vector.broadcast %532 : vector<1x128xf32> to vector<32x128xf32>
    %534 = vector.broadcast %cst_99 : f32 to vector<32x128xf32>
    %535 = arith.select %531, %533, %534 : vector<32x128xi1>, vector<32x128xf32>
    %536 = arith.maximumf %525, %535 : vector<32x128xf32>
    %537 = vector.extract_strided_slice %3 {offsets = [0, 48], sizes = [32, 1], strides = [1, 1]} : vector<32x128xf32> to vector<32x1xf32>
    %cst_100 = arith.constant 0.000000e+00 : f32
    %538 = vector.broadcast %cst_100 : f32 to vector<32x1xf32>
    %539 = arith.cmpf ogt, %537, %538 : vector<32x1xf32>
    %540 = vector.extract_strided_slice %7 {offsets = [48, 0], sizes = [1, 128], strides = [1, 1]} : vector<128x128xf32> to vector<1x128xf32>
    %cst_101 = arith.constant -1.000000e+30 : f32
    %541 = vector.shape_cast %539 : vector<32x1xi1> to vector<32x1xi1>
    %542 = vector.broadcast %541 : vector<32x1xi1> to vector<32x128xi1>
    %543 = vector.shape_cast %540 : vector<1x128xf32> to vector<1x128xf32>
    %544 = vector.broadcast %543 : vector<1x128xf32> to vector<32x128xf32>
    %545 = vector.broadcast %cst_101 : f32 to vector<32x128xf32>
    %546 = arith.select %542, %544, %545 : vector<32x128xi1>, vector<32x128xf32>
    %547 = arith.maximumf %536, %546 : vector<32x128xf32>
    %548 = vector.extract_strided_slice %3 {offsets = [0, 49], sizes = [32, 1], strides = [1, 1]} : vector<32x128xf32> to vector<32x1xf32>
    %cst_102 = arith.constant 0.000000e+00 : f32
    %549 = vector.broadcast %cst_102 : f32 to vector<32x1xf32>
    %550 = arith.cmpf ogt, %548, %549 : vector<32x1xf32>
    %551 = vector.extract_strided_slice %7 {offsets = [49, 0], sizes = [1, 128], strides = [1, 1]} : vector<128x128xf32> to vector<1x128xf32>
    %cst_103 = arith.constant -1.000000e+30 : f32
    %552 = vector.shape_cast %550 : vector<32x1xi1> to vector<32x1xi1>
    %553 = vector.broadcast %552 : vector<32x1xi1> to vector<32x128xi1>
    %554 = vector.shape_cast %551 : vector<1x128xf32> to vector<1x128xf32>
    %555 = vector.broadcast %554 : vector<1x128xf32> to vector<32x128xf32>
    %556 = vector.broadcast %cst_103 : f32 to vector<32x128xf32>
    %557 = arith.select %553, %555, %556 : vector<32x128xi1>, vector<32x128xf32>
    %558 = arith.maximumf %547, %557 : vector<32x128xf32>
    %559 = vector.extract_strided_slice %3 {offsets = [0, 50], sizes = [32, 1], strides = [1, 1]} : vector<32x128xf32> to vector<32x1xf32>
    %cst_104 = arith.constant 0.000000e+00 : f32
    %560 = vector.broadcast %cst_104 : f32 to vector<32x1xf32>
    %561 = arith.cmpf ogt, %559, %560 : vector<32x1xf32>
    %562 = vector.extract_strided_slice %7 {offsets = [50, 0], sizes = [1, 128], strides = [1, 1]} : vector<128x128xf32> to vector<1x128xf32>
    %cst_105 = arith.constant -1.000000e+30 : f32
    %563 = vector.shape_cast %561 : vector<32x1xi1> to vector<32x1xi1>
    %564 = vector.broadcast %563 : vector<32x1xi1> to vector<32x128xi1>
    %565 = vector.shape_cast %562 : vector<1x128xf32> to vector<1x128xf32>
    %566 = vector.broadcast %565 : vector<1x128xf32> to vector<32x128xf32>
    %567 = vector.broadcast %cst_105 : f32 to vector<32x128xf32>
    %568 = arith.select %564, %566, %567 : vector<32x128xi1>, vector<32x128xf32>
    %569 = arith.maximumf %558, %568 : vector<32x128xf32>
    %570 = vector.extract_strided_slice %3 {offsets = [0, 51], sizes = [32, 1], strides = [1, 1]} : vector<32x128xf32> to vector<32x1xf32>
    %cst_106 = arith.constant 0.000000e+00 : f32
    %571 = vector.broadcast %cst_106 : f32 to vector<32x1xf32>
    %572 = arith.cmpf ogt, %570, %571 : vector<32x1xf32>
    %573 = vector.extract_strided_slice %7 {offsets = [51, 0], sizes = [1, 128], strides = [1, 1]} : vector<128x128xf32> to vector<1x128xf32>
    %cst_107 = arith.constant -1.000000e+30 : f32
    %574 = vector.shape_cast %572 : vector<32x1xi1> to vector<32x1xi1>
    %575 = vector.broadcast %574 : vector<32x1xi1> to vector<32x128xi1>
    %576 = vector.shape_cast %573 : vector<1x128xf32> to vector<1x128xf32>
    %577 = vector.broadcast %576 : vector<1x128xf32> to vector<32x128xf32>
    %578 = vector.broadcast %cst_107 : f32 to vector<32x128xf32>
    %579 = arith.select %575, %577, %578 : vector<32x128xi1>, vector<32x128xf32>
    %580 = arith.maximumf %569, %579 : vector<32x128xf32>
    %581 = vector.extract_strided_slice %3 {offsets = [0, 52], sizes = [32, 1], strides = [1, 1]} : vector<32x128xf32> to vector<32x1xf32>
    %cst_108 = arith.constant 0.000000e+00 : f32
    %582 = vector.broadcast %cst_108 : f32 to vector<32x1xf32>
    %583 = arith.cmpf ogt, %581, %582 : vector<32x1xf32>
    %584 = vector.extract_strided_slice %7 {offsets = [52, 0], sizes = [1, 128], strides = [1, 1]} : vector<128x128xf32> to vector<1x128xf32>
    %cst_109 = arith.constant -1.000000e+30 : f32
    %585 = vector.shape_cast %583 : vector<32x1xi1> to vector<32x1xi1>
    %586 = vector.broadcast %585 : vector<32x1xi1> to vector<32x128xi1>
    %587 = vector.shape_cast %584 : vector<1x128xf32> to vector<1x128xf32>
    %588 = vector.broadcast %587 : vector<1x128xf32> to vector<32x128xf32>
    %589 = vector.broadcast %cst_109 : f32 to vector<32x128xf32>
    %590 = arith.select %586, %588, %589 : vector<32x128xi1>, vector<32x128xf32>
    %591 = arith.maximumf %580, %590 : vector<32x128xf32>
    %592 = vector.extract_strided_slice %3 {offsets = [0, 53], sizes = [32, 1], strides = [1, 1]} : vector<32x128xf32> to vector<32x1xf32>
    %cst_110 = arith.constant 0.000000e+00 : f32
    %593 = vector.broadcast %cst_110 : f32 to vector<32x1xf32>
    %594 = arith.cmpf ogt, %592, %593 : vector<32x1xf32>
    %595 = vector.extract_strided_slice %7 {offsets = [53, 0], sizes = [1, 128], strides = [1, 1]} : vector<128x128xf32> to vector<1x128xf32>
    %cst_111 = arith.constant -1.000000e+30 : f32
    %596 = vector.shape_cast %594 : vector<32x1xi1> to vector<32x1xi1>
    %597 = vector.broadcast %596 : vector<32x1xi1> to vector<32x128xi1>
    %598 = vector.shape_cast %595 : vector<1x128xf32> to vector<1x128xf32>
    %599 = vector.broadcast %598 : vector<1x128xf32> to vector<32x128xf32>
    %600 = vector.broadcast %cst_111 : f32 to vector<32x128xf32>
    %601 = arith.select %597, %599, %600 : vector<32x128xi1>, vector<32x128xf32>
    %602 = arith.maximumf %591, %601 : vector<32x128xf32>
    %603 = vector.extract_strided_slice %3 {offsets = [0, 54], sizes = [32, 1], strides = [1, 1]} : vector<32x128xf32> to vector<32x1xf32>
    %cst_112 = arith.constant 0.000000e+00 : f32
    %604 = vector.broadcast %cst_112 : f32 to vector<32x1xf32>
    %605 = arith.cmpf ogt, %603, %604 : vector<32x1xf32>
    %606 = vector.extract_strided_slice %7 {offsets = [54, 0], sizes = [1, 128], strides = [1, 1]} : vector<128x128xf32> to vector<1x128xf32>
    %cst_113 = arith.constant -1.000000e+30 : f32
    %607 = vector.shape_cast %605 : vector<32x1xi1> to vector<32x1xi1>
    %608 = vector.broadcast %607 : vector<32x1xi1> to vector<32x128xi1>
    %609 = vector.shape_cast %606 : vector<1x128xf32> to vector<1x128xf32>
    %610 = vector.broadcast %609 : vector<1x128xf32> to vector<32x128xf32>
    %611 = vector.broadcast %cst_113 : f32 to vector<32x128xf32>
    %612 = arith.select %608, %610, %611 : vector<32x128xi1>, vector<32x128xf32>
    %613 = arith.maximumf %602, %612 : vector<32x128xf32>
    %614 = vector.extract_strided_slice %3 {offsets = [0, 55], sizes = [32, 1], strides = [1, 1]} : vector<32x128xf32> to vector<32x1xf32>
    %cst_114 = arith.constant 0.000000e+00 : f32
    %615 = vector.broadcast %cst_114 : f32 to vector<32x1xf32>
    %616 = arith.cmpf ogt, %614, %615 : vector<32x1xf32>
    %617 = vector.extract_strided_slice %7 {offsets = [55, 0], sizes = [1, 128], strides = [1, 1]} : vector<128x128xf32> to vector<1x128xf32>
    %cst_115 = arith.constant -1.000000e+30 : f32
    %618 = vector.shape_cast %616 : vector<32x1xi1> to vector<32x1xi1>
    %619 = vector.broadcast %618 : vector<32x1xi1> to vector<32x128xi1>
    %620 = vector.shape_cast %617 : vector<1x128xf32> to vector<1x128xf32>
    %621 = vector.broadcast %620 : vector<1x128xf32> to vector<32x128xf32>
    %622 = vector.broadcast %cst_115 : f32 to vector<32x128xf32>
    %623 = arith.select %619, %621, %622 : vector<32x128xi1>, vector<32x128xf32>
    %624 = arith.maximumf %613, %623 : vector<32x128xf32>
    %625 = vector.extract_strided_slice %3 {offsets = [0, 56], sizes = [32, 1], strides = [1, 1]} : vector<32x128xf32> to vector<32x1xf32>
    %cst_116 = arith.constant 0.000000e+00 : f32
    %626 = vector.broadcast %cst_116 : f32 to vector<32x1xf32>
    %627 = arith.cmpf ogt, %625, %626 : vector<32x1xf32>
    %628 = vector.extract_strided_slice %7 {offsets = [56, 0], sizes = [1, 128], strides = [1, 1]} : vector<128x128xf32> to vector<1x128xf32>
    %cst_117 = arith.constant -1.000000e+30 : f32
    %629 = vector.shape_cast %627 : vector<32x1xi1> to vector<32x1xi1>
    %630 = vector.broadcast %629 : vector<32x1xi1> to vector<32x128xi1>
    %631 = vector.shape_cast %628 : vector<1x128xf32> to vector<1x128xf32>
    %632 = vector.broadcast %631 : vector<1x128xf32> to vector<32x128xf32>
    %633 = vector.broadcast %cst_117 : f32 to vector<32x128xf32>
    %634 = arith.select %630, %632, %633 : vector<32x128xi1>, vector<32x128xf32>
    %635 = arith.maximumf %624, %634 : vector<32x128xf32>
    %636 = vector.extract_strided_slice %3 {offsets = [0, 57], sizes = [32, 1], strides = [1, 1]} : vector<32x128xf32> to vector<32x1xf32>
    %cst_118 = arith.constant 0.000000e+00 : f32
    %637 = vector.broadcast %cst_118 : f32 to vector<32x1xf32>
    %638 = arith.cmpf ogt, %636, %637 : vector<32x1xf32>
    %639 = vector.extract_strided_slice %7 {offsets = [57, 0], sizes = [1, 128], strides = [1, 1]} : vector<128x128xf32> to vector<1x128xf32>
    %cst_119 = arith.constant -1.000000e+30 : f32
    %640 = vector.shape_cast %638 : vector<32x1xi1> to vector<32x1xi1>
    %641 = vector.broadcast %640 : vector<32x1xi1> to vector<32x128xi1>
    %642 = vector.shape_cast %639 : vector<1x128xf32> to vector<1x128xf32>
    %643 = vector.broadcast %642 : vector<1x128xf32> to vector<32x128xf32>
    %644 = vector.broadcast %cst_119 : f32 to vector<32x128xf32>
    %645 = arith.select %641, %643, %644 : vector<32x128xi1>, vector<32x128xf32>
    %646 = arith.maximumf %635, %645 : vector<32x128xf32>
    %647 = vector.extract_strided_slice %3 {offsets = [0, 58], sizes = [32, 1], strides = [1, 1]} : vector<32x128xf32> to vector<32x1xf32>
    %cst_120 = arith.constant 0.000000e+00 : f32
    %648 = vector.broadcast %cst_120 : f32 to vector<32x1xf32>
    %649 = arith.cmpf ogt, %647, %648 : vector<32x1xf32>
    %650 = vector.extract_strided_slice %7 {offsets = [58, 0], sizes = [1, 128], strides = [1, 1]} : vector<128x128xf32> to vector<1x128xf32>
    %cst_121 = arith.constant -1.000000e+30 : f32
    %651 = vector.shape_cast %649 : vector<32x1xi1> to vector<32x1xi1>
    %652 = vector.broadcast %651 : vector<32x1xi1> to vector<32x128xi1>
    %653 = vector.shape_cast %650 : vector<1x128xf32> to vector<1x128xf32>
    %654 = vector.broadcast %653 : vector<1x128xf32> to vector<32x128xf32>
    %655 = vector.broadcast %cst_121 : f32 to vector<32x128xf32>
    %656 = arith.select %652, %654, %655 : vector<32x128xi1>, vector<32x128xf32>
    %657 = arith.maximumf %646, %656 : vector<32x128xf32>
    %658 = vector.extract_strided_slice %3 {offsets = [0, 59], sizes = [32, 1], strides = [1, 1]} : vector<32x128xf32> to vector<32x1xf32>
    %cst_122 = arith.constant 0.000000e+00 : f32
    %659 = vector.broadcast %cst_122 : f32 to vector<32x1xf32>
    %660 = arith.cmpf ogt, %658, %659 : vector<32x1xf32>
    %661 = vector.extract_strided_slice %7 {offsets = [59, 0], sizes = [1, 128], strides = [1, 1]} : vector<128x128xf32> to vector<1x128xf32>
    %cst_123 = arith.constant -1.000000e+30 : f32
    %662 = vector.shape_cast %660 : vector<32x1xi1> to vector<32x1xi1>
    %663 = vector.broadcast %662 : vector<32x1xi1> to vector<32x128xi1>
    %664 = vector.shape_cast %661 : vector<1x128xf32> to vector<1x128xf32>
    %665 = vector.broadcast %664 : vector<1x128xf32> to vector<32x128xf32>
    %666 = vector.broadcast %cst_123 : f32 to vector<32x128xf32>
    %667 = arith.select %663, %665, %666 : vector<32x128xi1>, vector<32x128xf32>
    %668 = arith.maximumf %657, %667 : vector<32x128xf32>
    %669 = vector.extract_strided_slice %3 {offsets = [0, 60], sizes = [32, 1], strides = [1, 1]} : vector<32x128xf32> to vector<32x1xf32>
    %cst_124 = arith.constant 0.000000e+00 : f32
    %670 = vector.broadcast %cst_124 : f32 to vector<32x1xf32>
    %671 = arith.cmpf ogt, %669, %670 : vector<32x1xf32>
    %672 = vector.extract_strided_slice %7 {offsets = [60, 0], sizes = [1, 128], strides = [1, 1]} : vector<128x128xf32> to vector<1x128xf32>
    %cst_125 = arith.constant -1.000000e+30 : f32
    %673 = vector.shape_cast %671 : vector<32x1xi1> to vector<32x1xi1>
    %674 = vector.broadcast %673 : vector<32x1xi1> to vector<32x128xi1>
    %675 = vector.shape_cast %672 : vector<1x128xf32> to vector<1x128xf32>
    %676 = vector.broadcast %675 : vector<1x128xf32> to vector<32x128xf32>
    %677 = vector.broadcast %cst_125 : f32 to vector<32x128xf32>
    %678 = arith.select %674, %676, %677 : vector<32x128xi1>, vector<32x128xf32>
    %679 = arith.maximumf %668, %678 : vector<32x128xf32>
    %680 = vector.extract_strided_slice %3 {offsets = [0, 61], sizes = [32, 1], strides = [1, 1]} : vector<32x128xf32> to vector<32x1xf32>
    %cst_126 = arith.constant 0.000000e+00 : f32
    %681 = vector.broadcast %cst_126 : f32 to vector<32x1xf32>
    %682 = arith.cmpf ogt, %680, %681 : vector<32x1xf32>
    %683 = vector.extract_strided_slice %7 {offsets = [61, 0], sizes = [1, 128], strides = [1, 1]} : vector<128x128xf32> to vector<1x128xf32>
    %cst_127 = arith.constant -1.000000e+30 : f32
    %684 = vector.shape_cast %682 : vector<32x1xi1> to vector<32x1xi1>
    %685 = vector.broadcast %684 : vector<32x1xi1> to vector<32x128xi1>
    %686 = vector.shape_cast %683 : vector<1x128xf32> to vector<1x128xf32>
    %687 = vector.broadcast %686 : vector<1x128xf32> to vector<32x128xf32>
    %688 = vector.broadcast %cst_127 : f32 to vector<32x128xf32>
    %689 = arith.select %685, %687, %688 : vector<32x128xi1>, vector<32x128xf32>
    %690 = arith.maximumf %679, %689 : vector<32x128xf32>
    %691 = vector.extract_strided_slice %3 {offsets = [0, 62], sizes = [32, 1], strides = [1, 1]} : vector<32x128xf32> to vector<32x1xf32>
    %cst_128 = arith.constant 0.000000e+00 : f32
    %692 = vector.broadcast %cst_128 : f32 to vector<32x1xf32>
    %693 = arith.cmpf ogt, %691, %692 : vector<32x1xf32>
    %694 = vector.extract_strided_slice %7 {offsets = [62, 0], sizes = [1, 128], strides = [1, 1]} : vector<128x128xf32> to vector<1x128xf32>
    %cst_129 = arith.constant -1.000000e+30 : f32
    %695 = vector.shape_cast %693 : vector<32x1xi1> to vector<32x1xi1>
    %696 = vector.broadcast %695 : vector<32x1xi1> to vector<32x128xi1>
    %697 = vector.shape_cast %694 : vector<1x128xf32> to vector<1x128xf32>
    %698 = vector.broadcast %697 : vector<1x128xf32> to vector<32x128xf32>
    %699 = vector.broadcast %cst_129 : f32 to vector<32x128xf32>
    %700 = arith.select %696, %698, %699 : vector<32x128xi1>, vector<32x128xf32>
    %701 = arith.maximumf %690, %700 : vector<32x128xf32>
    %702 = vector.extract_strided_slice %3 {offsets = [0, 63], sizes = [32, 1], strides = [1, 1]} : vector<32x128xf32> to vector<32x1xf32>
    %cst_130 = arith.constant 0.000000e+00 : f32
    %703 = vector.broadcast %cst_130 : f32 to vector<32x1xf32>
    %704 = arith.cmpf ogt, %702, %703 : vector<32x1xf32>
    %705 = vector.extract_strided_slice %7 {offsets = [63, 0], sizes = [1, 128], strides = [1, 1]} : vector<128x128xf32> to vector<1x128xf32>
    %cst_131 = arith.constant -1.000000e+30 : f32
    %706 = vector.shape_cast %704 : vector<32x1xi1> to vector<32x1xi1>
    %707 = vector.broadcast %706 : vector<32x1xi1> to vector<32x128xi1>
    %708 = vector.shape_cast %705 : vector<1x128xf32> to vector<1x128xf32>
    %709 = vector.broadcast %708 : vector<1x128xf32> to vector<32x128xf32>
    %710 = vector.broadcast %cst_131 : f32 to vector<32x128xf32>
    %711 = arith.select %707, %709, %710 : vector<32x128xi1>, vector<32x128xf32>
    %712 = arith.maximumf %701, %711 : vector<32x128xf32>
    %713 = vector.extract_strided_slice %3 {offsets = [0, 64], sizes = [32, 1], strides = [1, 1]} : vector<32x128xf32> to vector<32x1xf32>
    %cst_132 = arith.constant 0.000000e+00 : f32
    %714 = vector.broadcast %cst_132 : f32 to vector<32x1xf32>
    %715 = arith.cmpf ogt, %713, %714 : vector<32x1xf32>
    %716 = vector.extract_strided_slice %7 {offsets = [64, 0], sizes = [1, 128], strides = [1, 1]} : vector<128x128xf32> to vector<1x128xf32>
    %cst_133 = arith.constant -1.000000e+30 : f32
    %717 = vector.shape_cast %715 : vector<32x1xi1> to vector<32x1xi1>
    %718 = vector.broadcast %717 : vector<32x1xi1> to vector<32x128xi1>
    %719 = vector.shape_cast %716 : vector<1x128xf32> to vector<1x128xf32>
    %720 = vector.broadcast %719 : vector<1x128xf32> to vector<32x128xf32>
    %721 = vector.broadcast %cst_133 : f32 to vector<32x128xf32>
    %722 = arith.select %718, %720, %721 : vector<32x128xi1>, vector<32x128xf32>
    %723 = arith.maximumf %712, %722 : vector<32x128xf32>
    %724 = vector.extract_strided_slice %3 {offsets = [0, 65], sizes = [32, 1], strides = [1, 1]} : vector<32x128xf32> to vector<32x1xf32>
    %cst_134 = arith.constant 0.000000e+00 : f32
    %725 = vector.broadcast %cst_134 : f32 to vector<32x1xf32>
    %726 = arith.cmpf ogt, %724, %725 : vector<32x1xf32>
    %727 = vector.extract_strided_slice %7 {offsets = [65, 0], sizes = [1, 128], strides = [1, 1]} : vector<128x128xf32> to vector<1x128xf32>
    %cst_135 = arith.constant -1.000000e+30 : f32
    %728 = vector.shape_cast %726 : vector<32x1xi1> to vector<32x1xi1>
    %729 = vector.broadcast %728 : vector<32x1xi1> to vector<32x128xi1>
    %730 = vector.shape_cast %727 : vector<1x128xf32> to vector<1x128xf32>
    %731 = vector.broadcast %730 : vector<1x128xf32> to vector<32x128xf32>
    %732 = vector.broadcast %cst_135 : f32 to vector<32x128xf32>
    %733 = arith.select %729, %731, %732 : vector<32x128xi1>, vector<32x128xf32>
    %734 = arith.maximumf %723, %733 : vector<32x128xf32>
    %735 = vector.extract_strided_slice %3 {offsets = [0, 66], sizes = [32, 1], strides = [1, 1]} : vector<32x128xf32> to vector<32x1xf32>
    %cst_136 = arith.constant 0.000000e+00 : f32
    %736 = vector.broadcast %cst_136 : f32 to vector<32x1xf32>
    %737 = arith.cmpf ogt, %735, %736 : vector<32x1xf32>
    %738 = vector.extract_strided_slice %7 {offsets = [66, 0], sizes = [1, 128], strides = [1, 1]} : vector<128x128xf32> to vector<1x128xf32>
    %cst_137 = arith.constant -1.000000e+30 : f32
    %739 = vector.shape_cast %737 : vector<32x1xi1> to vector<32x1xi1>
    %740 = vector.broadcast %739 : vector<32x1xi1> to vector<32x128xi1>
    %741 = vector.shape_cast %738 : vector<1x128xf32> to vector<1x128xf32>
    %742 = vector.broadcast %741 : vector<1x128xf32> to vector<32x128xf32>
    %743 = vector.broadcast %cst_137 : f32 to vector<32x128xf32>
    %744 = arith.select %740, %742, %743 : vector<32x128xi1>, vector<32x128xf32>
    %745 = arith.maximumf %734, %744 : vector<32x128xf32>
    %746 = vector.extract_strided_slice %3 {offsets = [0, 67], sizes = [32, 1], strides = [1, 1]} : vector<32x128xf32> to vector<32x1xf32>
    %cst_138 = arith.constant 0.000000e+00 : f32
    %747 = vector.broadcast %cst_138 : f32 to vector<32x1xf32>
    %748 = arith.cmpf ogt, %746, %747 : vector<32x1xf32>
    %749 = vector.extract_strided_slice %7 {offsets = [67, 0], sizes = [1, 128], strides = [1, 1]} : vector<128x128xf32> to vector<1x128xf32>
    %cst_139 = arith.constant -1.000000e+30 : f32
    %750 = vector.shape_cast %748 : vector<32x1xi1> to vector<32x1xi1>
    %751 = vector.broadcast %750 : vector<32x1xi1> to vector<32x128xi1>
    %752 = vector.shape_cast %749 : vector<1x128xf32> to vector<1x128xf32>
    %753 = vector.broadcast %752 : vector<1x128xf32> to vector<32x128xf32>
    %754 = vector.broadcast %cst_139 : f32 to vector<32x128xf32>
    %755 = arith.select %751, %753, %754 : vector<32x128xi1>, vector<32x128xf32>
    %756 = arith.maximumf %745, %755 : vector<32x128xf32>
    %757 = vector.extract_strided_slice %3 {offsets = [0, 68], sizes = [32, 1], strides = [1, 1]} : vector<32x128xf32> to vector<32x1xf32>
    %cst_140 = arith.constant 0.000000e+00 : f32
    %758 = vector.broadcast %cst_140 : f32 to vector<32x1xf32>
    %759 = arith.cmpf ogt, %757, %758 : vector<32x1xf32>
    %760 = vector.extract_strided_slice %7 {offsets = [68, 0], sizes = [1, 128], strides = [1, 1]} : vector<128x128xf32> to vector<1x128xf32>
    %cst_141 = arith.constant -1.000000e+30 : f32
    %761 = vector.shape_cast %759 : vector<32x1xi1> to vector<32x1xi1>
    %762 = vector.broadcast %761 : vector<32x1xi1> to vector<32x128xi1>
    %763 = vector.shape_cast %760 : vector<1x128xf32> to vector<1x128xf32>
    %764 = vector.broadcast %763 : vector<1x128xf32> to vector<32x128xf32>
    %765 = vector.broadcast %cst_141 : f32 to vector<32x128xf32>
    %766 = arith.select %762, %764, %765 : vector<32x128xi1>, vector<32x128xf32>
    %767 = arith.maximumf %756, %766 : vector<32x128xf32>
    %768 = vector.extract_strided_slice %3 {offsets = [0, 69], sizes = [32, 1], strides = [1, 1]} : vector<32x128xf32> to vector<32x1xf32>
    %cst_142 = arith.constant 0.000000e+00 : f32
    %769 = vector.broadcast %cst_142 : f32 to vector<32x1xf32>
    %770 = arith.cmpf ogt, %768, %769 : vector<32x1xf32>
    %771 = vector.extract_strided_slice %7 {offsets = [69, 0], sizes = [1, 128], strides = [1, 1]} : vector<128x128xf32> to vector<1x128xf32>
    %cst_143 = arith.constant -1.000000e+30 : f32
    %772 = vector.shape_cast %770 : vector<32x1xi1> to vector<32x1xi1>
    %773 = vector.broadcast %772 : vector<32x1xi1> to vector<32x128xi1>
    %774 = vector.shape_cast %771 : vector<1x128xf32> to vector<1x128xf32>
    %775 = vector.broadcast %774 : vector<1x128xf32> to vector<32x128xf32>
    %776 = vector.broadcast %cst_143 : f32 to vector<32x128xf32>
    %777 = arith.select %773, %775, %776 : vector<32x128xi1>, vector<32x128xf32>
    %778 = arith.maximumf %767, %777 : vector<32x128xf32>
    %779 = vector.extract_strided_slice %3 {offsets = [0, 70], sizes = [32, 1], strides = [1, 1]} : vector<32x128xf32> to vector<32x1xf32>
    %cst_144 = arith.constant 0.000000e+00 : f32
    %780 = vector.broadcast %cst_144 : f32 to vector<32x1xf32>
    %781 = arith.cmpf ogt, %779, %780 : vector<32x1xf32>
    %782 = vector.extract_strided_slice %7 {offsets = [70, 0], sizes = [1, 128], strides = [1, 1]} : vector<128x128xf32> to vector<1x128xf32>
    %cst_145 = arith.constant -1.000000e+30 : f32
    %783 = vector.shape_cast %781 : vector<32x1xi1> to vector<32x1xi1>
    %784 = vector.broadcast %783 : vector<32x1xi1> to vector<32x128xi1>
    %785 = vector.shape_cast %782 : vector<1x128xf32> to vector<1x128xf32>
    %786 = vector.broadcast %785 : vector<1x128xf32> to vector<32x128xf32>
    %787 = vector.broadcast %cst_145 : f32 to vector<32x128xf32>
    %788 = arith.select %784, %786, %787 : vector<32x128xi1>, vector<32x128xf32>
    %789 = arith.maximumf %778, %788 : vector<32x128xf32>
    %790 = vector.extract_strided_slice %3 {offsets = [0, 71], sizes = [32, 1], strides = [1, 1]} : vector<32x128xf32> to vector<32x1xf32>
    %cst_146 = arith.constant 0.000000e+00 : f32
    %791 = vector.broadcast %cst_146 : f32 to vector<32x1xf32>
    %792 = arith.cmpf ogt, %790, %791 : vector<32x1xf32>
    %793 = vector.extract_strided_slice %7 {offsets = [71, 0], sizes = [1, 128], strides = [1, 1]} : vector<128x128xf32> to vector<1x128xf32>
    %cst_147 = arith.constant -1.000000e+30 : f32
    %794 = vector.shape_cast %792 : vector<32x1xi1> to vector<32x1xi1>
    %795 = vector.broadcast %794 : vector<32x1xi1> to vector<32x128xi1>
    %796 = vector.shape_cast %793 : vector<1x128xf32> to vector<1x128xf32>
    %797 = vector.broadcast %796 : vector<1x128xf32> to vector<32x128xf32>
    %798 = vector.broadcast %cst_147 : f32 to vector<32x128xf32>
    %799 = arith.select %795, %797, %798 : vector<32x128xi1>, vector<32x128xf32>
    %800 = arith.maximumf %789, %799 : vector<32x128xf32>
    %801 = vector.extract_strided_slice %3 {offsets = [0, 72], sizes = [32, 1], strides = [1, 1]} : vector<32x128xf32> to vector<32x1xf32>
    %cst_148 = arith.constant 0.000000e+00 : f32
    %802 = vector.broadcast %cst_148 : f32 to vector<32x1xf32>
    %803 = arith.cmpf ogt, %801, %802 : vector<32x1xf32>
    %804 = vector.extract_strided_slice %7 {offsets = [72, 0], sizes = [1, 128], strides = [1, 1]} : vector<128x128xf32> to vector<1x128xf32>
    %cst_149 = arith.constant -1.000000e+30 : f32
    %805 = vector.shape_cast %803 : vector<32x1xi1> to vector<32x1xi1>
    %806 = vector.broadcast %805 : vector<32x1xi1> to vector<32x128xi1>
    %807 = vector.shape_cast %804 : vector<1x128xf32> to vector<1x128xf32>
    %808 = vector.broadcast %807 : vector<1x128xf32> to vector<32x128xf32>
    %809 = vector.broadcast %cst_149 : f32 to vector<32x128xf32>
    %810 = arith.select %806, %808, %809 : vector<32x128xi1>, vector<32x128xf32>
    %811 = arith.maximumf %800, %810 : vector<32x128xf32>
    %812 = vector.extract_strided_slice %3 {offsets = [0, 73], sizes = [32, 1], strides = [1, 1]} : vector<32x128xf32> to vector<32x1xf32>
    %cst_150 = arith.constant 0.000000e+00 : f32
    %813 = vector.broadcast %cst_150 : f32 to vector<32x1xf32>
    %814 = arith.cmpf ogt, %812, %813 : vector<32x1xf32>
    %815 = vector.extract_strided_slice %7 {offsets = [73, 0], sizes = [1, 128], strides = [1, 1]} : vector<128x128xf32> to vector<1x128xf32>
    %cst_151 = arith.constant -1.000000e+30 : f32
    %816 = vector.shape_cast %814 : vector<32x1xi1> to vector<32x1xi1>
    %817 = vector.broadcast %816 : vector<32x1xi1> to vector<32x128xi1>
    %818 = vector.shape_cast %815 : vector<1x128xf32> to vector<1x128xf32>
    %819 = vector.broadcast %818 : vector<1x128xf32> to vector<32x128xf32>
    %820 = vector.broadcast %cst_151 : f32 to vector<32x128xf32>
    %821 = arith.select %817, %819, %820 : vector<32x128xi1>, vector<32x128xf32>
    %822 = arith.maximumf %811, %821 : vector<32x128xf32>
    %823 = vector.extract_strided_slice %3 {offsets = [0, 74], sizes = [32, 1], strides = [1, 1]} : vector<32x128xf32> to vector<32x1xf32>
    %cst_152 = arith.constant 0.000000e+00 : f32
    %824 = vector.broadcast %cst_152 : f32 to vector<32x1xf32>
    %825 = arith.cmpf ogt, %823, %824 : vector<32x1xf32>
    %826 = vector.extract_strided_slice %7 {offsets = [74, 0], sizes = [1, 128], strides = [1, 1]} : vector<128x128xf32> to vector<1x128xf32>
    %cst_153 = arith.constant -1.000000e+30 : f32
    %827 = vector.shape_cast %825 : vector<32x1xi1> to vector<32x1xi1>
    %828 = vector.broadcast %827 : vector<32x1xi1> to vector<32x128xi1>
    %829 = vector.shape_cast %826 : vector<1x128xf32> to vector<1x128xf32>
    %830 = vector.broadcast %829 : vector<1x128xf32> to vector<32x128xf32>
    %831 = vector.broadcast %cst_153 : f32 to vector<32x128xf32>
    %832 = arith.select %828, %830, %831 : vector<32x128xi1>, vector<32x128xf32>
    %833 = arith.maximumf %822, %832 : vector<32x128xf32>
    %834 = vector.extract_strided_slice %3 {offsets = [0, 75], sizes = [32, 1], strides = [1, 1]} : vector<32x128xf32> to vector<32x1xf32>
    %cst_154 = arith.constant 0.000000e+00 : f32
    %835 = vector.broadcast %cst_154 : f32 to vector<32x1xf32>
    %836 = arith.cmpf ogt, %834, %835 : vector<32x1xf32>
    %837 = vector.extract_strided_slice %7 {offsets = [75, 0], sizes = [1, 128], strides = [1, 1]} : vector<128x128xf32> to vector<1x128xf32>
    %cst_155 = arith.constant -1.000000e+30 : f32
    %838 = vector.shape_cast %836 : vector<32x1xi1> to vector<32x1xi1>
    %839 = vector.broadcast %838 : vector<32x1xi1> to vector<32x128xi1>
    %840 = vector.shape_cast %837 : vector<1x128xf32> to vector<1x128xf32>
    %841 = vector.broadcast %840 : vector<1x128xf32> to vector<32x128xf32>
    %842 = vector.broadcast %cst_155 : f32 to vector<32x128xf32>
    %843 = arith.select %839, %841, %842 : vector<32x128xi1>, vector<32x128xf32>
    %844 = arith.maximumf %833, %843 : vector<32x128xf32>
    %845 = vector.extract_strided_slice %3 {offsets = [0, 76], sizes = [32, 1], strides = [1, 1]} : vector<32x128xf32> to vector<32x1xf32>
    %cst_156 = arith.constant 0.000000e+00 : f32
    %846 = vector.broadcast %cst_156 : f32 to vector<32x1xf32>
    %847 = arith.cmpf ogt, %845, %846 : vector<32x1xf32>
    %848 = vector.extract_strided_slice %7 {offsets = [76, 0], sizes = [1, 128], strides = [1, 1]} : vector<128x128xf32> to vector<1x128xf32>
    %cst_157 = arith.constant -1.000000e+30 : f32
    %849 = vector.shape_cast %847 : vector<32x1xi1> to vector<32x1xi1>
    %850 = vector.broadcast %849 : vector<32x1xi1> to vector<32x128xi1>
    %851 = vector.shape_cast %848 : vector<1x128xf32> to vector<1x128xf32>
    %852 = vector.broadcast %851 : vector<1x128xf32> to vector<32x128xf32>
    %853 = vector.broadcast %cst_157 : f32 to vector<32x128xf32>
    %854 = arith.select %850, %852, %853 : vector<32x128xi1>, vector<32x128xf32>
    %855 = arith.maximumf %844, %854 : vector<32x128xf32>
    %856 = vector.extract_strided_slice %3 {offsets = [0, 77], sizes = [32, 1], strides = [1, 1]} : vector<32x128xf32> to vector<32x1xf32>
    %cst_158 = arith.constant 0.000000e+00 : f32
    %857 = vector.broadcast %cst_158 : f32 to vector<32x1xf32>
    %858 = arith.cmpf ogt, %856, %857 : vector<32x1xf32>
    %859 = vector.extract_strided_slice %7 {offsets = [77, 0], sizes = [1, 128], strides = [1, 1]} : vector<128x128xf32> to vector<1x128xf32>
    %cst_159 = arith.constant -1.000000e+30 : f32
    %860 = vector.shape_cast %858 : vector<32x1xi1> to vector<32x1xi1>
    %861 = vector.broadcast %860 : vector<32x1xi1> to vector<32x128xi1>
    %862 = vector.shape_cast %859 : vector<1x128xf32> to vector<1x128xf32>
    %863 = vector.broadcast %862 : vector<1x128xf32> to vector<32x128xf32>
    %864 = vector.broadcast %cst_159 : f32 to vector<32x128xf32>
    %865 = arith.select %861, %863, %864 : vector<32x128xi1>, vector<32x128xf32>
    %866 = arith.maximumf %855, %865 : vector<32x128xf32>
    %867 = vector.extract_strided_slice %3 {offsets = [0, 78], sizes = [32, 1], strides = [1, 1]} : vector<32x128xf32> to vector<32x1xf32>
    %cst_160 = arith.constant 0.000000e+00 : f32
    %868 = vector.broadcast %cst_160 : f32 to vector<32x1xf32>
    %869 = arith.cmpf ogt, %867, %868 : vector<32x1xf32>
    %870 = vector.extract_strided_slice %7 {offsets = [78, 0], sizes = [1, 128], strides = [1, 1]} : vector<128x128xf32> to vector<1x128xf32>
    %cst_161 = arith.constant -1.000000e+30 : f32
    %871 = vector.shape_cast %869 : vector<32x1xi1> to vector<32x1xi1>
    %872 = vector.broadcast %871 : vector<32x1xi1> to vector<32x128xi1>
    %873 = vector.shape_cast %870 : vector<1x128xf32> to vector<1x128xf32>
    %874 = vector.broadcast %873 : vector<1x128xf32> to vector<32x128xf32>
    %875 = vector.broadcast %cst_161 : f32 to vector<32x128xf32>
    %876 = arith.select %872, %874, %875 : vector<32x128xi1>, vector<32x128xf32>
    %877 = arith.maximumf %866, %876 : vector<32x128xf32>
    %878 = vector.extract_strided_slice %3 {offsets = [0, 79], sizes = [32, 1], strides = [1, 1]} : vector<32x128xf32> to vector<32x1xf32>
    %cst_162 = arith.constant 0.000000e+00 : f32
    %879 = vector.broadcast %cst_162 : f32 to vector<32x1xf32>
    %880 = arith.cmpf ogt, %878, %879 : vector<32x1xf32>
    %881 = vector.extract_strided_slice %7 {offsets = [79, 0], sizes = [1, 128], strides = [1, 1]} : vector<128x128xf32> to vector<1x128xf32>
    %cst_163 = arith.constant -1.000000e+30 : f32
    %882 = vector.shape_cast %880 : vector<32x1xi1> to vector<32x1xi1>
    %883 = vector.broadcast %882 : vector<32x1xi1> to vector<32x128xi1>
    %884 = vector.shape_cast %881 : vector<1x128xf32> to vector<1x128xf32>
    %885 = vector.broadcast %884 : vector<1x128xf32> to vector<32x128xf32>
    %886 = vector.broadcast %cst_163 : f32 to vector<32x128xf32>
    %887 = arith.select %883, %885, %886 : vector<32x128xi1>, vector<32x128xf32>
    %888 = arith.maximumf %877, %887 : vector<32x128xf32>
    %889 = vector.extract_strided_slice %3 {offsets = [0, 80], sizes = [32, 1], strides = [1, 1]} : vector<32x128xf32> to vector<32x1xf32>
    %cst_164 = arith.constant 0.000000e+00 : f32
    %890 = vector.broadcast %cst_164 : f32 to vector<32x1xf32>
    %891 = arith.cmpf ogt, %889, %890 : vector<32x1xf32>
    %892 = vector.extract_strided_slice %7 {offsets = [80, 0], sizes = [1, 128], strides = [1, 1]} : vector<128x128xf32> to vector<1x128xf32>
    %cst_165 = arith.constant -1.000000e+30 : f32
    %893 = vector.shape_cast %891 : vector<32x1xi1> to vector<32x1xi1>
    %894 = vector.broadcast %893 : vector<32x1xi1> to vector<32x128xi1>
    %895 = vector.shape_cast %892 : vector<1x128xf32> to vector<1x128xf32>
    %896 = vector.broadcast %895 : vector<1x128xf32> to vector<32x128xf32>
    %897 = vector.broadcast %cst_165 : f32 to vector<32x128xf32>
    %898 = arith.select %894, %896, %897 : vector<32x128xi1>, vector<32x128xf32>
    %899 = arith.maximumf %888, %898 : vector<32x128xf32>
    %900 = vector.extract_strided_slice %3 {offsets = [0, 81], sizes = [32, 1], strides = [1, 1]} : vector<32x128xf32> to vector<32x1xf32>
    %cst_166 = arith.constant 0.000000e+00 : f32
    %901 = vector.broadcast %cst_166 : f32 to vector<32x1xf32>
    %902 = arith.cmpf ogt, %900, %901 : vector<32x1xf32>
    %903 = vector.extract_strided_slice %7 {offsets = [81, 0], sizes = [1, 128], strides = [1, 1]} : vector<128x128xf32> to vector<1x128xf32>
    %cst_167 = arith.constant -1.000000e+30 : f32
    %904 = vector.shape_cast %902 : vector<32x1xi1> to vector<32x1xi1>
    %905 = vector.broadcast %904 : vector<32x1xi1> to vector<32x128xi1>
    %906 = vector.shape_cast %903 : vector<1x128xf32> to vector<1x128xf32>
    %907 = vector.broadcast %906 : vector<1x128xf32> to vector<32x128xf32>
    %908 = vector.broadcast %cst_167 : f32 to vector<32x128xf32>
    %909 = arith.select %905, %907, %908 : vector<32x128xi1>, vector<32x128xf32>
    %910 = arith.maximumf %899, %909 : vector<32x128xf32>
    %911 = vector.extract_strided_slice %3 {offsets = [0, 82], sizes = [32, 1], strides = [1, 1]} : vector<32x128xf32> to vector<32x1xf32>
    %cst_168 = arith.constant 0.000000e+00 : f32
    %912 = vector.broadcast %cst_168 : f32 to vector<32x1xf32>
    %913 = arith.cmpf ogt, %911, %912 : vector<32x1xf32>
    %914 = vector.extract_strided_slice %7 {offsets = [82, 0], sizes = [1, 128], strides = [1, 1]} : vector<128x128xf32> to vector<1x128xf32>
    %cst_169 = arith.constant -1.000000e+30 : f32
    %915 = vector.shape_cast %913 : vector<32x1xi1> to vector<32x1xi1>
    %916 = vector.broadcast %915 : vector<32x1xi1> to vector<32x128xi1>
    %917 = vector.shape_cast %914 : vector<1x128xf32> to vector<1x128xf32>
    %918 = vector.broadcast %917 : vector<1x128xf32> to vector<32x128xf32>
    %919 = vector.broadcast %cst_169 : f32 to vector<32x128xf32>
    %920 = arith.select %916, %918, %919 : vector<32x128xi1>, vector<32x128xf32>
    %921 = arith.maximumf %910, %920 : vector<32x128xf32>
    %922 = vector.extract_strided_slice %3 {offsets = [0, 83], sizes = [32, 1], strides = [1, 1]} : vector<32x128xf32> to vector<32x1xf32>
    %cst_170 = arith.constant 0.000000e+00 : f32
    %923 = vector.broadcast %cst_170 : f32 to vector<32x1xf32>
    %924 = arith.cmpf ogt, %922, %923 : vector<32x1xf32>
    %925 = vector.extract_strided_slice %7 {offsets = [83, 0], sizes = [1, 128], strides = [1, 1]} : vector<128x128xf32> to vector<1x128xf32>
    %cst_171 = arith.constant -1.000000e+30 : f32
    %926 = vector.shape_cast %924 : vector<32x1xi1> to vector<32x1xi1>
    %927 = vector.broadcast %926 : vector<32x1xi1> to vector<32x128xi1>
    %928 = vector.shape_cast %925 : vector<1x128xf32> to vector<1x128xf32>
    %929 = vector.broadcast %928 : vector<1x128xf32> to vector<32x128xf32>
    %930 = vector.broadcast %cst_171 : f32 to vector<32x128xf32>
    %931 = arith.select %927, %929, %930 : vector<32x128xi1>, vector<32x128xf32>
    %932 = arith.maximumf %921, %931 : vector<32x128xf32>
    %933 = vector.extract_strided_slice %3 {offsets = [0, 84], sizes = [32, 1], strides = [1, 1]} : vector<32x128xf32> to vector<32x1xf32>
    %cst_172 = arith.constant 0.000000e+00 : f32
    %934 = vector.broadcast %cst_172 : f32 to vector<32x1xf32>
    %935 = arith.cmpf ogt, %933, %934 : vector<32x1xf32>
    %936 = vector.extract_strided_slice %7 {offsets = [84, 0], sizes = [1, 128], strides = [1, 1]} : vector<128x128xf32> to vector<1x128xf32>
    %cst_173 = arith.constant -1.000000e+30 : f32
    %937 = vector.shape_cast %935 : vector<32x1xi1> to vector<32x1xi1>
    %938 = vector.broadcast %937 : vector<32x1xi1> to vector<32x128xi1>
    %939 = vector.shape_cast %936 : vector<1x128xf32> to vector<1x128xf32>
    %940 = vector.broadcast %939 : vector<1x128xf32> to vector<32x128xf32>
    %941 = vector.broadcast %cst_173 : f32 to vector<32x128xf32>
    %942 = arith.select %938, %940, %941 : vector<32x128xi1>, vector<32x128xf32>
    %943 = arith.maximumf %932, %942 : vector<32x128xf32>
    %944 = vector.extract_strided_slice %3 {offsets = [0, 85], sizes = [32, 1], strides = [1, 1]} : vector<32x128xf32> to vector<32x1xf32>
    %cst_174 = arith.constant 0.000000e+00 : f32
    %945 = vector.broadcast %cst_174 : f32 to vector<32x1xf32>
    %946 = arith.cmpf ogt, %944, %945 : vector<32x1xf32>
    %947 = vector.extract_strided_slice %7 {offsets = [85, 0], sizes = [1, 128], strides = [1, 1]} : vector<128x128xf32> to vector<1x128xf32>
    %cst_175 = arith.constant -1.000000e+30 : f32
    %948 = vector.shape_cast %946 : vector<32x1xi1> to vector<32x1xi1>
    %949 = vector.broadcast %948 : vector<32x1xi1> to vector<32x128xi1>
    %950 = vector.shape_cast %947 : vector<1x128xf32> to vector<1x128xf32>
    %951 = vector.broadcast %950 : vector<1x128xf32> to vector<32x128xf32>
    %952 = vector.broadcast %cst_175 : f32 to vector<32x128xf32>
    %953 = arith.select %949, %951, %952 : vector<32x128xi1>, vector<32x128xf32>
    %954 = arith.maximumf %943, %953 : vector<32x128xf32>
    %955 = vector.extract_strided_slice %3 {offsets = [0, 86], sizes = [32, 1], strides = [1, 1]} : vector<32x128xf32> to vector<32x1xf32>
    %cst_176 = arith.constant 0.000000e+00 : f32
    %956 = vector.broadcast %cst_176 : f32 to vector<32x1xf32>
    %957 = arith.cmpf ogt, %955, %956 : vector<32x1xf32>
    %958 = vector.extract_strided_slice %7 {offsets = [86, 0], sizes = [1, 128], strides = [1, 1]} : vector<128x128xf32> to vector<1x128xf32>
    %cst_177 = arith.constant -1.000000e+30 : f32
    %959 = vector.shape_cast %957 : vector<32x1xi1> to vector<32x1xi1>
    %960 = vector.broadcast %959 : vector<32x1xi1> to vector<32x128xi1>
    %961 = vector.shape_cast %958 : vector<1x128xf32> to vector<1x128xf32>
    %962 = vector.broadcast %961 : vector<1x128xf32> to vector<32x128xf32>
    %963 = vector.broadcast %cst_177 : f32 to vector<32x128xf32>
    %964 = arith.select %960, %962, %963 : vector<32x128xi1>, vector<32x128xf32>
    %965 = arith.maximumf %954, %964 : vector<32x128xf32>
    %966 = vector.extract_strided_slice %3 {offsets = [0, 87], sizes = [32, 1], strides = [1, 1]} : vector<32x128xf32> to vector<32x1xf32>
    %cst_178 = arith.constant 0.000000e+00 : f32
    %967 = vector.broadcast %cst_178 : f32 to vector<32x1xf32>
    %968 = arith.cmpf ogt, %966, %967 : vector<32x1xf32>
    %969 = vector.extract_strided_slice %7 {offsets = [87, 0], sizes = [1, 128], strides = [1, 1]} : vector<128x128xf32> to vector<1x128xf32>
    %cst_179 = arith.constant -1.000000e+30 : f32
    %970 = vector.shape_cast %968 : vector<32x1xi1> to vector<32x1xi1>
    %971 = vector.broadcast %970 : vector<32x1xi1> to vector<32x128xi1>
    %972 = vector.shape_cast %969 : vector<1x128xf32> to vector<1x128xf32>
    %973 = vector.broadcast %972 : vector<1x128xf32> to vector<32x128xf32>
    %974 = vector.broadcast %cst_179 : f32 to vector<32x128xf32>
    %975 = arith.select %971, %973, %974 : vector<32x128xi1>, vector<32x128xf32>
    %976 = arith.maximumf %965, %975 : vector<32x128xf32>
    %977 = vector.extract_strided_slice %3 {offsets = [0, 88], sizes = [32, 1], strides = [1, 1]} : vector<32x128xf32> to vector<32x1xf32>
    %cst_180 = arith.constant 0.000000e+00 : f32
    %978 = vector.broadcast %cst_180 : f32 to vector<32x1xf32>
    %979 = arith.cmpf ogt, %977, %978 : vector<32x1xf32>
    %980 = vector.extract_strided_slice %7 {offsets = [88, 0], sizes = [1, 128], strides = [1, 1]} : vector<128x128xf32> to vector<1x128xf32>
    %cst_181 = arith.constant -1.000000e+30 : f32
    %981 = vector.shape_cast %979 : vector<32x1xi1> to vector<32x1xi1>
    %982 = vector.broadcast %981 : vector<32x1xi1> to vector<32x128xi1>
    %983 = vector.shape_cast %980 : vector<1x128xf32> to vector<1x128xf32>
    %984 = vector.broadcast %983 : vector<1x128xf32> to vector<32x128xf32>
    %985 = vector.broadcast %cst_181 : f32 to vector<32x128xf32>
    %986 = arith.select %982, %984, %985 : vector<32x128xi1>, vector<32x128xf32>
    %987 = arith.maximumf %976, %986 : vector<32x128xf32>
    %988 = vector.extract_strided_slice %3 {offsets = [0, 89], sizes = [32, 1], strides = [1, 1]} : vector<32x128xf32> to vector<32x1xf32>
    %cst_182 = arith.constant 0.000000e+00 : f32
    %989 = vector.broadcast %cst_182 : f32 to vector<32x1xf32>
    %990 = arith.cmpf ogt, %988, %989 : vector<32x1xf32>
    %991 = vector.extract_strided_slice %7 {offsets = [89, 0], sizes = [1, 128], strides = [1, 1]} : vector<128x128xf32> to vector<1x128xf32>
    %cst_183 = arith.constant -1.000000e+30 : f32
    %992 = vector.shape_cast %990 : vector<32x1xi1> to vector<32x1xi1>
    %993 = vector.broadcast %992 : vector<32x1xi1> to vector<32x128xi1>
    %994 = vector.shape_cast %991 : vector<1x128xf32> to vector<1x128xf32>
    %995 = vector.broadcast %994 : vector<1x128xf32> to vector<32x128xf32>
    %996 = vector.broadcast %cst_183 : f32 to vector<32x128xf32>
    %997 = arith.select %993, %995, %996 : vector<32x128xi1>, vector<32x128xf32>
    %998 = arith.maximumf %987, %997 : vector<32x128xf32>
    %999 = vector.extract_strided_slice %3 {offsets = [0, 90], sizes = [32, 1], strides = [1, 1]} : vector<32x128xf32> to vector<32x1xf32>
    %cst_184 = arith.constant 0.000000e+00 : f32
    %1000 = vector.broadcast %cst_184 : f32 to vector<32x1xf32>
    %1001 = arith.cmpf ogt, %999, %1000 : vector<32x1xf32>
    %1002 = vector.extract_strided_slice %7 {offsets = [90, 0], sizes = [1, 128], strides = [1, 1]} : vector<128x128xf32> to vector<1x128xf32>
    %cst_185 = arith.constant -1.000000e+30 : f32
    %1003 = vector.shape_cast %1001 : vector<32x1xi1> to vector<32x1xi1>
    %1004 = vector.broadcast %1003 : vector<32x1xi1> to vector<32x128xi1>
    %1005 = vector.shape_cast %1002 : vector<1x128xf32> to vector<1x128xf32>
    %1006 = vector.broadcast %1005 : vector<1x128xf32> to vector<32x128xf32>
    %1007 = vector.broadcast %cst_185 : f32 to vector<32x128xf32>
    %1008 = arith.select %1004, %1006, %1007 : vector<32x128xi1>, vector<32x128xf32>
    %1009 = arith.maximumf %998, %1008 : vector<32x128xf32>
    %1010 = vector.extract_strided_slice %3 {offsets = [0, 91], sizes = [32, 1], strides = [1, 1]} : vector<32x128xf32> to vector<32x1xf32>
    %cst_186 = arith.constant 0.000000e+00 : f32
    %1011 = vector.broadcast %cst_186 : f32 to vector<32x1xf32>
    %1012 = arith.cmpf ogt, %1010, %1011 : vector<32x1xf32>
    %1013 = vector.extract_strided_slice %7 {offsets = [91, 0], sizes = [1, 128], strides = [1, 1]} : vector<128x128xf32> to vector<1x128xf32>
    %cst_187 = arith.constant -1.000000e+30 : f32
    %1014 = vector.shape_cast %1012 : vector<32x1xi1> to vector<32x1xi1>
    %1015 = vector.broadcast %1014 : vector<32x1xi1> to vector<32x128xi1>
    %1016 = vector.shape_cast %1013 : vector<1x128xf32> to vector<1x128xf32>
    %1017 = vector.broadcast %1016 : vector<1x128xf32> to vector<32x128xf32>
    %1018 = vector.broadcast %cst_187 : f32 to vector<32x128xf32>
    %1019 = arith.select %1015, %1017, %1018 : vector<32x128xi1>, vector<32x128xf32>
    %1020 = arith.maximumf %1009, %1019 : vector<32x128xf32>
    %1021 = vector.extract_strided_slice %3 {offsets = [0, 92], sizes = [32, 1], strides = [1, 1]} : vector<32x128xf32> to vector<32x1xf32>
    %cst_188 = arith.constant 0.000000e+00 : f32
    %1022 = vector.broadcast %cst_188 : f32 to vector<32x1xf32>
    %1023 = arith.cmpf ogt, %1021, %1022 : vector<32x1xf32>
    %1024 = vector.extract_strided_slice %7 {offsets = [92, 0], sizes = [1, 128], strides = [1, 1]} : vector<128x128xf32> to vector<1x128xf32>
    %cst_189 = arith.constant -1.000000e+30 : f32
    %1025 = vector.shape_cast %1023 : vector<32x1xi1> to vector<32x1xi1>
    %1026 = vector.broadcast %1025 : vector<32x1xi1> to vector<32x128xi1>
    %1027 = vector.shape_cast %1024 : vector<1x128xf32> to vector<1x128xf32>
    %1028 = vector.broadcast %1027 : vector<1x128xf32> to vector<32x128xf32>
    %1029 = vector.broadcast %cst_189 : f32 to vector<32x128xf32>
    %1030 = arith.select %1026, %1028, %1029 : vector<32x128xi1>, vector<32x128xf32>
    %1031 = arith.maximumf %1020, %1030 : vector<32x128xf32>
    %1032 = vector.extract_strided_slice %3 {offsets = [0, 93], sizes = [32, 1], strides = [1, 1]} : vector<32x128xf32> to vector<32x1xf32>
    %cst_190 = arith.constant 0.000000e+00 : f32
    %1033 = vector.broadcast %cst_190 : f32 to vector<32x1xf32>
    %1034 = arith.cmpf ogt, %1032, %1033 : vector<32x1xf32>
    %1035 = vector.extract_strided_slice %7 {offsets = [93, 0], sizes = [1, 128], strides = [1, 1]} : vector<128x128xf32> to vector<1x128xf32>
    %cst_191 = arith.constant -1.000000e+30 : f32
    %1036 = vector.shape_cast %1034 : vector<32x1xi1> to vector<32x1xi1>
    %1037 = vector.broadcast %1036 : vector<32x1xi1> to vector<32x128xi1>
    %1038 = vector.shape_cast %1035 : vector<1x128xf32> to vector<1x128xf32>
    %1039 = vector.broadcast %1038 : vector<1x128xf32> to vector<32x128xf32>
    %1040 = vector.broadcast %cst_191 : f32 to vector<32x128xf32>
    %1041 = arith.select %1037, %1039, %1040 : vector<32x128xi1>, vector<32x128xf32>
    %1042 = arith.maximumf %1031, %1041 : vector<32x128xf32>
    %1043 = vector.extract_strided_slice %3 {offsets = [0, 94], sizes = [32, 1], strides = [1, 1]} : vector<32x128xf32> to vector<32x1xf32>
    %cst_192 = arith.constant 0.000000e+00 : f32
    %1044 = vector.broadcast %cst_192 : f32 to vector<32x1xf32>
    %1045 = arith.cmpf ogt, %1043, %1044 : vector<32x1xf32>
    %1046 = vector.extract_strided_slice %7 {offsets = [94, 0], sizes = [1, 128], strides = [1, 1]} : vector<128x128xf32> to vector<1x128xf32>
    %cst_193 = arith.constant -1.000000e+30 : f32
    %1047 = vector.shape_cast %1045 : vector<32x1xi1> to vector<32x1xi1>
    %1048 = vector.broadcast %1047 : vector<32x1xi1> to vector<32x128xi1>
    %1049 = vector.shape_cast %1046 : vector<1x128xf32> to vector<1x128xf32>
    %1050 = vector.broadcast %1049 : vector<1x128xf32> to vector<32x128xf32>
    %1051 = vector.broadcast %cst_193 : f32 to vector<32x128xf32>
    %1052 = arith.select %1048, %1050, %1051 : vector<32x128xi1>, vector<32x128xf32>
    %1053 = arith.maximumf %1042, %1052 : vector<32x128xf32>
    %1054 = vector.extract_strided_slice %3 {offsets = [0, 95], sizes = [32, 1], strides = [1, 1]} : vector<32x128xf32> to vector<32x1xf32>
    %cst_194 = arith.constant 0.000000e+00 : f32
    %1055 = vector.broadcast %cst_194 : f32 to vector<32x1xf32>
    %1056 = arith.cmpf ogt, %1054, %1055 : vector<32x1xf32>
    %1057 = vector.extract_strided_slice %7 {offsets = [95, 0], sizes = [1, 128], strides = [1, 1]} : vector<128x128xf32> to vector<1x128xf32>
    %cst_195 = arith.constant -1.000000e+30 : f32
    %1058 = vector.shape_cast %1056 : vector<32x1xi1> to vector<32x1xi1>
    %1059 = vector.broadcast %1058 : vector<32x1xi1> to vector<32x128xi1>
    %1060 = vector.shape_cast %1057 : vector<1x128xf32> to vector<1x128xf32>
    %1061 = vector.broadcast %1060 : vector<1x128xf32> to vector<32x128xf32>
    %1062 = vector.broadcast %cst_195 : f32 to vector<32x128xf32>
    %1063 = arith.select %1059, %1061, %1062 : vector<32x128xi1>, vector<32x128xf32>
    %1064 = arith.maximumf %1053, %1063 : vector<32x128xf32>
    %1065 = vector.extract_strided_slice %3 {offsets = [0, 96], sizes = [32, 1], strides = [1, 1]} : vector<32x128xf32> to vector<32x1xf32>
    %cst_196 = arith.constant 0.000000e+00 : f32
    %1066 = vector.broadcast %cst_196 : f32 to vector<32x1xf32>
    %1067 = arith.cmpf ogt, %1065, %1066 : vector<32x1xf32>
    %1068 = vector.extract_strided_slice %7 {offsets = [96, 0], sizes = [1, 128], strides = [1, 1]} : vector<128x128xf32> to vector<1x128xf32>
    %cst_197 = arith.constant -1.000000e+30 : f32
    %1069 = vector.shape_cast %1067 : vector<32x1xi1> to vector<32x1xi1>
    %1070 = vector.broadcast %1069 : vector<32x1xi1> to vector<32x128xi1>
    %1071 = vector.shape_cast %1068 : vector<1x128xf32> to vector<1x128xf32>
    %1072 = vector.broadcast %1071 : vector<1x128xf32> to vector<32x128xf32>
    %1073 = vector.broadcast %cst_197 : f32 to vector<32x128xf32>
    %1074 = arith.select %1070, %1072, %1073 : vector<32x128xi1>, vector<32x128xf32>
    %1075 = arith.maximumf %1064, %1074 : vector<32x128xf32>
    %1076 = vector.extract_strided_slice %3 {offsets = [0, 97], sizes = [32, 1], strides = [1, 1]} : vector<32x128xf32> to vector<32x1xf32>
    %cst_198 = arith.constant 0.000000e+00 : f32
    %1077 = vector.broadcast %cst_198 : f32 to vector<32x1xf32>
    %1078 = arith.cmpf ogt, %1076, %1077 : vector<32x1xf32>
    %1079 = vector.extract_strided_slice %7 {offsets = [97, 0], sizes = [1, 128], strides = [1, 1]} : vector<128x128xf32> to vector<1x128xf32>
    %cst_199 = arith.constant -1.000000e+30 : f32
    %1080 = vector.shape_cast %1078 : vector<32x1xi1> to vector<32x1xi1>
    %1081 = vector.broadcast %1080 : vector<32x1xi1> to vector<32x128xi1>
    %1082 = vector.shape_cast %1079 : vector<1x128xf32> to vector<1x128xf32>
    %1083 = vector.broadcast %1082 : vector<1x128xf32> to vector<32x128xf32>
    %1084 = vector.broadcast %cst_199 : f32 to vector<32x128xf32>
    %1085 = arith.select %1081, %1083, %1084 : vector<32x128xi1>, vector<32x128xf32>
    %1086 = arith.maximumf %1075, %1085 : vector<32x128xf32>
    %1087 = vector.extract_strided_slice %3 {offsets = [0, 98], sizes = [32, 1], strides = [1, 1]} : vector<32x128xf32> to vector<32x1xf32>
    %cst_200 = arith.constant 0.000000e+00 : f32
    %1088 = vector.broadcast %cst_200 : f32 to vector<32x1xf32>
    %1089 = arith.cmpf ogt, %1087, %1088 : vector<32x1xf32>
    %1090 = vector.extract_strided_slice %7 {offsets = [98, 0], sizes = [1, 128], strides = [1, 1]} : vector<128x128xf32> to vector<1x128xf32>
    %cst_201 = arith.constant -1.000000e+30 : f32
    %1091 = vector.shape_cast %1089 : vector<32x1xi1> to vector<32x1xi1>
    %1092 = vector.broadcast %1091 : vector<32x1xi1> to vector<32x128xi1>
    %1093 = vector.shape_cast %1090 : vector<1x128xf32> to vector<1x128xf32>
    %1094 = vector.broadcast %1093 : vector<1x128xf32> to vector<32x128xf32>
    %1095 = vector.broadcast %cst_201 : f32 to vector<32x128xf32>
    %1096 = arith.select %1092, %1094, %1095 : vector<32x128xi1>, vector<32x128xf32>
    %1097 = arith.maximumf %1086, %1096 : vector<32x128xf32>
    %1098 = vector.extract_strided_slice %3 {offsets = [0, 99], sizes = [32, 1], strides = [1, 1]} : vector<32x128xf32> to vector<32x1xf32>
    %cst_202 = arith.constant 0.000000e+00 : f32
    %1099 = vector.broadcast %cst_202 : f32 to vector<32x1xf32>
    %1100 = arith.cmpf ogt, %1098, %1099 : vector<32x1xf32>
    %1101 = vector.extract_strided_slice %7 {offsets = [99, 0], sizes = [1, 128], strides = [1, 1]} : vector<128x128xf32> to vector<1x128xf32>
    %cst_203 = arith.constant -1.000000e+30 : f32
    %1102 = vector.shape_cast %1100 : vector<32x1xi1> to vector<32x1xi1>
    %1103 = vector.broadcast %1102 : vector<32x1xi1> to vector<32x128xi1>
    %1104 = vector.shape_cast %1101 : vector<1x128xf32> to vector<1x128xf32>
    %1105 = vector.broadcast %1104 : vector<1x128xf32> to vector<32x128xf32>
    %1106 = vector.broadcast %cst_203 : f32 to vector<32x128xf32>
    %1107 = arith.select %1103, %1105, %1106 : vector<32x128xi1>, vector<32x128xf32>
    %1108 = arith.maximumf %1097, %1107 : vector<32x128xf32>
    %1109 = vector.extract_strided_slice %3 {offsets = [0, 100], sizes = [32, 1], strides = [1, 1]} : vector<32x128xf32> to vector<32x1xf32>
    %cst_204 = arith.constant 0.000000e+00 : f32
    %1110 = vector.broadcast %cst_204 : f32 to vector<32x1xf32>
    %1111 = arith.cmpf ogt, %1109, %1110 : vector<32x1xf32>
    %1112 = vector.extract_strided_slice %7 {offsets = [100, 0], sizes = [1, 128], strides = [1, 1]} : vector<128x128xf32> to vector<1x128xf32>
    %cst_205 = arith.constant -1.000000e+30 : f32
    %1113 = vector.shape_cast %1111 : vector<32x1xi1> to vector<32x1xi1>
    %1114 = vector.broadcast %1113 : vector<32x1xi1> to vector<32x128xi1>
    %1115 = vector.shape_cast %1112 : vector<1x128xf32> to vector<1x128xf32>
    %1116 = vector.broadcast %1115 : vector<1x128xf32> to vector<32x128xf32>
    %1117 = vector.broadcast %cst_205 : f32 to vector<32x128xf32>
    %1118 = arith.select %1114, %1116, %1117 : vector<32x128xi1>, vector<32x128xf32>
    %1119 = arith.maximumf %1108, %1118 : vector<32x128xf32>
    %1120 = vector.extract_strided_slice %3 {offsets = [0, 101], sizes = [32, 1], strides = [1, 1]} : vector<32x128xf32> to vector<32x1xf32>
    %cst_206 = arith.constant 0.000000e+00 : f32
    %1121 = vector.broadcast %cst_206 : f32 to vector<32x1xf32>
    %1122 = arith.cmpf ogt, %1120, %1121 : vector<32x1xf32>
    %1123 = vector.extract_strided_slice %7 {offsets = [101, 0], sizes = [1, 128], strides = [1, 1]} : vector<128x128xf32> to vector<1x128xf32>
    %cst_207 = arith.constant -1.000000e+30 : f32
    %1124 = vector.shape_cast %1122 : vector<32x1xi1> to vector<32x1xi1>
    %1125 = vector.broadcast %1124 : vector<32x1xi1> to vector<32x128xi1>
    %1126 = vector.shape_cast %1123 : vector<1x128xf32> to vector<1x128xf32>
    %1127 = vector.broadcast %1126 : vector<1x128xf32> to vector<32x128xf32>
    %1128 = vector.broadcast %cst_207 : f32 to vector<32x128xf32>
    %1129 = arith.select %1125, %1127, %1128 : vector<32x128xi1>, vector<32x128xf32>
    %1130 = arith.maximumf %1119, %1129 : vector<32x128xf32>
    %1131 = vector.extract_strided_slice %3 {offsets = [0, 102], sizes = [32, 1], strides = [1, 1]} : vector<32x128xf32> to vector<32x1xf32>
    %cst_208 = arith.constant 0.000000e+00 : f32
    %1132 = vector.broadcast %cst_208 : f32 to vector<32x1xf32>
    %1133 = arith.cmpf ogt, %1131, %1132 : vector<32x1xf32>
    %1134 = vector.extract_strided_slice %7 {offsets = [102, 0], sizes = [1, 128], strides = [1, 1]} : vector<128x128xf32> to vector<1x128xf32>
    %cst_209 = arith.constant -1.000000e+30 : f32
    %1135 = vector.shape_cast %1133 : vector<32x1xi1> to vector<32x1xi1>
    %1136 = vector.broadcast %1135 : vector<32x1xi1> to vector<32x128xi1>
    %1137 = vector.shape_cast %1134 : vector<1x128xf32> to vector<1x128xf32>
    %1138 = vector.broadcast %1137 : vector<1x128xf32> to vector<32x128xf32>
    %1139 = vector.broadcast %cst_209 : f32 to vector<32x128xf32>
    %1140 = arith.select %1136, %1138, %1139 : vector<32x128xi1>, vector<32x128xf32>
    %1141 = arith.maximumf %1130, %1140 : vector<32x128xf32>
    %1142 = vector.extract_strided_slice %3 {offsets = [0, 103], sizes = [32, 1], strides = [1, 1]} : vector<32x128xf32> to vector<32x1xf32>
    %cst_210 = arith.constant 0.000000e+00 : f32
    %1143 = vector.broadcast %cst_210 : f32 to vector<32x1xf32>
    %1144 = arith.cmpf ogt, %1142, %1143 : vector<32x1xf32>
    %1145 = vector.extract_strided_slice %7 {offsets = [103, 0], sizes = [1, 128], strides = [1, 1]} : vector<128x128xf32> to vector<1x128xf32>
    %cst_211 = arith.constant -1.000000e+30 : f32
    %1146 = vector.shape_cast %1144 : vector<32x1xi1> to vector<32x1xi1>
    %1147 = vector.broadcast %1146 : vector<32x1xi1> to vector<32x128xi1>
    %1148 = vector.shape_cast %1145 : vector<1x128xf32> to vector<1x128xf32>
    %1149 = vector.broadcast %1148 : vector<1x128xf32> to vector<32x128xf32>
    %1150 = vector.broadcast %cst_211 : f32 to vector<32x128xf32>
    %1151 = arith.select %1147, %1149, %1150 : vector<32x128xi1>, vector<32x128xf32>
    %1152 = arith.maximumf %1141, %1151 : vector<32x128xf32>
    %1153 = vector.extract_strided_slice %3 {offsets = [0, 104], sizes = [32, 1], strides = [1, 1]} : vector<32x128xf32> to vector<32x1xf32>
    %cst_212 = arith.constant 0.000000e+00 : f32
    %1154 = vector.broadcast %cst_212 : f32 to vector<32x1xf32>
    %1155 = arith.cmpf ogt, %1153, %1154 : vector<32x1xf32>
    %1156 = vector.extract_strided_slice %7 {offsets = [104, 0], sizes = [1, 128], strides = [1, 1]} : vector<128x128xf32> to vector<1x128xf32>
    %cst_213 = arith.constant -1.000000e+30 : f32
    %1157 = vector.shape_cast %1155 : vector<32x1xi1> to vector<32x1xi1>
    %1158 = vector.broadcast %1157 : vector<32x1xi1> to vector<32x128xi1>
    %1159 = vector.shape_cast %1156 : vector<1x128xf32> to vector<1x128xf32>
    %1160 = vector.broadcast %1159 : vector<1x128xf32> to vector<32x128xf32>
    %1161 = vector.broadcast %cst_213 : f32 to vector<32x128xf32>
    %1162 = arith.select %1158, %1160, %1161 : vector<32x128xi1>, vector<32x128xf32>
    %1163 = arith.maximumf %1152, %1162 : vector<32x128xf32>
    %1164 = vector.extract_strided_slice %3 {offsets = [0, 105], sizes = [32, 1], strides = [1, 1]} : vector<32x128xf32> to vector<32x1xf32>
    %cst_214 = arith.constant 0.000000e+00 : f32
    %1165 = vector.broadcast %cst_214 : f32 to vector<32x1xf32>
    %1166 = arith.cmpf ogt, %1164, %1165 : vector<32x1xf32>
    %1167 = vector.extract_strided_slice %7 {offsets = [105, 0], sizes = [1, 128], strides = [1, 1]} : vector<128x128xf32> to vector<1x128xf32>
    %cst_215 = arith.constant -1.000000e+30 : f32
    %1168 = vector.shape_cast %1166 : vector<32x1xi1> to vector<32x1xi1>
    %1169 = vector.broadcast %1168 : vector<32x1xi1> to vector<32x128xi1>
    %1170 = vector.shape_cast %1167 : vector<1x128xf32> to vector<1x128xf32>
    %1171 = vector.broadcast %1170 : vector<1x128xf32> to vector<32x128xf32>
    %1172 = vector.broadcast %cst_215 : f32 to vector<32x128xf32>
    %1173 = arith.select %1169, %1171, %1172 : vector<32x128xi1>, vector<32x128xf32>
    %1174 = arith.maximumf %1163, %1173 : vector<32x128xf32>
    %1175 = vector.extract_strided_slice %3 {offsets = [0, 106], sizes = [32, 1], strides = [1, 1]} : vector<32x128xf32> to vector<32x1xf32>
    %cst_216 = arith.constant 0.000000e+00 : f32
    %1176 = vector.broadcast %cst_216 : f32 to vector<32x1xf32>
    %1177 = arith.cmpf ogt, %1175, %1176 : vector<32x1xf32>
    %1178 = vector.extract_strided_slice %7 {offsets = [106, 0], sizes = [1, 128], strides = [1, 1]} : vector<128x128xf32> to vector<1x128xf32>
    %cst_217 = arith.constant -1.000000e+30 : f32
    %1179 = vector.shape_cast %1177 : vector<32x1xi1> to vector<32x1xi1>
    %1180 = vector.broadcast %1179 : vector<32x1xi1> to vector<32x128xi1>
    %1181 = vector.shape_cast %1178 : vector<1x128xf32> to vector<1x128xf32>
    %1182 = vector.broadcast %1181 : vector<1x128xf32> to vector<32x128xf32>
    %1183 = vector.broadcast %cst_217 : f32 to vector<32x128xf32>
    %1184 = arith.select %1180, %1182, %1183 : vector<32x128xi1>, vector<32x128xf32>
    %1185 = arith.maximumf %1174, %1184 : vector<32x128xf32>
    %1186 = vector.extract_strided_slice %3 {offsets = [0, 107], sizes = [32, 1], strides = [1, 1]} : vector<32x128xf32> to vector<32x1xf32>
    %cst_218 = arith.constant 0.000000e+00 : f32
    %1187 = vector.broadcast %cst_218 : f32 to vector<32x1xf32>
    %1188 = arith.cmpf ogt, %1186, %1187 : vector<32x1xf32>
    %1189 = vector.extract_strided_slice %7 {offsets = [107, 0], sizes = [1, 128], strides = [1, 1]} : vector<128x128xf32> to vector<1x128xf32>
    %cst_219 = arith.constant -1.000000e+30 : f32
    %1190 = vector.shape_cast %1188 : vector<32x1xi1> to vector<32x1xi1>
    %1191 = vector.broadcast %1190 : vector<32x1xi1> to vector<32x128xi1>
    %1192 = vector.shape_cast %1189 : vector<1x128xf32> to vector<1x128xf32>
    %1193 = vector.broadcast %1192 : vector<1x128xf32> to vector<32x128xf32>
    %1194 = vector.broadcast %cst_219 : f32 to vector<32x128xf32>
    %1195 = arith.select %1191, %1193, %1194 : vector<32x128xi1>, vector<32x128xf32>
    %1196 = arith.maximumf %1185, %1195 : vector<32x128xf32>
    %1197 = vector.extract_strided_slice %3 {offsets = [0, 108], sizes = [32, 1], strides = [1, 1]} : vector<32x128xf32> to vector<32x1xf32>
    %cst_220 = arith.constant 0.000000e+00 : f32
    %1198 = vector.broadcast %cst_220 : f32 to vector<32x1xf32>
    %1199 = arith.cmpf ogt, %1197, %1198 : vector<32x1xf32>
    %1200 = vector.extract_strided_slice %7 {offsets = [108, 0], sizes = [1, 128], strides = [1, 1]} : vector<128x128xf32> to vector<1x128xf32>
    %cst_221 = arith.constant -1.000000e+30 : f32
    %1201 = vector.shape_cast %1199 : vector<32x1xi1> to vector<32x1xi1>
    %1202 = vector.broadcast %1201 : vector<32x1xi1> to vector<32x128xi1>
    %1203 = vector.shape_cast %1200 : vector<1x128xf32> to vector<1x128xf32>
    %1204 = vector.broadcast %1203 : vector<1x128xf32> to vector<32x128xf32>
    %1205 = vector.broadcast %cst_221 : f32 to vector<32x128xf32>
    %1206 = arith.select %1202, %1204, %1205 : vector<32x128xi1>, vector<32x128xf32>
    %1207 = arith.maximumf %1196, %1206 : vector<32x128xf32>
    %1208 = vector.extract_strided_slice %3 {offsets = [0, 109], sizes = [32, 1], strides = [1, 1]} : vector<32x128xf32> to vector<32x1xf32>
    %cst_222 = arith.constant 0.000000e+00 : f32
    %1209 = vector.broadcast %cst_222 : f32 to vector<32x1xf32>
    %1210 = arith.cmpf ogt, %1208, %1209 : vector<32x1xf32>
    %1211 = vector.extract_strided_slice %7 {offsets = [109, 0], sizes = [1, 128], strides = [1, 1]} : vector<128x128xf32> to vector<1x128xf32>
    %cst_223 = arith.constant -1.000000e+30 : f32
    %1212 = vector.shape_cast %1210 : vector<32x1xi1> to vector<32x1xi1>
    %1213 = vector.broadcast %1212 : vector<32x1xi1> to vector<32x128xi1>
    %1214 = vector.shape_cast %1211 : vector<1x128xf32> to vector<1x128xf32>
    %1215 = vector.broadcast %1214 : vector<1x128xf32> to vector<32x128xf32>
    %1216 = vector.broadcast %cst_223 : f32 to vector<32x128xf32>
    %1217 = arith.select %1213, %1215, %1216 : vector<32x128xi1>, vector<32x128xf32>
    %1218 = arith.maximumf %1207, %1217 : vector<32x128xf32>
    %1219 = vector.extract_strided_slice %3 {offsets = [0, 110], sizes = [32, 1], strides = [1, 1]} : vector<32x128xf32> to vector<32x1xf32>
    %cst_224 = arith.constant 0.000000e+00 : f32
    %1220 = vector.broadcast %cst_224 : f32 to vector<32x1xf32>
    %1221 = arith.cmpf ogt, %1219, %1220 : vector<32x1xf32>
    %1222 = vector.extract_strided_slice %7 {offsets = [110, 0], sizes = [1, 128], strides = [1, 1]} : vector<128x128xf32> to vector<1x128xf32>
    %cst_225 = arith.constant -1.000000e+30 : f32
    %1223 = vector.shape_cast %1221 : vector<32x1xi1> to vector<32x1xi1>
    %1224 = vector.broadcast %1223 : vector<32x1xi1> to vector<32x128xi1>
    %1225 = vector.shape_cast %1222 : vector<1x128xf32> to vector<1x128xf32>
    %1226 = vector.broadcast %1225 : vector<1x128xf32> to vector<32x128xf32>
    %1227 = vector.broadcast %cst_225 : f32 to vector<32x128xf32>
    %1228 = arith.select %1224, %1226, %1227 : vector<32x128xi1>, vector<32x128xf32>
    %1229 = arith.maximumf %1218, %1228 : vector<32x128xf32>
    %1230 = vector.extract_strided_slice %3 {offsets = [0, 111], sizes = [32, 1], strides = [1, 1]} : vector<32x128xf32> to vector<32x1xf32>
    %cst_226 = arith.constant 0.000000e+00 : f32
    %1231 = vector.broadcast %cst_226 : f32 to vector<32x1xf32>
    %1232 = arith.cmpf ogt, %1230, %1231 : vector<32x1xf32>
    %1233 = vector.extract_strided_slice %7 {offsets = [111, 0], sizes = [1, 128], strides = [1, 1]} : vector<128x128xf32> to vector<1x128xf32>
    %cst_227 = arith.constant -1.000000e+30 : f32
    %1234 = vector.shape_cast %1232 : vector<32x1xi1> to vector<32x1xi1>
    %1235 = vector.broadcast %1234 : vector<32x1xi1> to vector<32x128xi1>
    %1236 = vector.shape_cast %1233 : vector<1x128xf32> to vector<1x128xf32>
    %1237 = vector.broadcast %1236 : vector<1x128xf32> to vector<32x128xf32>
    %1238 = vector.broadcast %cst_227 : f32 to vector<32x128xf32>
    %1239 = arith.select %1235, %1237, %1238 : vector<32x128xi1>, vector<32x128xf32>
    %1240 = arith.maximumf %1229, %1239 : vector<32x128xf32>
    %1241 = vector.extract_strided_slice %3 {offsets = [0, 112], sizes = [32, 1], strides = [1, 1]} : vector<32x128xf32> to vector<32x1xf32>
    %cst_228 = arith.constant 0.000000e+00 : f32
    %1242 = vector.broadcast %cst_228 : f32 to vector<32x1xf32>
    %1243 = arith.cmpf ogt, %1241, %1242 : vector<32x1xf32>
    %1244 = vector.extract_strided_slice %7 {offsets = [112, 0], sizes = [1, 128], strides = [1, 1]} : vector<128x128xf32> to vector<1x128xf32>
    %cst_229 = arith.constant -1.000000e+30 : f32
    %1245 = vector.shape_cast %1243 : vector<32x1xi1> to vector<32x1xi1>
    %1246 = vector.broadcast %1245 : vector<32x1xi1> to vector<32x128xi1>
    %1247 = vector.shape_cast %1244 : vector<1x128xf32> to vector<1x128xf32>
    %1248 = vector.broadcast %1247 : vector<1x128xf32> to vector<32x128xf32>
    %1249 = vector.broadcast %cst_229 : f32 to vector<32x128xf32>
    %1250 = arith.select %1246, %1248, %1249 : vector<32x128xi1>, vector<32x128xf32>
    %1251 = arith.maximumf %1240, %1250 : vector<32x128xf32>
    %1252 = vector.extract_strided_slice %3 {offsets = [0, 113], sizes = [32, 1], strides = [1, 1]} : vector<32x128xf32> to vector<32x1xf32>
    %cst_230 = arith.constant 0.000000e+00 : f32
    %1253 = vector.broadcast %cst_230 : f32 to vector<32x1xf32>
    %1254 = arith.cmpf ogt, %1252, %1253 : vector<32x1xf32>
    %1255 = vector.extract_strided_slice %7 {offsets = [113, 0], sizes = [1, 128], strides = [1, 1]} : vector<128x128xf32> to vector<1x128xf32>
    %cst_231 = arith.constant -1.000000e+30 : f32
    %1256 = vector.shape_cast %1254 : vector<32x1xi1> to vector<32x1xi1>
    %1257 = vector.broadcast %1256 : vector<32x1xi1> to vector<32x128xi1>
    %1258 = vector.shape_cast %1255 : vector<1x128xf32> to vector<1x128xf32>
    %1259 = vector.broadcast %1258 : vector<1x128xf32> to vector<32x128xf32>
    %1260 = vector.broadcast %cst_231 : f32 to vector<32x128xf32>
    %1261 = arith.select %1257, %1259, %1260 : vector<32x128xi1>, vector<32x128xf32>
    %1262 = arith.maximumf %1251, %1261 : vector<32x128xf32>
    %1263 = vector.extract_strided_slice %3 {offsets = [0, 114], sizes = [32, 1], strides = [1, 1]} : vector<32x128xf32> to vector<32x1xf32>
    %cst_232 = arith.constant 0.000000e+00 : f32
    %1264 = vector.broadcast %cst_232 : f32 to vector<32x1xf32>
    %1265 = arith.cmpf ogt, %1263, %1264 : vector<32x1xf32>
    %1266 = vector.extract_strided_slice %7 {offsets = [114, 0], sizes = [1, 128], strides = [1, 1]} : vector<128x128xf32> to vector<1x128xf32>
    %cst_233 = arith.constant -1.000000e+30 : f32
    %1267 = vector.shape_cast %1265 : vector<32x1xi1> to vector<32x1xi1>
    %1268 = vector.broadcast %1267 : vector<32x1xi1> to vector<32x128xi1>
    %1269 = vector.shape_cast %1266 : vector<1x128xf32> to vector<1x128xf32>
    %1270 = vector.broadcast %1269 : vector<1x128xf32> to vector<32x128xf32>
    %1271 = vector.broadcast %cst_233 : f32 to vector<32x128xf32>
    %1272 = arith.select %1268, %1270, %1271 : vector<32x128xi1>, vector<32x128xf32>
    %1273 = arith.maximumf %1262, %1272 : vector<32x128xf32>
    %1274 = vector.extract_strided_slice %3 {offsets = [0, 115], sizes = [32, 1], strides = [1, 1]} : vector<32x128xf32> to vector<32x1xf32>
    %cst_234 = arith.constant 0.000000e+00 : f32
    %1275 = vector.broadcast %cst_234 : f32 to vector<32x1xf32>
    %1276 = arith.cmpf ogt, %1274, %1275 : vector<32x1xf32>
    %1277 = vector.extract_strided_slice %7 {offsets = [115, 0], sizes = [1, 128], strides = [1, 1]} : vector<128x128xf32> to vector<1x128xf32>
    %cst_235 = arith.constant -1.000000e+30 : f32
    %1278 = vector.shape_cast %1276 : vector<32x1xi1> to vector<32x1xi1>
    %1279 = vector.broadcast %1278 : vector<32x1xi1> to vector<32x128xi1>
    %1280 = vector.shape_cast %1277 : vector<1x128xf32> to vector<1x128xf32>
    %1281 = vector.broadcast %1280 : vector<1x128xf32> to vector<32x128xf32>
    %1282 = vector.broadcast %cst_235 : f32 to vector<32x128xf32>
    %1283 = arith.select %1279, %1281, %1282 : vector<32x128xi1>, vector<32x128xf32>
    %1284 = arith.maximumf %1273, %1283 : vector<32x128xf32>
    %1285 = vector.extract_strided_slice %3 {offsets = [0, 116], sizes = [32, 1], strides = [1, 1]} : vector<32x128xf32> to vector<32x1xf32>
    %cst_236 = arith.constant 0.000000e+00 : f32
    %1286 = vector.broadcast %cst_236 : f32 to vector<32x1xf32>
    %1287 = arith.cmpf ogt, %1285, %1286 : vector<32x1xf32>
    %1288 = vector.extract_strided_slice %7 {offsets = [116, 0], sizes = [1, 128], strides = [1, 1]} : vector<128x128xf32> to vector<1x128xf32>
    %cst_237 = arith.constant -1.000000e+30 : f32
    %1289 = vector.shape_cast %1287 : vector<32x1xi1> to vector<32x1xi1>
    %1290 = vector.broadcast %1289 : vector<32x1xi1> to vector<32x128xi1>
    %1291 = vector.shape_cast %1288 : vector<1x128xf32> to vector<1x128xf32>
    %1292 = vector.broadcast %1291 : vector<1x128xf32> to vector<32x128xf32>
    %1293 = vector.broadcast %cst_237 : f32 to vector<32x128xf32>
    %1294 = arith.select %1290, %1292, %1293 : vector<32x128xi1>, vector<32x128xf32>
    %1295 = arith.maximumf %1284, %1294 : vector<32x128xf32>
    %1296 = vector.extract_strided_slice %3 {offsets = [0, 117], sizes = [32, 1], strides = [1, 1]} : vector<32x128xf32> to vector<32x1xf32>
    %cst_238 = arith.constant 0.000000e+00 : f32
    %1297 = vector.broadcast %cst_238 : f32 to vector<32x1xf32>
    %1298 = arith.cmpf ogt, %1296, %1297 : vector<32x1xf32>
    %1299 = vector.extract_strided_slice %7 {offsets = [117, 0], sizes = [1, 128], strides = [1, 1]} : vector<128x128xf32> to vector<1x128xf32>
    %cst_239 = arith.constant -1.000000e+30 : f32
    %1300 = vector.shape_cast %1298 : vector<32x1xi1> to vector<32x1xi1>
    %1301 = vector.broadcast %1300 : vector<32x1xi1> to vector<32x128xi1>
    %1302 = vector.shape_cast %1299 : vector<1x128xf32> to vector<1x128xf32>
    %1303 = vector.broadcast %1302 : vector<1x128xf32> to vector<32x128xf32>
    %1304 = vector.broadcast %cst_239 : f32 to vector<32x128xf32>
    %1305 = arith.select %1301, %1303, %1304 : vector<32x128xi1>, vector<32x128xf32>
    %1306 = arith.maximumf %1295, %1305 : vector<32x128xf32>
    %1307 = vector.extract_strided_slice %3 {offsets = [0, 118], sizes = [32, 1], strides = [1, 1]} : vector<32x128xf32> to vector<32x1xf32>
    %cst_240 = arith.constant 0.000000e+00 : f32
    %1308 = vector.broadcast %cst_240 : f32 to vector<32x1xf32>
    %1309 = arith.cmpf ogt, %1307, %1308 : vector<32x1xf32>
    %1310 = vector.extract_strided_slice %7 {offsets = [118, 0], sizes = [1, 128], strides = [1, 1]} : vector<128x128xf32> to vector<1x128xf32>
    %cst_241 = arith.constant -1.000000e+30 : f32
    %1311 = vector.shape_cast %1309 : vector<32x1xi1> to vector<32x1xi1>
    %1312 = vector.broadcast %1311 : vector<32x1xi1> to vector<32x128xi1>
    %1313 = vector.shape_cast %1310 : vector<1x128xf32> to vector<1x128xf32>
    %1314 = vector.broadcast %1313 : vector<1x128xf32> to vector<32x128xf32>
    %1315 = vector.broadcast %cst_241 : f32 to vector<32x128xf32>
    %1316 = arith.select %1312, %1314, %1315 : vector<32x128xi1>, vector<32x128xf32>
    %1317 = arith.maximumf %1306, %1316 : vector<32x128xf32>
    %1318 = vector.extract_strided_slice %3 {offsets = [0, 119], sizes = [32, 1], strides = [1, 1]} : vector<32x128xf32> to vector<32x1xf32>
    %cst_242 = arith.constant 0.000000e+00 : f32
    %1319 = vector.broadcast %cst_242 : f32 to vector<32x1xf32>
    %1320 = arith.cmpf ogt, %1318, %1319 : vector<32x1xf32>
    %1321 = vector.extract_strided_slice %7 {offsets = [119, 0], sizes = [1, 128], strides = [1, 1]} : vector<128x128xf32> to vector<1x128xf32>
    %cst_243 = arith.constant -1.000000e+30 : f32
    %1322 = vector.shape_cast %1320 : vector<32x1xi1> to vector<32x1xi1>
    %1323 = vector.broadcast %1322 : vector<32x1xi1> to vector<32x128xi1>
    %1324 = vector.shape_cast %1321 : vector<1x128xf32> to vector<1x128xf32>
    %1325 = vector.broadcast %1324 : vector<1x128xf32> to vector<32x128xf32>
    %1326 = vector.broadcast %cst_243 : f32 to vector<32x128xf32>
    %1327 = arith.select %1323, %1325, %1326 : vector<32x128xi1>, vector<32x128xf32>
    %1328 = arith.maximumf %1317, %1327 : vector<32x128xf32>
    %1329 = vector.extract_strided_slice %3 {offsets = [0, 120], sizes = [32, 1], strides = [1, 1]} : vector<32x128xf32> to vector<32x1xf32>
    %cst_244 = arith.constant 0.000000e+00 : f32
    %1330 = vector.broadcast %cst_244 : f32 to vector<32x1xf32>
    %1331 = arith.cmpf ogt, %1329, %1330 : vector<32x1xf32>
    %1332 = vector.extract_strided_slice %7 {offsets = [120, 0], sizes = [1, 128], strides = [1, 1]} : vector<128x128xf32> to vector<1x128xf32>
    %cst_245 = arith.constant -1.000000e+30 : f32
    %1333 = vector.shape_cast %1331 : vector<32x1xi1> to vector<32x1xi1>
    %1334 = vector.broadcast %1333 : vector<32x1xi1> to vector<32x128xi1>
    %1335 = vector.shape_cast %1332 : vector<1x128xf32> to vector<1x128xf32>
    %1336 = vector.broadcast %1335 : vector<1x128xf32> to vector<32x128xf32>
    %1337 = vector.broadcast %cst_245 : f32 to vector<32x128xf32>
    %1338 = arith.select %1334, %1336, %1337 : vector<32x128xi1>, vector<32x128xf32>
    %1339 = arith.maximumf %1328, %1338 : vector<32x128xf32>
    %1340 = vector.extract_strided_slice %3 {offsets = [0, 121], sizes = [32, 1], strides = [1, 1]} : vector<32x128xf32> to vector<32x1xf32>
    %cst_246 = arith.constant 0.000000e+00 : f32
    %1341 = vector.broadcast %cst_246 : f32 to vector<32x1xf32>
    %1342 = arith.cmpf ogt, %1340, %1341 : vector<32x1xf32>
    %1343 = vector.extract_strided_slice %7 {offsets = [121, 0], sizes = [1, 128], strides = [1, 1]} : vector<128x128xf32> to vector<1x128xf32>
    %cst_247 = arith.constant -1.000000e+30 : f32
    %1344 = vector.shape_cast %1342 : vector<32x1xi1> to vector<32x1xi1>
    %1345 = vector.broadcast %1344 : vector<32x1xi1> to vector<32x128xi1>
    %1346 = vector.shape_cast %1343 : vector<1x128xf32> to vector<1x128xf32>
    %1347 = vector.broadcast %1346 : vector<1x128xf32> to vector<32x128xf32>
    %1348 = vector.broadcast %cst_247 : f32 to vector<32x128xf32>
    %1349 = arith.select %1345, %1347, %1348 : vector<32x128xi1>, vector<32x128xf32>
    %1350 = arith.maximumf %1339, %1349 : vector<32x128xf32>
    %1351 = vector.extract_strided_slice %3 {offsets = [0, 122], sizes = [32, 1], strides = [1, 1]} : vector<32x128xf32> to vector<32x1xf32>
    %cst_248 = arith.constant 0.000000e+00 : f32
    %1352 = vector.broadcast %cst_248 : f32 to vector<32x1xf32>
    %1353 = arith.cmpf ogt, %1351, %1352 : vector<32x1xf32>
    %1354 = vector.extract_strided_slice %7 {offsets = [122, 0], sizes = [1, 128], strides = [1, 1]} : vector<128x128xf32> to vector<1x128xf32>
    %cst_249 = arith.constant -1.000000e+30 : f32
    %1355 = vector.shape_cast %1353 : vector<32x1xi1> to vector<32x1xi1>
    %1356 = vector.broadcast %1355 : vector<32x1xi1> to vector<32x128xi1>
    %1357 = vector.shape_cast %1354 : vector<1x128xf32> to vector<1x128xf32>
    %1358 = vector.broadcast %1357 : vector<1x128xf32> to vector<32x128xf32>
    %1359 = vector.broadcast %cst_249 : f32 to vector<32x128xf32>
    %1360 = arith.select %1356, %1358, %1359 : vector<32x128xi1>, vector<32x128xf32>
    %1361 = arith.maximumf %1350, %1360 : vector<32x128xf32>
    %1362 = vector.extract_strided_slice %3 {offsets = [0, 123], sizes = [32, 1], strides = [1, 1]} : vector<32x128xf32> to vector<32x1xf32>
    %cst_250 = arith.constant 0.000000e+00 : f32
    %1363 = vector.broadcast %cst_250 : f32 to vector<32x1xf32>
    %1364 = arith.cmpf ogt, %1362, %1363 : vector<32x1xf32>
    %1365 = vector.extract_strided_slice %7 {offsets = [123, 0], sizes = [1, 128], strides = [1, 1]} : vector<128x128xf32> to vector<1x128xf32>
    %cst_251 = arith.constant -1.000000e+30 : f32
    %1366 = vector.shape_cast %1364 : vector<32x1xi1> to vector<32x1xi1>
    %1367 = vector.broadcast %1366 : vector<32x1xi1> to vector<32x128xi1>
    %1368 = vector.shape_cast %1365 : vector<1x128xf32> to vector<1x128xf32>
    %1369 = vector.broadcast %1368 : vector<1x128xf32> to vector<32x128xf32>
    %1370 = vector.broadcast %cst_251 : f32 to vector<32x128xf32>
    %1371 = arith.select %1367, %1369, %1370 : vector<32x128xi1>, vector<32x128xf32>
    %1372 = arith.maximumf %1361, %1371 : vector<32x128xf32>
    %1373 = vector.extract_strided_slice %3 {offsets = [0, 124], sizes = [32, 1], strides = [1, 1]} : vector<32x128xf32> to vector<32x1xf32>
    %cst_252 = arith.constant 0.000000e+00 : f32
    %1374 = vector.broadcast %cst_252 : f32 to vector<32x1xf32>
    %1375 = arith.cmpf ogt, %1373, %1374 : vector<32x1xf32>
    %1376 = vector.extract_strided_slice %7 {offsets = [124, 0], sizes = [1, 128], strides = [1, 1]} : vector<128x128xf32> to vector<1x128xf32>
    %cst_253 = arith.constant -1.000000e+30 : f32
    %1377 = vector.shape_cast %1375 : vector<32x1xi1> to vector<32x1xi1>
    %1378 = vector.broadcast %1377 : vector<32x1xi1> to vector<32x128xi1>
    %1379 = vector.shape_cast %1376 : vector<1x128xf32> to vector<1x128xf32>
    %1380 = vector.broadcast %1379 : vector<1x128xf32> to vector<32x128xf32>
    %1381 = vector.broadcast %cst_253 : f32 to vector<32x128xf32>
    %1382 = arith.select %1378, %1380, %1381 : vector<32x128xi1>, vector<32x128xf32>
    %1383 = arith.maximumf %1372, %1382 : vector<32x128xf32>
    %1384 = vector.extract_strided_slice %3 {offsets = [0, 125], sizes = [32, 1], strides = [1, 1]} : vector<32x128xf32> to vector<32x1xf32>
    %cst_254 = arith.constant 0.000000e+00 : f32
    %1385 = vector.broadcast %cst_254 : f32 to vector<32x1xf32>
    %1386 = arith.cmpf ogt, %1384, %1385 : vector<32x1xf32>
    %1387 = vector.extract_strided_slice %7 {offsets = [125, 0], sizes = [1, 128], strides = [1, 1]} : vector<128x128xf32> to vector<1x128xf32>
    %cst_255 = arith.constant -1.000000e+30 : f32
    %1388 = vector.shape_cast %1386 : vector<32x1xi1> to vector<32x1xi1>
    %1389 = vector.broadcast %1388 : vector<32x1xi1> to vector<32x128xi1>
    %1390 = vector.shape_cast %1387 : vector<1x128xf32> to vector<1x128xf32>
    %1391 = vector.broadcast %1390 : vector<1x128xf32> to vector<32x128xf32>
    %1392 = vector.broadcast %cst_255 : f32 to vector<32x128xf32>
    %1393 = arith.select %1389, %1391, %1392 : vector<32x128xi1>, vector<32x128xf32>
    %1394 = arith.maximumf %1383, %1393 : vector<32x128xf32>
    %1395 = vector.extract_strided_slice %3 {offsets = [0, 126], sizes = [32, 1], strides = [1, 1]} : vector<32x128xf32> to vector<32x1xf32>
    %cst_256 = arith.constant 0.000000e+00 : f32
    %1396 = vector.broadcast %cst_256 : f32 to vector<32x1xf32>
    %1397 = arith.cmpf ogt, %1395, %1396 : vector<32x1xf32>
    %1398 = vector.extract_strided_slice %7 {offsets = [126, 0], sizes = [1, 128], strides = [1, 1]} : vector<128x128xf32> to vector<1x128xf32>
    %cst_257 = arith.constant -1.000000e+30 : f32
    %1399 = vector.shape_cast %1397 : vector<32x1xi1> to vector<32x1xi1>
    %1400 = vector.broadcast %1399 : vector<32x1xi1> to vector<32x128xi1>
    %1401 = vector.shape_cast %1398 : vector<1x128xf32> to vector<1x128xf32>
    %1402 = vector.broadcast %1401 : vector<1x128xf32> to vector<32x128xf32>
    %1403 = vector.broadcast %cst_257 : f32 to vector<32x128xf32>
    %1404 = arith.select %1400, %1402, %1403 : vector<32x128xi1>, vector<32x128xf32>
    %1405 = arith.maximumf %1394, %1404 : vector<32x128xf32>
    %1406 = vector.extract_strided_slice %3 {offsets = [0, 127], sizes = [32, 1], strides = [1, 1]} : vector<32x128xf32> to vector<32x1xf32>
    %cst_258 = arith.constant 0.000000e+00 : f32
    %1407 = vector.broadcast %cst_258 : f32 to vector<32x1xf32>
    %1408 = arith.cmpf ogt, %1406, %1407 : vector<32x1xf32>
    %1409 = vector.extract_strided_slice %7 {offsets = [127, 0], sizes = [1, 128], strides = [1, 1]} : vector<128x128xf32> to vector<1x128xf32>
    %cst_259 = arith.constant -1.000000e+30 : f32
    %1410 = vector.shape_cast %1408 : vector<32x1xi1> to vector<32x1xi1>
    %1411 = vector.broadcast %1410 : vector<32x1xi1> to vector<32x128xi1>
    %1412 = vector.shape_cast %1409 : vector<1x128xf32> to vector<1x128xf32>
    %1413 = vector.broadcast %1412 : vector<1x128xf32> to vector<32x128xf32>
    %1414 = vector.broadcast %cst_259 : f32 to vector<32x128xf32>
    %1415 = arith.select %1411, %1413, %1414 : vector<32x128xi1>, vector<32x128xf32>
    %1416 = arith.maximumf %1405, %1415 : vector<32x128xf32>
    %c0_260 = arith.constant 0 : index
    %c0_261 = arith.constant 0 : index
    %1417 = vector.load %arg7[%c0_260, %c0_261] : memref<32x128xf32, #tpu.memory_space<vmem>>, vector<32x128xf32>
    tpu.vector_store %arg7[%c0_260, %c0_261], %1416 {strides = array<i32>} : memref<32x128xf32, #tpu.memory_space<vmem>>, vector<32x128xf32>,
    %c1_i32 = arith.constant 1 : i32
    %1418 = arith.cmpi eq, %arg1, %c1_i32 : i32
    %1419 = arith.extui %1418 : i1 to i32
    %c0_i32_262 = arith.constant 0 : i32
    %1420 = arith.cmpi ne, %1419, %c0_i32_262 : i32
    scf.if %1420 {
      %c0_263 = arith.constant 0 : index
      %c0_264 = arith.constant 0 : index
      %1421 = vector.load %arg3[%c0_263, %c0_264] : memref<32x1xf32, #tpu.memory_space<vmem>>, vector<32x1xf32>
      %cst_265 = arith.constant 0.000000e+00 : f32
      %1422 = vector.broadcast %cst_265 : f32 to vector<32x1xf32>
      %1423 = arith.cmpf ogt, %1421, %1422 : vector<32x1xf32>
      %c0_266 = arith.constant 0 : index
      %c0_267 = arith.constant 0 : index
      %1424 = vector.load %arg4[%c0_266, %c0_267] : memref<32x128xf32, #tpu.memory_space<vmem>>, vector<32x128xf32>
      %c0_268 = arith.constant 0 : index
      %c0_269 = arith.constant 0 : index
      %1425 = vector.load %arg7[%c0_268, %c0_269] : memref<32x128xf32, #tpu.memory_space<vmem>>, vector<32x128xf32>
      %1426 = arith.addf %1424, %1425 : vector<32x128xf32>
      %cst_270 = arith.constant 0.000000e+00 : f32
      %1427 = vector.shape_cast %1423 : vector<32x1xi1> to vector<32x1xi1>
      %1428 = vector.broadcast %1427 : vector<32x1xi1> to vector<32x128xi1>
      %1429 = vector.broadcast %cst_270 : f32 to vector<32x128xf32>
      %1430 = arith.select %1428, %1426, %1429 : vector<32x128xi1>, vector<32x128xf32>
      %cst_271 = arith.constant 0.000000e+00 : f32
      %1431 = vector.broadcast %cst_271 : f32 to vector<32x128xf32>
      %1432 = arith.cmpf oge, %1430, %1431 : vector<32x128xf32>
      %cst_272 = arith.constant 0.00999999977 : f32
      %1433 = vector.broadcast %cst_272 : f32 to vector<32x128xf32>
      %1434 = arith.mulf %1433, %1430 : vector<32x128xf32>
      %1435 = arith.select %1432, %1430, %1434 : vector<32x128xi1>, vector<32x128xf32>
      %c0_273 = arith.constant 0 : index
      %c0_274 = arith.constant 0 : index
      %1436 = vector.load %arg6[%c0_273, %c0_274] : memref<32x128xf32, #tpu.memory_space<vmem>>, vector<32x128xf32>
      tpu.vector_store %arg6[%c0_273, %c0_274], %1435 {strides = array<i32>} : memref<32x128xf32, #tpu.memory_space<vmem>>, vector<32x128xf32>,
    } else {
    }
    return
  }
  func.func @transform_0(%arg0: i32, %arg1: i32) -> (i32, i32) {
    %c0_i32 = arith.constant 0 : i32
    return %arg0, %arg1 : i32, i32
  }
  func.func @transform_1(%arg0: i32, %arg1: i32) -> (i32, i32) {
    %c0_i32 = arith.constant 0 : i32
    %c0_i32_0 = arith.constant 0 : i32
    return %arg0, %c0_i32 : i32, i32
  }
  func.func @transform_2(%arg0: i32, %arg1: i32) -> (i32, i32) {
    %c0_i32 = arith.constant 0 : i32
    %c0_i32_0 = arith.constant 0 : i32
    return %arg0, %c0_i32 : i32, i32
  }
  func.func @transform_3(%arg0: i32, %arg1: i32) -> (i32, i32) {
    %c0_i32 = arith.constant 0 : i32
    %c0_i32_0 = arith.constant 0 : i32
    %c0_i32_1 = arith.constant 0 : i32
    return %c0_i32, %c0_i32_0 : i32, i32
  }
  func.func @transform_4(%arg0: i32, %arg1: i32) -> (i32, i32) {
    %c0_i32 = arith.constant 0 : i32
    %c0_i32_0 = arith.constant 0 : i32
    return %arg0, %c0_i32 : i32, i32
  }
}

module attributes {stable_mosaic.version = 11 : i64} {
  func.func @_edgeconv_linear_kernel(%arg0: i32, %arg1: memref<32x256xf32, #tpu.memory_space<vmem>>, %arg2: memref<256x256xf32, #tpu.memory_space<vmem>>, %arg3: memref<1x128xf32, #tpu.memory_space<vmem>>, %arg4: memref<32x128xf32, #tpu.memory_space<vmem>>, %arg5: memref<32x128xf32, #tpu.memory_space<vmem>>) attributes {dimension_semantics = [#tpu.dimension_semantics<parallel>], iteration_bounds = array<i64: 8>, scalar_prefetch = 0 : i64, scratch_operands = 0 : i64, tpu.core_type = #tpu.core_type<tc>, window_params = [{transform_indices = @transform_0, window_bounds = array<i64: 32, 256>}, {pipeline_mode = #tpu.pipeline_mode<synchronous>, transform_indices = @transform_1, window_bounds = array<i64: 256, 256>}, {pipeline_mode = #tpu.pipeline_mode<synchronous>, transform_indices = @transform_2, window_bounds = array<i64: 1, 128>}, {transform_indices = @transform_3, window_bounds = array<i64: 32, 128>}, {transform_indices = @transform_4, window_bounds = array<i64: 32, 128>}]} {
    %c0 = arith.constant 0 : index
    %c0_0 = arith.constant 0 : index
    %0 = vector.load %arg1[%c0, %c0_0] : memref<32x256xf32, #tpu.memory_space<vmem>>, vector<32x256xf32>
    %c0_1 = arith.constant 0 : index
    %c0_2 = arith.constant 0 : index
    %1 = vector.load %arg2[%c0_1, %c0_2] : memref<256x256xf32, #tpu.memory_space<vmem>>, vector<256x256xf32>
    %cst = arith.constant dense<0.000000e+00> : vector<32x256xf32>
    %2 = tpu.matmul %0, %1, %cst {dimension_numbers = #tpu.dot_dimension_numbers<[1], [0], [0], [1], [0, 0, 1, 1], [], []>} : vector<32x256xf32>, vector<256x256xf32>, vector<32x256xf32> -> vector<32x256xf32>
    %3 = vector.extract_strided_slice %2 {offsets = [0, 0], sizes = [32, 128], strides = [1, 1]} : vector<32x256xf32> to vector<32x128xf32>
    %c0_3 = arith.constant 0 : index
    %c0_4 = arith.constant 0 : index
    %4 = vector.load %arg3[%c0_3, %c0_4] : memref<1x128xf32, #tpu.memory_space<vmem>>, vector<1x128xf32>
    %5 = vector.broadcast %4 : vector<1x128xf32> to vector<32x128xf32>
    %6 = arith.addf %3, %5 : vector<32x128xf32>
    %c0_5 = arith.constant 0 : index
    %c0_6 = arith.constant 0 : index
    %7 = vector.load %arg4[%c0_5, %c0_6] : memref<32x128xf32, #tpu.memory_space<vmem>>, vector<32x128xf32>
    tpu.vector_store %arg4[%c0_5, %c0_6], %6 {strides = array<i32>} : memref<32x128xf32, #tpu.memory_space<vmem>>, vector<32x128xf32>,
    %8 = vector.extract_strided_slice %2 {offsets = [0, 128], sizes = [32, 128], strides = [1, 1]} : vector<32x256xf32> to vector<32x128xf32>
    %c0_7 = arith.constant 0 : index
    %c0_8 = arith.constant 0 : index
    %9 = vector.load %arg5[%c0_7, %c0_8] : memref<32x128xf32, #tpu.memory_space<vmem>>, vector<32x128xf32>
    tpu.vector_store %arg5[%c0_7, %c0_8], %8 {strides = array<i32>} : memref<32x128xf32, #tpu.memory_space<vmem>>, vector<32x128xf32>,
    return
  }
  func.func @transform_0(%arg0: i32) -> (i32, i32) {
    %c0_i32 = arith.constant 0 : i32
    %c0_i32_0 = arith.constant 0 : i32
    return %arg0, %c0_i32 : i32, i32
  }
  func.func @transform_1(%arg0: i32) -> (i32, i32) {
    %c0_i32 = arith.constant 0 : i32
    %c0_i32_0 = arith.constant 0 : i32
    %c0_i32_1 = arith.constant 0 : i32
    return %c0_i32, %c0_i32_0 : i32, i32
  }
  func.func @transform_2(%arg0: i32) -> (i32, i32) {
    %c0_i32 = arith.constant 0 : i32
    %c0_i32_0 = arith.constant 0 : i32
    %c0_i32_1 = arith.constant 0 : i32
    return %c0_i32, %c0_i32_0 : i32, i32
  }
  func.func @transform_3(%arg0: i32) -> (i32, i32) {
    %c0_i32 = arith.constant 0 : i32
    %c0_i32_0 = arith.constant 0 : i32
    return %arg0, %c0_i32 : i32, i32
  }
  func.func @transform_4(%arg0: i32) -> (i32, i32) {
    %c0_i32 = arith.constant 0 : i32
    %c0_i32_0 = arith.constant 0 : i32
    return %arg0, %c0_i32 : i32, i32
  }
}

module attributes {stable_mosaic.version = 11 : i64} {
  func.func @_edgeconv_linear_kernel(%arg0: i32, %arg1: memref<32x384xf32, #tpu.memory_space<vmem>>, %arg2: memref<384x256xf32, #tpu.memory_space<vmem>>, %arg3: memref<1x128xf32, #tpu.memory_space<vmem>>, %arg4: memref<32x128xf32, #tpu.memory_space<vmem>>, %arg5: memref<32x128xf32, #tpu.memory_space<vmem>>) attributes {dimension_semantics = [#tpu.dimension_semantics<parallel>], iteration_bounds = array<i64: 8>, scalar_prefetch = 0 : i64, scratch_operands = 0 : i64, tpu.core_type = #tpu.core_type<tc>, window_params = [{transform_indices = @transform_0, window_bounds = array<i64: 32, 384>}, {pipeline_mode = #tpu.pipeline_mode<synchronous>, transform_indices = @transform_1, window_bounds = array<i64: 384, 256>}, {pipeline_mode = #tpu.pipeline_mode<synchronous>, transform_indices = @transform_2, window_bounds = array<i64: 1, 128>}, {transform_indices = @transform_3, window_bounds = array<i64: 32, 128>}, {transform_indices = @transform_4, window_bounds = array<i64: 32, 128>}]} {
    %c0 = arith.constant 0 : index
    %c0_0 = arith.constant 0 : index
    %0 = vector.load %arg1[%c0, %c0_0] : memref<32x384xf32, #tpu.memory_space<vmem>>, vector<32x384xf32>
    %c0_1 = arith.constant 0 : index
    %c0_2 = arith.constant 0 : index
    %1 = vector.load %arg2[%c0_1, %c0_2] : memref<384x256xf32, #tpu.memory_space<vmem>>, vector<384x256xf32>
    %cst = arith.constant dense<0.000000e+00> : vector<32x256xf32>
    %2 = tpu.matmul %0, %1, %cst {dimension_numbers = #tpu.dot_dimension_numbers<[1], [0], [0], [1], [0, 0, 1, 1], [], []>} : vector<32x384xf32>, vector<384x256xf32>, vector<32x256xf32> -> vector<32x256xf32>
    %3 = vector.extract_strided_slice %2 {offsets = [0, 0], sizes = [32, 128], strides = [1, 1]} : vector<32x256xf32> to vector<32x128xf32>
    %c0_3 = arith.constant 0 : index
    %c0_4 = arith.constant 0 : index
    %4 = vector.load %arg3[%c0_3, %c0_4] : memref<1x128xf32, #tpu.memory_space<vmem>>, vector<1x128xf32>
    %5 = vector.broadcast %4 : vector<1x128xf32> to vector<32x128xf32>
    %6 = arith.addf %3, %5 : vector<32x128xf32>
    %c0_5 = arith.constant 0 : index
    %c0_6 = arith.constant 0 : index
    %7 = vector.load %arg4[%c0_5, %c0_6] : memref<32x128xf32, #tpu.memory_space<vmem>>, vector<32x128xf32>
    tpu.vector_store %arg4[%c0_5, %c0_6], %6 {strides = array<i32>} : memref<32x128xf32, #tpu.memory_space<vmem>>, vector<32x128xf32>,
    %8 = vector.extract_strided_slice %2 {offsets = [0, 128], sizes = [32, 128], strides = [1, 1]} : vector<32x256xf32> to vector<32x128xf32>
    %c0_7 = arith.constant 0 : index
    %c0_8 = arith.constant 0 : index
    %9 = vector.load %arg5[%c0_7, %c0_8] : memref<32x128xf32, #tpu.memory_space<vmem>>, vector<32x128xf32>
    tpu.vector_store %arg5[%c0_7, %c0_8], %8 {strides = array<i32>} : memref<32x128xf32, #tpu.memory_space<vmem>>, vector<32x128xf32>,
    return
  }
  func.func @transform_0(%arg0: i32) -> (i32, i32) {
    %c0_i32 = arith.constant 0 : i32
    %c0_i32_0 = arith.constant 0 : i32
    return %arg0, %c0_i32 : i32, i32
  }
  func.func @transform_1(%arg0: i32) -> (i32, i32) {
    %c0_i32 = arith.constant 0 : i32
    %c0_i32_0 = arith.constant 0 : i32
    %c0_i32_1 = arith.constant 0 : i32
    return %c0_i32, %c0_i32_0 : i32, i32
  }
  func.func @transform_2(%arg0: i32) -> (i32, i32) {
    %c0_i32 = arith.constant 0 : i32
    %c0_i32_0 = arith.constant 0 : i32
    %c0_i32_1 = arith.constant 0 : i32
    return %c0_i32, %c0_i32_0 : i32, i32
  }
  func.func @transform_3(%arg0: i32) -> (i32, i32) {
    %c0_i32 = arith.constant 0 : i32
    %c0_i32_0 = arith.constant 0 : i32
    return %arg0, %c0_i32 : i32, i32
  }
  func.func @transform_4(%arg0: i32) -> (i32, i32) {
    %c0_i32 = arith.constant 0 : i32
    %c0_i32_0 = arith.constant 0 : i32
    return %arg0, %c0_i32 : i32, i32
  }
}

module attributes {stable_mosaic.version = 11 : i64} {
  func.func @_edgeconv_linear_kernel(%arg0: i32, %arg1: memref<32x512xf32, #tpu.memory_space<vmem>>, %arg2: memref<512x256xf32, #tpu.memory_space<vmem>>, %arg3: memref<1x128xf32, #tpu.memory_space<vmem>>, %arg4: memref<32x128xf32, #tpu.memory_space<vmem>>, %arg5: memref<32x128xf32, #tpu.memory_space<vmem>>) attributes {dimension_semantics = [#tpu.dimension_semantics<parallel>], iteration_bounds = array<i64: 8>, scalar_prefetch = 0 : i64, scratch_operands = 0 : i64, tpu.core_type = #tpu.core_type<tc>, window_params = [{transform_indices = @transform_0, window_bounds = array<i64: 32, 512>}, {pipeline_mode = #tpu.pipeline_mode<synchronous>, transform_indices = @transform_1, window_bounds = array<i64: 512, 256>}, {pipeline_mode = #tpu.pipeline_mode<synchronous>, transform_indices = @transform_2, window_bounds = array<i64: 1, 128>}, {transform_indices = @transform_3, window_bounds = array<i64: 32, 128>}, {transform_indices = @transform_4, window_bounds = array<i64: 32, 128>}]} {
    %c0 = arith.constant 0 : index
    %c0_0 = arith.constant 0 : index
    %0 = vector.load %arg1[%c0, %c0_0] : memref<32x512xf32, #tpu.memory_space<vmem>>, vector<32x512xf32>
    %c0_1 = arith.constant 0 : index
    %c0_2 = arith.constant 0 : index
    %1 = vector.load %arg2[%c0_1, %c0_2] : memref<512x256xf32, #tpu.memory_space<vmem>>, vector<512x256xf32>
    %cst = arith.constant dense<0.000000e+00> : vector<32x256xf32>
    %2 = tpu.matmul %0, %1, %cst {dimension_numbers = #tpu.dot_dimension_numbers<[1], [0], [0], [1], [0, 0, 1, 1], [], []>} : vector<32x512xf32>, vector<512x256xf32>, vector<32x256xf32> -> vector<32x256xf32>
    %3 = vector.extract_strided_slice %2 {offsets = [0, 0], sizes = [32, 128], strides = [1, 1]} : vector<32x256xf32> to vector<32x128xf32>
    %c0_3 = arith.constant 0 : index
    %c0_4 = arith.constant 0 : index
    %4 = vector.load %arg3[%c0_3, %c0_4] : memref<1x128xf32, #tpu.memory_space<vmem>>, vector<1x128xf32>
    %5 = vector.broadcast %4 : vector<1x128xf32> to vector<32x128xf32>
    %6 = arith.addf %3, %5 : vector<32x128xf32>
    %c0_5 = arith.constant 0 : index
    %c0_6 = arith.constant 0 : index
    %7 = vector.load %arg4[%c0_5, %c0_6] : memref<32x128xf32, #tpu.memory_space<vmem>>, vector<32x128xf32>
    tpu.vector_store %arg4[%c0_5, %c0_6], %6 {strides = array<i32>} : memref<32x128xf32, #tpu.memory_space<vmem>>, vector<32x128xf32>,
    %8 = vector.extract_strided_slice %2 {offsets = [0, 128], sizes = [32, 128], strides = [1, 1]} : vector<32x256xf32> to vector<32x128xf32>
    %c0_7 = arith.constant 0 : index
    %c0_8 = arith.constant 0 : index
    %9 = vector.load %arg5[%c0_7, %c0_8] : memref<32x128xf32, #tpu.memory_space<vmem>>, vector<32x128xf32>
    tpu.vector_store %arg5[%c0_7, %c0_8], %8 {strides = array<i32>} : memref<32x128xf32, #tpu.memory_space<vmem>>, vector<32x128xf32>,
    return
  }
  func.func @transform_0(%arg0: i32) -> (i32, i32) {
    %c0_i32 = arith.constant 0 : i32
    %c0_i32_0 = arith.constant 0 : i32
    return %arg0, %c0_i32 : i32, i32
  }
  func.func @transform_1(%arg0: i32) -> (i32, i32) {
    %c0_i32 = arith.constant 0 : i32
    %c0_i32_0 = arith.constant 0 : i32
    %c0_i32_1 = arith.constant 0 : i32
    return %c0_i32, %c0_i32_0 : i32, i32
  }
  func.func @transform_2(%arg0: i32) -> (i32, i32) {
    %c0_i32 = arith.constant 0 : i32
    %c0_i32_0 = arith.constant 0 : i32
    %c0_i32_1 = arith.constant 0 : i32
    return %c0_i32, %c0_i32_0 : i32, i32
  }
  func.func @transform_3(%arg0: i32) -> (i32, i32) {
    %c0_i32 = arith.constant 0 : i32
    %c0_i32_0 = arith.constant 0 : i32
    return %arg0, %c0_i32 : i32, i32
  }
  func.func @transform_4(%arg0: i32) -> (i32, i32) {
    %c0_i32 = arith.constant 0 : i32
    %c0_i32_0 = arith.constant 0 : i32
    return %arg0, %c0_i32 : i32, i32
  }
}

module attributes {stable_mosaic.version = 11 : i64} {
  func.func @_mlp_head_kernel(%arg0: i32, %arg1: memref<32x640xf32, #tpu.memory_space<vmem>>, %arg2: memref<640x128xf32, #tpu.memory_space<vmem>>, %arg3: memref<1x128xf32, #tpu.memory_space<vmem>>, %arg4: memref<128x128xf32, #tpu.memory_space<vmem>>, %arg5: memref<1x128xf32, #tpu.memory_space<vmem>>, %arg6: memref<32x128xf32, #tpu.memory_space<vmem>>) attributes {dimension_semantics = [#tpu.dimension_semantics<parallel>], iteration_bounds = array<i64: 8>, scalar_prefetch = 0 : i64, scratch_operands = 0 : i64, tpu.core_type = #tpu.core_type<tc>, window_params = [{transform_indices = @transform_0, window_bounds = array<i64: 32, 640>}, {pipeline_mode = #tpu.pipeline_mode<synchronous>, transform_indices = @transform_1, window_bounds = array<i64: 640, 128>}, {pipeline_mode = #tpu.pipeline_mode<synchronous>, transform_indices = @transform_2, window_bounds = array<i64: 1, 128>}, {pipeline_mode = #tpu.pipeline_mode<synchronous>, transform_indices = @transform_3, window_bounds = array<i64: 128, 128>}, {pipeline_mode = #tpu.pipeline_mode<synchronous>, transform_indices = @transform_4, window_bounds = array<i64: 1, 128>}, {transform_indices = @transform_5, window_bounds = array<i64: 32, 128>}]} {
    %c0 = arith.constant 0 : index
    %c0_0 = arith.constant 0 : index
    %0 = vector.load %arg1[%c0, %c0_0] : memref<32x640xf32, #tpu.memory_space<vmem>>, vector<32x640xf32>
    %c0_1 = arith.constant 0 : index
    %c0_2 = arith.constant 0 : index
    %1 = vector.load %arg2[%c0_1, %c0_2] : memref<640x128xf32, #tpu.memory_space<vmem>>, vector<640x128xf32>
    %cst = arith.constant dense<0.000000e+00> : vector<32x128xf32>
    %2 = tpu.matmul %0, %1, %cst {dimension_numbers = #tpu.dot_dimension_numbers<[1], [0], [0], [1], [0, 0, 1, 1], [], []>} : vector<32x640xf32>, vector<640x128xf32>, vector<32x128xf32> -> vector<32x128xf32>
    %c0_3 = arith.constant 0 : index
    %c0_4 = arith.constant 0 : index
    %3 = vector.load %arg3[%c0_3, %c0_4] : memref<1x128xf32, #tpu.memory_space<vmem>>, vector<1x128xf32>
    %4 = vector.broadcast %3 : vector<1x128xf32> to vector<32x128xf32>
    %5 = arith.addf %2, %4 : vector<32x128xf32>
    %c0_5 = arith.constant 0 : index
    %c0_6 = arith.constant 0 : index
    %6 = vector.load %arg4[%c0_5, %c0_6] : memref<128x128xf32, #tpu.memory_space<vmem>>, vector<128x128xf32>
    %cst_7 = arith.constant dense<0.000000e+00> : vector<32x128xf32>
    %7 = tpu.matmul %5, %6, %cst_7 {dimension_numbers = #tpu.dot_dimension_numbers<[1], [0], [0], [1], [0, 0, 1, 1], [], []>} : vector<32x128xf32>, vector<128x128xf32>, vector<32x128xf32> -> vector<32x128xf32>
    %c0_8 = arith.constant 0 : index
    %c0_9 = arith.constant 0 : index
    %8 = vector.load %arg5[%c0_8, %c0_9] : memref<1x128xf32, #tpu.memory_space<vmem>>, vector<1x128xf32>
    %9 = vector.broadcast %8 : vector<1x128xf32> to vector<32x128xf32>
    %10 = arith.addf %7, %9 : vector<32x128xf32>
    %c0_10 = arith.constant 0 : index
    %c0_11 = arith.constant 0 : index
    %11 = vector.load %arg6[%c0_10, %c0_11] : memref<32x128xf32, #tpu.memory_space<vmem>>, vector<32x128xf32>
    tpu.vector_store %arg6[%c0_10, %c0_11], %10 {strides = array<i32>} : memref<32x128xf32, #tpu.memory_space<vmem>>, vector<32x128xf32>,
    return
  }
  func.func @transform_0(%arg0: i32) -> (i32, i32) {
    %c0_i32 = arith.constant 0 : i32
    %c0_i32_0 = arith.constant 0 : i32
    return %arg0, %c0_i32 : i32, i32
  }
  func.func @transform_1(%arg0: i32) -> (i32, i32) {
    %c0_i32 = arith.constant 0 : i32
    %c0_i32_0 = arith.constant 0 : i32
    %c0_i32_1 = arith.constant 0 : i32
    return %c0_i32, %c0_i32_0 : i32, i32
  }
  func.func @transform_2(%arg0: i32) -> (i32, i32) {
    %c0_i32 = arith.constant 0 : i32
    %c0_i32_0 = arith.constant 0 : i32
    %c0_i32_1 = arith.constant 0 : i32
    return %c0_i32, %c0_i32_0 : i32, i32
  }
  func.func @transform_3(%arg0: i32) -> (i32, i32) {
    %c0_i32 = arith.constant 0 : i32
    %c0_i32_0 = arith.constant 0 : i32
    %c0_i32_1 = arith.constant 0 : i32
    return %c0_i32, %c0_i32_0 : i32, i32
  }
  func.func @transform_4(%arg0: i32) -> (i32, i32) {
    %c0_i32 = arith.constant 0 : i32
    %c0_i32_0 = arith.constant 0 : i32
    %c0_i32_1 = arith.constant 0 : i32
    return %c0_i32, %c0_i32_0 : i32, i32
  }
  func.func @transform_5(%arg0: i32) -> (i32, i32) {
    %c0_i32 = arith.constant 0 : i32
    %c0_i32_0 = arith.constant 0 : i32
    return %arg0, %c0_i32 : i32, i32
  }
}

</mosaic_0001>

<llo_original>
// kernel: sub.11
$region0: #{sub.11}
  #allocation0 [shape = 's32[1]{0}', space=sflag, size = 0x4, scoped, tag = 'scoped memory for sub.11']
  %s0 = inlined_call_operand.vmem [shape: f32[24,16], index: 0, kind: input, shape index: {}]
  %s1 = inlined_call_operand.vmem [shape: f32[24,16], index: 1, kind: input, shape index: {}]
  %s2 = inlined_call_operand.vmem [shape: f32[24,16], index: 2, kind: output, shape index: {}]
  %v3 = vld [vmem:[%s0] sm:$0xff]
  %v4 = vld [vmem:[%s1] sm:$0xff]
  %5 = xla_tuple %v3, %v4
  %6 = xla_tuple %5
  %v7 = vsub.f32 %v3, %v4
  %8 = xla_tuple %v7
  %9 = vst [vmem:[%s2] sm:$0xff] %v7
  %s10 = scalar_lea.vmem %s0, 8
  %v11 = vld [vmem:[%s10] sm:$0xff]
  %s12 = scalar_lea.vmem %s1, 8
  %v13 = vld [vmem:[%s12] sm:$0xff]
  %14 = xla_tuple %v11, %v13
  %15 = xla_tuple %14
  %v16 = vsub.f32 %v11, %v13
  %17 = xla_tuple %v16
  %s18 = scalar_lea.vmem %s2, 8
  %19 = vst [vmem:[%s18] sm:$0xff] %v16
  %s20 = scalar_lea.vmem %s0, 16
  %v21 = vld [vmem:[%s20] sm:$0xff]
  %s22 = scalar_lea.vmem %s1, 16
  %v23 = vld [vmem:[%s22] sm:$0xff]
  %24 = xla_tuple %v21, %v23
  %25 = xla_tuple %24
  %v26 = vsub.f32 %v21, %v23
  %27 = xla_tuple %v26
  %s28 = scalar_lea.vmem %s2, 16
  %29 = vst [vmem:[%s28] sm:$0xff] %v26

// kernel: fwd.9
$region0: #{fwd.9}
  #allocation0 [shape = 'u32[]', space=smem, size = 0x4, offset = 0x4, fixed_abs, tag = 'smem constant byte address 0x4 - core index']
  #allocation1 [shape = 'u32[144,128]{1,0:T(1,128)}', space=vmem, size = 0x12000, scoped, tag = 'internal scratch']
  %s0 = inlined_call_operand.vmem [shape: f32[256,640], index: 0, kind: input, shape index: {}]
  %s1 = inlined_call_operand.vmem [shape: f32[128,256], index: 1, kind: input, shape index: {}]
  %s2 = inlined_call_operand.vmem [shape: f32[1,128], index: 2, kind: input, shape index: {}]
  %s3 = inlined_call_operand.vmem [shape: f32[256,128], index: 3, kind: output, shape index: {0}]
  %s4 = inlined_call_operand.vmem [shape: f32[256,128], index: 4, kind: output, shape index: {1}]
  %5 = xla_tuple %s3, %s4
  %s6 = sld [smem:[#allocation0]]
  $region91: #{fwd.9} parent=0
    _
  %s8 = ssub.s32 1, %s6
  %s9 = scalar_select 0, %s8, %s6
  $region1: #{fwd.9} parent=0
    #allocation2 [shape = 'u8[32768]{0}', space=vmem, size = 0x8000, scoped, tag = 'input window, operand 0']
    loop: start=0, step=1, limit=10
    $region2: #{fwd.9} parent=1 // loop_pre_header
      _
    $region3: #{fwd.9} parent=1 // loop_header
      %s11 = sphi 0, %s15
      %p12 = scmp.ge.s32.totalorder %s11, 10
      %s21 = sphi 0, %s23
      %s24 = sphi 0, %s21
      %s25 = sphi 0, %s24
      %s41 = sphi 0, %s25
      %s45 = sphi 0, %s45
      %s47 = sphi 0, %s45
      %s48 = sphi 0, %s47
      %s62 = sphi 0, %s48
      %s66 = sphi 0, %s66
      %s68 = sphi 0, %s66
      %s69 = sphi 0, %s68
      %s83 = sphi 0, %s69
      %s89 = sphi 0, %s91
      %s92 = sphi 0, %s89
      %s93 = sphi 0, %s92
      %s109 = sphi 0, %s93
      %s115 = sphi 0, %s117
      %s118 = sphi 0, %s115
      %s119 = sphi 0, %s118
      %s135 = sphi 0, %s119
    $region4: #{fwd.9} parent=1 // loop_header_branch
      %14 = sbr.rel (%p12) target = $region8
    $region5: #{fwd.9} parent=1 // loop_body
      %s16 = ssub.s32 %s11, 1
      %s17 = ssub.s32 %s11, 2
      %s18 = sadd.s32 %s11, 1
      %s19 = ssub.s32 %s11, %s18
      %p20 = scmp.eq.s32.totalorder %s19, 0
      %s22 = sadd.s32 %s21, 1
      %s23 = scalar_select %p20, %s21, %s22
      %p26 = pneg %p20
      %p27 = scmp.eq.s32.totalorder %s11, 7
      %p28 = por %p26, %p27
      %p29 = scmp.ne.s32.totalorder %s21, %s24
      %p30 = scmp.eq.s32.totalorder %s11, 0
      %p31 = por %p29, %p30
      %p32 = scmp.ne.s32.totalorder %s21, %s24
      %p33 = scmp.eq.s32.totalorder %s16, 7
      %p34 = por %p32, %p33
      %p35 = scmp.ne.s32.totalorder %s24, %s25
      %p36 = scmp.eq.s32.totalorder %s16, 0
      %p37 = por %p35, %p36
      %p38 = scmp.ne.s32.totalorder %s24, %s25
      %p39 = scmp.eq.s32.totalorder %s17, 7
      %p40 = por %p38, %p39
      %p42 = scmp.ne.s32.totalorder %s25, %s41
      %p43 = scmp.eq.s32.totalorder %s17, 0
      %p44 = por %p42, %p43
      %s46 = sadd.s32 %s45, 1
      %p49 = scmp.eq.s32.totalorder %s11, 7
      %p50 = scmp.ne.s32.totalorder %s45, %s47
      %p51 = scmp.eq.s32.totalorder %s11, 0
      %p52 = por %p50, %p51
      %p53 = scmp.ne.s32.totalorder %s45, %s47
      %p54 = scmp.eq.s32.totalorder %s16, 7
      %p55 = por %p53, %p54
      %p56 = scmp.ne.s32.totalorder %s47, %s48
      %p57 = scmp.eq.s32.totalorder %s16, 0
      %p58 = por %p56, %p57
      %p59 = scmp.ne.s32.totalorder %s47, %s48
      %p60 = scmp.eq.s32.totalorder %s17, 7
      %p61 = por %p59, %p60
      %p63 = scmp.ne.s32.totalorder %s48, %s62
      %p64 = scmp.eq.s32.totalorder %s17, 0
      %p65 = por %p63, %p64
      %s67 = sadd.s32 %s66, 1
      %p70 = scmp.eq.s32.totalorder %s11, 7
      %p71 = scmp.ne.s32.totalorder %s66, %s68
      %p72 = scmp.eq.s32.totalorder %s11, 0
      %p73 = por %p71, %p72
      %p74 = scmp.ne.s32.totalorder %s66, %s68
      %p75 = scmp.eq.s32.totalorder %s16, 7
      %p76 = por %p74, %p75
      %p77 = scmp.ne.s32.totalorder %s68, %s69
      %p78 = scmp.eq.s32.totalorder %s16, 0
      %p79 = por %p77, %p78
      %p80 = scmp.ne.s32.totalorder %s68, %s69
      %p81 = scmp.eq.s32.totalorder %s17, 7
      %p82 = por %p80, %p81
      %p84 = scmp.ne.s32.totalorder %s69, %s83
      %p85 = scmp.eq.s32.totalorder %s17, 0
      %p86 = por %p84, %p85
      %s87 = ssub.s32 %s11, %s18
      %p88 = scmp.eq.s32.totalorder %s87, 0
      %s90 = sadd.s32 %s89, 1
      %s91 = scalar_select %p88, %s89, %s90
      %p94 = pneg %p88
      %p95 = scmp.eq.s32.totalorder %s11, 7
      %p96 = por %p94, %p95
      %p97 = scmp.ne.s32.totalorder %s89, %s92
      %p98 = scmp.eq.s32.totalorder %s11, 0
      %p99 = por %p97, %p98
      %p100 = scmp.ne.s32.totalorder %s89, %s92
      %p101 = scmp.eq.s32.totalorder %s16, 7
      %p102 = por %p100, %p101
      %p103 = scmp.ne.s32.totalorder %s92, %s93
      %p104 = scmp.eq.s32.totalorder %s16, 0
      %p105 = por %p103, %p104
      %p106 = scmp.ne.s32.totalorder %s92, %s93
      %p107 = scmp.eq.s32.totalorder %s17, 7
      %p108 = por %p106, %p107
      %p110 = scmp.ne.s32.totalorder %s93, %s109
      %p111 = scmp.eq.s32.totalorder %s17, 0
      %p112 = por %p110, %p111
      %s113 = ssub.s32 %s11, %s18
      %p114 = scmp.eq.s32.totalorder %s113, 0
      %s116 = sadd.s32 %s115, 1
      %s117 = scalar_select %p114, %s115, %s116
      %p120 = pneg %p114
      %p121 = scmp.eq.s32.totalorder %s11, 7
      %p122 = por %p120, %p121
      %p123 = scmp.ne.s32.totalorder %s115, %s118
      %p124 = scmp.eq.s32.totalorder %s11, 0
      %p125 = por %p123, %p124
      %p126 = scmp.ne.s32.totalorder %s115, %s118
      %p127 = scmp.eq.s32.totalorder %s16, 7
      %p128 = por %p126, %p127
      %p129 = scmp.ne.s32.totalorder %s118, %s119
      %p130 = scmp.eq.s32.totalorder %s16, 0
      %p131 = por %p129, %p130
      %p132 = scmp.ne.s32.totalorder %s118, %s119
      %p133 = scmp.eq.s32.totalorder %s17, 7
      %p134 = por %p132, %p133
      %p136 = scmp.ne.s32.totalorder %s119, %s135
      %p137 = scmp.eq.s32.totalorder %s17, 0
      %p138 = por %p136, %p137
      %p139 = scmp.le.s32.totalorder 1, %s11
      %p140 = scmp.lt.s32.totalorder %s11, 9
      %p141 = pnand %p139, %p140
      %p142 = pneg %p141
      // Predicated region
      $region9: #{fwd.9} parent=5 // pred_check
        _
      $region10: #{fwd.9} parent=5 // pred_check_branch
        %144 = sbr.rel (%p141) target = $region12
      $region11: #{fwd.9} parent=5 // pred_region
        %s145 = ssub.s32 %s11, 1
        // Predicated region
        $region13: #{fwd.9} parent=11 // pred_check
          %p146 = pneg %p58
        $region14: #{fwd.9} parent=11 // pred_check_branch
          %148 = sbr.rel (%p146) target = $region16
        $region15: #{fwd.9} parent=11 // pred_region
          _
        $region16: #{fwd.9} parent=11 // pred_fallthru
          _
        // Predicated region
        $region17: #{fwd.9} parent=11 // pred_check
          %p149 = pneg %p79
        $region18: #{fwd.9} parent=11 // pred_check_branch
          %151 = sbr.rel (%p149) target = $region20
        $region19: #{fwd.9} parent=11 // pred_region
          _
        $region20: #{fwd.9} parent=11 // pred_fallthru
          _
      $region12: #{fwd.9} parent=5 // pred_fallthru
        _
      %p152 = scmp.lt.s32.totalorder %s11, 8
      // Predicated region
      $region21: #{fwd.9} parent=5 // pred_check
        %p153 = pneg %p152
      $region22: #{fwd.9} parent=5 // pred_check_branch
        %155 = sbr.rel (%p153) target = $region24
      $region23: #{fwd.9} parent=5 // pred_region
        // Predicated region
        $region25: #{fwd.9} parent=23 // pred_check
          %p156 = pneg %p31
        $region26: #{fwd.9} parent=23 // pred_check_branch
          %158 = sbr.rel (%p156) target = $region28
        $region27: #{fwd.9} parent=23 // pred_region
          %s159 = sand.u32 %s21, 1
          %s160 = sand.u32 %s21, 1
          %s161 = smul.addr %s160, 32
          %s162 = scalar_lea.vmem [#allocation2], %s161
          %s163 = smul.u32 4, %s11
          %s164 = smul.addr %s163, 5
          %s165 = smul.addr %s164, 8
          %s166 = scalar_lea.vmem %s0, %s165
          // Predicated region
          $region29: #{fwd.9} parent=27 // pred_check
            _
          $region30: #{fwd.9} parent=27 // pred_check_branch
            %168 = sbr.rel (0) target = $region32
          $region31: #{fwd.9} parent=27 // pred_region
            // Predicated region
            $region33: #{fwd.9} parent=31 // pred_check
              _
            $region34: #{fwd.9} parent=31 // pred_check_branch
              %170 = sbr.rel (0) target = $region36
            $region35: #{fwd.9} parent=31 // pred_region
              // Predicated region
              $region48: #{fwd.9} parent=35 // pred_check
                _
              $region49: #{fwd.9} parent=35 // pred_check_branch
                %192 = sbr.rel (0) target = $region51
              $region50: #{fwd.9} parent=35 // pred_region
                loop: start=0, step=1, limit=1
                $region52: #{fwd.9} parent=50 // loop_pre_header
                  _
                $region53: #{fwd.9} parent=50 // loop_header
                  %s194 = sphi 0, %s198
                  %p195 = scmp.ge.s32.totalorder %s194, 1
                  %s199 = sphi %s166, %s166
                  %s200 = sphi %s162, %s162
                $region54: #{fwd.9} parent=50 // loop_header_branch
                  %197 = sbr.rel (%p195) target = $region58
                $region55: #{fwd.9} parent=50 // loop_body
                  %v201 = vld [vmem:[%s199] sm:$0xff]
                  %202 = vst [vmem:[%s200] sm:$0xff] %v201
                  %v203 = vld [vmem:[%s199 + $0x28] sm:$0xff]
                  %204 = vst [vmem:[%s200 + $0x8] sm:$0xff] %v203
                  %v205 = vld [vmem:[%s199 + $0x50] sm:$0xff]
                  %206 = vst [vmem:[%s200 + $0x10] sm:$0xff] %v205
                  %v207 = vld [vmem:[%s199 + $0x78] sm:$0xff]
                  %208 = vst [vmem:[%s200 + $0x18] sm:$0xff] %v207
                $region56: #{fwd.9} parent=50 // loop_footer
                  %s198 = sadd.s32 1, %s194
                $region57: #{fwd.9} parent=50 // loop_footer_branch
                  %193 = sbr.rel target = $region53
                $region58: #{fwd.9} parent=50 // loop_exit
                  _
              $region51: #{fwd.9} parent=35 // pred_fallthru
                _
              // Predicated region
              $region59: #{fwd.9} parent=35 // pred_check
                _
              $region60: #{fwd.9} parent=35 // pred_check_branch
                %210 = sbr.rel target = $region62
              $region61: #{fwd.9} parent=35 // pred_region
                _
              $region62: #{fwd.9} parent=35 // pred_fallthru
                _
            $region36: #{fwd.9} parent=31 // pred_fallthru
              _
            // Predicated region
            $region37: #{fwd.9} parent=31 // pred_check
              _
            $region38: #{fwd.9} parent=31 // pred_check_branch
              %172 = sbr.rel target = $region40
            $region39: #{fwd.9} parent=31 // pred_region
              %s174 = ssub.s32 256, 1
              loop: start=0, step=1, limit=1
              $region41: #{fwd.9} parent=39 // loop_pre_header
                _
              $region42: #{fwd.9} parent=39 // loop_header
                %s176 = sphi 0, %s180
                %p177 = scmp.ge.s32.totalorder %s176, 1
                %s181 = sphi %s166, %s166
                %s182 = sphi %s162, %s162
              $region43: #{fwd.9} parent=39 // loop_header_branch
                %179 = sbr.rel (%p177) target = $region47
              $region44: #{fwd.9} parent=39 // loop_body
                %v183 = vld [vmem:[%s181] sm:%s174]
                %184 = vst [vmem:[%s182] sm:%s174] %v183
                %v185 = vld [vmem:[%s181 + $0x28] sm:%s174]
                %186 = vst [vmem:[%s182 + $0x8] sm:%s174] %v185
                %v187 = vld [vmem:[%s181 + $0x50] sm:%s174]
                %188 = vst [vmem:[%s182 + $0x10] sm:%s174] %v187
                %v189 = vld [vmem:[%s181 + $0x78] sm:%s174]
                %190 = vst [vmem:[%s182 + $0x18] sm:%s174] %v189
              $region45: #{fwd.9} parent=39 // loop_footer
                %s180 = sadd.s32 1, %s176
              $region46: #{fwd.9} parent=39 // loop_footer_branch
                %175 = sbr.rel target = $region42
              $region47: #{fwd.9} parent=39 // loop_exit
                _
            $region40: #{fwd.9} parent=31 // pred_fallthru
              _
          $region32: #{fwd.9} parent=27 // pred_fallthru
            _
          %211 = vnop
        $region28: #{fwd.9} parent=23 // pred_fallthru
          _
      $region24: #{fwd.9} parent=5 // pred_fallthru
        _
      %p212 = scmp.le.s32.totalorder 1, %s11
      %p213 = scmp.lt.s32.totalorder %s11, 9
      %p214 = pnand %p212, %p213
      %p215 = pneg %p214
      // Predicated region
      $region63: #{fwd.9} parent=5 // pred_check
        _
      $region64: #{fwd.9} parent=5 // pred_check_branch
        %217 = sbr.rel (%p214) target = $region66
      $region65: #{fwd.9} parent=5 // pred_region
        %s218 = ssub.s32 %s11, 1
        %s219 = sand.u32 %s24, 1
        %s220 = sand.u32 %s24, 1
        %s221 = smul.addr %s220, 32
        %s222 = scalar_lea.vmem [#allocation2], %s221
        // Predicated region
        $region67: #{fwd.9} parent=65 // pred_check
          %p223 = pneg %p37
        $region68: #{fwd.9} parent=65 // pred_check_branch
          %225 = sbr.rel (%p223) target = $region70
        $region69: #{fwd.9} parent=65 // pred_region
          _
        $region70: #{fwd.9} parent=65 // pred_fallthru
          _
        %s226 = sand.u32 %s24, 1
        %s227 = sand.u32 %s24, 1
        %s228 = smul.addr %s227, 32
        %s229 = scalar_lea.vmem [#allocation2], %s228
        %p230 = pneg %p37
        %p231 = pneg %p34
        %p232 = pneg %p58
        %p233 = pneg %p55
        %p234 = pneg %p79
        %p235 = pneg %p76
        %p236 = pneg %p105
        %p237 = pneg %p102
        %s238 = smul.u32 4, %s16
        %p239 = scmp.lt.s32.totalorder %s238, 31
        %s240 = scalar_select %p239, %s238, 31
        %s241 = smul.addr %s240, 8
        %s242 = scalar_lea.vmem %s3, %s241
        %p243 = pneg %p131
        %p244 = pneg %p128
        %s245 = smul.u32 4, %s16
        %p246 = scmp.lt.s32.totalorder %s245, 31
        %s247 = scalar_select %p246, %s245, 31
        %s248 = smul.addr %s247, 8
        %s249 = scalar_lea.vmem %s4, %s248
        %s250 = smul.u32 4, %s16
        %s251 = smul.u32 4, %s16
        %p252 = scmp.lt.s32.totalorder %s251, 31
        %s253 = scalar_select %p252, %s251, 31
        %s254 = smul.addr %s253, 8
        %s255 = scalar_lea.vmem %s3, %s254
        %s256 = smul.u32 4, %s16
        %s257 = smul.u32 4, %s16
        %p258 = scmp.lt.s32.totalorder %s257, 31
        %s259 = scalar_select %p258, %s257, 31
        %s260 = smul.addr %s259, 8
        %s261 = scalar_lea.vmem %s4, %s260
        %s262 = smul.u32 4, %s16
        %v263 = vld [vmem:[%s222] sm:$0xff]
        %v264 = vld [vmem:[%s222 + $0x8] sm:$0xff]
        %v265 = vld [vmem:[%s222 + $0x10] sm:$0xff]
        %v266 = vld [vmem:[%s222 + $0x18] sm:$0xff]
        %v267 = vld [vmem:[%s1] sm:$0xff]
        %v268 = vld [vmem:[%s1 + $0x8] sm:$0xff]
        %v269 = vld [vmem:[%s1 + $0x10] sm:$0xff]
        %v270 = vld [vmem:[%s1 + $0x18] sm:$0xff]
        %v271 = vld [vmem:[%s1 + $0x20] sm:$0xff]
        %v272 = vld [vmem:[%s1 + $0x28] sm:$0xff]
        %v273 = vld [vmem:[%s1 + $0x30] sm:$0xff]
        %v274 = vld [vmem:[%s1 + $0x38] sm:$0xff]
        %v275 = vld [vmem:[%s1 + $0x40] sm:$0xff]
        %v276 = vld [vmem:[%s1 + $0x48] sm:$0xff]
        %v277 = vld [vmem:[%s1 + $0x50] sm:$0xff]
        %v278 = vld [vmem:[%s1 + $0x58] sm:$0xff]
        %v279 = vld [vmem:[%s1 + $0x60] sm:$0xff]
        %v280 = vld [vmem:[%s1 + $0x68] sm:$0xff]
        %v281 = vld [vmem:[%s1 + $0x70] sm:$0xff]
        %v282 = vld [vmem:[%s1 + $0x78] sm:$0xff]
        %v283 = vld [vmem:[%s1 + $0x80] sm:$0xff]
        %v284 = vld [vmem:[%s1 + $0x88] sm:$0xff]
        %v285 = vld [vmem:[%s1 + $0x90] sm:$0xff]
        %v286 = vld [vmem:[%s1 + $0x98] sm:$0xff]
        %v287 = vld [vmem:[%s1 + $0xa0] sm:$0xff]
        %v288 = vld [vmem:[%s1 + $0xa8] sm:$0xff]
        %v289 = vld [vmem:[%s1 + $0xb0] sm:$0xff]
        %v290 = vld [vmem:[%s1 + $0xb8] sm:$0xff]
        %v291 = vld [vmem:[%s1 + $0xc0] sm:$0xff]
        %v292 = vld [vmem:[%s1 + $0xc8] sm:$0xff]
        %v293 = vld [vmem:[%s1 + $0xd0] sm:$0xff]
        %v294 = vld [vmem:[%s1 + $0xd8] sm:$0xff]
        %v295 = vld [vmem:[%s1 + $0xe0] sm:$0xff]
        %v296 = vld [vmem:[%s1 + $0xe8] sm:$0xff]
        %v297 = vld [vmem:[%s1 + $0xf0] sm:$0xff]
        %v298 = vld [vmem:[%s1 + $0xf8] sm:$0xff]
        %299 = vmatprep.subr.mxu0 %v298
        %300 = vmatpush1.msra.mxu0 %v297
        %301 = vmatprep.subr.mxu0 %v296
        %302 = vmatpush1.msra.mxu0 %v295
        %303 = vmatprep.subr.mxu0 %v294
        %304 = vmatpush1.msra.mxu0 %v293
        %305 = vmatprep.subr.mxu0 %v292
        %306 = vmatpush1.msra.mxu0 %v291
        %307 = vmatprep.subr.mxu0 %v290
        %308 = vmatpush1.msra.mxu0 %v289
        %309 = vmatprep.subr.mxu0 %v288
        %310 = vmatpush1.msra.mxu0 %v287
        %311 = vmatprep.subr.mxu0 %v286
        %312 = vmatpush1.msra.mxu0 %v285
        %313 = vmatprep.subr.mxu0 %v284
        %314 = vmatpush1.msra.mxu0 %v283
        %315 = vmatprep.subr.mxu0 %v282
        %316 = vmatpush1.msra.mxu0 %v281
        %317 = vmatprep.subr.mxu0 %v280
        %318 = vmatpush1.msra.mxu0 %v279
        %319 = vmatprep.subr.mxu0 %v278
        %320 = vmatpush1.msra.mxu0 %v277
        %321 = vmatprep.subr.mxu0 %v276
        %322 = vmatpush1.msra.mxu0 %v275
        %323 = vmatprep.subr.mxu0 %v274
        %324 = vmatpush1.msra.mxu0 %v273
        %325 = vmatprep.subr.mxu0 %v272
        %326 = vmatpush1.msra.mxu0 %v271
        %327 = vmatprep.subr.mxu0 %v270
        %328 = vmatpush1.msra.mxu0 %v269
        %329 = vmatprep.subr.mxu0 %v268
        %330 = vmatpush1.msra.mxu0 %v267
        %331 = vmatprep.subr.mxu0 0.0
        %332 = vmatpush2.msra.mxu0 0.0
        %333 = vmatprep.subr.mxu0 0.0
        %334 = vmatpush2.msra.mxu0 0.0
        %335 = vmatprep.subr.mxu0 0.0
        %336 = vmatpush2.msra.mxu0 0.0
        %337 = vmatprep.subr.mxu0 0.0
        %338 = vmatpush2.msra.mxu0 0.0
        %339 = vmatprep.subr.mxu0 0.0
        %340 = vmatpush2.msra.mxu0 0.0
        %341 = vmatprep.subr.mxu0 0.0
        %342 = vmatpush2.msra.mxu0 0.0
        %343 = vmatprep.subr.mxu0 0.0
        %344 = vmatpush2.msra.mxu0 0.0
        %345 = vmatprep.subr.mxu0 0.0
        %346 = vmatpush2.msra.mxu0 0.0
        %347 = vmatprep.subr.mxu0 0.0
        %348 = vmatpush2.msra.mxu0 0.0
        %349 = vmatprep.subr.mxu0 0.0
        %350 = vmatpush2.msra.mxu0 0.0
        %351 = vmatprep.subr.mxu0 0.0
        %352 = vmatpush2.msra.mxu0 0.0
        %353 = vmatprep.subr.mxu0 0.0
        %354 = vmatpush2.msra.mxu0 0.0
        %355 = vmatprep.subr.mxu0 0.0
        %356 = vmatpush2.msra.mxu0 0.0
        %357 = vmatprep.subr.mxu0 0.0
        %358 = vmatpush2.msra.mxu0 0.0
        %359 = vmatprep.subr.mxu0 0.0
        %360 = vmatpush2.msra.mxu0 0.0
        %361 = vmatprep.subr.mxu0 0.0
        %362 = vmatpush2.msra.mxu0 0.0
        %363 = vmatprep.mubr.f32.mxu0 0.0
        %364 = vmatmul.mubr.f32.gmra.mxu0 %v263
        %v365 = vpop.f32.mrf.mxu0
        %v366 = vadd.f32 0.0, %v365
        %v367 = vpop.f32.mrf.mxu0
        %v368 = vadd.f32 0.0, %v367
        %369 = vmatprep.mubr.f32.mxu0 0.0
        %370 = vmatmul.mubr.f32.gmra.mxu0 %v264
        %v371 = vpop.f32.mrf.mxu0
        %v372 = vadd.f32 0.0, %v371
        %v373 = vpop.f32.mrf.mxu0
        %v374 = vadd.f32 0.0, %v373
        %375 = vmatprep.mubr.f32.mxu0 0.0
        %376 = vmatmul.mubr.f32.gmra.mxu0 %v265
        %v377 = vpop.f32.mrf.mxu0
        %v378 = vadd.f32 0.0, %v377
        %v379 = vpop.f32.mrf.mxu0
        %v380 = vadd.f32 0.0, %v379
        %381 = vmatprep.mubr.f32.mxu0 0.0
        %382 = vmatmul.mubr.f32.gmra.mxu0 %v266
        %v383 = vpop.f32.mrf.mxu0
        %v384 = vadd.f32 0.0, %v383
        %v385 = vpop.f32.mrf.mxu0
        %v386 = vadd.f32 0.0, %v385
        %387 = vdwg.mxu0
        %v388 = vld [vmem:[%s2] sm:$0x1]
        %v390 = vlaneseq
        %v391 = vshrl.u32 %v390, 7
        %v392 = vsub.s32 0, %v391
        %v393 = vrot.slane %v388, %v392
        %v395 = vadd.f32 %v366, %v393
        %v396 = vadd.f32 %v372, %v393
        %v397 = vadd.f32 %v378, %v393
        %v398 = vadd.f32 %v384, %v393
        %399 = vst [vmem:[%s255] sm:$0xff] %v395
        %400 = vst [vmem:[%s255 + $0x8] sm:$0xff] %v396
        %401 = vst [vmem:[%s255 + $0x10] sm:$0xff] %v397
        %402 = vst [vmem:[%s255 + $0x18] sm:$0xff] %v398
        %403 = vst [vmem:[%s261] sm:$0xff] %v368
        %404 = vst [vmem:[%s261 + $0x8] sm:$0xff] %v374
        %405 = vst [vmem:[%s261 + $0x10] sm:$0xff] %v380
        %406 = vst [vmem:[%s261 + $0x18] sm:$0xff] %v386
        %s407 = smul.u32 4, %s16
        %p408 = scmp.lt.s32.totalorder %s407, 31
        %s409 = scalar_select %p408, %s407, 31
        %s410 = smul.addr %s409, 8
        %s411 = scalar_lea.vmem %s3, %s410
        %s412 = smul.u32 4, %s16
        %p413 = scmp.lt.s32.totalorder %s412, 31
        %s414 = scalar_select %p413, %s412, 31
        %s415 = smul.addr %s414, 8
        %s416 = scalar_lea.vmem %s4, %s415
        // Predicated region
        $region71: #{fwd.9} parent=65 // pred_check
          %p417 = pneg %p102
        $region72: #{fwd.9} parent=65 // pred_check_branch
          %419 = sbr.rel (%p417) target = $region74
        $region73: #{fwd.9} parent=65 // pred_region
          %s420 = smul.u32 4, %s16
        $region74: #{fwd.9} parent=65 // pred_fallthru
          _
        // Predicated region
        $region75: #{fwd.9} parent=65 // pred_check
          %p421 = pneg %p128
        $region76: #{fwd.9} parent=65 // pred_check_branch
          %423 = sbr.rel (%p421) target = $region78
        $region77: #{fwd.9} parent=65 // pred_region
          %s424 = smul.u32 4, %s16
        $region78: #{fwd.9} parent=65 // pred_fallthru
          _
      $region66: #{fwd.9} parent=5 // pred_fallthru
        _
      %p425 = scmp.le.s32.totalorder 2, %s11
      // Predicated region
      $region79: #{fwd.9} parent=5 // pred_check
        %p426 = pneg %p425
      $region80: #{fwd.9} parent=5 // pred_check_branch
        %428 = sbr.rel (%p426) target = $region82
      $region81: #{fwd.9} parent=5 // pred_region
        %s429 = ssub.s32 %s11, 2
        // Predicated region
        $region83: #{fwd.9} parent=81 // pred_check
          %p430 = pneg %p108
        $region84: #{fwd.9} parent=81 // pred_check_branch
          %432 = sbr.rel (%p430) target = $region86
        $region85: #{fwd.9} parent=81 // pred_region
          %s433 = smul.u32 4, %s17
          %p434 = scmp.lt.s32.totalorder %s433, 31
          %s435 = scalar_select %p434, %s433, 31
          %s436 = smul.addr %s435, 8
          %s437 = scalar_lea.vmem %s3, %s436
        $region86: #{fwd.9} parent=81 // pred_fallthru
          _
        // Predicated region
        $region87: #{fwd.9} parent=81 // pred_check
          %p438 = pneg %p134
        $region88: #{fwd.9} parent=81 // pred_check_branch
          %440 = sbr.rel (%p438) target = $region90
        $region89: #{fwd.9} parent=81 // pred_region
          %s441 = smul.u32 4, %s17
          %p442 = scmp.lt.s32.totalorder %s441, 31
          %s443 = scalar_select %p442, %s441, 31
          %s444 = smul.addr %s443, 8
          %s445 = scalar_lea.vmem %s4, %s444
        $region90: #{fwd.9} parent=81 // pred_fallthru
          _
      $region82: #{fwd.9} parent=5 // pred_fallthru
        _
    $region6: #{fwd.9} parent=1 // loop_footer
      %s15 = sadd.s32 1, %s11
    $region7: #{fwd.9} parent=1 // loop_footer_branch
      %10 = sbr.rel target = $region3
    $region8: #{fwd.9} parent=1 // loop_exit
      _

// kernel: sub.13
$region0: #{sub.13}
  #allocation0 [shape = 's32[1]{0}', space=sflag, size = 0x4, scoped, tag = 'scoped memory for sub.13']
  %s0 = inlined_call_operand.vmem [shape: f32[40,32], index: 0, kind: input, shape index: {}]
  %s1 = inlined_call_operand.vmem [shape: f32[40,32], index: 1, kind: input, shape index: {}]
  %s2 = inlined_call_operand.vmem [shape: f32[40,32], index: 2, kind: output, shape index: {}]
  %v3 = vld [vmem:[%s0] sm:$0xff]
  %v4 = vld [vmem:[%s1] sm:$0xff]
  %5 = xla_tuple %v3, %v4
  %6 = xla_tuple %5
  %v7 = vsub.f32 %v3, %v4
  %8 = xla_tuple %v7
  %9 = vst [vmem:[%s2] sm:$0xff] %v7
  %s10 = scalar_lea.vmem %s0, 8
  %v11 = vld [vmem:[%s10] sm:$0xff]
  %s12 = scalar_lea.vmem %s1, 8
  %v13 = vld [vmem:[%s12] sm:$0xff]
  %14 = xla_tuple %v11, %v13
  %15 = xla_tuple %14
  %v16 = vsub.f32 %v11, %v13
  %17 = xla_tuple %v16
  %s18 = scalar_lea.vmem %s2, 8
  %19 = vst [vmem:[%s18] sm:$0xff] %v16
  %s20 = scalar_lea.vmem %s0, 16
  %v21 = vld [vmem:[%s20] sm:$0xff]
  %s22 = scalar_lea.vmem %s1, 16
  %v23 = vld [vmem:[%s22] sm:$0xff]
  %24 = xla_tuple %v21, %v23
  %25 = xla_tuple %24
  %v26 = vsub.f32 %v21, %v23
  %27 = xla_tuple %v26
  %s28 = scalar_lea.vmem %s2, 16
  %29 = vst [vmem:[%s28] sm:$0xff] %v26
  %s30 = scalar_lea.vmem %s0, 24
  %v31 = vld [vmem:[%s30] sm:$0xff]
  %s32 = scalar_lea.vmem %s1, 24
  %v33 = vld [vmem:[%s32] sm:$0xff]
  %34 = xla_tuple %v31, %v33
  %35 = xla_tuple %34
  %v36 = vsub.f32 %v31, %v33
  %37 = xla_tuple %v36
  %s38 = scalar_lea.vmem %s2, 24
  %39 = vst [vmem:[%s38] sm:$0xff] %v36
  %s40 = scalar_lea.vmem %s0, 32
  %v41 = vld [vmem:[%s40] sm:$0xff]
  %s42 = scalar_lea.vmem %s1, 32
  %v43 = vld [vmem:[%s42] sm:$0xff]
  %44 = xla_tuple %v41, %v43
  %45 = xla_tuple %44
  %v46 = vsub.f32 %v41, %v43
  %47 = xla_tuple %v46
  %s48 = scalar_lea.vmem %s2, 32
  %49 = vst [vmem:[%s48] sm:$0xff] %v46

// kernel: fwd.11
$region0: #{fwd.11}
  #allocation0 [shape = 'u32[]', space=smem, size = 0x4, offset = 0x4, fixed_abs, tag = 'smem constant byte address 0x4 - core index']
  #allocation1 [shape = 'u32[144,128]{1,0:T(1,128)}', space=vmem, size = 0x12000, scoped, tag = 'internal scratch']
  %s0 = inlined_call_operand.vmem [shape: f32[256,640], index: 0, kind: input, shape index: {}]
  %s1 = inlined_call_operand.vmem [shape: f32[256,256], index: 1, kind: input, shape index: {}]
  %s2 = inlined_call_operand.vmem [shape: f32[1,128], index: 2, kind: input, shape index: {}]
  %s3 = inlined_call_operand.vmem [shape: f32[256,128], index: 3, kind: output, shape index: {0}]
  %s4 = inlined_call_operand.vmem [shape: f32[256,128], index: 4, kind: output, shape index: {1}]
  %5 = xla_tuple %s3, %s4
  %s6 = sld [smem:[#allocation0]]
  $region76: #{fwd.11} parent=0
    _
  %s8 = ssub.s32 1, %s6
  %s9 = scalar_select 0, %s8, %s6
  $region1: #{fwd.11} parent=0
    #allocation2 [shape = 'u8[65536]{0}', space=vmem, size = 0x10000, scoped, tag = 'input window, operand 0']
    loop: start=0, step=1, limit=10
    $region2: #{fwd.11} parent=1 // loop_pre_header
      _
    $region3: #{fwd.11} parent=1 // loop_header
      %s11 = sphi 0, %s15
      %p12 = scmp.ge.s32.totalorder %s11, 10
      %s21 = sphi 0, %s23
      %s24 = sphi 0, %s21
      %s25 = sphi 0, %s24
      %s41 = sphi 0, %s25
      %s45 = sphi 0, %s45
      %s47 = sphi 0, %s45
      %s48 = sphi 0, %s47
      %s62 = sphi 0, %s48
      %s66 = sphi 0, %s66
      %s68 = sphi 0, %s66
      %s69 = sphi 0, %s68
      %s83 = sphi 0, %s69
      %s89 = sphi 0, %s91
      %s92 = sphi 0, %s89
      %s93 = sphi 0, %s92
      %s109 = sphi 0, %s93
      %s115 = sphi 0, %s117
      %s118 = sphi 0, %s115
      %s119 = sphi 0, %s118
      %s135 = sphi 0, %s119
    $region4: #{fwd.11} parent=1 // loop_header_branch
      %14 = sbr.rel (%p12) target = $region8
    $region5: #{fwd.11} parent=1 // loop_body
      %s16 = ssub.s32 %s11, 1
      %s17 = ssub.s32 %s11, 2
      %s18 = sadd.s32 %s11, 1
      %s19 = ssub.s32 %s11, %s18
      %p20 = scmp.eq.s32.totalorder %s19, 0
      %s22 = sadd.s32 %s21, 1
      %s23 = scalar_select %p20, %s21, %s22
      %p26 = pneg %p20
      %p27 = scmp.eq.s32.totalorder %s11, 7
      %p28 = por %p26, %p27
      %p29 = scmp.ne.s32.totalorder %s21, %s24
      %p30 = scmp.eq.s32.totalorder %s11, 0
      %p31 = por %p29, %p30
      %p32 = scmp.ne.s32.totalorder %s21, %s24
      %p33 = scmp.eq.s32.totalorder %s16, 7
      %p34 = por %p32, %p33
      %p35 = scmp.ne.s32.totalorder %s24, %s25
      %p36 = scmp.eq.s32.totalorder %s16, 0
      %p37 = por %p35, %p36
      %p38 = scmp.ne.s32.totalorder %s24, %s25
      %p39 = scmp.eq.s32.totalorder %s17, 7
      %p40 = por %p38, %p39
      %p42 = scmp.ne.s32.totalorder %s25, %s41
      %p43 = scmp.eq.s32.totalorder %s17, 0
      %p44 = por %p42, %p43
      %s46 = sadd.s32 %s45, 1
      %p49 = scmp.eq.s32.totalorder %s11, 7
      %p50 = scmp.ne.s32.totalorder %s45, %s47
      %p51 = scmp.eq.s32.totalorder %s11, 0
      %p52 = por %p50, %p51
      %p53 = scmp.ne.s32.totalorder %s45, %s47
      %p54 = scmp.eq.s32.totalorder %s16, 7
      %p55 = por %p53, %p54
      %p56 = scmp.ne.s32.totalorder %s47, %s48
      %p57 = scmp.eq.s32.totalorder %s16, 0
      %p58 = por %p56, %p57
      %p59 = scmp.ne.s32.totalorder %s47, %s48
      %p60 = scmp.eq.s32.totalorder %s17, 7
      %p61 = por %p59, %p60
      %p63 = scmp.ne.s32.totalorder %s48, %s62
      %p64 = scmp.eq.s32.totalorder %s17, 0
      %p65 = por %p63, %p64
      %s67 = sadd.s32 %s66, 1
      %p70 = scmp.eq.s32.totalorder %s11, 7
      %p71 = scmp.ne.s32.totalorder %s66, %s68
      %p72 = scmp.eq.s32.totalorder %s11, 0
      %p73 = por %p71, %p72
      %p74 = scmp.ne.s32.totalorder %s66, %s68
      %p75 = scmp.eq.s32.totalorder %s16, 7
      %p76 = por %p74, %p75
      %p77 = scmp.ne.s32.totalorder %s68, %s69
      %p78 = scmp.eq.s32.totalorder %s16, 0
      %p79 = por %p77, %p78
      %p80 = scmp.ne.s32.totalorder %s68, %s69
      %p81 = scmp.eq.s32.totalorder %s17, 7
      %p82 = por %p80, %p81
      %p84 = scmp.ne.s32.totalorder %s69, %s83
      %p85 = scmp.eq.s32.totalorder %s17, 0
      %p86 = por %p84, %p85
      %s87 = ssub.s32 %s11, %s18
      %p88 = scmp.eq.s32.totalorder %s87, 0
      %s90 = sadd.s32 %s89, 1
      %s91 = scalar_select %p88, %s89, %s90
      %p94 = pneg %p88
      %p95 = scmp.eq.s32.totalorder %s11, 7
      %p96 = por %p94, %p95
      %p97 = scmp.ne.s32.totalorder %s89, %s92
      %p98 = scmp.eq.s32.totalorder %s11, 0
      %p99 = por %p97, %p98
      %p100 = scmp.ne.s32.totalorder %s89, %s92
      %p101 = scmp.eq.s32.totalorder %s16, 7
      %p102 = por %p100, %p101
      %p103 = scmp.ne.s32.totalorder %s92, %s93
      %p104 = scmp.eq.s32.totalorder %s16, 0
      %p105 = por %p103, %p104
      %p106 = scmp.ne.s32.totalorder %s92, %s93
      %p107 = scmp.eq.s32.totalorder %s17, 7
      %p108 = por %p106, %p107
      %p110 = scmp.ne.s32.totalorder %s93, %s109
      %p111 = scmp.eq.s32.totalorder %s17, 0
      %p112 = por %p110, %p111
      %s113 = ssub.s32 %s11, %s18
      %p114 = scmp.eq.s32.totalorder %s113, 0
      %s116 = sadd.s32 %s115, 1
      %s117 = scalar_select %p114, %s115, %s116
      %p120 = pneg %p114
      %p121 = scmp.eq.s32.totalorder %s11, 7
      %p122 = por %p120, %p121
      %p123 = scmp.ne.s32.totalorder %s115, %s118
      %p124 = scmp.eq.s32.totalorder %s11, 0
      %p125 = por %p123, %p124
      %p126 = scmp.ne.s32.totalorder %s115, %s118
      %p127 = scmp.eq.s32.totalorder %s16, 7
      %p128 = por %p126, %p127
      %p129 = scmp.ne.s32.totalorder %s118, %s119
      %p130 = scmp.eq.s32.totalorder %s16, 0
      %p131 = por %p129, %p130
      %p132 = scmp.ne.s32.totalorder %s118, %s119
      %p133 = scmp.eq.s32.totalorder %s17, 7
      %p134 = por %p132, %p133
      %p136 = scmp.ne.s32.totalorder %s119, %s135
      %p137 = scmp.eq.s32.totalorder %s17, 0
      %p138 = por %p136, %p137
      %p139 = scmp.le.s32.totalorder 1, %s11
      %p140 = scmp.lt.s32.totalorder %s11, 9
      %p141 = pnand %p139, %p140
      %p142 = pneg %p141
      // Predicated region
      $region9: #{fwd.11} parent=5 // pred_check
        _
      $region10: #{fwd.11} parent=5 // pred_check_branch
        %144 = sbr.rel (%p141) target = $region12
      $region11: #{fwd.11} parent=5 // pred_region
        %s145 = ssub.s32 %s11, 1
        // Predicated region
        $region13: #{fwd.11} parent=11 // pred_check
          %p146 = pneg %p58
        $region14: #{fwd.11} parent=11 // pred_check_branch
          %148 = sbr.rel (%p146) target = $region16
        $region15: #{fwd.11} parent=11 // pred_region
          _
        $region16: #{fwd.11} parent=11 // pred_fallthru
          _
        // Predicated region
        $region17: #{fwd.11} parent=11 // pred_check
          %p149 = pneg %p79
        $region18: #{fwd.11} parent=11 // pred_check_branch
          %151 = sbr.rel (%p149) target = $region20
        $region19: #{fwd.11} parent=11 // pred_region
          _
        $region20: #{fwd.11} parent=11 // pred_fallthru
          _
      $region12: #{fwd.11} parent=5 // pred_fallthru
        _
      %p152 = scmp.lt.s32.totalorder %s11, 8
      // Predicated region
      $region21: #{fwd.11} parent=5 // pred_check
        %p153 = pneg %p152
      $region22: #{fwd.11} parent=5 // pred_check_branch
        %155 = sbr.rel (%p153) target = $region24
      $region23: #{fwd.11} parent=5 // pred_region
        // Predicated region
        $region25: #{fwd.11} parent=23 // pred_check
          %p156 = pneg %p31
        $region26: #{fwd.11} parent=23 // pred_check_branch
          %158 = sbr.rel (%p156) target = $region28
        $region27: #{fwd.11} parent=23 // pred_region
          %s159 = sand.u32 %s21, 1
          %s160 = sand.u32 %s21, 1
          %s161 = smul.addr %s160, 64
          %s162 = scalar_lea.vmem [#allocation2], %s161
          %s163 = smul.u32 4, %s11
          %s164 = smul.addr %s163, 5
          %s165 = smul.addr %s164, 8
          %s166 = scalar_lea.vmem %s0, %s165
          // Predicated region
          $region29: #{fwd.11} parent=27 // pred_check
            _
          $region30: #{fwd.11} parent=27 // pred_check_branch
            %168 = sbr.rel (0) target = $region32
          $region31: #{fwd.11} parent=27 // pred_region
            // Predicated region
            $region33: #{fwd.11} parent=31 // pred_check
              _
            $region34: #{fwd.11} parent=31 // pred_check_branch
              %170 = sbr.rel (0) target = $region36
            $region35: #{fwd.11} parent=31 // pred_region
              loop: start=0, step=1, limit=1
              $region37: #{fwd.11} parent=35 // loop_pre_header
                _
              $region38: #{fwd.11} parent=35 // loop_header
                %s172 = sphi 0, %s176
                %p173 = scmp.ge.s32.totalorder %s172, 1
                %s177 = sphi %s166, %s166
                %s178 = sphi %s162, %s162
              $region39: #{fwd.11} parent=35 // loop_header_branch
                %175 = sbr.rel (%p173) target = $region43
              $region40: #{fwd.11} parent=35 // loop_body
                %v179 = vld [vmem:[%s177] sm:$0xff]
                %180 = vst [vmem:[%s178] sm:$0xff] %v179
                %v181 = vld [vmem:[%s177 + $0x8] sm:$0xff]
                %182 = vst [vmem:[%s178 + $0x8] sm:$0xff] %v181
                %v183 = vld [vmem:[%s177 + $0x28] sm:$0xff]
                %184 = vst [vmem:[%s178 + $0x10] sm:$0xff] %v183
                %v185 = vld [vmem:[%s177 + $0x30] sm:$0xff]
                %186 = vst [vmem:[%s178 + $0x18] sm:$0xff] %v185
                %v187 = vld [vmem:[%s177 + $0x50] sm:$0xff]
                %188 = vst [vmem:[%s178 + $0x20] sm:$0xff] %v187
                %v189 = vld [vmem:[%s177 + $0x58] sm:$0xff]
                %190 = vst [vmem:[%s178 + $0x28] sm:$0xff] %v189
                %v191 = vld [vmem:[%s177 + $0x78] sm:$0xff]
                %192 = vst [vmem:[%s178 + $0x30] sm:$0xff] %v191
                %v193 = vld [vmem:[%s177 + $0x80] sm:$0xff]
                %194 = vst [vmem:[%s178 + $0x38] sm:$0xff] %v193
              $region41: #{fwd.11} parent=35 // loop_footer
                %s176 = sadd.s32 1, %s172
              $region42: #{fwd.11} parent=35 // loop_footer_branch
                %171 = sbr.rel target = $region38
              $region43: #{fwd.11} parent=35 // loop_exit
                _
            $region36: #{fwd.11} parent=31 // pred_fallthru
              _
            // Predicated region
            $region44: #{fwd.11} parent=31 // pred_check
              _
            $region45: #{fwd.11} parent=31 // pred_check_branch
              %196 = sbr.rel target = $region47
            $region46: #{fwd.11} parent=31 // pred_region
              _
            $region47: #{fwd.11} parent=31 // pred_fallthru
              _
          $region32: #{fwd.11} parent=27 // pred_fallthru
            _
          %197 = vnop
        $region28: #{fwd.11} parent=23 // pred_fallthru
          _
      $region24: #{fwd.11} parent=5 // pred_fallthru
        _
      %p198 = scmp.le.s32.totalorder 1, %s11
      %p199 = scmp.lt.s32.totalorder %s11, 9
      %p200 = pnand %p198, %p199
      %p201 = pneg %p200
      // Predicated region
      $region48: #{fwd.11} parent=5 // pred_check
        _
      $region49: #{fwd.11} parent=5 // pred_check_branch
        %203 = sbr.rel (%p200) target = $region51
      $region50: #{fwd.11} parent=5 // pred_region
        %s204 = ssub.s32 %s11, 1
        %s205 = sand.u32 %s24, 1
        %s206 = sand.u32 %s24, 1
        %s207 = smul.addr %s206, 64
        %s208 = scalar_lea.vmem [#allocation2], %s207
        // Predicated region
        $region52: #{fwd.11} parent=50 // pred_check
          %p209 = pneg %p37
        $region53: #{fwd.11} parent=50 // pred_check_branch
          %211 = sbr.rel (%p209) target = $region55
        $region54: #{fwd.11} parent=50 // pred_region
          _
        $region55: #{fwd.11} parent=50 // pred_fallthru
          _
        %s212 = sand.u32 %s24, 1
        %s213 = sand.u32 %s24, 1
        %s214 = smul.addr %s213, 64
        %s215 = scalar_lea.vmem [#allocation2], %s214
        %p216 = pneg %p37
        %p217 = pneg %p34
        %p218 = pneg %p58
        %p219 = pneg %p55
        %p220 = pneg %p79
        %p221 = pneg %p76
        %p222 = pneg %p105
        %p223 = pneg %p102
        %s224 = smul.u32 4, %s16
        %p225 = scmp.lt.s32.totalorder %s224, 31
        %s226 = scalar_select %p225, %s224, 31
        %s227 = smul.addr %s226, 8
        %s228 = scalar_lea.vmem %s3, %s227
        %p229 = pneg %p131
        %p230 = pneg %p128
        %s231 = smul.u32 4, %s16
        %p232 = scmp.lt.s32.totalorder %s231, 31
        %s233 = scalar_select %p232, %s231, 31
        %s234 = smul.addr %s233, 8
        %s235 = scalar_lea.vmem %s4, %s234
        %s236 = smul.u32 4, %s16
        %s237 = smul.u32 4, %s16
        %p238 = scmp.lt.s32.totalorder %s237, 31
        %s239 = scalar_select %p238, %s237, 31
        %s240 = smul.addr %s239, 8
        %s241 = scalar_lea.vmem %s3, %s240
        %s242 = smul.u32 4, %s16
        %s243 = smul.u32 4, %s16
        %p244 = scmp.lt.s32.totalorder %s243, 31
        %s245 = scalar_select %p244, %s243, 31
        %s246 = smul.addr %s245, 8
        %s247 = scalar_lea.vmem %s4, %s246
        %s248 = smul.u32 4, %s16
        %v249 = vld [vmem:[%s208] sm:$0xff]
        %v250 = vld [vmem:[%s208 + $0x8] sm:$0xff]
        %v251 = vld [vmem:[%s208 + $0x10] sm:$0xff]
        %v252 = vld [vmem:[%s208 + $0x18] sm:$0xff]
        %v253 = vld [vmem:[%s208 + $0x20] sm:$0xff]
        %v254 = vld [vmem:[%s208 + $0x28] sm:$0xff]
        %v255 = vld [vmem:[%s208 + $0x30] sm:$0xff]
        %v256 = vld [vmem:[%s208 + $0x38] sm:$0xff]
        %v257 = vld [vmem:[%s1] sm:$0xff]
        %v258 = vld [vmem:[%s1 + $0x8] sm:$0xff]
        %v259 = vld [vmem:[%s1 + $0x10] sm:$0xff]
        %v260 = vld [vmem:[%s1 + $0x18] sm:$0xff]
        %v261 = vld [vmem:[%s1 + $0x20] sm:$0xff]
        %v262 = vld [vmem:[%s1 + $0x28] sm:$0xff]
        %v263 = vld [vmem:[%s1 + $0x30] sm:$0xff]
        %v264 = vld [vmem:[%s1 + $0x38] sm:$0xff]
        %v265 = vld [vmem:[%s1 + $0x40] sm:$0xff]
        %v266 = vld [vmem:[%s1 + $0x48] sm:$0xff]
        %v267 = vld [vmem:[%s1 + $0x50] sm:$0xff]
        %v268 = vld [vmem:[%s1 + $0x58] sm:$0xff]
        %v269 = vld [vmem:[%s1 + $0x60] sm:$0xff]
        %v270 = vld [vmem:[%s1 + $0x68] sm:$0xff]
        %v271 = vld [vmem:[%s1 + $0x70] sm:$0xff]
        %v272 = vld [vmem:[%s1 + $0x78] sm:$0xff]
        %v273 = vld [vmem:[%s1 + $0x80] sm:$0xff]
        %v274 = vld [vmem:[%s1 + $0x88] sm:$0xff]
        %v275 = vld [vmem:[%s1 + $0x90] sm:$0xff]
        %v276 = vld [vmem:[%s1 + $0x98] sm:$0xff]
        %v277 = vld [vmem:[%s1 + $0xa0] sm:$0xff]
        %v278 = vld [vmem:[%s1 + $0xa8] sm:$0xff]
        %v279 = vld [vmem:[%s1 + $0xb0] sm:$0xff]
        %v280 = vld [vmem:[%s1 + $0xb8] sm:$0xff]
        %v281 = vld [vmem:[%s1 + $0xc0] sm:$0xff]
        %v282 = vld [vmem:[%s1 + $0xc8] sm:$0xff]
        %v283 = vld [vmem:[%s1 + $0xd0] sm:$0xff]
        %v284 = vld [vmem:[%s1 + $0xd8] sm:$0xff]
        %v285 = vld [vmem:[%s1 + $0xe0] sm:$0xff]
        %v286 = vld [vmem:[%s1 + $0xe8] sm:$0xff]
        %v287 = vld [vmem:[%s1 + $0xf0] sm:$0xff]
        %v288 = vld [vmem:[%s1 + $0xf8] sm:$0xff]
        %v289 = vld [vmem:[%s1 + $0x100] sm:$0xff]
        %v290 = vld [vmem:[%s1 + $0x108] sm:$0xff]
        %v291 = vld [vmem:[%s1 + $0x110] sm:$0xff]
        %v292 = vld [vmem:[%s1 + $0x118] sm:$0xff]
        %v293 = vld [vmem:[%s1 + $0x120] sm:$0xff]
        %v294 = vld [vmem:[%s1 + $0x128] sm:$0xff]
        %v295 = vld [vmem:[%s1 + $0x130] sm:$0xff]
        %v296 = vld [vmem:[%s1 + $0x138] sm:$0xff]
        %v297 = vld [vmem:[%s1 + $0x140] sm:$0xff]
        %v298 = vld [vmem:[%s1 + $0x148] sm:$0xff]
        %v299 = vld [vmem:[%s1 + $0x150] sm:$0xff]
        %v300 = vld [vmem:[%s1 + $0x158] sm:$0xff]
        %v301 = vld [vmem:[%s1 + $0x160] sm:$0xff]
        %v302 = vld [vmem:[%s1 + $0x168] sm:$0xff]
        %v303 = vld [vmem:[%s1 + $0x170] sm:$0xff]
        %v304 = vld [vmem:[%s1 + $0x178] sm:$0xff]
        %v305 = vld [vmem:[%s1 + $0x180] sm:$0xff]
        %v306 = vld [vmem:[%s1 + $0x188] sm:$0xff]
        %v307 = vld [vmem:[%s1 + $0x190] sm:$0xff]
        %v308 = vld [vmem:[%s1 + $0x198] sm:$0xff]
        %v309 = vld [vmem:[%s1 + $0x1a0] sm:$0xff]
        %v310 = vld [vmem:[%s1 + $0x1a8] sm:$0xff]
        %v311 = vld [vmem:[%s1 + $0x1b0] sm:$0xff]
        %v312 = vld [vmem:[%s1 + $0x1b8] sm:$0xff]
        %v313 = vld [vmem:[%s1 + $0x1c0] sm:$0xff]
        %v314 = vld [vmem:[%s1 + $0x1c8] sm:$0xff]
        %v315 = vld [vmem:[%s1 + $0x1d0] sm:$0xff]
        %v316 = vld [vmem:[%s1 + $0x1d8] sm:$0xff]
        %v317 = vld [vmem:[%s1 + $0x1e0] sm:$0xff]
        %v318 = vld [vmem:[%s1 + $0x1e8] sm:$0xff]
        %v319 = vld [vmem:[%s1 + $0x1f0] sm:$0xff]
        %v320 = vld [vmem:[%s1 + $0x1f8] sm:$0xff]
        %321 = vmatprep.subr.mxu0 %v288
        %322 = vmatpush1.msra.mxu0 %v287
        %323 = vmatprep.subr.mxu0 %v286
        %324 = vmatpush1.msra.mxu0 %v285
        %325 = vmatprep.subr.mxu0 %v284
        %326 = vmatpush1.msra.mxu0 %v283
        %327 = vmatprep.subr.mxu0 %v282
        %328 = vmatpush1.msra.mxu0 %v281
        %329 = vmatprep.subr.mxu0 %v280
        %330 = vmatpush1.msra.mxu0 %v279
        %331 = vmatprep.subr.mxu0 %v278
        %332 = vmatpush1.msra.mxu0 %v277
        %333 = vmatprep.subr.mxu0 %v276
        %334 = vmatpush1.msra.mxu0 %v275
        %335 = vmatprep.subr.mxu0 %v274
        %336 = vmatpush1.msra.mxu0 %v273
        %337 = vmatprep.subr.mxu0 %v272
        %338 = vmatpush1.msra.mxu0 %v271
        %339 = vmatprep.subr.mxu0 %v270
        %340 = vmatpush1.msra.mxu0 %v269
        %341 = vmatprep.subr.mxu0 %v268
        %342 = vmatpush1.msra.mxu0 %v267
        %343 = vmatprep.subr.mxu0 %v266
        %344 = vmatpush1.msra.mxu0 %v265
        %345 = vmatprep.subr.mxu0 %v264
        %346 = vmatpush1.msra.mxu0 %v263
        %347 = vmatprep.subr.mxu0 %v262
        %348 = vmatpush1.msra.mxu0 %v261
        %349 = vmatprep.subr.mxu0 %v260
        %350 = vmatpush1.msra.mxu0 %v259
        %351 = vmatprep.subr.mxu0 %v258
        %352 = vmatpush1.msra.mxu0 %v257
        %353 = vmatprep.subr.mxu0 %v320
        %354 = vmatpush2.msra.mxu0 %v319
        %355 = vmatprep.subr.mxu0 %v318
        %356 = vmatpush2.msra.mxu0 %v317
        %357 = vmatprep.subr.mxu0 %v316
        %358 = vmatpush2.msra.mxu0 %v315
        %359 = vmatprep.subr.mxu0 %v314
        %360 = vmatpush2.msra.mxu0 %v313
        %361 = vmatprep.subr.mxu0 %v312
        %362 = vmatpush2.msra.mxu0 %v311
        %363 = vmatprep.subr.mxu0 %v310
        %364 = vmatpush2.msra.mxu0 %v309
        %365 = vmatprep.subr.mxu0 %v308
        %366 = vmatpush2.msra.mxu0 %v307
        %367 = vmatprep.subr.mxu0 %v306
        %368 = vmatpush2.msra.mxu0 %v305
        %369 = vmatprep.subr.mxu0 %v304
        %370 = vmatpush2.msra.mxu0 %v303
        %371 = vmatprep.subr.mxu0 %v302
        %372 = vmatpush2.msra.mxu0 %v301
        %373 = vmatprep.subr.mxu0 %v300
        %374 = vmatpush2.msra.mxu0 %v299
        %375 = vmatprep.subr.mxu0 %v298
        %376 = vmatpush2.msra.mxu0 %v297
        %377 = vmatprep.subr.mxu0 %v296
        %378 = vmatpush2.msra.mxu0 %v295
        %379 = vmatprep.subr.mxu0 %v294
        %380 = vmatpush2.msra.mxu0 %v293
        %381 = vmatprep.subr.mxu0 %v292
        %382 = vmatpush2.msra.mxu0 %v291
        %383 = vmatprep.subr.mxu0 %v290
        %384 = vmatpush2.msra.mxu0 %v289
        %385 = vmatprep.mubr.f32.mxu0 %v250
        %386 = vmatmul.mubr.f32.gmra.mxu0 %v249
        %v387 = vpop.f32.mrf.mxu0
        %v388 = vadd.f32 0.0, %v387
        %v389 = vpop.f32.mrf.mxu0
        %v390 = vadd.f32 0.0, %v389
        %391 = vmatprep.mubr.f32.mxu0 %v252
        %392 = vmatmul.mubr.f32.gmra.mxu0 %v251
        %v393 = vpop.f32.mrf.mxu0
        %v394 = vadd.f32 0.0, %v393
        %v395 = vpop.f32.mrf.mxu0
        %v396 = vadd.f32 0.0, %v395
        %397 = vmatprep.mubr.f32.mxu0 %v254
        %398 = vmatmul.mubr.f32.gmra.mxu0 %v253
        %v399 = vpop.f32.mrf.mxu0
        %v400 = vadd.f32 0.0, %v399
        %v401 = vpop.f32.mrf.mxu0
        %v402 = vadd.f32 0.0, %v401
        %403 = vmatprep.mubr.f32.mxu0 %v256
        %404 = vmatmul.mubr.f32.gmra.mxu0 %v255
        %v405 = vpop.f32.mrf.mxu0
        %v406 = vadd.f32 0.0, %v405
        %v407 = vpop.f32.mrf.mxu0
        %v408 = vadd.f32 0.0, %v407
        %409 = vdwg.mxu0
        %v410 = vld [vmem:[%s2] sm:$0x1]
        %v412 = vlaneseq
        %v413 = vshrl.u32 %v412, 7
        %v414 = vsub.s32 0, %v413
        %v415 = vrot.slane %v410, %v414
        %v417 = vadd.f32 %v388, %v415
        %v418 = vadd.f32 %v394, %v415
        %v419 = vadd.f32 %v400, %v415
        %v420 = vadd.f32 %v406, %v415
        %421 = vst [vmem:[%s241] sm:$0xff] %v417
        %422 = vst [vmem:[%s241 + $0x8] sm:$0xff] %v418
        %423 = vst [vmem:[%s241 + $0x10] sm:$0xff] %v419
        %424 = vst [vmem:[%s241 + $0x18] sm:$0xff] %v420
        %425 = vst [vmem:[%s247] sm:$0xff] %v390
        %426 = vst [vmem:[%s247 + $0x8] sm:$0xff] %v396
        %427 = vst [vmem:[%s247 + $0x10] sm:$0xff] %v402
        %428 = vst [vmem:[%s247 + $0x18] sm:$0xff] %v408
        %s429 = smul.u32 4, %s16
        %p430 = scmp.lt.s32.totalorder %s429, 31
        %s431 = scalar_select %p430, %s429, 31
        %s432 = smul.addr %s431, 8
        %s433 = scalar_lea.vmem %s3, %s432
        %s434 = smul.u32 4, %s16
        %p435 = scmp.lt.s32.totalorder %s434, 31
        %s436 = scalar_select %p435, %s434, 31
        %s437 = smul.addr %s436, 8
        %s438 = scalar_lea.vmem %s4, %s437
        // Predicated region
        $region56: #{fwd.11} parent=50 // pred_check
          %p439 = pneg %p102
        $region57: #{fwd.11} parent=50 // pred_check_branch
          %441 = sbr.rel (%p439) target = $region59
        $region58: #{fwd.11} parent=50 // pred_region
          %s442 = smul.u32 4, %s16
        $region59: #{fwd.11} parent=50 // pred_fallthru
          _
        // Predicated region
        $region60: #{fwd.11} parent=50 // pred_check
          %p443 = pneg %p128
        $region61: #{fwd.11} parent=50 // pred_check_branch
          %445 = sbr.rel (%p443) target = $region63
        $region62: #{fwd.11} parent=50 // pred_region
          %s446 = smul.u32 4, %s16
        $region63: #{fwd.11} parent=50 // pred_fallthru
          _
      $region51: #{fwd.11} parent=5 // pred_fallthru
        _
      %p447 = scmp.le.s32.totalorder 2, %s11
      // Predicated region
      $region64: #{fwd.11} parent=5 // pred_check
        %p448 = pneg %p447
      $region65: #{fwd.11} parent=5 // pred_check_branch
        %450 = sbr.rel (%p448) target = $region67
      $region66: #{fwd.11} parent=5 // pred_region
        %s451 = ssub.s32 %s11, 2
        // Predicated region
        $region68: #{fwd.11} parent=66 // pred_check
          %p452 = pneg %p108
        $region69: #{fwd.11} parent=66 // pred_check_branch
          %454 = sbr.rel (%p452) target = $region71
        $region70: #{fwd.11} parent=66 // pred_region
          %s455 = smul.u32 4, %s17
          %p456 = scmp.lt.s32.totalorder %s455, 31
          %s457 = scalar_select %p456, %s455, 31
          %s458 = smul.addr %s457, 8
          %s459 = scalar_lea.vmem %s3, %s458
        $region71: #{fwd.11} parent=66 // pred_fallthru
          _
        // Predicated region
        $region72: #{fwd.11} parent=66 // pred_check
          %p460 = pneg %p134
        $region73: #{fwd.11} parent=66 // pred_check_branch
          %462 = sbr.rel (%p460) target = $region75
        $region74: #{fwd.11} parent=66 // pred_region
          %s463 = smul.u32 4, %s17
          %p464 = scmp.lt.s32.totalorder %s463, 31
          %s465 = scalar_select %p464, %s463, 31
          %s466 = smul.addr %s465, 8
          %s467 = scalar_lea.vmem %s4, %s466
        $region75: #{fwd.11} parent=66 // pred_fallthru
          _
      $region67: #{fwd.11} parent=5 // pred_fallthru
        _
    $region6: #{fwd.11} parent=1 // loop_footer
      %s15 = sadd.s32 1, %s11
    $region7: #{fwd.11} parent=1 // loop_footer_branch
      %10 = sbr.rel target = $region3
    $region8: #{fwd.11} parent=1 // loop_exit
      _

// kernel: sub.16
$region0: #{sub.16}
  #allocation0 [shape = 's32[1]{0}', space=sflag, size = 0x4, scoped, tag = 'scoped memory for sub.16']
  %s0 = inlined_call_operand.vmem [shape: f32[72,32], index: 0, kind: input, shape index: {}]
  %s1 = inlined_call_operand.vmem [shape: f32[72,32], index: 1, kind: input, shape index: {}]
  %s2 = inlined_call_operand.vmem [shape: f32[72,32], index: 2, kind: output, shape index: {}]
  %v3 = vld [vmem:[%s0] sm:$0xff]
  %v4 = vld [vmem:[%s1] sm:$0xff]
  %5 = xla_tuple %v3, %v4
  %6 = xla_tuple %5
  %v7 = vsub.f32 %v3, %v4
  %8 = xla_tuple %v7
  %9 = vst [vmem:[%s2] sm:$0xff] %v7
  %s10 = scalar_lea.vmem %s0, 8
  %v11 = vld [vmem:[%s10] sm:$0xff]
  %s12 = scalar_lea.vmem %s1, 8
  %v13 = vld [vmem:[%s12] sm:$0xff]
  %14 = xla_tuple %v11, %v13
  %15 = xla_tuple %14
  %v16 = vsub.f32 %v11, %v13
  %17 = xla_tuple %v16
  %s18 = scalar_lea.vmem %s2, 8
  %19 = vst [vmem:[%s18] sm:$0xff] %v16
  %s20 = scalar_lea.vmem %s0, 16
  %v21 = vld [vmem:[%s20] sm:$0xff]
  %s22 = scalar_lea.vmem %s1, 16
  %v23 = vld [vmem:[%s22] sm:$0xff]
  %24 = xla_tuple %v21, %v23
  %25 = xla_tuple %24
  %v26 = vsub.f32 %v21, %v23
  %27 = xla_tuple %v26
  %s28 = scalar_lea.vmem %s2, 16
  %29 = vst [vmem:[%s28] sm:$0xff] %v26
  %s30 = scalar_lea.vmem %s0, 24
  %v31 = vld [vmem:[%s30] sm:$0xff]
  %s32 = scalar_lea.vmem %s1, 24
  %v33 = vld [vmem:[%s32] sm:$0xff]
  %34 = xla_tuple %v31, %v33
  %35 = xla_tuple %34
  %v36 = vsub.f32 %v31, %v33
  %37 = xla_tuple %v36
  %s38 = scalar_lea.vmem %s2, 24
  %39 = vst [vmem:[%s38] sm:$0xff] %v36
  %s40 = scalar_lea.vmem %s0, 32
  %v41 = vld [vmem:[%s40] sm:$0xff]
  %s42 = scalar_lea.vmem %s1, 32
  %v43 = vld [vmem:[%s42] sm:$0xff]
  %44 = xla_tuple %v41, %v43
  %45 = xla_tuple %44
  %v46 = vsub.f32 %v41, %v43
  %47 = xla_tuple %v46
  %s48 = scalar_lea.vmem %s2, 32
  %49 = vst [vmem:[%s48] sm:$0xff] %v46
  %s50 = scalar_lea.vmem %s0, 40
  %v51 = vld [vmem:[%s50] sm:$0xff]
  %s52 = scalar_lea.vmem %s1, 40
  %v53 = vld [vmem:[%s52] sm:$0xff]
  %54 = xla_tuple %v51, %v53
  %55 = xla_tuple %54
  %v56 = vsub.f32 %v51, %v53
  %57 = xla_tuple %v56
  %s58 = scalar_lea.vmem %s2, 40
  %59 = vst [vmem:[%s58] sm:$0xff] %v56
  %s60 = scalar_lea.vmem %s0, 48
  %v61 = vld [vmem:[%s60] sm:$0xff]
  %s62 = scalar_lea.vmem %s1, 48
  %v63 = vld [vmem:[%s62] sm:$0xff]
  %64 = xla_tuple %v61, %v63
  %65 = xla_tuple %64
  %v66 = vsub.f32 %v61, %v63
  %67 = xla_tuple %v66
  %s68 = scalar_lea.vmem %s2, 48
  %69 = vst [vmem:[%s68] sm:$0xff] %v66
  %s70 = scalar_lea.vmem %s0, 56
  %v71 = vld [vmem:[%s70] sm:$0xff]
  %s72 = scalar_lea.vmem %s1, 56
  %v73 = vld [vmem:[%s72] sm:$0xff]
  %74 = xla_tuple %v71, %v73
  %75 = xla_tuple %74
  %v76 = vsub.f32 %v71, %v73
  %77 = xla_tuple %v76
  %s78 = scalar_lea.vmem %s2, 56
  %79 = vst [vmem:[%s78] sm:$0xff] %v76
  %s80 = scalar_lea.vmem %s0, 64
  %v81 = vld [vmem:[%s80] sm:$0xff]
  %s82 = scalar_lea.vmem %s1, 64
  %v83 = vld [vmem:[%s82] sm:$0xff]
  %84 = xla_tuple %v81, %v83
  %85 = xla_tuple %84
  %v86 = vsub.f32 %v81, %v83
  %87 = xla_tuple %v86
  %s88 = scalar_lea.vmem %s2, 64
  %89 = vst [vmem:[%s88] sm:$0xff] %v86

// kernel: fwd.13
$region0: #{fwd.13}
  #allocation0 [shape = 'u32[]', space=smem, size = 0x4, offset = 0x4, fixed_abs, tag = 'smem constant byte address 0x4 - core index']
  #allocation1 [shape = 'u32[144,128]{1,0:T(1,128)}', space=vmem, size = 0x12000, scoped, tag = 'internal scratch']
  %s0 = inlined_call_operand.vmem [shape: f32[256,640], index: 0, kind: input, shape index: {}]
  %s1 = inlined_call_operand.vmem [shape: f32[384,256], index: 1, kind: input, shape index: {}]
  %s2 = inlined_call_operand.vmem [shape: f32[1,128], index: 2, kind: input, shape index: {}]
  %s3 = inlined_call_operand.vmem [shape: f32[256,128], index: 3, kind: output, shape index: {0}]
  %s4 = inlined_call_operand.vmem [shape: f32[256,128], index: 4, kind: output, shape index: {1}]
  %5 = xla_tuple %s3, %s4
  %s6 = sld [smem:[#allocation0]]
  $region76: #{fwd.13} parent=0
    _
  %s8 = ssub.s32 1, %s6
  %s9 = scalar_select 0, %s8, %s6
  $region1: #{fwd.13} parent=0
    #allocation2 [shape = 'u8[98304]{0}', space=vmem, size = 0x18000, scoped, tag = 'input window, operand 0']
    loop: start=0, step=1, limit=10
    $region2: #{fwd.13} parent=1 // loop_pre_header
      _
    $region3: #{fwd.13} parent=1 // loop_header
      %s11 = sphi 0, %s15
      %p12 = scmp.ge.s32.totalorder %s11, 10
      %s21 = sphi 0, %s23
      %s24 = sphi 0, %s21
      %s25 = sphi 0, %s24
      %s41 = sphi 0, %s25
      %s45 = sphi 0, %s45
      %s47 = sphi 0, %s45
      %s48 = sphi 0, %s47
      %s62 = sphi 0, %s48
      %s66 = sphi 0, %s66
      %s68 = sphi 0, %s66
      %s69 = sphi 0, %s68
      %s83 = sphi 0, %s69
      %s89 = sphi 0, %s91
      %s92 = sphi 0, %s89
      %s93 = sphi 0, %s92
      %s109 = sphi 0, %s93
      %s115 = sphi 0, %s117
      %s118 = sphi 0, %s115
      %s119 = sphi 0, %s118
      %s135 = sphi 0, %s119
    $region4: #{fwd.13} parent=1 // loop_header_branch
      %14 = sbr.rel (%p12) target = $region8
    $region5: #{fwd.13} parent=1 // loop_body
      %s16 = ssub.s32 %s11, 1
      %s17 = ssub.s32 %s11, 2
      %s18 = sadd.s32 %s11, 1
      %s19 = ssub.s32 %s11, %s18
      %p20 = scmp.eq.s32.totalorder %s19, 0
      %s22 = sadd.s32 %s21, 1
      %s23 = scalar_select %p20, %s21, %s22
      %p26 = pneg %p20
      %p27 = scmp.eq.s32.totalorder %s11, 7
      %p28 = por %p26, %p27
      %p29 = scmp.ne.s32.totalorder %s21, %s24
      %p30 = scmp.eq.s32.totalorder %s11, 0
      %p31 = por %p29, %p30
      %p32 = scmp.ne.s32.totalorder %s21, %s24
      %p33 = scmp.eq.s32.totalorder %s16, 7
      %p34 = por %p32, %p33
      %p35 = scmp.ne.s32.totalorder %s24, %s25
      %p36 = scmp.eq.s32.totalorder %s16, 0
      %p37 = por %p35, %p36
      %p38 = scmp.ne.s32.totalorder %s24, %s25
      %p39 = scmp.eq.s32.totalorder %s17, 7
      %p40 = por %p38, %p39
      %p42 = scmp.ne.s32.totalorder %s25, %s41
      %p43 = scmp.eq.s32.totalorder %s17, 0
      %p44 = por %p42, %p43
      %s46 = sadd.s32 %s45, 1
      %p49 = scmp.eq.s32.totalorder %s11, 7
      %p50 = scmp.ne.s32.totalorder %s45, %s47
      %p51 = scmp.eq.s32.totalorder %s11, 0
      %p52 = por %p50, %p51
      %p53 = scmp.ne.s32.totalorder %s45, %s47
      %p54 = scmp.eq.s32.totalorder %s16, 7
      %p55 = por %p53, %p54
      %p56 = scmp.ne.s32.totalorder %s47, %s48
      %p57 = scmp.eq.s32.totalorder %s16, 0
      %p58 = por %p56, %p57
      %p59 = scmp.ne.s32.totalorder %s47, %s48
      %p60 = scmp.eq.s32.totalorder %s17, 7
      %p61 = por %p59, %p60
      %p63 = scmp.ne.s32.totalorder %s48, %s62
      %p64 = scmp.eq.s32.totalorder %s17, 0
      %p65 = por %p63, %p64
      %s67 = sadd.s32 %s66, 1
      %p70 = scmp.eq.s32.totalorder %s11, 7
      %p71 = scmp.ne.s32.totalorder %s66, %s68
      %p72 = scmp.eq.s32.totalorder %s11, 0
      %p73 = por %p71, %p72
      %p74 = scmp.ne.s32.totalorder %s66, %s68
      %p75 = scmp.eq.s32.totalorder %s16, 7
      %p76 = por %p74, %p75
      %p77 = scmp.ne.s32.totalorder %s68, %s69
      %p78 = scmp.eq.s32.totalorder %s16, 0
      %p79 = por %p77, %p78
      %p80 = scmp.ne.s32.totalorder %s68, %s69
      %p81 = scmp.eq.s32.totalorder %s17, 7
      %p82 = por %p80, %p81
      %p84 = scmp.ne.s32.totalorder %s69, %s83
      %p85 = scmp.eq.s32.totalorder %s17, 0
      %p86 = por %p84, %p85
      %s87 = ssub.s32 %s11, %s18
      %p88 = scmp.eq.s32.totalorder %s87, 0
      %s90 = sadd.s32 %s89, 1
      %s91 = scalar_select %p88, %s89, %s90
      %p94 = pneg %p88
      %p95 = scmp.eq.s32.totalorder %s11, 7
      %p96 = por %p94, %p95
      %p97 = scmp.ne.s32.totalorder %s89, %s92
      %p98 = scmp.eq.s32.totalorder %s11, 0
      %p99 = por %p97, %p98
      %p100 = scmp.ne.s32.totalorder %s89, %s92
      %p101 = scmp.eq.s32.totalorder %s16, 7
      %p102 = por %p100, %p101
      %p103 = scmp.ne.s32.totalorder %s92, %s93
      %p104 = scmp.eq.s32.totalorder %s16, 0
      %p105 = por %p103, %p104
      %p106 = scmp.ne.s32.totalorder %s92, %s93
      %p107 = scmp.eq.s32.totalorder %s17, 7
      %p108 = por %p106, %p107
      %p110 = scmp.ne.s32.totalorder %s93, %s109
      %p111 = scmp.eq.s32.totalorder %s17, 0
      %p112 = por %p110, %p111
      %s113 = ssub.s32 %s11, %s18
      %p114 = scmp.eq.s32.totalorder %s113, 0
      %s116 = sadd.s32 %s115, 1
      %s117 = scalar_select %p114, %s115, %s116
      %p120 = pneg %p114
      %p121 = scmp.eq.s32.totalorder %s11, 7
      %p122 = por %p120, %p121
      %p123 = scmp.ne.s32.totalorder %s115, %s118
      %p124 = scmp.eq.s32.totalorder %s11, 0
      %p125 = por %p123, %p124
      %p126 = scmp.ne.s32.totalorder %s115, %s118
      %p127 = scmp.eq.s32.totalorder %s16, 7
      %p128 = por %p126, %p127
      %p129 = scmp.ne.s32.totalorder %s118, %s119
      %p130 = scmp.eq.s32.totalorder %s16, 0
      %p131 = por %p129, %p130
      %p132 = scmp.ne.s32.totalorder %s118, %s119
      %p133 = scmp.eq.s32.totalorder %s17, 7
      %p134 = por %p132, %p133
      %p136 = scmp.ne.s32.totalorder %s119, %s135
      %p137 = scmp.eq.s32.totalorder %s17, 0
      %p138 = por %p136, %p137
      %p139 = scmp.le.s32.totalorder 1, %s11
      %p140 = scmp.lt.s32.totalorder %s11, 9
      %p141 = pnand %p139, %p140
      %p142 = pneg %p141
      // Predicated region
      $region9: #{fwd.13} parent=5 // pred_check
        _
      $region10: #{fwd.13} parent=5 // pred_check_branch
        %144 = sbr.rel (%p141) target = $region12
      $region11: #{fwd.13} parent=5 // pred_region
        %s145 = ssub.s32 %s11, 1
        // Predicated region
        $region13: #{fwd.13} parent=11 // pred_check
          %p146 = pneg %p58
        $region14: #{fwd.13} parent=11 // pred_check_branch
          %148 = sbr.rel (%p146) target = $region16
        $region15: #{fwd.13} parent=11 // pred_region
          _
        $region16: #{fwd.13} parent=11 // pred_fallthru
          _
        // Predicated region
        $region17: #{fwd.13} parent=11 // pred_check
          %p149 = pneg %p79
        $region18: #{fwd.13} parent=11 // pred_check_branch
          %151 = sbr.rel (%p149) target = $region20
        $region19: #{fwd.13} parent=11 // pred_region
          _
        $region20: #{fwd.13} parent=11 // pred_fallthru
          _
      $region12: #{fwd.13} parent=5 // pred_fallthru
        _
      %p152 = scmp.lt.s32.totalorder %s11, 8
      // Predicated region
      $region21: #{fwd.13} parent=5 // pred_check
        %p153 = pneg %p152
      $region22: #{fwd.13} parent=5 // pred_check_branch
        %155 = sbr.rel (%p153) target = $region24
      $region23: #{fwd.13} parent=5 // pred_region
        // Predicated region
        $region25: #{fwd.13} parent=23 // pred_check
          %p156 = pneg %p31
        $region26: #{fwd.13} parent=23 // pred_check_branch
          %158 = sbr.rel (%p156) target = $region28
        $region27: #{fwd.13} parent=23 // pred_region
          %s159 = sand.u32 %s21, 1
          %s160 = sand.u32 %s21, 1
          %s161 = smul.addr %s160, 96
          %s162 = scalar_lea.vmem [#allocation2], %s161
          %s163 = smul.u32 4, %s11
          %s164 = smul.addr %s163, 5
          %s165 = smul.addr %s164, 8
          %s166 = scalar_lea.vmem %s0, %s165
          // Predicated region
          $region29: #{fwd.13} parent=27 // pred_check
            _
          $region30: #{fwd.13} parent=27 // pred_check_branch
            %168 = sbr.rel (0) target = $region32
          $region31: #{fwd.13} parent=27 // pred_region
            // Predicated region
            $region33: #{fwd.13} parent=31 // pred_check
              _
            $region34: #{fwd.13} parent=31 // pred_check_branch
              %170 = sbr.rel (0) target = $region36
            $region35: #{fwd.13} parent=31 // pred_region
              loop: start=0, step=1, limit=1
              $region37: #{fwd.13} parent=35 // loop_pre_header
                _
              $region38: #{fwd.13} parent=35 // loop_header
                %s172 = sphi 0, %s176
                %p173 = scmp.ge.s32.totalorder %s172, 1
                %s177 = sphi %s166, %s166
                %s178 = sphi %s162, %s162
              $region39: #{fwd.13} parent=35 // loop_header_branch
                %175 = sbr.rel (%p173) target = $region43
              $region40: #{fwd.13} parent=35 // loop_body
                %v179 = vld [vmem:[%s177] sm:$0xff]
                %180 = vst [vmem:[%s178] sm:$0xff] %v179
                %v181 = vld [vmem:[%s177 + $0x8] sm:$0xff]
                %182 = vst [vmem:[%s178 + $0x8] sm:$0xff] %v181
                %v183 = vld [vmem:[%s177 + $0x10] sm:$0xff]
                %184 = vst [vmem:[%s178 + $0x10] sm:$0xff] %v183
                %v185 = vld [vmem:[%s177 + $0x28] sm:$0xff]
                %186 = vst [vmem:[%s178 + $0x18] sm:$0xff] %v185
                %v187 = vld [vmem:[%s177 + $0x30] sm:$0xff]
                %188 = vst [vmem:[%s178 + $0x20] sm:$0xff] %v187
                %v189 = vld [vmem:[%s177 + $0x38] sm:$0xff]
                %190 = vst [vmem:[%s178 + $0x28] sm:$0xff] %v189
                %v191 = vld [vmem:[%s177 + $0x50] sm:$0xff]
                %192 = vst [vmem:[%s178 + $0x30] sm:$0xff] %v191
                %v193 = vld [vmem:[%s177 + $0x58] sm:$0xff]
                %194 = vst [vmem:[%s178 + $0x38] sm:$0xff] %v193
                %v195 = vld [vmem:[%s177 + $0x60] sm:$0xff]
                %196 = vst [vmem:[%s178 + $0x40] sm:$0xff] %v195
                %v197 = vld [vmem:[%s177 + $0x78] sm:$0xff]
                %198 = vst [vmem:[%s178 + $0x48] sm:$0xff] %v197
                %v199 = vld [vmem:[%s177 + $0x80] sm:$0xff]
                %200 = vst [vmem:[%s178 + $0x50] sm:$0xff] %v199
                %v201 = vld [vmem:[%s177 + $0x88] sm:$0xff]
                %202 = vst [vmem:[%s178 + $0x58] sm:$0xff] %v201
              $region41: #{fwd.13} parent=35 // loop_footer
                %s176 = sadd.s32 1, %s172
              $region42: #{fwd.13} parent=35 // loop_footer_branch
                %171 = sbr.rel target = $region38
              $region43: #{fwd.13} parent=35 // loop_exit
                _
            $region36: #{fwd.13} parent=31 // pred_fallthru
              _
            // Predicated region
            $region44: #{fwd.13} parent=31 // pred_check
              _
            $region45: #{fwd.13} parent=31 // pred_check_branch
              %204 = sbr.rel target = $region47
            $region46: #{fwd.13} parent=31 // pred_region
              _
            $region47: #{fwd.13} parent=31 // pred_fallthru
              _
          $region32: #{fwd.13} parent=27 // pred_fallthru
            _
          %205 = vnop
        $region28: #{fwd.13} parent=23 // pred_fallthru
          _
      $region24: #{fwd.13} parent=5 // pred_fallthru
        _
      %p206 = scmp.le.s32.totalorder 1, %s11
      %p207 = scmp.lt.s32.totalorder %s11, 9
      %p208 = pnand %p206, %p207
      %p209 = pneg %p208
      // Predicated region
      $region48: #{fwd.13} parent=5 // pred_check
        _
      $region49: #{fwd.13} parent=5 // pred_check_branch
        %211 = sbr.rel (%p208) target = $region51
      $region50: #{fwd.13} parent=5 // pred_region
        %s212 = ssub.s32 %s11, 1
        %s213 = sand.u32 %s24, 1
        %s214 = sand.u32 %s24, 1
        %s215 = smul.addr %s214, 96
        %s216 = scalar_lea.vmem [#allocation2], %s215
        // Predicated region
        $region52: #{fwd.13} parent=50 // pred_check
          %p217 = pneg %p37
        $region53: #{fwd.13} parent=50 // pred_check_branch
          %219 = sbr.rel (%p217) target = $region55
        $region54: #{fwd.13} parent=50 // pred_region
          _
        $region55: #{fwd.13} parent=50 // pred_fallthru
          _
        %s220 = sand.u32 %s24, 1
        %s221 = sand.u32 %s24, 1
        %s222 = smul.addr %s221, 96
        %s223 = scalar_lea.vmem [#allocation2], %s222
        %p224 = pneg %p37
        %p225 = pneg %p34
        %p226 = pneg %p58
        %p227 = pneg %p55
        %p228 = pneg %p79
        %p229 = pneg %p76
        %p230 = pneg %p105
        %p231 = pneg %p102
        %s232 = smul.u32 4, %s16
        %p233 = scmp.lt.s32.totalorder %s232, 31
        %s234 = scalar_select %p233, %s232, 31
        %s235 = smul.addr %s234, 8
        %s236 = scalar_lea.vmem %s3, %s235
        %p237 = pneg %p131
        %p238 = pneg %p128
        %s239 = smul.u32 4, %s16
        %p240 = scmp.lt.s32.totalorder %s239, 31
        %s241 = scalar_select %p240, %s239, 31
        %s242 = smul.addr %s241, 8
        %s243 = scalar_lea.vmem %s4, %s242
        %s244 = smul.u32 4, %s16
        %s245 = smul.u32 4, %s16
        %p246 = scmp.lt.s32.totalorder %s245, 31
        %s247 = scalar_select %p246, %s245, 31
        %s248 = smul.addr %s247, 8
        %s249 = scalar_lea.vmem %s3, %s248
        %s250 = smul.u32 4, %s16
        %s251 = smul.u32 4, %s16
        %p252 = scmp.lt.s32.totalorder %s251, 31
        %s253 = scalar_select %p252, %s251, 31
        %s254 = smul.addr %s253, 8
        %s255 = scalar_lea.vmem %s4, %s254
        %s256 = smul.u32 4, %s16
        %v257 = vld [vmem:[%s216] sm:$0xff]
        %v258 = vld [vmem:[%s216 + $0x8] sm:$0xff]
        %v259 = vld [vmem:[%s216 + $0x10] sm:$0xff]
        %v260 = vld [vmem:[%s216 + $0x18] sm:$0xff]
        %v261 = vld [vmem:[%s216 + $0x20] sm:$0xff]
        %v262 = vld [vmem:[%s216 + $0x28] sm:$0xff]
        %v263 = vld [vmem:[%s216 + $0x30] sm:$0xff]
        %v264 = vld [vmem:[%s216 + $0x38] sm:$0xff]
        %v265 = vld [vmem:[%s216 + $0x40] sm:$0xff]
        %v266 = vld [vmem:[%s216 + $0x48] sm:$0xff]
        %v267 = vld [vmem:[%s216 + $0x50] sm:$0xff]
        %v268 = vld [vmem:[%s216 + $0x58] sm:$0xff]
        %v269 = vld [vmem:[%s1] sm:$0xff]
        %v270 = vld [vmem:[%s1 + $0x8] sm:$0xff]
        %v271 = vld [vmem:[%s1 + $0x10] sm:$0xff]
        %v272 = vld [vmem:[%s1 + $0x18] sm:$0xff]
        %v273 = vld [vmem:[%s1 + $0x20] sm:$0xff]
        %v274 = vld [vmem:[%s1 + $0x28] sm:$0xff]
        %v275 = vld [vmem:[%s1 + $0x30] sm:$0xff]
        %v276 = vld [vmem:[%s1 + $0x38] sm:$0xff]
        %v277 = vld [vmem:[%s1 + $0x40] sm:$0xff]
        %v278 = vld [vmem:[%s1 + $0x48] sm:$0xff]
        %v279 = vld [vmem:[%s1 + $0x50] sm:$0xff]
        %v280 = vld [vmem:[%s1 + $0x58] sm:$0xff]
        %v281 = vld [vmem:[%s1 + $0x60] sm:$0xff]
        %v282 = vld [vmem:[%s1 + $0x68] sm:$0xff]
        %v283 = vld [vmem:[%s1 + $0x70] sm:$0xff]
        %v284 = vld [vmem:[%s1 + $0x78] sm:$0xff]
        %v285 = vld [vmem:[%s1 + $0x80] sm:$0xff]
        %v286 = vld [vmem:[%s1 + $0x88] sm:$0xff]
        %v287 = vld [vmem:[%s1 + $0x90] sm:$0xff]
        %v288 = vld [vmem:[%s1 + $0x98] sm:$0xff]
        %v289 = vld [vmem:[%s1 + $0xa0] sm:$0xff]
        %v290 = vld [vmem:[%s1 + $0xa8] sm:$0xff]
        %v291 = vld [vmem:[%s1 + $0xb0] sm:$0xff]
        %v292 = vld [vmem:[%s1 + $0xb8] sm:$0xff]
        %v293 = vld [vmem:[%s1 + $0xc0] sm:$0xff]
        %v294 = vld [vmem:[%s1 + $0xc8] sm:$0xff]
        %v295 = vld [vmem:[%s1 + $0xd0] sm:$0xff]
        %v296 = vld [vmem:[%s1 + $0xd8] sm:$0xff]
        %v297 = vld [vmem:[%s1 + $0xe0] sm:$0xff]
        %v298 = vld [vmem:[%s1 + $0xe8] sm:$0xff]
        %v299 = vld [vmem:[%s1 + $0xf0] sm:$0xff]
        %v300 = vld [vmem:[%s1 + $0xf8] sm:$0xff]
        %v301 = vld [vmem:[%s1 + $0x100] sm:$0xff]
        %v302 = vld [vmem:[%s1 + $0x108] sm:$0xff]
        %v303 = vld [vmem:[%s1 + $0x110] sm:$0xff]
        %v304 = vld [vmem:[%s1 + $0x118] sm:$0xff]
        %v305 = vld [vmem:[%s1 + $0x120] sm:$0xff]
        %v306 = vld [vmem:[%s1 + $0x128] sm:$0xff]
        %v307 = vld [vmem:[%s1 + $0x130] sm:$0xff]
        %v308 = vld [vmem:[%s1 + $0x138] sm:$0xff]
        %v309 = vld [vmem:[%s1 + $0x140] sm:$0xff]
        %v310 = vld [vmem:[%s1 + $0x148] sm:$0xff]
        %v311 = vld [vmem:[%s1 + $0x150] sm:$0xff]
        %v312 = vld [vmem:[%s1 + $0x158] sm:$0xff]
        %v313 = vld [vmem:[%s1 + $0x160] sm:$0xff]
        %v314 = vld [vmem:[%s1 + $0x168] sm:$0xff]
        %v315 = vld [vmem:[%s1 + $0x170] sm:$0xff]
        %v316 = vld [vmem:[%s1 + $0x178] sm:$0xff]
        %v317 = vld [vmem:[%s1 + $0x180] sm:$0xff]
        %v318 = vld [vmem:[%s1 + $0x188] sm:$0xff]
        %v319 = vld [vmem:[%s1 + $0x190] sm:$0xff]
        %v320 = vld [vmem:[%s1 + $0x198] sm:$0xff]
        %v321 = vld [vmem:[%s1 + $0x1a0] sm:$0xff]
        %v322 = vld [vmem:[%s1 + $0x1a8] sm:$0xff]
        %v323 = vld [vmem:[%s1 + $0x1b0] sm:$0xff]
        %v324 = vld [vmem:[%s1 + $0x1b8] sm:$0xff]
        %v325 = vld [vmem:[%s1 + $0x1c0] sm:$0xff]
        %v326 = vld [vmem:[%s1 + $0x1c8] sm:$0xff]
        %v327 = vld [vmem:[%s1 + $0x1d0] sm:$0xff]
        %v328 = vld [vmem:[%s1 + $0x1d8] sm:$0xff]
        %v329 = vld [vmem:[%s1 + $0x1e0] sm:$0xff]
        %v330 = vld [vmem:[%s1 + $0x1e8] sm:$0xff]
        %v331 = vld [vmem:[%s1 + $0x1f0] sm:$0xff]
        %v332 = vld [vmem:[%s1 + $0x1f8] sm:$0xff]
        %v333 = vld [vmem:[%s1 + $0x200] sm:$0xff]
        %v334 = vld [vmem:[%s1 + $0x208] sm:$0xff]
        %v335 = vld [vmem:[%s1 + $0x210] sm:$0xff]
        %v336 = vld [vmem:[%s1 + $0x218] sm:$0xff]
        %v337 = vld [vmem:[%s1 + $0x220] sm:$0xff]
        %v338 = vld [vmem:[%s1 + $0x228] sm:$0xff]
        %v339 = vld [vmem:[%s1 + $0x230] sm:$0xff]
        %v340 = vld [vmem:[%s1 + $0x238] sm:$0xff]
        %v341 = vld [vmem:[%s1 + $0x240] sm:$0xff]
        %v342 = vld [vmem:[%s1 + $0x248] sm:$0xff]
        %v343 = vld [vmem:[%s1 + $0x250] sm:$0xff]
        %v344 = vld [vmem:[%s1 + $0x258] sm:$0xff]
        %v345 = vld [vmem:[%s1 + $0x260] sm:$0xff]
        %v346 = vld [vmem:[%s1 + $0x268] sm:$0xff]
        %v347 = vld [vmem:[%s1 + $0x270] sm:$0xff]
        %v348 = vld [vmem:[%s1 + $0x278] sm:$0xff]
        %v349 = vld [vmem:[%s1 + $0x280] sm:$0xff]
        %v350 = vld [vmem:[%s1 + $0x288] sm:$0xff]
        %v351 = vld [vmem:[%s1 + $0x290] sm:$0xff]
        %v352 = vld [vmem:[%s1 + $0x298] sm:$0xff]
        %v353 = vld [vmem:[%s1 + $0x2a0] sm:$0xff]
        %v354 = vld [vmem:[%s1 + $0x2a8] sm:$0xff]
        %v355 = vld [vmem:[%s1 + $0x2b0] sm:$0xff]
        %v356 = vld [vmem:[%s1 + $0x2b8] sm:$0xff]
        %v357 = vld [vmem:[%s1 + $0x2c0] sm:$0xff]
        %v358 = vld [vmem:[%s1 + $0x2c8] sm:$0xff]
        %v359 = vld [vmem:[%s1 + $0x2d0] sm:$0xff]
        %v360 = vld [vmem:[%s1 + $0x2d8] sm:$0xff]
        %v361 = vld [vmem:[%s1 + $0x2e0] sm:$0xff]
        %v362 = vld [vmem:[%s1 + $0x2e8] sm:$0xff]
        %v363 = vld [vmem:[%s1 + $0x2f0] sm:$0xff]
        %v364 = vld [vmem:[%s1 + $0x2f8] sm:$0xff]
        %365 = vmatprep.subr.mxu0 %v300
        %366 = vmatpush1.msra.mxu0 %v299
        %367 = vmatprep.subr.mxu0 %v298
        %368 = vmatpush1.msra.mxu0 %v297
        %369 = vmatprep.subr.mxu0 %v296
        %370 = vmatpush1.msra.mxu0 %v295
        %371 = vmatprep.subr.mxu0 %v294
        %372 = vmatpush1.msra.mxu0 %v293
        %373 = vmatprep.subr.mxu0 %v292
        %374 = vmatpush1.msra.mxu0 %v291
        %375 = vmatprep.subr.mxu0 %v290
        %376 = vmatpush1.msra.mxu0 %v289
        %377 = vmatprep.subr.mxu0 %v288
        %378 = vmatpush1.msra.mxu0 %v287
        %379 = vmatprep.subr.mxu0 %v286
        %380 = vmatpush1.msra.mxu0 %v285
        %381 = vmatprep.subr.mxu0 %v284
        %382 = vmatpush1.msra.mxu0 %v283
        %383 = vmatprep.subr.mxu0 %v282
        %384 = vmatpush1.msra.mxu0 %v281
        %385 = vmatprep.subr.mxu0 %v280
        %386 = vmatpush1.msra.mxu0 %v279
        %387 = vmatprep.subr.mxu0 %v278
        %388 = vmatpush1.msra.mxu0 %v277
        %389 = vmatprep.subr.mxu0 %v276
        %390 = vmatpush1.msra.mxu0 %v275
        %391 = vmatprep.subr.mxu0 %v274
        %392 = vmatpush1.msra.mxu0 %v273
        %393 = vmatprep.subr.mxu0 %v272
        %394 = vmatpush1.msra.mxu0 %v271
        %395 = vmatprep.subr.mxu0 %v270
        %396 = vmatpush1.msra.mxu0 %v269
        %397 = vmatprep.subr.mxu0 %v332
        %398 = vmatpush2.msra.mxu0 %v331
        %399 = vmatprep.subr.mxu0 %v330
        %400 = vmatpush2.msra.mxu0 %v329
        %401 = vmatprep.subr.mxu0 %v328
        %402 = vmatpush2.msra.mxu0 %v327
        %403 = vmatprep.subr.mxu0 %v326
        %404 = vmatpush2.msra.mxu0 %v325
        %405 = vmatprep.subr.mxu0 %v324
        %406 = vmatpush2.msra.mxu0 %v323
        %407 = vmatprep.subr.mxu0 %v322
        %408 = vmatpush2.msra.mxu0 %v321
        %409 = vmatprep.subr.mxu0 %v320
        %410 = vmatpush2.msra.mxu0 %v319
        %411 = vmatprep.subr.mxu0 %v318
        %412 = vmatpush2.msra.mxu0 %v317
        %413 = vmatprep.subr.mxu0 %v316
        %414 = vmatpush2.msra.mxu0 %v315
        %415 = vmatprep.subr.mxu0 %v314
        %416 = vmatpush2.msra.mxu0 %v313
        %417 = vmatprep.subr.mxu0 %v312
        %418 = vmatpush2.msra.mxu0 %v311
        %419 = vmatprep.subr.mxu0 %v310
        %420 = vmatpush2.msra.mxu0 %v309
        %421 = vmatprep.subr.mxu0 %v308
        %422 = vmatpush2.msra.mxu0 %v307
        %423 = vmatprep.subr.mxu0 %v306
        %424 = vmatpush2.msra.mxu0 %v305
        %425 = vmatprep.subr.mxu0 %v304
        %426 = vmatpush2.msra.mxu0 %v303
        %427 = vmatprep.subr.mxu0 %v302
        %428 = vmatpush2.msra.mxu0 %v301
        %429 = vmatprep.mubr.f32.mxu0 %v258
        %430 = vmatmul.mubr.f32.gmra.mxu0 %v257
        %v431 = vpop.f32.mrf.mxu0
        %v432 = vadd.f32 0.0, %v431
        %v433 = vpop.f32.mrf.mxu0
        %v434 = vadd.f32 0.0, %v433
        %435 = vmatprep.mubr.f32.mxu0 %v261
        %436 = vmatmul.mubr.f32.gmra.mxu0 %v260
        %v437 = vpop.f32.mrf.mxu0
        %v438 = vadd.f32 0.0, %v437
        %v439 = vpop.f32.mrf.mxu0
        %v440 = vadd.f32 0.0, %v439
        %441 = vmatprep.mubr.f32.mxu0 %v264
        %442 = vmatmul.mubr.f32.gmra.mxu0 %v263
        %v443 = vpop.f32.mrf.mxu0
        %v444 = vadd.f32 0.0, %v443
        %v445 = vpop.f32.mrf.mxu0
        %v446 = vadd.f32 0.0, %v445
        %447 = vmatprep.mubr.f32.mxu0 %v267
        %448 = vmatmul.mubr.f32.gmra.mxu0 %v266
        %v449 = vpop.f32.mrf.mxu0
        %v450 = vadd.f32 0.0, %v449
        %v451 = vpop.f32.mrf.mxu0
        %v452 = vadd.f32 0.0, %v451
        %453 = vdwg.mxu0
        %454 = vmatprep.subr.mxu0 %v364
        %455 = vmatpush1.msra.mxu0 %v363
        %456 = vmatprep.subr.mxu0 %v362
        %457 = vmatpush1.msra.mxu0 %v361
        %458 = vmatprep.subr.mxu0 %v360
        %459 = vmatpush1.msra.mxu0 %v359
        %460 = vmatprep.subr.mxu0 %v358
        %461 = vmatpush1.msra.mxu0 %v357
        %462 = vmatprep.subr.mxu0 %v356
        %463 = vmatpush1.msra.mxu0 %v355
        %464 = vmatprep.subr.mxu0 %v354
        %465 = vmatpush1.msra.mxu0 %v353
        %466 = vmatprep.subr.mxu0 %v352
        %467 = vmatpush1.msra.mxu0 %v351
        %468 = vmatprep.subr.mxu0 %v350
        %469 = vmatpush1.msra.mxu0 %v349
        %470 = vmatprep.subr.mxu0 %v348
        %471 = vmatpush1.msra.mxu0 %v347
        %472 = vmatprep.subr.mxu0 %v346
        %473 = vmatpush1.msra.mxu0 %v345
        %474 = vmatprep.subr.mxu0 %v344
        %475 = vmatpush1.msra.mxu0 %v343
        %476 = vmatprep.subr.mxu0 %v342
        %477 = vmatpush1.msra.mxu0 %v341
        %478 = vmatprep.subr.mxu0 %v340
        %479 = vmatpush1.msra.mxu0 %v339
        %480 = vmatprep.subr.mxu0 %v338
        %481 = vmatpush1.msra.mxu0 %v337
        %482 = vmatprep.subr.mxu0 %v336
        %483 = vmatpush1.msra.mxu0 %v335
        %484 = vmatprep.subr.mxu0 %v334
        %485 = vmatpush1.msra.mxu0 %v333
        %486 = vmatprep.subr.mxu0 0.0
        %487 = vmatpush2.msra.mxu0 0.0
        %488 = vmatprep.subr.mxu0 0.0
        %489 = vmatpush2.msra.mxu0 0.0
        %490 = vmatprep.subr.mxu0 0.0
        %491 = vmatpush2.msra.mxu0 0.0
        %492 = vmatprep.subr.mxu0 0.0
        %493 = vmatpush2.msra.mxu0 0.0
        %494 = vmatprep.subr.mxu0 0.0
        %495 = vmatpush2.msra.mxu0 0.0
        %496 = vmatprep.subr.mxu0 0.0
        %497 = vmatpush2.msra.mxu0 0.0
        %498 = vmatprep.subr.mxu0 0.0
        %499 = vmatpush2.msra.mxu0 0.0
        %500 = vmatprep.subr.mxu0 0.0
        %501 = vmatpush2.msra.mxu0 0.0
        %502 = vmatprep.subr.mxu0 0.0
        %503 = vmatpush2.msra.mxu0 0.0
        %504 = vmatprep.subr.mxu0 0.0
        %505 = vmatpush2.msra.mxu0 0.0
        %506 = vmatprep.subr.mxu0 0.0
        %507 = vmatpush2.msra.mxu0 0.0
        %508 = vmatprep.subr.mxu0 0.0
        %509 = vmatpush2.msra.mxu0 0.0
        %510 = vmatprep.subr.mxu0 0.0
        %511 = vmatpush2.msra.mxu0 0.0
        %512 = vmatprep.subr.mxu0 0.0
        %513 = vmatpush2.msra.mxu0 0.0
        %514 = vmatprep.subr.mxu0 0.0
        %515 = vmatpush2.msra.mxu0 0.0
        %516 = vmatprep.subr.mxu0 0.0
        %517 = vmatpush2.msra.mxu0 0.0
        %518 = vmatprep.mubr.f32.mxu0 0.0
        %519 = vmatmul.mubr.f32.gmra.mxu0 %v259
        %v520 = vpop.f32.mrf.mxu0
        %v521 = vadd.f32 %v432, %v520
        %v522 = vpop.f32.mrf.mxu0
        %v523 = vadd.f32 %v434, %v522
        %524 = vmatprep.mubr.f32.mxu0 0.0
        %525 = vmatmul.mubr.f32.gmra.mxu0 %v262
        %v526 = vpop.f32.mrf.mxu0
        %v527 = vadd.f32 %v438, %v526
        %v528 = vpop.f32.mrf.mxu0
        %v529 = vadd.f32 %v440, %v528
        %530 = vmatprep.mubr.f32.mxu0 0.0
        %531 = vmatmul.mubr.f32.gmra.mxu0 %v265
        %v532 = vpop.f32.mrf.mxu0
        %v533 = vadd.f32 %v444, %v532
        %v534 = vpop.f32.mrf.mxu0
        %v535 = vadd.f32 %v446, %v534
        %536 = vmatprep.mubr.f32.mxu0 0.0
        %537 = vmatmul.mubr.f32.gmra.mxu0 %v268
        %v538 = vpop.f32.mrf.mxu0
        %v539 = vadd.f32 %v450, %v538
        %v540 = vpop.f32.mrf.mxu0
        %v541 = vadd.f32 %v452, %v540
        %542 = vdwg.mxu0
        %v543 = vld [vmem:[%s2] sm:$0x1]
        %v545 = vlaneseq
        %v546 = vshrl.u32 %v545, 7
        %v547 = vsub.s32 0, %v546
        %v548 = vrot.slane %v543, %v547
        %v550 = vadd.f32 %v521, %v548
        %v551 = vadd.f32 %v527, %v548
        %v552 = vadd.f32 %v533, %v548
        %v553 = vadd.f32 %v539, %v548
        %554 = vst [vmem:[%s249] sm:$0xff] %v550
        %555 = vst [vmem:[%s249 + $0x8] sm:$0xff] %v551
        %556 = vst [vmem:[%s249 + $0x10] sm:$0xff] %v552
        %557 = vst [vmem:[%s249 + $0x18] sm:$0xff] %v553
        %558 = vst [vmem:[%s255] sm:$0xff] %v523
        %559 = vst [vmem:[%s255 + $0x8] sm:$0xff] %v529
        %560 = vst [vmem:[%s255 + $0x10] sm:$0xff] %v535
        %561 = vst [vmem:[%s255 + $0x18] sm:$0xff] %v541
        %s562 = smul.u32 4, %s16
        %p563 = scmp.lt.s32.totalorder %s562, 31
        %s564 = scalar_select %p563, %s562, 31
        %s565 = smul.addr %s564, 8
        %s566 = scalar_lea.vmem %s3, %s565
        %s567 = smul.u32 4, %s16
        %p568 = scmp.lt.s32.totalorder %s567, 31
        %s569 = scalar_select %p568, %s567, 31
        %s570 = smul.addr %s569, 8
        %s571 = scalar_lea.vmem %s4, %s570
        // Predicated region
        $region56: #{fwd.13} parent=50 // pred_check
          %p572 = pneg %p102
        $region57: #{fwd.13} parent=50 // pred_check_branch
          %574 = sbr.rel (%p572) target = $region59
        $region58: #{fwd.13} parent=50 // pred_region
          %s575 = smul.u32 4, %s16
        $region59: #{fwd.13} parent=50 // pred_fallthru
          _
        // Predicated region
        $region60: #{fwd.13} parent=50 // pred_check
          %p576 = pneg %p128
        $region61: #{fwd.13} parent=50 // pred_check_branch
          %578 = sbr.rel (%p576) target = $region63
        $region62: #{fwd.13} parent=50 // pred_region
          %s579 = smul.u32 4, %s16
        $region63: #{fwd.13} parent=50 // pred_fallthru
          _
      $region51: #{fwd.13} parent=5 // pred_fallthru
        _
      %p580 = scmp.le.s32.totalorder 2, %s11
      // Predicated region
      $region64: #{fwd.13} parent=5 // pred_check
        %p581 = pneg %p580
      $region65: #{fwd.13} parent=5 // pred_check_branch
        %583 = sbr.rel (%p581) target = $region67
      $region66: #{fwd.13} parent=5 // pred_region
        %s584 = ssub.s32 %s11, 2
        // Predicated region
        $region68: #{fwd.13} parent=66 // pred_check
          %p585 = pneg %p108
        $region69: #{fwd.13} parent=66 // pred_check_branch
          %587 = sbr.rel (%p585) target = $region71
        $region70: #{fwd.13} parent=66 // pred_region
          %s588 = smul.u32 4, %s17
          %p589 = scmp.lt.s32.totalorder %s588, 31
          %s590 = scalar_select %p589, %s588, 31
          %s591 = smul.addr %s590, 8
          %s592 = scalar_lea.vmem %s3, %s591
        $region71: #{fwd.13} parent=66 // pred_fallthru
          _
        // Predicated region
        $region72: #{fwd.13} parent=66 // pred_check
          %p593 = pneg %p134
        $region73: #{fwd.13} parent=66 // pred_check_branch
          %595 = sbr.rel (%p593) target = $region75
        $region74: #{fwd.13} parent=66 // pred_region
          %s596 = smul.u32 4, %s17
          %p597 = scmp.lt.s32.totalorder %s596, 31
          %s598 = scalar_select %p597, %s596, 31
          %s599 = smul.addr %s598, 8
          %s600 = scalar_lea.vmem %s4, %s599
        $region75: #{fwd.13} parent=66 // pred_fallthru
          _
      $region67: #{fwd.13} parent=5 // pred_fallthru
        _
    $region6: #{fwd.13} parent=1 // loop_footer
      %s15 = sadd.s32 1, %s11
    $region7: #{fwd.13} parent=1 // loop_footer_branch
      %10 = sbr.rel target = $region3
    $region8: #{fwd.13} parent=1 // loop_exit
      _

// kernel: fwd.10
$region0: #{fwd.10}
  #allocation0 [shape = 'u32[]', space=smem, size = 0x4, offset = 0x4, fixed_abs, tag = 'smem constant byte address 0x4 - core index']
  #allocation1 [shape = 'u32[144,128]{1,0:T(1,128)}', space=vmem, size = 0x12000, scoped, tag = 'internal scratch']
  #allocation2 [shape = 'f32[32,128]{1,0:T(8,128)}', space=vmem, size = 0x4000, scoped, tag = 'scratch operand']
  %s0 = inlined_call_operand.vmem [shape: f32[256,256], index: 0, kind: input, shape index: {}]
  %s1 = inlined_call_operand.vmem [shape: f32[256,1], index: 1, kind: input, shape index: {}]
  %s2 = inlined_call_operand.vmem [shape: f32[256,128], index: 2, kind: input, shape index: {}]
  %s3 = inlined_call_operand.vmem [shape: f32[256,128], index: 3, kind: input, shape index: {}]
  %s4 = inlined_call_operand.vmem [shape: f32[256,128], index: 4, kind: output, shape index: {}]
  %s5 = sld [smem:[#allocation0]]
  $region95: #{fwd.10} parent=0
    _
  %s7 = ssub.s32 1, %s5
  %s8 = scalar_select 0, %s7, %s5
  $region1: #{fwd.10} parent=0
    #allocation3 [shape = 'u8[32768]{0}', space=vmem, size = 0x8000, scoped, tag = 'input window, operand 0']
    loop: start=0, step=1, limit=18
    $region2: #{fwd.10} parent=1 // loop_pre_header
      _
    $region3: #{fwd.10} parent=1 // loop_header
      %s10 = sphi 0, %s14
      %p11 = scmp.ge.s32.totalorder %s10, 18
      %s17 = sphi 0, %s29
      %s18 = sphi 0, %s25
      %s19 = sphi 0, %s17
      %s20 = sphi 0, %s18
      %s21 = sphi 0, %s19
      %s22 = sphi 0, %s20
      %s34 = sphi 0, %s36
      %s37 = sphi 0, %s34
      %s38 = sphi 0, %s37
      %s54 = sphi 0, %s38
      %s60 = sphi 0, %s62
      %s63 = sphi 0, %s60
      %s64 = sphi 0, %s63
      %s80 = sphi 0, %s64
      %s86 = sphi 0, %s88
      %s89 = sphi 0, %s86
      %s90 = sphi 0, %s89
      %s106 = sphi 0, %s90
      %s110 = sphi 0, %s110
      %s112 = sphi 0, %s110
      %s113 = sphi 0, %s112
      %s127 = sphi 0, %s113
      %s133 = sphi 0, %s135
      %s136 = sphi 0, %s133
      %s137 = sphi 0, %s136
      %s153 = sphi 0, %s137
    $region4: #{fwd.10} parent=1 // loop_header_branch
      %13 = sbr.rel (%p11) target = $region8
    $region5: #{fwd.10} parent=1 // loop_body
      %s15 = ssub.s32 %s10, 1
      %s16 = ssub.s32 %s10, 2
      %s23 = sadd.s32 1, %s18
      %p24 = scmp.ge.s32.totalorder %s23, 2
      %s25 = scalar_select %p24, 0, %s23
      %s26 = sadd.s32 1, %s17
      %s27 = scalar_select %p24, %s26, %s17
      %p28 = scmp.ge.s32.totalorder %s27, 8
      %s29 = scalar_select %p28, 0, %s27
      %s30 = ssub.s32 %s17, %s29
      %s31 = ssub.s32 %s18, %s25
      %s32 = sor.u32 %s30, %s31
      %p33 = scmp.eq.s32.totalorder %s32, 0
      %s35 = sadd.s32 %s34, 1
      %s36 = scalar_select %p33, %s34, %s35
      %p39 = pneg %p33
      %p40 = scmp.eq.s32.totalorder %s10, 15
      %p41 = por %p39, %p40
      %p42 = scmp.ne.s32.totalorder %s34, %s37
      %p43 = scmp.eq.s32.totalorder %s10, 0
      %p44 = por %p42, %p43
      %p45 = scmp.ne.s32.totalorder %s34, %s37
      %p46 = scmp.eq.s32.totalorder %s15, 15
      %p47 = por %p45, %p46
      %p48 = scmp.ne.s32.totalorder %s37, %s38
      %p49 = scmp.eq.s32.totalorder %s15, 0
      %p50 = por %p48, %p49
      %p51 = scmp.ne.s32.totalorder %s37, %s38
      %p52 = scmp.eq.s32.totalorder %s16, 15
      %p53 = por %p51, %p52
      %p55 = scmp.ne.s32.totalorder %s38, %s54
      %p56 = scmp.eq.s32.totalorder %s16, 0
      %p57 = por %p55, %p56
      %s58 = ssub.s32 %s17, %s29
      %p59 = scmp.eq.s32.totalorder %s58, 0
      %s61 = sadd.s32 %s60, 1
      %s62 = scalar_select %p59, %s60, %s61
      %p65 = pneg %p59
      %p66 = scmp.eq.s32.totalorder %s10, 15
      %p67 = por %p65, %p66
      %p68 = scmp.ne.s32.totalorder %s60, %s63
      %p69 = scmp.eq.s32.totalorder %s10, 0
      %p70 = por %p68, %p69
      %p71 = scmp.ne.s32.totalorder %s60, %s63
      %p72 = scmp.eq.s32.totalorder %s15, 15
      %p73 = por %p71, %p72
      %p74 = scmp.ne.s32.totalorder %s63, %s64
      %p75 = scmp.eq.s32.totalorder %s15, 0
      %p76 = por %p74, %p75
      %p77 = scmp.ne.s32.totalorder %s63, %s64
      %p78 = scmp.eq.s32.totalorder %s16, 15
      %p79 = por %p77, %p78
      %p81 = scmp.ne.s32.totalorder %s64, %s80
      %p82 = scmp.eq.s32.totalorder %s16, 0
      %p83 = por %p81, %p82
      %s84 = ssub.s32 %s17, %s29
      %p85 = scmp.eq.s32.totalorder %s84, 0
      %s87 = sadd.s32 %s86, 1
      %s88 = scalar_select %p85, %s86, %s87
      %p91 = pneg %p85
      %p92 = scmp.eq.s32.totalorder %s10, 15
      %p93 = por %p91, %p92
      %p94 = scmp.ne.s32.totalorder %s86, %s89
      %p95 = scmp.eq.s32.totalorder %s10, 0
      %p96 = por %p94, %p95
      %p97 = scmp.ne.s32.totalorder %s86, %s89
      %p98 = scmp.eq.s32.totalorder %s15, 15
      %p99 = por %p97, %p98
      %p100 = scmp.ne.s32.totalorder %s89, %s90
      %p101 = scmp.eq.s32.totalorder %s15, 0
      %p102 = por %p100, %p101
      %p103 = scmp.ne.s32.totalorder %s89, %s90
      %p104 = scmp.eq.s32.totalorder %s16, 15
      %p105 = por %p103, %p104
      %p107 = scmp.ne.s32.totalorder %s90, %s106
      %p108 = scmp.eq.s32.totalorder %s16, 0
      %p109 = por %p107, %p108
      %s111 = sadd.s32 %s110, 1
      %p114 = scmp.eq.s32.totalorder %s10, 15
      %p115 = scmp.ne.s32.totalorder %s110, %s112
      %p116 = scmp.eq.s32.totalorder %s10, 0
      %p117 = por %p115, %p116
      %p118 = scmp.ne.s32.totalorder %s110, %s112
      %p119 = scmp.eq.s32.totalorder %s15, 15
      %p120 = por %p118, %p119
      %p121 = scmp.ne.s32.totalorder %s112, %s113
      %p122 = scmp.eq.s32.totalorder %s15, 0
      %p123 = por %p121, %p122
      %p124 = scmp.ne.s32.totalorder %s112, %s113
      %p125 = scmp.eq.s32.totalorder %s16, 15
      %p126 = por %p124, %p125
      %p128 = scmp.ne.s32.totalorder %s113, %s127
      %p129 = scmp.eq.s32.totalorder %s16, 0
      %p130 = por %p128, %p129
      %s131 = ssub.s32 %s17, %s29
      %p132 = scmp.eq.s32.totalorder %s131, 0
      %s134 = sadd.s32 %s133, 1
      %s135 = scalar_select %p132, %s133, %s134
      %p138 = pneg %p132
      %p139 = scmp.eq.s32.totalorder %s10, 15
      %p140 = por %p138, %p139
      %p141 = scmp.ne.s32.totalorder %s133, %s136
      %p142 = scmp.eq.s32.totalorder %s10, 0
      %p143 = por %p141, %p142
      %p144 = scmp.ne.s32.totalorder %s133, %s136
      %p145 = scmp.eq.s32.totalorder %s15, 15
      %p146 = por %p144, %p145
      %p147 = scmp.ne.s32.totalorder %s136, %s137
      %p148 = scmp.eq.s32.totalorder %s15, 0
      %p149 = por %p147, %p148
      %p150 = scmp.ne.s32.totalorder %s136, %s137
      %p151 = scmp.eq.s32.totalorder %s16, 15
      %p152 = por %p150, %p151
      %p154 = scmp.ne.s32.totalorder %s137, %s153
      %p155 = scmp.eq.s32.totalorder %s16, 0
      %p156 = por %p154, %p155
      %p157 = scmp.le.s32.totalorder 1, %s10
      %p158 = scmp.lt.s32.totalorder %s10, 17
      %p159 = pnand %p157, %p158
      %p160 = pneg %p159
      // Predicated region
      $region9: #{fwd.10} parent=5 // pred_check
        _
      $region10: #{fwd.10} parent=5 // pred_check_branch
        %162 = sbr.rel (%p159) target = $region12
      $region11: #{fwd.10} parent=5 // pred_region
        %s163 = ssub.s32 %s10, 1
        // Predicated region
        $region13: #{fwd.10} parent=11 // pred_check
          %p164 = pneg %p123
        $region14: #{fwd.10} parent=11 // pred_check_branch
          %166 = sbr.rel (%p164) target = $region16
        $region15: #{fwd.10} parent=11 // pred_region
          _
        $region16: #{fwd.10} parent=11 // pred_fallthru
          _
      $region12: #{fwd.10} parent=5 // pred_fallthru
        _
      %p167 = scmp.lt.s32.totalorder %s10, 16
      // Predicated region
      $region17: #{fwd.10} parent=5 // pred_check
        %p168 = pneg %p167
      $region18: #{fwd.10} parent=5 // pred_check_branch
        %170 = sbr.rel (%p168) target = $region20
      $region19: #{fwd.10} parent=5 // pred_region
        // Predicated region
        $region21: #{fwd.10} parent=19 // pred_check
          %p171 = pneg %p44
        $region22: #{fwd.10} parent=19 // pred_check_branch
          %173 = sbr.rel (%p171) target = $region24
        $region23: #{fwd.10} parent=19 // pred_region
          %s174 = sand.u32 %s34, 1
          %s175 = sand.u32 %s34, 1
          %s176 = smul.addr %s175, 32
          %s177 = scalar_lea.vmem [#allocation3], %s176
          %s178 = smul.u32 4, %s17
          %s179 = smul.addr %s178, 2
          %s180 = sadd.s32 %s18, %s179
          %s181 = smul.addr %s180, 8
          %s182 = scalar_lea.vmem %s0, %s181
          // Predicated region
          $region25: #{fwd.10} parent=23 // pred_check
            _
          $region26: #{fwd.10} parent=23 // pred_check_branch
            %184 = sbr.rel (0) target = $region28
          $region27: #{fwd.10} parent=23 // pred_region
            // Predicated region
            $region29: #{fwd.10} parent=27 // pred_check
              _
            $region30: #{fwd.10} parent=27 // pred_check_branch
              %186 = sbr.rel (0) target = $region32
            $region31: #{fwd.10} parent=27 // pred_region
              // Predicated region
              $region44: #{fwd.10} parent=31 // pred_check
                _
              $region45: #{fwd.10} parent=31 // pred_check_branch
                %208 = sbr.rel (0) target = $region47
              $region46: #{fwd.10} parent=31 // pred_region
                loop: start=0, step=1, limit=1
                $region48: #{fwd.10} parent=46 // loop_pre_header
                  _
                $region49: #{fwd.10} parent=46 // loop_header
                  %s210 = sphi 0, %s214
                  %p211 = scmp.ge.s32.totalorder %s210, 1
                  %s215 = sphi %s182, %s182
                  %s216 = sphi %s177, %s177
                $region50: #{fwd.10} parent=46 // loop_header_branch
                  %213 = sbr.rel (%p211) target = $region54
                $region51: #{fwd.10} parent=46 // loop_body
                  %v217 = vld [vmem:[%s215] sm:$0xff]
                  %218 = vst [vmem:[%s216] sm:$0xff] %v217
                  %v219 = vld [vmem:[%s215 + $0x10] sm:$0xff]
                  %220 = vst [vmem:[%s216 + $0x8] sm:$0xff] %v219
                  %v221 = vld [vmem:[%s215 + $0x20] sm:$0xff]
                  %222 = vst [vmem:[%s216 + $0x10] sm:$0xff] %v221
                  %v223 = vld [vmem:[%s215 + $0x30] sm:$0xff]
                  %224 = vst [vmem:[%s216 + $0x18] sm:$0xff] %v223
                $region52: #{fwd.10} parent=46 // loop_footer
                  %s214 = sadd.s32 1, %s210
                $region53: #{fwd.10} parent=46 // loop_footer_branch
                  %209 = sbr.rel target = $region49
                $region54: #{fwd.10} parent=46 // loop_exit
                  _
              $region47: #{fwd.10} parent=31 // pred_fallthru
                _
              // Predicated region
              $region55: #{fwd.10} parent=31 // pred_check
                _
              $region56: #{fwd.10} parent=31 // pred_check_branch
                %226 = sbr.rel target = $region58
              $region57: #{fwd.10} parent=31 // pred_region
                _
              $region58: #{fwd.10} parent=31 // pred_fallthru
                _
            $region32: #{fwd.10} parent=27 // pred_fallthru
              _
            // Predicated region
            $region33: #{fwd.10} parent=27 // pred_check
              _
            $region34: #{fwd.10} parent=27 // pred_check_branch
              %188 = sbr.rel target = $region36
            $region35: #{fwd.10} parent=27 // pred_region
              %s190 = ssub.s32 256, 1
              loop: start=0, step=1, limit=1
              $region37: #{fwd.10} parent=35 // loop_pre_header
                _
              $region38: #{fwd.10} parent=35 // loop_header
                %s192 = sphi 0, %s196
                %p193 = scmp.ge.s32.totalorder %s192, 1
                %s197 = sphi %s182, %s182
                %s198 = sphi %s177, %s177
              $region39: #{fwd.10} parent=35 // loop_header_branch
                %195 = sbr.rel (%p193) target = $region43
              $region40: #{fwd.10} parent=35 // loop_body
                %v199 = vld [vmem:[%s197] sm:%s190]
                %200 = vst [vmem:[%s198] sm:%s190] %v199
                %v201 = vld [vmem:[%s197 + $0x10] sm:%s190]
                %202 = vst [vmem:[%s198 + $0x8] sm:%s190] %v201
                %v203 = vld [vmem:[%s197 + $0x20] sm:%s190]
                %204 = vst [vmem:[%s198 + $0x10] sm:%s190] %v203
                %v205 = vld [vmem:[%s197 + $0x30] sm:%s190]
                %206 = vst [vmem:[%s198 + $0x18] sm:%s190] %v205
              $region41: #{fwd.10} parent=35 // loop_footer
                %s196 = sadd.s32 1, %s192
              $region42: #{fwd.10} parent=35 // loop_footer_branch
                %191 = sbr.rel target = $region38
              $region43: #{fwd.10} parent=35 // loop_exit
                _
            $region36: #{fwd.10} parent=27 // pred_fallthru
              _
          $region28: #{fwd.10} parent=23 // pred_fallthru
            _
          %227 = vnop
        $region24: #{fwd.10} parent=19 // pred_fallthru
          _
        // Predicated region
        $region59: #{fwd.10} parent=19 // pred_check
          %p228 = pneg %p70
        $region60: #{fwd.10} parent=19 // pred_check_branch
          %230 = sbr.rel (%p228) target = $region62
        $region61: #{fwd.10} parent=19 // pred_region
          %s231 = smul.u32 4, %s17
          %p232 = scmp.lt.s32.totalorder %s231, 31
          %s233 = scalar_select %p232, %s231, 31
          %s234 = smul.addr %s233, 8
          %s235 = scalar_lea.vmem %s1, %s234
          %s236 = smul.u32 4, %s17
        $region62: #{fwd.10} parent=19 // pred_fallthru
          _
        // Predicated region
        $region63: #{fwd.10} parent=19 // pred_check
          %p237 = pneg %p96
        $region64: #{fwd.10} parent=19 // pred_check_branch
          %239 = sbr.rel (%p237) target = $region66
        $region65: #{fwd.10} parent=19 // pred_region
          %s240 = smul.u32 4, %s17
          %p241 = scmp.lt.s32.totalorder %s240, 31
          %s242 = scalar_select %p241, %s240, 31
          %s243 = smul.addr %s242, 8
          %s244 = scalar_lea.vmem %s2, %s243
          %s245 = smul.u32 4, %s17
        $region66: #{fwd.10} parent=19 // pred_fallthru
          _
      $region20: #{fwd.10} parent=5 // pred_fallthru
        _
      %p246 = scmp.le.s32.totalorder 1, %s10
      %p247 = scmp.lt.s32.totalorder %s10, 17
      %p248 = pnand %p246, %p247
      %p249 = pneg %p248
      // Predicated region
      $region67: #{fwd.10} parent=5 // pred_check
        _
      $region68: #{fwd.10} parent=5 // pred_check_branch
        %251 = sbr.rel (%p248) target = $region70
      $region69: #{fwd.10} parent=5 // pred_region
        %s252 = ssub.s32 %s10, 1
        %s253 = sand.u32 %s37, 1
        %s254 = sand.u32 %s37, 1
        %s255 = smul.addr %s254, 32
        %s256 = scalar_lea.vmem [#allocation3], %s255
        // Predicated region
        $region71: #{fwd.10} parent=69 // pred_check
          %p257 = pneg %p50
        $region72: #{fwd.10} parent=69 // pred_check_branch
          %259 = sbr.rel (%p257) target = $region74
        $region73: #{fwd.10} parent=69 // pred_region
          _
        $region74: #{fwd.10} parent=69 // pred_fallthru
          _
        %s260 = sand.u32 %s37, 1
        %s261 = sand.u32 %s37, 1
        %s262 = smul.addr %s261, 32
        %s263 = scalar_lea.vmem [#allocation3], %s262
        %p264 = pneg %p50
        %p265 = pneg %p47
        %s266 = smul.u32 4, %s19
        %p267 = scmp.lt.s32.totalorder %s266, 31
        %s268 = scalar_select %p267, %s266, 31
        %s269 = smul.addr %s268, 8
        %s270 = scalar_lea.vmem %s1, %s269
        %p271 = pneg %p76
        %p272 = pneg %p73
        %s273 = smul.u32 4, %s19
        %p274 = scmp.lt.s32.totalorder %s273, 31
        %s275 = scalar_select %p274, %s273, 31
        %s276 = smul.addr %s275, 8
        %s277 = scalar_lea.vmem %s2, %s276
        %p278 = pneg %p102
        %p279 = pneg %p99
        %p280 = pneg %p123
        %p281 = pneg %p120
        %p282 = pneg %p149
        %p283 = pneg %p146
        %s284 = smul.u32 4, %s19
        %p285 = scmp.lt.s32.totalorder %s284, 31
        %s286 = scalar_select %p285, %s284, 31
        %s287 = smul.addr %s286, 8
        %s288 = scalar_lea.vmem %s4, %s287
        %s289 = smul.u32 4, %s19
        %s290 = smul.u32 4, %s19
        %p291 = scmp.lt.s32.totalorder %s290, 31
        %s292 = scalar_select %p291, %s290, 31
        %s293 = smul.addr %s292, 8
        %s294 = scalar_lea.vmem %s1, %s293
        %s295 = smul.u32 4, %s19
        %s296 = smul.u32 4, %s19
        %p297 = scmp.lt.s32.totalorder %s296, 31
        %s298 = scalar_select %p297, %s296, 31
        %s299 = smul.addr %s298, 8
        %s300 = scalar_lea.vmem %s2, %s299
        %s301 = smul.u32 4, %s19
        %s302 = smul.u32 4, %s19
        %p303 = scmp.lt.s32.totalorder %s302, 31
        %s304 = scalar_select %p303, %s302, 31
        %s305 = smul.addr %s304, 8
        %s306 = scalar_lea.vmem %s4, %s305
        %s307 = smul.u32 4, %s19
        %p308 = scmp.eq.s32.totalorder %s20, 0
        // Predicated region
        $region75: #{fwd.10} parent=69 // pred_check
          %p309 = pneg %p308
        $region76: #{fwd.10} parent=69 // pred_check_branch
          %311 = sbr.rel (%p309) target = $region78
        $region77: #{fwd.10} parent=69 // pred_region
          %312 = vst [vmem:[#allocation2] sm:$0xff] -1e+30
          %313 = vst [vmem:[#allocation2 + $0x8] sm:$0xff] -1e+30
          %314 = vst [vmem:[#allocation2 + $0x10] sm:$0xff] -1e+30
          %315 = vst [vmem:[#allocation2 + $0x18] sm:$0xff] -1e+30
        $region78: #{fwd.10} parent=69 // pred_fallthru
          _
        %v316 = vld [vmem:[%s256] sm:$0xff]
        %v317 = vld [vmem:[%s256 + $0x8] sm:$0xff]
        %v318 = vld [vmem:[%s256 + $0x10] sm:$0xff]
        %v319 = vld [vmem:[%s256 + $0x18] sm:$0xff]
        %s320 = smul.u32 %s20, 128
        %s321 = scalar_lea.vmem %s3, %s320
        %v322 = vld [vmem:[%s321] sm:$0xff]
        %v323 = vld [vmem:[%s321 + $0x8] sm:$0xff]
        %v324 = vld [vmem:[%s321 + $0x10] sm:$0xff]
        %v325 = vld [vmem:[%s321 + $0x18] sm:$0xff]
        %v326 = vld [vmem:[%s321 + $0x20] sm:$0xff]
        %v327 = vld [vmem:[%s321 + $0x28] sm:$0xff]
        %v328 = vld [vmem:[%s321 + $0x30] sm:$0xff]
        %v329 = vld [vmem:[%s321 + $0x38] sm:$0xff]
        %v330 = vld [vmem:[%s321 + $0x40] sm:$0xff]
        %v331 = vld [vmem:[%s321 + $0x48] sm:$0xff]
        %v332 = vld [vmem:[%s321 + $0x50] sm:$0xff]
        %v333 = vld [vmem:[%s321 + $0x58] sm:$0xff]
        %v334 = vld [vmem:[%s321 + $0x60] sm:$0xff]
        %v335 = vld [vmem:[%s321 + $0x68] sm:$0xff]
        %v336 = vld [vmem:[%s321 + $0x70] sm:$0xff]
        %v337 = vld [vmem:[%s321 + $0x78] sm:$0xff]
        %v338 = vld [vmem:[#allocation2] sm:$0xff]
        %v339 = vld [vmem:[#allocation2 + $0x8] sm:$0xff]
        %v340 = vld [vmem:[#allocation2 + $0x10] sm:$0xff]
        %v341 = vld [vmem:[#allocation2 + $0x18] sm:$0xff]
        %vm342 = vcmp.gt.f32.partialorder %v316, 0.0
        %vm343 = vcmp.gt.f32.partialorder %v317, 0.0
        %vm344 = vcmp.gt.f32.partialorder %v318, 0.0
        %vm345 = vcmp.gt.f32.partialorder %v319, 0.0
        %v346 = vsel %vm342, 1, 0
        %v347 = vsel %vm343, 1, 0
        %v348 = vsel %vm344, 1, 0
        %v349 = vsel %vm345, 1, 0
        %350 = vset.pattern.permute.xlu0 0
        %351 = vperm.xlu0 %350, %v346
        %v352 = vpop.permute.xlu0 %351
        %353 = vset.pattern.permute.xlu0 0
        %354 = vperm.xlu0 %353, %v347
        %v355 = vpop.permute.xlu0 %354
        %356 = vset.pattern.permute.xlu0 0
        %357 = vperm.xlu0 %356, %v348
        %v358 = vpop.permute.xlu0 %357
        %359 = vset.pattern.permute.xlu0 0
        %360 = vperm.xlu0 %359, %v349
        %v361 = vpop.permute.xlu0 %360
        %vm362 = vcmp.eq.s32.totalorder %v352, 1
        %vm363 = vcmp.eq.s32.totalorder %v355, 1
        %vm364 = vcmp.eq.s32.totalorder %v358, 1
        %vm365 = vcmp.eq.s32.totalorder %v361, 1
        %v366 = vlaneseq
        %v367 = vshrl.u32 %v366, 7
        %v368 = vsub.s32 0, %v367
        %v369 = vrot.slane %v322, %v368
        %v370 = vsel %vm362, %v369, -1e+30
        %v371 = vsel %vm363, %v369, -1e+30
        %v372 = vsel %vm364, %v369, -1e+30
        %v373 = vsel %vm365, %v369, -1e+30
        %v374 = vmax.f32 %v338, %v370
        %v375 = vmax.f32 %v339, %v371
        %v376 = vmax.f32 %v340, %v372
        %v377 = vmax.f32 %v341, %v373
        %378 = vset.pattern.permute.xlu0 1
        %379 = vperm.xlu0 %378, %v346
        %v380 = vpop.permute.xlu0 %379
        %381 = vset.pattern.permute.xlu0 1
        %382 = vperm.xlu0 %381, %v347
        %v383 = vpop.permute.xlu0 %382
        %384 = vset.pattern.permute.xlu0 1
        %385 = vperm.xlu0 %384, %v348
        %v386 = vpop.permute.xlu0 %385
        %387 = vset.pattern.permute.xlu0 1
        %388 = vperm.xlu0 %387, %v349
        %v389 = vpop.permute.xlu0 %388
        %vm390 = vcmp.eq.s32.totalorder %v380, 1
        %vm391 = vcmp.eq.s32.totalorder %v383, 1
        %vm392 = vcmp.eq.s32.totalorder %v386, 1
        %vm393 = vcmp.eq.s32.totalorder %v389, 1
        %v394 = vlaneseq
        %v395 = vshrl.u32 %v394, 7
        %v396 = vsub.s32 1, %v395
        %v397 = vrot.slane %v322, %v396
        %v398 = vsel %vm390, %v397, -1e+30
        %v399 = vsel %vm391, %v397, -1e+30
        %v400 = vsel %vm392, %v397, -1e+30
        %v401 = vsel %vm393, %v397, -1e+30
        %v402 = vmax.f32 %v374, %v398
        %v403 = vmax.f32 %v375, %v399
        %v404 = vmax.f32 %v376, %v400
        %v405 = vmax.f32 %v377, %v401
        %406 = vset.pattern.permute.xlu0 2
        %407 = vperm.xlu0 %406, %v346
        %v408 = vpop.permute.xlu0 %407
        %409 = vset.pattern.permute.xlu0 2
        %410 = vperm.xlu0 %409, %v347
        %v411 = vpop.permute.xlu0 %410
        %412 = vset.pattern.permute.xlu0 2
        %413 = vperm.xlu0 %412, %v348
        %v414 = vpop.permute.xlu0 %413
        %415 = vset.pattern.permute.xlu0 2
        %416 = vperm.xlu0 %415, %v349
        %v417 = vpop.permute.xlu0 %416
        %vm418 = vcmp.eq.s32.totalorder %v408, 1
        %vm419 = vcmp.eq.s32.totalorder %v411, 1
        %vm420 = vcmp.eq.s32.totalorder %v414, 1
        %vm421 = vcmp.eq.s32.totalorder %v417, 1
        %v422 = vlaneseq
        %v423 = vshrl.u32 %v422, 7
        %v424 = vsub.s32 2, %v423
        %v425 = vrot.slane %v322, %v424
        %v426 = vsel %vm418, %v425, -1e+30
        %v427 = vsel %vm419, %v425, -1e+30
        %v428 = vsel %vm420, %v425, -1e+30
        %v429 = vsel %vm421, %v425, -1e+30
        %v430 = vmax.f32 %v402, %v426
        %v431 = vmax.f32 %v403, %v427
        %v432 = vmax.f32 %v404, %v428
        %v433 = vmax.f32 %v405, %v429
        %434 = vset.pattern.permute.xlu0 3
        %435 = vperm.xlu0 %434, %v346
        %v436 = vpop.permute.xlu0 %435
        %437 = vset.pattern.permute.xlu0 3
        %438 = vperm.xlu0 %437, %v347
        %v439 = vpop.permute.xlu0 %438
        %440 = vset.pattern.permute.xlu0 3
        %441 = vperm.xlu0 %440, %v348
        %v442 = vpop.permute.xlu0 %441
        %443 = vset.pattern.permute.xlu0 3
        %444 = vperm.xlu0 %443, %v349
        %v445 = vpop.permute.xlu0 %444
        %vm446 = vcmp.eq.s32.totalorder %v436, 1
        %vm447 = vcmp.eq.s32.totalorder %v439, 1
        %vm448 = vcmp.eq.s32.totalorder %v442, 1
        %vm449 = vcmp.eq.s32.totalorder %v445, 1
        %v450 = vlaneseq
        %v451 = vshrl.u32 %v450, 7
        %v452 = vsub.s32 3, %v451
        %v453 = vrot.slane %v322, %v452
        %v454 = vsel %vm446, %v453, -1e+30
        %v455 = vsel %vm447, %v453, -1e+30
        %v456 = vsel %vm448, %v453, -1e+30
        %v457 = vsel %vm449, %v453, -1e+30
        %v458 = vmax.f32 %v430, %v454
        %v459 = vmax.f32 %v431, %v455
        %v460 = vmax.f32 %v432, %v456
        %v461 = vmax.f32 %v433, %v457
        %462 = vset.pattern.permute.xlu0 4
        %463 = vperm.xlu0 %462, %v346
        %v464 = vpop.permute.xlu0 %463
        %465 = vset.pattern.permute.xlu0 4
        %466 = vperm.xlu0 %465, %v347
        %v467 = vpop.permute.xlu0 %466
        %468 = vset.pattern.permute.xlu0 4
        %469 = vperm.xlu0 %468, %v348
        %v470 = vpop.permute.xlu0 %469
        %471 = vset.pattern.permute.xlu0 4
        %472 = vperm.xlu0 %471, %v349
        %v473 = vpop.permute.xlu0 %472
        %vm474 = vcmp.eq.s32.totalorder %v464, 1
        %vm475 = vcmp.eq.s32.totalorder %v467, 1
        %vm476 = vcmp.eq.s32.totalorder %v470, 1
        %vm477 = vcmp.eq.s32.totalorder %v473, 1
        %v478 = vlaneseq
        %v479 = vshrl.u32 %v478, 7
        %v480 = vsub.s32 4, %v479
        %v481 = vrot.slane %v322, %v480
        %v482 = vsel %vm474, %v481, -1e+30
        %v483 = vsel %vm475, %v481, -1e+30
        %v484 = vsel %vm476, %v481, -1e+30
        %v485 = vsel %vm477, %v481, -1e+30
        %v486 = vmax.f32 %v458, %v482
        %v487 = vmax.f32 %v459, %v483
        %v488 = vmax.f32 %v460, %v484
        %v489 = vmax.f32 %v461, %v485
        %490 = vset.pattern.permute.xlu0 5
        %491 = vperm.xlu0 %490, %v346
        %v492 = vpop.permute.xlu0 %491
        %493 = vset.pattern.permute.xlu0 5
        %494 = vperm.xlu0 %493, %v347
        %v495 = vpop.permute.xlu0 %494
        %496 = vset.pattern.permute.xlu0 5
        %497 = vperm.xlu0 %496, %v348
        %v498 = vpop.permute.xlu0 %497
        %499 = vset.pattern.permute.xlu0 5
        %500 = vperm.xlu0 %499, %v349
        %v501 = vpop.permute.xlu0 %500
        %vm502 = vcmp.eq.s32.totalorder %v492, 1
        %vm503 = vcmp.eq.s32.totalorder %v495, 1
        %vm504 = vcmp.eq.s32.totalorder %v498, 1
        %vm505 = vcmp.eq.s32.totalorder %v501, 1
        %v506 = vlaneseq
        %v507 = vshrl.u32 %v506, 7
        %v508 = vsub.s32 5, %v507
        %v509 = vrot.slane %v322, %v508
        %v510 = vsel %vm502, %v509, -1e+30
        %v511 = vsel %vm503, %v509, -1e+30
        %v512 = vsel %vm504, %v509, -1e+30
        %v513 = vsel %vm505, %v509, -1e+30
        %v514 = vmax.f32 %v486, %v510
        %v515 = vmax.f32 %v487, %v511
        %v516 = vmax.f32 %v488, %v512
        %v517 = vmax.f32 %v489, %v513
        %518 = vset.pattern.permute.xlu0 6
        %519 = vperm.xlu0 %518, %v346
        %v520 = vpop.permute.xlu0 %519
        %521 = vset.pattern.permute.xlu0 6
        %522 = vperm.xlu0 %521, %v347
        %v523 = vpop.permute.xlu0 %522
        %524 = vset.pattern.permute.xlu0 6
        %525 = vperm.xlu0 %524, %v348
        %v526 = vpop.permute.xlu0 %525
        %527 = vset.pattern.permute.xlu0 6
        %528 = vperm.xlu0 %527, %v349
        %v529 = vpop.permute.xlu0 %528
        %vm530 = vcmp.eq.s32.totalorder %v520, 1
        %vm531 = vcmp.eq.s32.totalorder %v523, 1
        %vm532 = vcmp.eq.s32.totalorder %v526, 1
        %vm533 = vcmp.eq.s32.totalorder %v529, 1
        %v534 = vlaneseq
        %v535 = vshrl.u32 %v534, 7
        %v536 = vsub.s32 6, %v535
        %v537 = vrot.slane %v322, %v536
        %v538 = vsel %vm530, %v537, -1e+30
        %v539 = vsel %vm531, %v537, -1e+30
        %v540 = vsel %vm532, %v537, -1e+30
        %v541 = vsel %vm533, %v537, -1e+30
        %v542 = vmax.f32 %v514, %v538
        %v543 = vmax.f32 %v515, %v539
        %v544 = vmax.f32 %v516, %v540
        %v545 = vmax.f32 %v517, %v541
        %546 = vset.pattern.permute.xlu0 7
        %547 = vperm.xlu0 %546, %v346
        %v548 = vpop.permute.xlu0 %547
        %549 = vset.pattern.permute.xlu0 7
        %550 = vperm.xlu0 %549, %v347
        %v551 = vpop.permute.xlu0 %550
        %552 = vset.pattern.permute.xlu0 7
        %553 = vperm.xlu0 %552, %v348
        %v554 = vpop.permute.xlu0 %553
        %555 = vset.pattern.permute.xlu0 7
        %556 = vperm.xlu0 %555, %v349
        %v557 = vpop.permute.xlu0 %556
        %vm558 = vcmp.eq.s32.totalorder %v548, 1
        %vm559 = vcmp.eq.s32.totalorder %v551, 1
        %vm560 = vcmp.eq.s32.totalorder %v554, 1
        %vm561 = vcmp.eq.s32.totalorder %v557, 1
        %v562 = vlaneseq
        %v563 = vshrl.u32 %v562, 7
        %v564 = vsub.s32 7, %v563
        %v565 = vrot.slane %v322, %v564
        %v566 = vsel %vm558, %v565, -1e+30
        %v567 = vsel %vm559, %v565, -1e+30
        %v568 = vsel %vm560, %v565, -1e+30
        %v569 = vsel %vm561, %v565, -1e+30
        %v570 = vmax.f32 %v542, %v566
        %v571 = vmax.f32 %v543, %v567
        %v572 = vmax.f32 %v544, %v568
        %v573 = vmax.f32 %v545, %v569
        %574 = vset.pattern.permute.xlu0 8
        %575 = vperm.xlu0 %574, %v346
        %v576 = vpop.permute.xlu0 %575
        %577 = vset.pattern.permute.xlu0 8
        %578 = vperm.xlu0 %577, %v347
        %v579 = vpop.permute.xlu0 %578
        %580 = vset.pattern.permute.xlu0 8
        %581 = vperm.xlu0 %580, %v348
        %v582 = vpop.permute.xlu0 %581
        %583 = vset.pattern.permute.xlu0 8
        %584 = vperm.xlu0 %583, %v349
        %v585 = vpop.permute.xlu0 %584
        %vm586 = vcmp.eq.s32.totalorder %v576, 1
        %vm587 = vcmp.eq.s32.totalorder %v579, 1
        %vm588 = vcmp.eq.s32.totalorder %v582, 1
        %vm589 = vcmp.eq.s32.totalorder %v585, 1
        %v590 = vlaneseq
        %v591 = vshrl.u32 %v590, 7
        %v592 = vsub.s32 0, %v591
        %v593 = vrot.slane %v323, %v592
        %v594 = vsel %vm586, %v593, -1e+30
        %v595 = vsel %vm587, %v593, -1e+30
        %v596 = vsel %vm588, %v593, -1e+30
        %v597 = vsel %vm589, %v593, -1e+30
        %v598 = vmax.f32 %v570, %v594
        %v599 = vmax.f32 %v571, %v595
        %v600 = vmax.f32 %v572, %v596
        %v601 = vmax.f32 %v573, %v597
        %602 = vset.pattern.permute.xlu0 9
        %603 = vperm.xlu0 %602, %v346
        %v604 = vpop.permute.xlu0 %603
        %605 = vset.pattern.permute.xlu0 9
        %606 = vperm.xlu0 %605, %v347
        %v607 = vpop.permute.xlu0 %606
        %608 = vset.pattern.permute.xlu0 9
        %609 = vperm.xlu0 %608, %v348
        %v610 = vpop.permute.xlu0 %609
        %611 = vset.pattern.permute.xlu0 9
        %612 = vperm.xlu0 %611, %v349
        %v613 = vpop.permute.xlu0 %612
        %vm614 = vcmp.eq.s32.totalorder %v604, 1
        %vm615 = vcmp.eq.s32.totalorder %v607, 1
        %vm616 = vcmp.eq.s32.totalorder %v610, 1
        %vm617 = vcmp.eq.s32.totalorder %v613, 1
        %v618 = vlaneseq
        %v619 = vshrl.u32 %v618, 7
        %v620 = vsub.s32 1, %v619
        %v621 = vrot.slane %v323, %v620
        %v622 = vsel %vm614, %v621, -1e+30
        %v623 = vsel %vm615, %v621, -1e+30
        %v624 = vsel %vm616, %v621, -1e+30
        %v625 = vsel %vm617, %v621, -1e+30
        %v626 = vmax.f32 %v598, %v622
        %v627 = vmax.f32 %v599, %v623
        %v628 = vmax.f32 %v600, %v624
        %v629 = vmax.f32 %v601, %v625
        %630 = vset.pattern.permute.xlu0 10
        %631 = vperm.xlu0 %630, %v346
        %v632 = vpop.permute.xlu0 %631
        %633 = vset.pattern.permute.xlu0 10
        %634 = vperm.xlu0 %633, %v347
        %v635 = vpop.permute.xlu0 %634
        %636 = vset.pattern.permute.xlu0 10
        %637 = vperm.xlu0 %636, %v348
        %v638 = vpop.permute.xlu0 %637
        %639 = vset.pattern.permute.xlu0 10
        %640 = vperm.xlu0 %639, %v349
        %v641 = vpop.permute.xlu0 %640
        %vm642 = vcmp.eq.s32.totalorder %v632, 1
        %vm643 = vcmp.eq.s32.totalorder %v635, 1
        %vm644 = vcmp.eq.s32.totalorder %v638, 1
        %vm645 = vcmp.eq.s32.totalorder %v641, 1
        %v646 = vlaneseq
        %v647 = vshrl.u32 %v646, 7
        %v648 = vsub.s32 2, %v647
        %v649 = vrot.slane %v323, %v648
        %v650 = vsel %vm642, %v649, -1e+30
        %v651 = vsel %vm643, %v649, -1e+30
        %v652 = vsel %vm644, %v649, -1e+30
        %v653 = vsel %vm645, %v649, -1e+30
        %v654 = vmax.f32 %v626, %v650
        %v655 = vmax.f32 %v627, %v651
        %v656 = vmax.f32 %v628, %v652
        %v657 = vmax.f32 %v629, %v653
        %658 = vset.pattern.permute.xlu0 11
        %659 = vperm.xlu0 %658, %v346
        %v660 = vpop.permute.xlu0 %659
        %661 = vset.pattern.permute.xlu0 11
        %662 = vperm.xlu0 %661, %v347
        %v663 = vpop.permute.xlu0 %662
        %664 = vset.pattern.permute.xlu0 11
        %665 = vperm.xlu0 %664, %v348
        %v666 = vpop.permute.xlu0 %665
        %667 = vset.pattern.permute.xlu0 11
        %668 = vperm.xlu0 %667, %v349
        %v669 = vpop.permute.xlu0 %668
        %vm670 = vcmp.eq.s32.totalorder %v660, 1
        %vm671 = vcmp.eq.s32.totalorder %v663, 1
        %vm672 = vcmp.eq.s32.totalorder %v666, 1
        %vm673 = vcmp.eq.s32.totalorder %v669, 1
        %v674 = vlaneseq
        %v675 = vshrl.u32 %v674, 7
        %v676 = vsub.s32 3, %v675
        %v677 = vrot.slane %v323, %v676
        %v678 = vsel %vm670, %v677, -1e+30
        %v679 = vsel %vm671, %v677, -1e+30
        %v680 = vsel %vm672, %v677, -1e+30
        %v681 = vsel %vm673, %v677, -1e+30
        %v682 = vmax.f32 %v654, %v678
        %v683 = vmax.f32 %v655, %v679
        %v684 = vmax.f32 %v656, %v680
        %v685 = vmax.f32 %v657, %v681
        %686 = vset.pattern.permute.xlu0 12
        %687 = vperm.xlu0 %686, %v346
        %v688 = vpop.permute.xlu0 %687
        %689 = vset.pattern.permute.xlu0 12
        %690 = vperm.xlu0 %689, %v347
        %v691 = vpop.permute.xlu0 %690
        %692 = vset.pattern.permute.xlu0 12
        %693 = vperm.xlu0 %692, %v348
        %v694 = vpop.permute.xlu0 %693
        %695 = vset.pattern.permute.xlu0 12
        %696 = vperm.xlu0 %695, %v349
        %v697 = vpop.permute.xlu0 %696
        %vm698 = vcmp.eq.s32.totalorder %v688, 1
        %vm699 = vcmp.eq.s32.totalorder %v691, 1
        %vm700 = vcmp.eq.s32.totalorder %v694, 1
        %vm701 = vcmp.eq.s32.totalorder %v697, 1
        %v702 = vlaneseq
        %v703 = vshrl.u32 %v702, 7
        %v704 = vsub.s32 4, %v703
        %v705 = vrot.slane %v323, %v704
        %v706 = vsel %vm698, %v705, -1e+30
        %v707 = vsel %vm699, %v705, -1e+30
        %v708 = vsel %vm700, %v705, -1e+30
        %v709 = vsel %vm701, %v705, -1e+30
        %v710 = vmax.f32 %v682, %v706
        %v711 = vmax.f32 %v683, %v707
        %v712 = vmax.f32 %v684, %v708
        %v713 = vmax.f32 %v685, %v709
        %714 = vset.pattern.permute.xlu0 13
        %715 = vperm.xlu0 %714, %v346
        %v716 = vpop.permute.xlu0 %715
        %717 = vset.pattern.permute.xlu0 13
        %718 = vperm.xlu0 %717, %v347
        %v719 = vpop.permute.xlu0 %718
        %720 = vset.pattern.permute.xlu0 13
        %721 = vperm.xlu0 %720, %v348
        %v722 = vpop.permute.xlu0 %721
        %723 = vset.pattern.permute.xlu0 13
        %724 = vperm.xlu0 %723, %v349
        %v725 = vpop.permute.xlu0 %724
        %vm726 = vcmp.eq.s32.totalorder %v716, 1
        %vm727 = vcmp.eq.s32.totalorder %v719, 1
        %vm728 = vcmp.eq.s32.totalorder %v722, 1
        %vm729 = vcmp.eq.s32.totalorder %v725, 1
        %v730 = vlaneseq
        %v731 = vshrl.u32 %v730, 7
        %v732 = vsub.s32 5, %v731
        %v733 = vrot.slane %v323, %v732
        %v734 = vsel %vm726, %v733, -1e+30
        %v735 = vsel %vm727, %v733, -1e+30
        %v736 = vsel %vm728, %v733, -1e+30
        %v737 = vsel %vm729, %v733, -1e+30
        %v738 = vmax.f32 %v710, %v734
        %v739 = vmax.f32 %v711, %v735
        %v740 = vmax.f32 %v712, %v736
        %v741 = vmax.f32 %v713, %v737
        %742 = vset.pattern.permute.xlu0 14
        %743 = vperm.xlu0 %742, %v346
        %v744 = vpop.permute.xlu0 %743
        %745 = vset.pattern.permute.xlu0 14
        %746 = vperm.xlu0 %745, %v347
        %v747 = vpop.permute.xlu0 %746
        %748 = vset.pattern.permute.xlu0 14
        %749 = vperm.xlu0 %748, %v348
        %v750 = vpop.permute.xlu0 %749
        %751 = vset.pattern.permute.xlu0 14
        %752 = vperm.xlu0 %751, %v349
        %v753 = vpop.permute.xlu0 %752
        %vm754 = vcmp.eq.s32.totalorder %v744, 1
        %vm755 = vcmp.eq.s32.totalorder %v747, 1
        %vm756 = vcmp.eq.s32.totalorder %v750, 1
        %vm757 = vcmp.eq.s32.totalorder %v753, 1
        %v758 = vlaneseq
        %v759 = vshrl.u32 %v758, 7
        %v760 = vsub.s32 6, %v759
        %v761 = vrot.slane %v323, %v760
        %v762 = vsel %vm754, %v761, -1e+30
        %v763 = vsel %vm755, %v761, -1e+30
        %v764 = vsel %vm756, %v761, -1e+30
        %v765 = vsel %vm757, %v761, -1e+30
        %v766 = vmax.f32 %v738, %v762
        %v767 = vmax.f32 %v739, %v763
        %v768 = vmax.f32 %v740, %v764
        %v769 = vmax.f32 %v741, %v765
        %770 = vset.pattern.permute.xlu0 15
        %771 = vperm.xlu0 %770, %v346
        %v772 = vpop.permute.xlu0 %771
        %773 = vset.pattern.permute.xlu0 15
        %774 = vperm.xlu0 %773, %v347
        %v775 = vpop.permute.xlu0 %774
        %776 = vset.pattern.permute.xlu0 15
        %777 = vperm.xlu0 %776, %v348
        %v778 = vpop.permute.xlu0 %777
        %779 = vset.pattern.permute.xlu0 15
        %780 = vperm.xlu0 %779, %v349
        %v781 = vpop.permute.xlu0 %780
        %vm782 = vcmp.eq.s32.totalorder %v772, 1
        %vm783 = vcmp.eq.s32.totalorder %v775, 1
        %vm784 = vcmp.eq.s32.totalorder %v778, 1
        %vm785 = vcmp.eq.s32.totalorder %v781, 1
        %v786 = vlaneseq
        %v787 = vshrl.u32 %v786, 7
        %v788 = vsub.s32 7, %v787
        %v789 = vrot.slane %v323, %v788
        %v790 = vsel %vm782, %v789, -1e+30
        %v791 = vsel %vm783, %v789, -1e+30
        %v792 = vsel %vm784, %v789, -1e+30
        %v793 = vsel %vm785, %v789, -1e+30
        %v794 = vmax.f32 %v766, %v790
        %v795 = vmax.f32 %v767, %v791
        %v796 = vmax.f32 %v768, %v792
        %v797 = vmax.f32 %v769, %v793
        %798 = vset.pattern.permute.xlu0 16
        %799 = vperm.xlu0 %798, %v346
        %v800 = vpop.permute.xlu0 %799
        %801 = vset.pattern.permute.xlu0 16
        %802 = vperm.xlu0 %801, %v347
        %v803 = vpop.permute.xlu0 %802
        %804 = vset.pattern.permute.xlu0 16
        %805 = vperm.xlu0 %804, %v348
        %v806 = vpop.permute.xlu0 %805
        %807 = vset.pattern.permute.xlu0 16
        %808 = vperm.xlu0 %807, %v349
        %v809 = vpop.permute.xlu0 %808
        %vm810 = vcmp.eq.s32.totalorder %v800, 1
        %vm811 = vcmp.eq.s32.totalorder %v803, 1
        %vm812 = vcmp.eq.s32.totalorder %v806, 1
        %vm813 = vcmp.eq.s32.totalorder %v809, 1
        %v814 = vlaneseq
        %v815 = vshrl.u32 %v814, 7
        %v816 = vsub.s32 0, %v815
        %v817 = vrot.slane %v324, %v816
        %v818 = vsel %vm810, %v817, -1e+30
        %v819 = vsel %vm811, %v817, -1e+30
        %v820 = vsel %vm812, %v817, -1e+30
        %v821 = vsel %vm813, %v817, -1e+30
        %v822 = vmax.f32 %v794, %v818
        %v823 = vmax.f32 %v795, %v819
        %v824 = vmax.f32 %v796, %v820
        %v825 = vmax.f32 %v797, %v821
        %826 = vset.pattern.permute.xlu0 17
        %827 = vperm.xlu0 %826, %v346
        %v828 = vpop.permute.xlu0 %827
        %829 = vset.pattern.permute.xlu0 17
        %830 = vperm.xlu0 %829, %v347
        %v831 = vpop.permute.xlu0 %830
        %832 = vset.pattern.permute.xlu0 17
        %833 = vperm.xlu0 %832, %v348
        %v834 = vpop.permute.xlu0 %833
        %835 = vset.pattern.permute.xlu0 17
        %836 = vperm.xlu0 %835, %v349
        %v837 = vpop.permute.xlu0 %836
        %vm838 = vcmp.eq.s32.totalorder %v828, 1
        %vm839 = vcmp.eq.s32.totalorder %v831, 1
        %vm840 = vcmp.eq.s32.totalorder %v834, 1
        %vm841 = vcmp.eq.s32.totalorder %v837, 1
        %v842 = vlaneseq
        %v843 = vshrl.u32 %v842, 7
        %v844 = vsub.s32 1, %v843
        %v845 = vrot.slane %v324, %v844
        %v846 = vsel %vm838, %v845, -1e+30
        %v847 = vsel %vm839, %v845, -1e+30
        %v848 = vsel %vm840, %v845, -1e+30
        %v849 = vsel %vm841, %v845, -1e+30
        %v850 = vmax.f32 %v822, %v846
        %v851 = vmax.f32 %v823, %v847
        %v852 = vmax.f32 %v824, %v848
        %v853 = vmax.f32 %v825, %v849
        %854 = vset.pattern.permute.xlu0 18
        %855 = vperm.xlu0 %854, %v346
        %v856 = vpop.permute.xlu0 %855
        %857 = vset.pattern.permute.xlu0 18
        %858 = vperm.xlu0 %857, %v347
        %v859 = vpop.permute.xlu0 %858
        %860 = vset.pattern.permute.xlu0 18
        %861 = vperm.xlu0 %860, %v348
        %v862 = vpop.permute.xlu0 %861
        %863 = vset.pattern.permute.xlu0 18
        %864 = vperm.xlu0 %863, %v349
        %v865 = vpop.permute.xlu0 %864
        %vm866 = vcmp.eq.s32.totalorder %v856, 1
        %vm867 = vcmp.eq.s32.totalorder %v859, 1
        %vm868 = vcmp.eq.s32.totalorder %v862, 1
        %vm869 = vcmp.eq.s32.totalorder %v865, 1
        %v870 = vlaneseq
        %v871 = vshrl.u32 %v870, 7
        %v872 = vsub.s32 2, %v871
        %v873 = vrot.slane %v324, %v872
        %v874 = vsel %vm866, %v873, -1e+30
        %v875 = vsel %vm867, %v873, -1e+30
        %v876 = vsel %vm868, %v873, -1e+30
        %v877 = vsel %vm869, %v873, -1e+30
        %v878 = vmax.f32 %v850, %v874
        %v879 = vmax.f32 %v851, %v875
        %v880 = vmax.f32 %v852, %v876
        %v881 = vmax.f32 %v853, %v877
        %882 = vset.pattern.permute.xlu0 19
        %883 = vperm.xlu0 %882, %v346
        %v884 = vpop.permute.xlu0 %883
        %885 = vset.pattern.permute.xlu0 19
        %886 = vperm.xlu0 %885, %v347
        %v887 = vpop.permute.xlu0 %886
        %888 = vset.pattern.permute.xlu0 19
        %889 = vperm.xlu0 %888, %v348
        %v890 = vpop.permute.xlu0 %889
        %891 = vset.pattern.permute.xlu0 19
        %892 = vperm.xlu0 %891, %v349
        %v893 = vpop.permute.xlu0 %892
        %vm894 = vcmp.eq.s32.totalorder %v884, 1
        %vm895 = vcmp.eq.s32.totalorder %v887, 1
        %vm896 = vcmp.eq.s32.totalorder %v890, 1
        %vm897 = vcmp.eq.s32.totalorder %v893, 1
        %v898 = vlaneseq
        %v899 = vshrl.u32 %v898, 7
        %v900 = vsub.s32 3, %v899
        %v901 = vrot.slane %v324, %v900
        %v902 = vsel %vm894, %v901, -1e+30
        %v903 = vsel %vm895, %v901, -1e+30
        %v904 = vsel %vm896, %v901, -1e+30
        %v905 = vsel %vm897, %v901, -1e+30
        %v906 = vmax.f32 %v878, %v902
        %v907 = vmax.f32 %v879, %v903
        %v908 = vmax.f32 %v880, %v904
        %v909 = vmax.f32 %v881, %v905
        %910 = vset.pattern.permute.xlu0 20
        %911 = vperm.xlu0 %910, %v346
        %v912 = vpop.permute.xlu0 %911
        %913 = vset.pattern.permute.xlu0 20
        %914 = vperm.xlu0 %913, %v347
        %v915 = vpop.permute.xlu0 %914
        %916 = vset.pattern.permute.xlu0 20
        %917 = vperm.xlu0 %916, %v348
        %v918 = vpop.permute.xlu0 %917
        %919 = vset.pattern.permute.xlu0 20
        %920 = vperm.xlu0 %919, %v349
        %v921 = vpop.permute.xlu0 %920
        %vm922 = vcmp.eq.s32.totalorder %v912, 1
        %vm923 = vcmp.eq.s32.totalorder %v915, 1
        %vm924 = vcmp.eq.s32.totalorder %v918, 1
        %vm925 = vcmp.eq.s32.totalorder %v921, 1
        %v926 = vlaneseq
        %v927 = vshrl.u32 %v926, 7
        %v928 = vsub.s32 4, %v927
        %v929 = vrot.slane %v324, %v928
        %v930 = vsel %vm922, %v929, -1e+30
        %v931 = vsel %vm923, %v929, -1e+30
        %v932 = vsel %vm924, %v929, -1e+30
        %v933 = vsel %vm925, %v929, -1e+30
        %v934 = vmax.f32 %v906, %v930
        %v935 = vmax.f32 %v907, %v931
        %v936 = vmax.f32 %v908, %v932
        %v937 = vmax.f32 %v909, %v933
        %938 = vset.pattern.permute.xlu0 21
        %939 = vperm.xlu0 %938, %v346
        %v940 = vpop.permute.xlu0 %939
        %941 = vset.pattern.permute.xlu0 21
        %942 = vperm.xlu0 %941, %v347
        %v943 = vpop.permute.xlu0 %942
        %944 = vset.pattern.permute.xlu0 21
        %945 = vperm.xlu0 %944, %v348
        %v946 = vpop.permute.xlu0 %945
        %947 = vset.pattern.permute.xlu0 21
        %948 = vperm.xlu0 %947, %v349
        %v949 = vpop.permute.xlu0 %948
        %vm950 = vcmp.eq.s32.totalorder %v940, 1
        %vm951 = vcmp.eq.s32.totalorder %v943, 1
        %vm952 = vcmp.eq.s32.totalorder %v946, 1
        %vm953 = vcmp.eq.s32.totalorder %v949, 1
        %v954 = vlaneseq
        %v955 = vshrl.u32 %v954, 7
        %v956 = vsub.s32 5, %v955
        %v957 = vrot.slane %v324, %v956
        %v958 = vsel %vm950, %v957, -1e+30
        %v959 = vsel %vm951, %v957, -1e+30
        %v960 = vsel %vm952, %v957, -1e+30
        %v961 = vsel %vm953, %v957, -1e+30
        %v962 = vmax.f32 %v934, %v958
        %v963 = vmax.f32 %v935, %v959
        %v964 = vmax.f32 %v936, %v960
        %v965 = vmax.f32 %v937, %v961
        %966 = vset.pattern.permute.xlu0 22
        %967 = vperm.xlu0 %966, %v346
        %v968 = vpop.permute.xlu0 %967
        %969 = vset.pattern.permute.xlu0 22
        %970 = vperm.xlu0 %969, %v347
        %v971 = vpop.permute.xlu0 %970
        %972 = vset.pattern.permute.xlu0 22
        %973 = vperm.xlu0 %972, %v348
        %v974 = vpop.permute.xlu0 %973
        %975 = vset.pattern.permute.xlu0 22
        %976 = vperm.xlu0 %975, %v349
        %v977 = vpop.permute.xlu0 %976
        %vm978 = vcmp.eq.s32.totalorder %v968, 1
        %vm979 = vcmp.eq.s32.totalorder %v971, 1
        %vm980 = vcmp.eq.s32.totalorder %v974, 1
        %vm981 = vcmp.eq.s32.totalorder %v977, 1
        %v982 = vlaneseq
        %v983 = vshrl.u32 %v982, 7
        %v984 = vsub.s32 6, %v983
        %v985 = vrot.slane %v324, %v984
        %v986 = vsel %vm978, %v985, -1e+30
        %v987 = vsel %vm979, %v985, -1e+30
        %v988 = vsel %vm980, %v985, -1e+30
        %v989 = vsel %vm981, %v985, -1e+30
        %v990 = vmax.f32 %v962, %v986
        %v991 = vmax.f32 %v963, %v987
        %v992 = vmax.f32 %v964, %v988
        %v993 = vmax.f32 %v965, %v989
        %994 = vset.pattern.permute.xlu0 23
        %995 = vperm.xlu0 %994, %v346
        %v996 = vpop.permute.xlu0 %995
        %997 = vset.pattern.permute.xlu0 23
        %998 = vperm.xlu0 %997, %v347
        %v999 = vpop.permute.xlu0 %998
        %1000 = vset.pattern.permute.xlu0 23
        %1001 = vperm.xlu0 %1000, %v348
        %v1002 = vpop.permute.xlu0 %1001
        %1003 = vset.pattern.permute.xlu0 23
        %1004 = vperm.xlu0 %1003, %v349
        %v1005 = vpop.permute.xlu0 %1004
        %vm1006 = vcmp.eq.s32.totalorder %v996, 1
        %vm1007 = vcmp.eq.s32.totalorder %v999, 1
        %vm1008 = vcmp.eq.s32.totalorder %v1002, 1
        %vm1009 = vcmp.eq.s32.totalorder %v1005, 1
        %v1010 = vlaneseq
        %v1011 = vshrl.u32 %v1010, 7
        %v1012 = vsub.s32 7, %v1011
        %v1013 = vrot.slane %v324, %v1012
        %v1014 = vsel %vm1006, %v1013, -1e+30
        %v1015 = vsel %vm1007, %v1013, -1e+30
        %v1016 = vsel %vm1008, %v1013, -1e+30
        %v1017 = vsel %vm1009, %v1013, -1e+30
        %v1018 = vmax.f32 %v990, %v1014
        %v1019 = vmax.f32 %v991, %v1015
        %v1020 = vmax.f32 %v992, %v1016
        %v1021 = vmax.f32 %v993, %v1017
        %1022 = vset.pattern.permute.xlu0 24
        %1023 = vperm.xlu0 %1022, %v346
        %v1024 = vpop.permute.xlu0 %1023
        %1025 = vset.pattern.permute.xlu0 24
        %1026 = vperm.xlu0 %1025, %v347
        %v1027 = vpop.permute.xlu0 %1026
        %1028 = vset.pattern.permute.xlu0 24
        %1029 = vperm.xlu0 %1028, %v348
        %v1030 = vpop.permute.xlu0 %1029
        %1031 = vset.pattern.permute.xlu0 24
        %1032 = vperm.xlu0 %1031, %v349
        %v1033 = vpop.permute.xlu0 %1032
        %vm1034 = vcmp.eq.s32.totalorder %v1024, 1
        %vm1035 = vcmp.eq.s32.totalorder %v1027, 1
        %vm1036 = vcmp.eq.s32.totalorder %v1030, 1
        %vm1037 = vcmp.eq.s32.totalorder %v1033, 1
        %v1038 = vlaneseq
        %v1039 = vshrl.u32 %v1038, 7
        %v1040 = vsub.s32 0, %v1039
        %v1041 = vrot.slane %v325, %v1040
        %v1042 = vsel %vm1034, %v1041, -1e+30
        %v1043 = vsel %vm1035, %v1041, -1e+30
        %v1044 = vsel %vm1036, %v1041, -1e+30
        %v1045 = vsel %vm1037, %v1041, -1e+30
        %v1046 = vmax.f32 %v1018, %v1042
        %v1047 = vmax.f32 %v1019, %v1043
        %v1048 = vmax.f32 %v1020, %v1044
        %v1049 = vmax.f32 %v1021, %v1045
        %1050 = vset.pattern.permute.xlu0 25
        %1051 = vperm.xlu0 %1050, %v346
        %v1052 = vpop.permute.xlu0 %1051
        %1053 = vset.pattern.permute.xlu0 25
        %1054 = vperm.xlu0 %1053, %v347
        %v1055 = vpop.permute.xlu0 %1054
        %1056 = vset.pattern.permute.xlu0 25
        %1057 = vperm.xlu0 %1056, %v348
        %v1058 = vpop.permute.xlu0 %1057
        %1059 = vset.pattern.permute.xlu0 25
        %1060 = vperm.xlu0 %1059, %v349
        %v1061 = vpop.permute.xlu0 %1060
        %vm1062 = vcmp.eq.s32.totalorder %v1052, 1
        %vm1063 = vcmp.eq.s32.totalorder %v1055, 1
        %vm1064 = vcmp.eq.s32.totalorder %v1058, 1
        %vm1065 = vcmp.eq.s32.totalorder %v1061, 1
        %v1066 = vlaneseq
        %v1067 = vshrl.u32 %v1066, 7
        %v1068 = vsub.s32 1, %v1067
        %v1069 = vrot.slane %v325, %v1068
        %v1070 = vsel %vm1062, %v1069, -1e+30
        %v1071 = vsel %vm1063, %v1069, -1e+30
        %v1072 = vsel %vm1064, %v1069, -1e+30
        %v1073 = vsel %vm1065, %v1069, -1e+30
        %v1074 = vmax.f32 %v1046, %v1070
        %v1075 = vmax.f32 %v1047, %v1071
        %v1076 = vmax.f32 %v1048, %v1072
        %v1077 = vmax.f32 %v1049, %v1073
        %1078 = vset.pattern.permute.xlu0 26
        %1079 = vperm.xlu0 %1078, %v346
        %v1080 = vpop.permute.xlu0 %1079
        %1081 = vset.pattern.permute.xlu0 26
        %1082 = vperm.xlu0 %1081, %v347
        %v1083 = vpop.permute.xlu0 %1082
        %1084 = vset.pattern.permute.xlu0 26
        %1085 = vperm.xlu0 %1084, %v348
        %v1086 = vpop.permute.xlu0 %1085
        %1087 = vset.pattern.permute.xlu0 26
        %1088 = vperm.xlu0 %1087, %v349
        %v1089 = vpop.permute.xlu0 %1088
        %vm1090 = vcmp.eq.s32.totalorder %v1080, 1
        %vm1091 = vcmp.eq.s32.totalorder %v1083, 1
        %vm1092 = vcmp.eq.s32.totalorder %v1086, 1
        %vm1093 = vcmp.eq.s32.totalorder %v1089, 1
        %v1094 = vlaneseq
        %v1095 = vshrl.u32 %v1094, 7
        %v1096 = vsub.s32 2, %v1095
        %v1097 = vrot.slane %v325, %v1096
        %v1098 = vsel %vm1090, %v1097, -1e+30
        %v1099 = vsel %vm1091, %v1097, -1e+30
        %v1100 = vsel %vm1092, %v1097, -1e+30
        %v1101 = vsel %vm1093, %v1097, -1e+30
        %v1102 = vmax.f32 %v1074, %v1098
        %v1103 = vmax.f32 %v1075, %v1099
        %v1104 = vmax.f32 %v1076, %v1100
        %v1105 = vmax.f32 %v1077, %v1101
        %1106 = vset.pattern.permute.xlu0 27
        %1107 = vperm.xlu0 %1106, %v346
        %v1108 = vpop.permute.xlu0 %1107
        %1109 = vset.pattern.permute.xlu0 27
        %1110 = vperm.xlu0 %1109, %v347
        %v1111 = vpop.permute.xlu0 %1110
        %1112 = vset.pattern.permute.xlu0 27
        %1113 = vperm.xlu0 %1112, %v348
        %v1114 = vpop.permute.xlu0 %1113
        %1115 = vset.pattern.permute.xlu0 27
        %1116 = vperm.xlu0 %1115, %v349
        %v1117 = vpop.permute.xlu0 %1116
        %vm1118 = vcmp.eq.s32.totalorder %v1108, 1
        %vm1119 = vcmp.eq.s32.totalorder %v1111, 1
        %vm1120 = vcmp.eq.s32.totalorder %v1114, 1
        %vm1121 = vcmp.eq.s32.totalorder %v1117, 1
        %v1122 = vlaneseq
        %v1123 = vshrl.u32 %v1122, 7
        %v1124 = vsub.s32 3, %v1123
        %v1125 = vrot.slane %v325, %v1124
        %v1126 = vsel %vm1118, %v1125, -1e+30
        %v1127 = vsel %vm1119, %v1125, -1e+30
        %v1128 = vsel %vm1120, %v1125, -1e+30
        %v1129 = vsel %vm1121, %v1125, -1e+30
        %v1130 = vmax.f32 %v1102, %v1126
        %v1131 = vmax.f32 %v1103, %v1127
        %v1132 = vmax.f32 %v1104, %v1128
        %v1133 = vmax.f32 %v1105, %v1129
        %1134 = vset.pattern.permute.xlu0 28
        %1135 = vperm.xlu0 %1134, %v346
        %v1136 = vpop.permute.xlu0 %1135
        %1137 = vset.pattern.permute.xlu0 28
        %1138 = vperm.xlu0 %1137, %v347
        %v1139 = vpop.permute.xlu0 %1138
        %1140 = vset.pattern.permute.xlu0 28
        %1141 = vperm.xlu0 %1140, %v348
        %v1142 = vpop.permute.xlu0 %1141
        %1143 = vset.pattern.permute.xlu0 28
        %1144 = vperm.xlu0 %1143, %v349
        %v1145 = vpop.permute.xlu0 %1144
        %vm1146 = vcmp.eq.s32.totalorder %v1136, 1
        %vm1147 = vcmp.eq.s32.totalorder %v1139, 1
        %vm1148 = vcmp.eq.s32.totalorder %v1142, 1
        %vm1149 = vcmp.eq.s32.totalorder %v1145, 1
        %v1150 = vlaneseq
        %v1151 = vshrl.u32 %v1150, 7
        %v1152 = vsub.s32 4, %v1151
        %v1153 = vrot.slane %v325, %v1152
        %v1154 = vsel %vm1146, %v1153, -1e+30
        %v1155 = vsel %vm1147, %v1153, -1e+30
        %v1156 = vsel %vm1148, %v1153, -1e+30
        %v1157 = vsel %vm1149, %v1153, -1e+30
        %v1158 = vmax.f32 %v1130, %v1154
        %v1159 = vmax.f32 %v1131, %v1155
        %v1160 = vmax.f32 %v1132, %v1156
        %v1161 = vmax.f32 %v1133, %v1157
        %1162 = vset.pattern.permute.xlu0 29
        %1163 = vperm.xlu0 %1162, %v346
        %v1164 = vpop.permute.xlu0 %1163
        %1165 = vset.pattern.permute.xlu0 29
        %1166 = vperm.xlu0 %1165, %v347
        %v1167 = vpop.permute.xlu0 %1166
        %1168 = vset.pattern.permute.xlu0 29
        %1169 = vperm.xlu0 %1168, %v348
        %v1170 = vpop.permute.xlu0 %1169
        %1171 = vset.pattern.permute.xlu0 29
        %1172 = vperm.xlu0 %1171, %v349
        %v1173 = vpop.permute.xlu0 %1172
        %vm1174 = vcmp.eq.s32.totalorder %v1164, 1
        %vm1175 = vcmp.eq.s32.totalorder %v1167, 1
        %vm1176 = vcmp.eq.s32.totalorder %v1170, 1
        %vm1177 = vcmp.eq.s32.totalorder %v1173, 1
        %v1178 = vlaneseq
        %v1179 = vshrl.u32 %v1178, 7
        %v1180 = vsub.s32 5, %v1179
        %v1181 = vrot.slane %v325, %v1180
        %v1182 = vsel %vm1174, %v1181, -1e+30
        %v1183 = vsel %vm1175, %v1181, -1e+30
        %v1184 = vsel %vm1176, %v1181, -1e+30
        %v1185 = vsel %vm1177, %v1181, -1e+30
        %v1186 = vmax.f32 %v1158, %v1182
        %v1187 = vmax.f32 %v1159, %v1183
        %v1188 = vmax.f32 %v1160, %v1184
        %v1189 = vmax.f32 %v1161, %v1185
        %1190 = vset.pattern.permute.xlu0 30
        %1191 = vperm.xlu0 %1190, %v346
        %v1192 = vpop.permute.xlu0 %1191
        %1193 = vset.pattern.permute.xlu0 30
        %1194 = vperm.xlu0 %1193, %v347
        %v1195 = vpop.permute.xlu0 %1194
        %1196 = vset.pattern.permute.xlu0 30
        %1197 = vperm.xlu0 %1196, %v348
        %v1198 = vpop.permute.xlu0 %1197
        %1199 = vset.pattern.permute.xlu0 30
        %1200 = vperm.xlu0 %1199, %v349
        %v1201 = vpop.permute.xlu0 %1200
        %vm1202 = vcmp.eq.s32.totalorder %v1192, 1
        %vm1203 = vcmp.eq.s32.totalorder %v1195, 1
        %vm1204 = vcmp.eq.s32.totalorder %v1198, 1
        %vm1205 = vcmp.eq.s32.totalorder %v1201, 1
        %v1206 = vlaneseq
        %v1207 = vshrl.u32 %v1206, 7
        %v1208 = vsub.s32 6, %v1207
        %v1209 = vrot.slane %v325, %v1208
        %v1210 = vsel %vm1202, %v1209, -1e+30
        %v1211 = vsel %vm1203, %v1209, -1e+30
        %v1212 = vsel %vm1204, %v1209, -1e+30
        %v1213 = vsel %vm1205, %v1209, -1e+30
        %v1214 = vmax.f32 %v1186, %v1210
        %v1215 = vmax.f32 %v1187, %v1211
        %v1216 = vmax.f32 %v1188, %v1212
        %v1217 = vmax.f32 %v1189, %v1213
        %1218 = vset.pattern.permute.xlu0 31
        %1219 = vperm.xlu0 %1218, %v346
        %v1220 = vpop.permute.xlu0 %1219
        %1221 = vset.pattern.permute.xlu0 31
        %1222 = vperm.xlu0 %1221, %v347
        %v1223 = vpop.permute.xlu0 %1222
        %1224 = vset.pattern.permute.xlu0 31
        %1225 = vperm.xlu0 %1224, %v348
        %v1226 = vpop.permute.xlu0 %1225
        %1227 = vset.pattern.permute.xlu0 31
        %1228 = vperm.xlu0 %1227, %v349
        %v1229 = vpop.permute.xlu0 %1228
        %vm1230 = vcmp.eq.s32.totalorder %v1220, 1
        %vm1231 = vcmp.eq.s32.totalorder %v1223, 1
        %vm1232 = vcmp.eq.s32.totalorder %v1226, 1
        %vm1233 = vcmp.eq.s32.totalorder %v1229, 1
        %v1234 = vlaneseq
        %v1235 = vshrl.u32 %v1234, 7
        %v1236 = vsub.s32 7, %v1235
        %v1237 = vrot.slane %v325, %v1236
        %v1238 = vsel %vm1230, %v1237, -1e+30
        %v1239 = vsel %vm1231, %v1237, -1e+30
        %v1240 = vsel %vm1232, %v1237, -1e+30
        %v1241 = vsel %vm1233, %v1237, -1e+30
        %v1242 = vmax.f32 %v1214, %v1238
        %v1243 = vmax.f32 %v1215, %v1239
        %v1244 = vmax.f32 %v1216, %v1240
        %v1245 = vmax.f32 %v1217, %v1241
        %1246 = vset.pattern.permute.xlu0 32
        %1247 = vperm.xlu0 %1246, %v346
        %v1248 = vpop.permute.xlu0 %1247
        %1249 = vset.pattern.permute.xlu0 32
        %1250 = vperm.xlu0 %1249, %v347
        %v1251 = vpop.permute.xlu0 %1250
        %1252 = vset.pattern.permute.xlu0 32
        %1253 = vperm.xlu0 %1252, %v348
        %v1254 = vpop.permute.xlu0 %1253
        %1255 = vset.pattern.permute.xlu0 32
        %1256 = vperm.xlu0 %1255, %v349
        %v1257 = vpop.permute.xlu0 %1256
        %vm1258 = vcmp.eq.s32.totalorder %v1248, 1
        %vm1259 = vcmp.eq.s32.totalorder %v1251, 1
        %vm1260 = vcmp.eq.s32.totalorder %v1254, 1
        %vm1261 = vcmp.eq.s32.totalorder %v1257, 1
        %v1262 = vlaneseq
        %v1263 = vshrl.u32 %v1262, 7
        %v1264 = vsub.s32 0, %v1263
        %v1265 = vrot.slane %v326, %v1264
        %v1266 = vsel %vm1258, %v1265, -1e+30
        %v1267 = vsel %vm1259, %v1265, -1e+30
        %v1268 = vsel %vm1260, %v1265, -1e+30
        %v1269 = vsel %vm1261, %v1265, -1e+30
        %v1270 = vmax.f32 %v1242, %v1266
        %v1271 = vmax.f32 %v1243, %v1267
        %v1272 = vmax.f32 %v1244, %v1268
        %v1273 = vmax.f32 %v1245, %v1269
        %1274 = vset.pattern.permute.xlu0 33
        %1275 = vperm.xlu0 %1274, %v346
        %v1276 = vpop.permute.xlu0 %1275
        %1277 = vset.pattern.permute.xlu0 33
        %1278 = vperm.xlu0 %1277, %v347
        %v1279 = vpop.permute.xlu0 %1278
        %1280 = vset.pattern.permute.xlu0 33
        %1281 = vperm.xlu0 %1280, %v348
        %v1282 = vpop.permute.xlu0 %1281
        %1283 = vset.pattern.permute.xlu0 33
        %1284 = vperm.xlu0 %1283, %v349
        %v1285 = vpop.permute.xlu0 %1284
        %vm1286 = vcmp.eq.s32.totalorder %v1276, 1
        %vm1287 = vcmp.eq.s32.totalorder %v1279, 1
        %vm1288 = vcmp.eq.s32.totalorder %v1282, 1
        %vm1289 = vcmp.eq.s32.totalorder %v1285, 1
        %v1290 = vlaneseq
        %v1291 = vshrl.u32 %v1290, 7
        %v1292 = vsub.s32 1, %v1291
        %v1293 = vrot.slane %v326, %v1292
        %v1294 = vsel %vm1286, %v1293, -1e+30
        %v1295 = vsel %vm1287, %v1293, -1e+30
        %v1296 = vsel %vm1288, %v1293, -1e+30
        %v1297 = vsel %vm1289, %v1293, -1e+30
        %v1298 = vmax.f32 %v1270, %v1294
        %v1299 = vmax.f32 %v1271, %v1295
        %v1300 = vmax.f32 %v1272, %v1296
        %v1301 = vmax.f32 %v1273, %v1297
        %1302 = vset.pattern.permute.xlu0 34
        %1303 = vperm.xlu0 %1302, %v346
        %v1304 = vpop.permute.xlu0 %1303
        %1305 = vset.pattern.permute.xlu0 34
        %1306 = vperm.xlu0 %1305, %v347
        %v1307 = vpop.permute.xlu0 %1306
        %1308 = vset.pattern.permute.xlu0 34
        %1309 = vperm.xlu0 %1308, %v348
        %v1310 = vpop.permute.xlu0 %1309
        %1311 = vset.pattern.permute.xlu0 34
        %1312 = vperm.xlu0 %1311, %v349
        %v1313 = vpop.permute.xlu0 %1312
        %vm1314 = vcmp.eq.s32.totalorder %v1304, 1
        %vm1315 = vcmp.eq.s32.totalorder %v1307, 1
        %vm1316 = vcmp.eq.s32.totalorder %v1310, 1
        %vm1317 = vcmp.eq.s32.totalorder %v1313, 1
        %v1318 = vlaneseq
        %v1319 = vshrl.u32 %v1318, 7
        %v1320 = vsub.s32 2, %v1319
        %v1321 = vrot.slane %v326, %v1320
        %v1322 = vsel %vm1314, %v1321, -1e+30
        %v1323 = vsel %vm1315, %v1321, -1e+30
        %v1324 = vsel %vm1316, %v1321, -1e+30
        %v1325 = vsel %vm1317, %v1321, -1e+30
        %v1326 = vmax.f32 %v1298, %v1322
        %v1327 = vmax.f32 %v1299, %v1323
        %v1328 = vmax.f32 %v1300, %v1324
        %v1329 = vmax.f32 %v1301, %v1325
        %1330 = vset.pattern.permute.xlu0 35
        %1331 = vperm.xlu0 %1330, %v346
        %v1332 = vpop.permute.xlu0 %1331
        %1333 = vset.pattern.permute.xlu0 35
        %1334 = vperm.xlu0 %1333, %v347
        %v1335 = vpop.permute.xlu0 %1334
        %1336 = vset.pattern.permute.xlu0 35
        %1337 = vperm.xlu0 %1336, %v348
        %v1338 = vpop.permute.xlu0 %1337
        %1339 = vset.pattern.permute.xlu0 35
        %1340 = vperm.xlu0 %1339, %v349
        %v1341 = vpop.permute.xlu0 %1340
        %vm1342 = vcmp.eq.s32.totalorder %v1332, 1
        %vm1343 = vcmp.eq.s32.totalorder %v1335, 1
        %vm1344 = vcmp.eq.s32.totalorder %v1338, 1
        %vm1345 = vcmp.eq.s32.totalorder %v1341, 1
        %v1346 = vlaneseq
        %v1347 = vshrl.u32 %v1346, 7
        %v1348 = vsub.s32 3, %v1347
        %v1349 = vrot.slane %v326, %v1348
        %v1350 = vsel %vm1342, %v1349, -1e+30
        %v1351 = vsel %vm1343, %v1349, -1e+30
        %v1352 = vsel %vm1344, %v1349, -1e+30
        %v1353 = vsel %vm1345, %v1349, -1e+30
        %v1354 = vmax.f32 %v1326, %v1350
        %v1355 = vmax.f32 %v1327, %v1351
        %v1356 = vmax.f32 %v1328, %v1352
        %v1357 = vmax.f32 %v1329, %v1353
        %1358 = vset.pattern.permute.xlu0 36
        %1359 = vperm.xlu0 %1358, %v346
        %v1360 = vpop.permute.xlu0 %1359
        %1361 = vset.pattern.permute.xlu0 36
        %1362 = vperm.xlu0 %1361, %v347
        %v1363 = vpop.permute.xlu0 %1362
        %1364 = vset.pattern.permute.xlu0 36
        %1365 = vperm.xlu0 %1364, %v348
        %v1366 = vpop.permute.xlu0 %1365
        %1367 = vset.pattern.permute.xlu0 36
        %1368 = vperm.xlu0 %1367, %v349
        %v1369 = vpop.permute.xlu0 %1368
        %vm1370 = vcmp.eq.s32.totalorder %v1360, 1
        %vm1371 = vcmp.eq.s32.totalorder %v1363, 1
        %vm1372 = vcmp.eq.s32.totalorder %v1366, 1
        %vm1373 = vcmp.eq.s32.totalorder %v1369, 1
        %v1374 = vlaneseq
        %v1375 = vshrl.u32 %v1374, 7
        %v1376 = vsub.s32 4, %v1375
        %v1377 = vrot.slane %v326, %v1376
        %v1378 = vsel %vm1370, %v1377, -1e+30
        %v1379 = vsel %vm1371, %v1377, -1e+30
        %v1380 = vsel %vm1372, %v1377, -1e+30
        %v1381 = vsel %vm1373, %v1377, -1e+30
        %v1382 = vmax.f32 %v1354, %v1378
        %v1383 = vmax.f32 %v1355, %v1379
        %v1384 = vmax.f32 %v1356, %v1380
        %v1385 = vmax.f32 %v1357, %v1381
        %1386 = vset.pattern.permute.xlu0 37
        %1387 = vperm.xlu0 %1386, %v346
        %v1388 = vpop.permute.xlu0 %1387
        %1389 = vset.pattern.permute.xlu0 37
        %1390 = vperm.xlu0 %1389, %v347
        %v1391 = vpop.permute.xlu0 %1390
        %1392 = vset.pattern.permute.xlu0 37
        %1393 = vperm.xlu0 %1392, %v348
        %v1394 = vpop.permute.xlu0 %1393
        %1395 = vset.pattern.permute.xlu0 37
        %1396 = vperm.xlu0 %1395, %v349
        %v1397 = vpop.permute.xlu0 %1396
        %vm1398 = vcmp.eq.s32.totalorder %v1388, 1
        %vm1399 = vcmp.eq.s32.totalorder %v1391, 1
        %vm1400 = vcmp.eq.s32.totalorder %v1394, 1
        %vm1401 = vcmp.eq.s32.totalorder %v1397, 1
        %v1402 = vlaneseq
        %v1403 = vshrl.u32 %v1402, 7
        %v1404 = vsub.s32 5, %v1403
        %v1405 = vrot.slane %v326, %v1404
        %v1406 = vsel %vm1398, %v1405, -1e+30
        %v1407 = vsel %vm1399, %v1405, -1e+30
        %v1408 = vsel %vm1400, %v1405, -1e+30
        %v1409 = vsel %vm1401, %v1405, -1e+30
        %v1410 = vmax.f32 %v1382, %v1406
        %v1411 = vmax.f32 %v1383, %v1407
        %v1412 = vmax.f32 %v1384, %v1408
        %v1413 = vmax.f32 %v1385, %v1409
        %1414 = vset.pattern.permute.xlu0 38
        %1415 = vperm.xlu0 %1414, %v346
        %v1416 = vpop.permute.xlu0 %1415
        %1417 = vset.pattern.permute.xlu0 38
        %1418 = vperm.xlu0 %1417, %v347
        %v1419 = vpop.permute.xlu0 %1418
        %1420 = vset.pattern.permute.xlu0 38
        %1421 = vperm.xlu0 %1420, %v348
        %v1422 = vpop.permute.xlu0 %1421
        %1423 = vset.pattern.permute.xlu0 38
        %1424 = vperm.xlu0 %1423, %v349
        %v1425 = vpop.permute.xlu0 %1424
        %vm1426 = vcmp.eq.s32.totalorder %v1416, 1
        %vm1427 = vcmp.eq.s32.totalorder %v1419, 1
        %vm1428 = vcmp.eq.s32.totalorder %v1422, 1
        %vm1429 = vcmp.eq.s32.totalorder %v1425, 1
        %v1430 = vlaneseq
        %v1431 = vshrl.u32 %v1430, 7
        %v1432 = vsub.s32 6, %v1431
        %v1433 = vrot.slane %v326, %v1432
        %v1434 = vsel %vm1426, %v1433, -1e+30
        %v1435 = vsel %vm1427, %v1433, -1e+30
        %v1436 = vsel %vm1428, %v1433, -1e+30
        %v1437 = vsel %vm1429, %v1433, -1e+30
        %v1438 = vmax.f32 %v1410, %v1434
        %v1439 = vmax.f32 %v1411, %v1435
        %v1440 = vmax.f32 %v1412, %v1436
        %v1441 = vmax.f32 %v1413, %v1437
        %1442 = vset.pattern.permute.xlu0 39
        %1443 = vperm.xlu0 %1442, %v346
        %v1444 = vpop.permute.xlu0 %1443
        %1445 = vset.pattern.permute.xlu0 39
        %1446 = vperm.xlu0 %1445, %v347
        %v1447 = vpop.permute.xlu0 %1446
        %1448 = vset.pattern.permute.xlu0 39
        %1449 = vperm.xlu0 %1448, %v348
        %v1450 = vpop.permute.xlu0 %1449
        %1451 = vset.pattern.permute.xlu0 39
        %1452 = vperm.xlu0 %1451, %v349
        %v1453 = vpop.permute.xlu0 %1452
        %vm1454 = vcmp.eq.s32.totalorder %v1444, 1
        %vm1455 = vcmp.eq.s32.totalorder %v1447, 1
        %vm1456 = vcmp.eq.s32.totalorder %v1450, 1
        %vm1457 = vcmp.eq.s32.totalorder %v1453, 1
        %v1458 = vlaneseq
        %v1459 = vshrl.u32 %v1458, 7
        %v1460 = vsub.s32 7, %v1459
        %v1461 = vrot.slane %v326, %v1460
        %v1462 = vsel %vm1454, %v1461, -1e+30
        %v1463 = vsel %vm1455, %v1461, -1e+30
        %v1464 = vsel %vm1456, %v1461, -1e+30
        %v1465 = vsel %vm1457, %v1461, -1e+30
        %v1466 = vmax.f32 %v1438, %v1462
        %v1467 = vmax.f32 %v1439, %v1463
        %v1468 = vmax.f32 %v1440, %v1464
        %v1469 = vmax.f32 %v1441, %v1465
        %1470 = vset.pattern.permute.xlu0 40
        %1471 = vperm.xlu0 %1470, %v346
        %v1472 = vpop.permute.xlu0 %1471
        %1473 = vset.pattern.permute.xlu0 40
        %1474 = vperm.xlu0 %1473, %v347
        %v1475 = vpop.permute.xlu0 %1474
        %1476 = vset.pattern.permute.xlu0 40
        %1477 = vperm.xlu0 %1476, %v348
        %v1478 = vpop.permute.xlu0 %1477
        %1479 = vset.pattern.permute.xlu0 40
        %1480 = vperm.xlu0 %1479, %v349
        %v1481 = vpop.permute.xlu0 %1480
        %vm1482 = vcmp.eq.s32.totalorder %v1472, 1
        %vm1483 = vcmp.eq.s32.totalorder %v1475, 1
        %vm1484 = vcmp.eq.s32.totalorder %v1478, 1
        %vm1485 = vcmp.eq.s32.totalorder %v1481, 1
        %v1486 = vlaneseq
        %v1487 = vshrl.u32 %v1486, 7
        %v1488 = vsub.s32 0, %v1487
        %v1489 = vrot.slane %v327, %v1488
        %v1490 = vsel %vm1482, %v1489, -1e+30
        %v1491 = vsel %vm1483, %v1489, -1e+30
        %v1492 = vsel %vm1484, %v1489, -1e+30
        %v1493 = vsel %vm1485, %v1489, -1e+30
        %v1494 = vmax.f32 %v1466, %v1490
        %v1495 = vmax.f32 %v1467, %v1491
        %v1496 = vmax.f32 %v1468, %v1492
        %v1497 = vmax.f32 %v1469, %v1493
        %1498 = vset.pattern.permute.xlu0 41
        %1499 = vperm.xlu0 %1498, %v346
        %v1500 = vpop.permute.xlu0 %1499
        %1501 = vset.pattern.permute.xlu0 41
        %1502 = vperm.xlu0 %1501, %v347
        %v1503 = vpop.permute.xlu0 %1502
        %1504 = vset.pattern.permute.xlu0 41
        %1505 = vperm.xlu0 %1504, %v348
        %v1506 = vpop.permute.xlu0 %1505
        %1507 = vset.pattern.permute.xlu0 41
        %1508 = vperm.xlu0 %1507, %v349
        %v1509 = vpop.permute.xlu0 %1508
        %vm1510 = vcmp.eq.s32.totalorder %v1500, 1
        %vm1511 = vcmp.eq.s32.totalorder %v1503, 1
        %vm1512 = vcmp.eq.s32.totalorder %v1506, 1
        %vm1513 = vcmp.eq.s32.totalorder %v1509, 1
        %v1514 = vlaneseq
        %v1515 = vshrl.u32 %v1514, 7
        %v1516 = vsub.s32 1, %v1515
        %v1517 = vrot.slane %v327, %v1516
        %v1518 = vsel %vm1510, %v1517, -1e+30
        %v1519 = vsel %vm1511, %v1517, -1e+30
        %v1520 = vsel %vm1512, %v1517, -1e+30
        %v1521 = vsel %vm1513, %v1517, -1e+30
        %v1522 = vmax.f32 %v1494, %v1518
        %v1523 = vmax.f32 %v1495, %v1519
        %v1524 = vmax.f32 %v1496, %v1520
        %v1525 = vmax.f32 %v1497, %v1521
        %1526 = vset.pattern.permute.xlu0 42
        %1527 = vperm.xlu0 %1526, %v346
        %v1528 = vpop.permute.xlu0 %1527
        %1529 = vset.pattern.permute.xlu0 42
        %1530 = vperm.xlu0 %1529, %v347
        %v1531 = vpop.permute.xlu0 %1530
        %1532 = vset.pattern.permute.xlu0 42
        %1533 = vperm.xlu0 %1532, %v348
        %v1534 = vpop.permute.xlu0 %1533
        %1535 = vset.pattern.permute.xlu0 42
        %1536 = vperm.xlu0 %1535, %v349
        %v1537 = vpop.permute.xlu0 %1536
        %vm1538 = vcmp.eq.s32.totalorder %v1528, 1
        %vm1539 = vcmp.eq.s32.totalorder %v1531, 1
        %vm1540 = vcmp.eq.s32.totalorder %v1534, 1
        %vm1541 = vcmp.eq.s32.totalorder %v1537, 1
        %v1542 = vlaneseq
        %v1543 = vshrl.u32 %v1542, 7
        %v1544 = vsub.s32 2, %v1543
        %v1545 = vrot.slane %v327, %v1544
        %v1546 = vsel %vm1538, %v1545, -1e+30
        %v1547 = vsel %vm1539, %v1545, -1e+30
        %v1548 = vsel %vm1540, %v1545, -1e+30
        %v1549 = vsel %vm1541, %v1545, -1e+30
        %v1550 = vmax.f32 %v1522, %v1546
        %v1551 = vmax.f32 %v1523, %v1547
        %v1552 = vmax.f32 %v1524, %v1548
        %v1553 = vmax.f32 %v1525, %v1549
        %1554 = vset.pattern.permute.xlu0 43
        %1555 = vperm.xlu0 %1554, %v346
        %v1556 = vpop.permute.xlu0 %1555
        %1557 = vset.pattern.permute.xlu0 43
        %1558 = vperm.xlu0 %1557, %v347
        %v1559 = vpop.permute.xlu0 %1558
        %1560 = vset.pattern.permute.xlu0 43
        %1561 = vperm.xlu0 %1560, %v348
        %v1562 = vpop.permute.xlu0 %1561
        %1563 = vset.pattern.permute.xlu0 43
        %1564 = vperm.xlu0 %1563, %v349
        %v1565 = vpop.permute.xlu0 %1564
        %vm1566 = vcmp.eq.s32.totalorder %v1556, 1
        %vm1567 = vcmp.eq.s32.totalorder %v1559, 1
        %vm1568 = vcmp.eq.s32.totalorder %v1562, 1
        %vm1569 = vcmp.eq.s32.totalorder %v1565, 1
        %v1570 = vlaneseq
        %v1571 = vshrl.u32 %v1570, 7
        %v1572 = vsub.s32 3, %v1571
        %v1573 = vrot.slane %v327, %v1572
        %v1574 = vsel %vm1566, %v1573, -1e+30
        %v1575 = vsel %vm1567, %v1573, -1e+30
        %v1576 = vsel %vm1568, %v1573, -1e+30
        %v1577 = vsel %vm1569, %v1573, -1e+30
        %v1578 = vmax.f32 %v1550, %v1574
        %v1579 = vmax.f32 %v1551, %v1575
        %v1580 = vmax.f32 %v1552, %v1576
        %v1581 = vmax.f32 %v1553, %v1577
        %1582 = vset.pattern.permute.xlu0 44
        %1583 = vperm.xlu0 %1582, %v346
        %v1584 = vpop.permute.xlu0 %1583
        %1585 = vset.pattern.permute.xlu0 44
        %1586 = vperm.xlu0 %1585, %v347
        %v1587 = vpop.permute.xlu0 %1586
        %1588 = vset.pattern.permute.xlu0 44
        %1589 = vperm.xlu0 %1588, %v348
        %v1590 = vpop.permute.xlu0 %1589
        %1591 = vset.pattern.permute.xlu0 44
        %1592 = vperm.xlu0 %1591, %v349
        %v1593 = vpop.permute.xlu0 %1592
        %vm1594 = vcmp.eq.s32.totalorder %v1584, 1
        %vm1595 = vcmp.eq.s32.totalorder %v1587, 1
        %vm1596 = vcmp.eq.s32.totalorder %v1590, 1
        %vm1597 = vcmp.eq.s32.totalorder %v1593, 1
        %v1598 = vlaneseq
        %v1599 = vshrl.u32 %v1598, 7
        %v1600 = vsub.s32 4, %v1599
        %v1601 = vrot.slane %v327, %v1600
        %v1602 = vsel %vm1594, %v1601, -1e+30
        %v1603 = vsel %vm1595, %v1601, -1e+30
        %v1604 = vsel %vm1596, %v1601, -1e+30
        %v1605 = vsel %vm1597, %v1601, -1e+30
        %v1606 = vmax.f32 %v1578, %v1602
        %v1607 = vmax.f32 %v1579, %v1603
        %v1608 = vmax.f32 %v1580, %v1604
        %v1609 = vmax.f32 %v1581, %v1605
        %1610 = vset.pattern.permute.xlu0 45
        %1611 = vperm.xlu0 %1610, %v346
        %v1612 = vpop.permute.xlu0 %1611
        %1613 = vset.pattern.permute.xlu0 45
        %1614 = vperm.xlu0 %1613, %v347
        %v1615 = vpop.permute.xlu0 %1614
        %1616 = vset.pattern.permute.xlu0 45
        %1617 = vperm.xlu0 %1616, %v348
        %v1618 = vpop.permute.xlu0 %1617
        %1619 = vset.pattern.permute.xlu0 45
        %1620 = vperm.xlu0 %1619, %v349
        %v1621 = vpop.permute.xlu0 %1620
        %vm1622 = vcmp.eq.s32.totalorder %v1612, 1
        %vm1623 = vcmp.eq.s32.totalorder %v1615, 1
        %vm1624 = vcmp.eq.s32.totalorder %v1618, 1
        %vm1625 = vcmp.eq.s32.totalorder %v1621, 1
        %v1626 = vlaneseq
        %v1627 = vshrl.u32 %v1626, 7
        %v1628 = vsub.s32 5, %v1627
        %v1629 = vrot.slane %v327, %v1628
        %v1630 = vsel %vm1622, %v1629, -1e+30
        %v1631 = vsel %vm1623, %v1629, -1e+30
        %v1632 = vsel %vm1624, %v1629, -1e+30
        %v1633 = vsel %vm1625, %v1629, -1e+30
        %v1634 = vmax.f32 %v1606, %v1630
        %v1635 = vmax.f32 %v1607, %v1631
        %v1636 = vmax.f32 %v1608, %v1632
        %v1637 = vmax.f32 %v1609, %v1633
        %1638 = vset.pattern.permute.xlu0 46
        %1639 = vperm.xlu0 %1638, %v346
        %v1640 = vpop.permute.xlu0 %1639
        %1641 = vset.pattern.permute.xlu0 46
        %1642 = vperm.xlu0 %1641, %v347
        %v1643 = vpop.permute.xlu0 %1642
        %1644 = vset.pattern.permute.xlu0 46
        %1645 = vperm.xlu0 %1644, %v348
        %v1646 = vpop.permute.xlu0 %1645
        %1647 = vset.pattern.permute.xlu0 46
        %1648 = vperm.xlu0 %1647, %v349
        %v1649 = vpop.permute.xlu0 %1648
        %vm1650 = vcmp.eq.s32.totalorder %v1640, 1
        %vm1651 = vcmp.eq.s32.totalorder %v1643, 1
        %vm1652 = vcmp.eq.s32.totalorder %v1646, 1
        %vm1653 = vcmp.eq.s32.totalorder %v1649, 1
        %v1654 = vlaneseq
        %v1655 = vshrl.u32 %v1654, 7
        %v1656 = vsub.s32 6, %v1655
        %v1657 = vrot.slane %v327, %v1656
        %v1658 = vsel %vm1650, %v1657, -1e+30
        %v1659 = vsel %vm1651, %v1657, -1e+30
        %v1660 = vsel %vm1652, %v1657, -1e+30
        %v1661 = vsel %vm1653, %v1657, -1e+30
        %v1662 = vmax.f32 %v1634, %v1658
        %v1663 = vmax.f32 %v1635, %v1659
        %v1664 = vmax.f32 %v1636, %v1660
        %v1665 = vmax.f32 %v1637, %v1661
        %1666 = vset.pattern.permute.xlu0 47
        %1667 = vperm.xlu0 %1666, %v346
        %v1668 = vpop.permute.xlu0 %1667
        %1669 = vset.pattern.permute.xlu0 47
        %1670 = vperm.xlu0 %1669, %v347
        %v1671 = vpop.permute.xlu0 %1670
        %1672 = vset.pattern.permute.xlu0 47
        %1673 = vperm.xlu0 %1672, %v348
        %v1674 = vpop.permute.xlu0 %1673
        %1675 = vset.pattern.permute.xlu0 47
        %1676 = vperm.xlu0 %1675, %v349
        %v1677 = vpop.permute.xlu0 %1676
        %vm1678 = vcmp.eq.s32.totalorder %v1668, 1
        %vm1679 = vcmp.eq.s32.totalorder %v1671, 1
        %vm1680 = vcmp.eq.s32.totalorder %v1674, 1
        %vm1681 = vcmp.eq.s32.totalorder %v1677, 1
        %v1682 = vlaneseq
        %v1683 = vshrl.u32 %v1682, 7
        %v1684 = vsub.s32 7, %v1683
        %v1685 = vrot.slane %v327, %v1684
        %v1686 = vsel %vm1678, %v1685, -1e+30
        %v1687 = vsel %vm1679, %v1685, -1e+30
        %v1688 = vsel %vm1680, %v1685, -1e+30
        %v1689 = vsel %vm1681, %v1685, -1e+30
        %v1690 = vmax.f32 %v1662, %v1686
        %v1691 = vmax.f32 %v1663, %v1687
        %v1692 = vmax.f32 %v1664, %v1688
        %v1693 = vmax.f32 %v1665, %v1689
        %1694 = vset.pattern.permute.xlu0 48
        %1695 = vperm.xlu0 %1694, %v346
        %v1696 = vpop.permute.xlu0 %1695
        %1697 = vset.pattern.permute.xlu0 48
        %1698 = vperm.xlu0 %1697, %v347
        %v1699 = vpop.permute.xlu0 %1698
        %1700 = vset.pattern.permute.xlu0 48
        %1701 = vperm.xlu0 %1700, %v348
        %v1702 = vpop.permute.xlu0 %1701
        %1703 = vset.pattern.permute.xlu0 48
        %1704 = vperm.xlu0 %1703, %v349
        %v1705 = vpop.permute.xlu0 %1704
        %vm1706 = vcmp.eq.s32.totalorder %v1696, 1
        %vm1707 = vcmp.eq.s32.totalorder %v1699, 1
        %vm1708 = vcmp.eq.s32.totalorder %v1702, 1
        %vm1709 = vcmp.eq.s32.totalorder %v1705, 1
        %v1710 = vlaneseq
        %v1711 = vshrl.u32 %v1710, 7
        %v1712 = vsub.s32 0, %v1711
        %v1713 = vrot.slane %v328, %v1712
        %v1714 = vsel %vm1706, %v1713, -1e+30
        %v1715 = vsel %vm1707, %v1713, -1e+30
        %v1716 = vsel %vm1708, %v1713, -1e+30
        %v1717 = vsel %vm1709, %v1713, -1e+30
        %v1718 = vmax.f32 %v1690, %v1714
        %v1719 = vmax.f32 %v1691, %v1715
        %v1720 = vmax.f32 %v1692, %v1716
        %v1721 = vmax.f32 %v1693, %v1717
        %1722 = vset.pattern.permute.xlu0 49
        %1723 = vperm.xlu0 %1722, %v346
        %v1724 = vpop.permute.xlu0 %1723
        %1725 = vset.pattern.permute.xlu0 49
        %1726 = vperm.xlu0 %1725, %v347
        %v1727 = vpop.permute.xlu0 %1726
        %1728 = vset.pattern.permute.xlu0 49
        %1729 = vperm.xlu0 %1728, %v348
        %v1730 = vpop.permute.xlu0 %1729
        %1731 = vset.pattern.permute.xlu0 49
        %1732 = vperm.xlu0 %1731, %v349
        %v1733 = vpop.permute.xlu0 %1732
        %vm1734 = vcmp.eq.s32.totalorder %v1724, 1
        %vm1735 = vcmp.eq.s32.totalorder %v1727, 1
        %vm1736 = vcmp.eq.s32.totalorder %v1730, 1
        %vm1737 = vcmp.eq.s32.totalorder %v1733, 1
        %v1738 = vlaneseq
        %v1739 = vshrl.u32 %v1738, 7
        %v1740 = vsub.s32 1, %v1739
        %v1741 = vrot.slane %v328, %v1740
        %v1742 = vsel %vm1734, %v1741, -1e+30
        %v1743 = vsel %vm1735, %v1741, -1e+30
        %v1744 = vsel %vm1736, %v1741, -1e+30
        %v1745 = vsel %vm1737, %v1741, -1e+30
        %v1746 = vmax.f32 %v1718, %v1742
        %v1747 = vmax.f32 %v1719, %v1743
        %v1748 = vmax.f32 %v1720, %v1744
        %v1749 = vmax.f32 %v1721, %v1745
        %1750 = vset.pattern.permute.xlu0 50
        %1751 = vperm.xlu0 %1750, %v346
        %v1752 = vpop.permute.xlu0 %1751
        %1753 = vset.pattern.permute.xlu0 50
        %1754 = vperm.xlu0 %1753, %v347
        %v1755 = vpop.permute.xlu0 %1754
        %1756 = vset.pattern.permute.xlu0 50
        %1757 = vperm.xlu0 %1756, %v348
        %v1758 = vpop.permute.xlu0 %1757
        %1759 = vset.pattern.permute.xlu0 50
        %1760 = vperm.xlu0 %1759, %v349
        %v1761 = vpop.permute.xlu0 %1760
        %vm1762 = vcmp.eq.s32.totalorder %v1752, 1
        %vm1763 = vcmp.eq.s32.totalorder %v1755, 1
        %vm1764 = vcmp.eq.s32.totalorder %v1758, 1
        %vm1765 = vcmp.eq.s32.totalorder %v1761, 1
        %v1766 = vlaneseq
        %v1767 = vshrl.u32 %v1766, 7
        %v1768 = vsub.s32 2, %v1767
        %v1769 = vrot.slane %v328, %v1768
        %v1770 = vsel %vm1762, %v1769, -1e+30
        %v1771 = vsel %vm1763, %v1769, -1e+30
        %v1772 = vsel %vm1764, %v1769, -1e+30
        %v1773 = vsel %vm1765, %v1769, -1e+30
        %v1774 = vmax.f32 %v1746, %v1770
        %v1775 = vmax.f32 %v1747, %v1771
        %v1776 = vmax.f32 %v1748, %v1772
        %v1777 = vmax.f32 %v1749, %v1773
        %1778 = vset.pattern.permute.xlu0 51
        %1779 = vperm.xlu0 %1778, %v346
        %v1780 = vpop.permute.xlu0 %1779
        %1781 = vset.pattern.permute.xlu0 51
        %1782 = vperm.xlu0 %1781, %v347
        %v1783 = vpop.permute.xlu0 %1782
        %1784 = vset.pattern.permute.xlu0 51
        %1785 = vperm.xlu0 %1784, %v348
        %v1786 = vpop.permute.xlu0 %1785
        %1787 = vset.pattern.permute.xlu0 51
        %1788 = vperm.xlu0 %1787, %v349
        %v1789 = vpop.permute.xlu0 %1788
        %vm1790 = vcmp.eq.s32.totalorder %v1780, 1
        %vm1791 = vcmp.eq.s32.totalorder %v1783, 1
        %vm1792 = vcmp.eq.s32.totalorder %v1786, 1
        %vm1793 = vcmp.eq.s32.totalorder %v1789, 1
        %v1794 = vlaneseq
        %v1795 = vshrl.u32 %v1794, 7
        %v1796 = vsub.s32 3, %v1795
        %v1797 = vrot.slane %v328, %v1796
        %v1798 = vsel %vm1790, %v1797, -1e+30
        %v1799 = vsel %vm1791, %v1797, -1e+30
        %v1800 = vsel %vm1792, %v1797, -1e+30
        %v1801 = vsel %vm1793, %v1797, -1e+30
        %v1802 = vmax.f32 %v1774, %v1798
        %v1803 = vmax.f32 %v1775, %v1799
        %v1804 = vmax.f32 %v1776, %v1800
        %v1805 = vmax.f32 %v1777, %v1801
        %1806 = vset.pattern.permute.xlu0 52
        %1807 = vperm.xlu0 %1806, %v346
        %v1808 = vpop.permute.xlu0 %1807
        %1809 = vset.pattern.permute.xlu0 52
        %1810 = vperm.xlu0 %1809, %v347
        %v1811 = vpop.permute.xlu0 %1810
        %1812 = vset.pattern.permute.xlu0 52
        %1813 = vperm.xlu0 %1812, %v348
        %v1814 = vpop.permute.xlu0 %1813
        %1815 = vset.pattern.permute.xlu0 52
        %1816 = vperm.xlu0 %1815, %v349
        %v1817 = vpop.permute.xlu0 %1816
        %vm1818 = vcmp.eq.s32.totalorder %v1808, 1
        %vm1819 = vcmp.eq.s32.totalorder %v1811, 1
        %vm1820 = vcmp.eq.s32.totalorder %v1814, 1
        %vm1821 = vcmp.eq.s32.totalorder %v1817, 1
        %v1822 = vlaneseq
        %v1823 = vshrl.u32 %v1822, 7
        %v1824 = vsub.s32 4, %v1823
        %v1825 = vrot.slane %v328, %v1824
        %v1826 = vsel %vm1818, %v1825, -1e+30
        %v1827 = vsel %vm1819, %v1825, -1e+30
        %v1828 = vsel %vm1820, %v1825, -1e+30
        %v1829 = vsel %vm1821, %v1825, -1e+30
        %v1830 = vmax.f32 %v1802, %v1826
        %v1831 = vmax.f32 %v1803, %v1827
        %v1832 = vmax.f32 %v1804, %v1828
        %v1833 = vmax.f32 %v1805, %v1829
        %1834 = vset.pattern.permute.xlu0 53
        %1835 = vperm.xlu0 %1834, %v346
        %v1836 = vpop.permute.xlu0 %1835
        %1837 = vset.pattern.permute.xlu0 53
        %1838 = vperm.xlu0 %1837, %v347
        %v1839 = vpop.permute.xlu0 %1838
        %1840 = vset.pattern.permute.xlu0 53
        %1841 = vperm.xlu0 %1840, %v348
        %v1842 = vpop.permute.xlu0 %1841
        %1843 = vset.pattern.permute.xlu0 53
        %1844 = vperm.xlu0 %1843, %v349
        %v1845 = vpop.permute.xlu0 %1844
        %vm1846 = vcmp.eq.s32.totalorder %v1836, 1
        %vm1847 = vcmp.eq.s32.totalorder %v1839, 1
        %vm1848 = vcmp.eq.s32.totalorder %v1842, 1
        %vm1849 = vcmp.eq.s32.totalorder %v1845, 1
        %v1850 = vlaneseq
        %v1851 = vshrl.u32 %v1850, 7
        %v1852 = vsub.s32 5, %v1851
        %v1853 = vrot.slane %v328, %v1852
        %v1854 = vsel %vm1846, %v1853, -1e+30
        %v1855 = vsel %vm1847, %v1853, -1e+30
        %v1856 = vsel %vm1848, %v1853, -1e+30
        %v1857 = vsel %vm1849, %v1853, -1e+30
        %v1858 = vmax.f32 %v1830, %v1854
        %v1859 = vmax.f32 %v1831, %v1855
        %v1860 = vmax.f32 %v1832, %v1856
        %v1861 = vmax.f32 %v1833, %v1857
        %1862 = vset.pattern.permute.xlu0 54
        %1863 = vperm.xlu0 %1862, %v346
        %v1864 = vpop.permute.xlu0 %1863
        %1865 = vset.pattern.permute.xlu0 54
        %1866 = vperm.xlu0 %1865, %v347
        %v1867 = vpop.permute.xlu0 %1866
        %1868 = vset.pattern.permute.xlu0 54
        %1869 = vperm.xlu0 %1868, %v348
        %v1870 = vpop.permute.xlu0 %1869
        %1871 = vset.pattern.permute.xlu0 54
        %1872 = vperm.xlu0 %1871, %v349
        %v1873 = vpop.permute.xlu0 %1872
        %vm1874 = vcmp.eq.s32.totalorder %v1864, 1
        %vm1875 = vcmp.eq.s32.totalorder %v1867, 1
        %vm1876 = vcmp.eq.s32.totalorder %v1870, 1
        %vm1877 = vcmp.eq.s32.totalorder %v1873, 1
        %v1878 = vlaneseq
        %v1879 = vshrl.u32 %v1878, 7
        %v1880 = vsub.s32 6, %v1879
        %v1881 = vrot.slane %v328, %v1880
        %v1882 = vsel %vm1874, %v1881, -1e+30
        %v1883 = vsel %vm1875, %v1881, -1e+30
        %v1884 = vsel %vm1876, %v1881, -1e+30
        %v1885 = vsel %vm1877, %v1881, -1e+30
        %v1886 = vmax.f32 %v1858, %v1882
        %v1887 = vmax.f32 %v1859, %v1883
        %v1888 = vmax.f32 %v1860, %v1884
        %v1889 = vmax.f32 %v1861, %v1885
        %1890 = vset.pattern.permute.xlu0 55
        %1891 = vperm.xlu0 %1890, %v346
        %v1892 = vpop.permute.xlu0 %1891
        %1893 = vset.pattern.permute.xlu0 55
        %1894 = vperm.xlu0 %1893, %v347
        %v1895 = vpop.permute.xlu0 %1894
        %1896 = vset.pattern.permute.xlu0 55
        %1897 = vperm.xlu0 %1896, %v348
        %v1898 = vpop.permute.xlu0 %1897
        %1899 = vset.pattern.permute.xlu0 55
        %1900 = vperm.xlu0 %1899, %v349
        %v1901 = vpop.permute.xlu0 %1900
        %vm1902 = vcmp.eq.s32.totalorder %v1892, 1
        %vm1903 = vcmp.eq.s32.totalorder %v1895, 1
        %vm1904 = vcmp.eq.s32.totalorder %v1898, 1
        %vm1905 = vcmp.eq.s32.totalorder %v1901, 1
        %v1906 = vlaneseq
        %v1907 = vshrl.u32 %v1906, 7
        %v1908 = vsub.s32 7, %v1907
        %v1909 = vrot.slane %v328, %v1908
        %v1910 = vsel %vm1902, %v1909, -1e+30
        %v1911 = vsel %vm1903, %v1909, -1e+30
        %v1912 = vsel %vm1904, %v1909, -1e+30
        %v1913 = vsel %vm1905, %v1909, -1e+30
        %v1914 = vmax.f32 %v1886, %v1910
        %v1915 = vmax.f32 %v1887, %v1911
        %v1916 = vmax.f32 %v1888, %v1912
        %v1917 = vmax.f32 %v1889, %v1913
        %1918 = vset.pattern.permute.xlu0 56
        %1919 = vperm.xlu0 %1918, %v346
        %v1920 = vpop.permute.xlu0 %1919
        %1921 = vset.pattern.permute.xlu0 56
        %1922 = vperm.xlu0 %1921, %v347
        %v1923 = vpop.permute.xlu0 %1922
        %1924 = vset.pattern.permute.xlu0 56
        %1925 = vperm.xlu0 %1924, %v348
        %v1926 = vpop.permute.xlu0 %1925
        %1927 = vset.pattern.permute.xlu0 56
        %1928 = vperm.xlu0 %1927, %v349
        %v1929 = vpop.permute.xlu0 %1928
        %vm1930 = vcmp.eq.s32.totalorder %v1920, 1
        %vm1931 = vcmp.eq.s32.totalorder %v1923, 1
        %vm1932 = vcmp.eq.s32.totalorder %v1926, 1
        %vm1933 = vcmp.eq.s32.totalorder %v1929, 1
        %v1934 = vlaneseq
        %v1935 = vshrl.u32 %v1934, 7
        %v1936 = vsub.s32 0, %v1935
        %v1937 = vrot.slane %v329, %v1936
        %v1938 = vsel %vm1930, %v1937, -1e+30
        %v1939 = vsel %vm1931, %v1937, -1e+30
        %v1940 = vsel %vm1932, %v1937, -1e+30
        %v1941 = vsel %vm1933, %v1937, -1e+30
        %v1942 = vmax.f32 %v1914, %v1938
        %v1943 = vmax.f32 %v1915, %v1939
        %v1944 = vmax.f32 %v1916, %v1940
        %v1945 = vmax.f32 %v1917, %v1941
        %1946 = vset.pattern.permute.xlu0 57
        %1947 = vperm.xlu0 %1946, %v346
        %v1948 = vpop.permute.xlu0 %1947
        %1949 = vset.pattern.permute.xlu0 57
        %1950 = vperm.xlu0 %1949, %v347
        %v1951 = vpop.permute.xlu0 %1950
        %1952 = vset.pattern.permute.xlu0 57
        %1953 = vperm.xlu0 %1952, %v348
        %v1954 = vpop.permute.xlu0 %1953
        %1955 = vset.pattern.permute.xlu0 57
        %1956 = vperm.xlu0 %1955, %v349
        %v1957 = vpop.permute.xlu0 %1956
        %vm1958 = vcmp.eq.s32.totalorder %v1948, 1
        %vm1959 = vcmp.eq.s32.totalorder %v1951, 1
        %vm1960 = vcmp.eq.s32.totalorder %v1954, 1
        %vm1961 = vcmp.eq.s32.totalorder %v1957, 1
        %v1962 = vlaneseq
        %v1963 = vshrl.u32 %v1962, 7
        %v1964 = vsub.s32 1, %v1963
        %v1965 = vrot.slane %v329, %v1964
        %v1966 = vsel %vm1958, %v1965, -1e+30
        %v1967 = vsel %vm1959, %v1965, -1e+30
        %v1968 = vsel %vm1960, %v1965, -1e+30
        %v1969 = vsel %vm1961, %v1965, -1e+30
        %v1970 = vmax.f32 %v1942, %v1966
        %v1971 = vmax.f32 %v1943, %v1967
        %v1972 = vmax.f32 %v1944, %v1968
        %v1973 = vmax.f32 %v1945, %v1969
        %1974 = vset.pattern.permute.xlu0 58
        %1975 = vperm.xlu0 %1974, %v346
        %v1976 = vpop.permute.xlu0 %1975
        %1977 = vset.pattern.permute.xlu0 58
        %1978 = vperm.xlu0 %1977, %v347
        %v1979 = vpop.permute.xlu0 %1978
        %1980 = vset.pattern.permute.xlu0 58
        %1981 = vperm.xlu0 %1980, %v348
        %v1982 = vpop.permute.xlu0 %1981
        %1983 = vset.pattern.permute.xlu0 58
        %1984 = vperm.xlu0 %1983, %v349
        %v1985 = vpop.permute.xlu0 %1984
        %vm1986 = vcmp.eq.s32.totalorder %v1976, 1
        %vm1987 = vcmp.eq.s32.totalorder %v1979, 1
        %vm1988 = vcmp.eq.s32.totalorder %v1982, 1
        %vm1989 = vcmp.eq.s32.totalorder %v1985, 1
        %v1990 = vlaneseq
        %v1991 = vshrl.u32 %v1990, 7
        %v1992 = vsub.s32 2, %v1991
        %v1993 = vrot.slane %v329, %v1992
        %v1994 = vsel %vm1986, %v1993, -1e+30
        %v1995 = vsel %vm1987, %v1993, -1e+30
        %v1996 = vsel %vm1988, %v1993, -1e+30
        %v1997 = vsel %vm1989, %v1993, -1e+30
        %v1998 = vmax.f32 %v1970, %v1994
        %v1999 = vmax.f32 %v1971, %v1995
        %v2000 = vmax.f32 %v1972, %v1996
        %v2001 = vmax.f32 %v1973, %v1997
        %2002 = vset.pattern.permute.xlu0 59
        %2003 = vperm.xlu0 %2002, %v346
        %v2004 = vpop.permute.xlu0 %2003
        %2005 = vset.pattern.permute.xlu0 59
        %2006 = vperm.xlu0 %2005, %v347
        %v2007 = vpop.permute.xlu0 %2006
        %2008 = vset.pattern.permute.xlu0 59
        %2009 = vperm.xlu0 %2008, %v348
        %v2010 = vpop.permute.xlu0 %2009
        %2011 = vset.pattern.permute.xlu0 59
        %2012 = vperm.xlu0 %2011, %v349
        %v2013 = vpop.permute.xlu0 %2012
        %vm2014 = vcmp.eq.s32.totalorder %v2004, 1
        %vm2015 = vcmp.eq.s32.totalorder %v2007, 1
        %vm2016 = vcmp.eq.s32.totalorder %v2010, 1
        %vm2017 = vcmp.eq.s32.totalorder %v2013, 1
        %v2018 = vlaneseq
        %v2019 = vshrl.u32 %v2018, 7
        %v2020 = vsub.s32 3, %v2019
        %v2021 = vrot.slane %v329, %v2020
        %v2022 = vsel %vm2014, %v2021, -1e+30
        %v2023 = vsel %vm2015, %v2021, -1e+30
        %v2024 = vsel %vm2016, %v2021, -1e+30
        %v2025 = vsel %vm2017, %v2021, -1e+30
        %v2026 = vmax.f32 %v1998, %v2022
        %v2027 = vmax.f32 %v1999, %v2023
        %v2028 = vmax.f32 %v2000, %v2024
        %v2029 = vmax.f32 %v2001, %v2025
        %2030 = vset.pattern.permute.xlu0 60
        %2031 = vperm.xlu0 %2030, %v346
        %v2032 = vpop.permute.xlu0 %2031
        %2033 = vset.pattern.permute.xlu0 60
        %2034 = vperm.xlu0 %2033, %v347
        %v2035 = vpop.permute.xlu0 %2034
        %2036 = vset.pattern.permute.xlu0 60
        %2037 = vperm.xlu0 %2036, %v348
        %v2038 = vpop.permute.xlu0 %2037
        %2039 = vset.pattern.permute.xlu0 60
        %2040 = vperm.xlu0 %2039, %v349
        %v2041 = vpop.permute.xlu0 %2040
        %vm2042 = vcmp.eq.s32.totalorder %v2032, 1
        %vm2043 = vcmp.eq.s32.totalorder %v2035, 1
        %vm2044 = vcmp.eq.s32.totalorder %v2038, 1
        %vm2045 = vcmp.eq.s32.totalorder %v2041, 1
        %v2046 = vlaneseq
        %v2047 = vshrl.u32 %v2046, 7
        %v2048 = vsub.s32 4, %v2047
        %v2049 = vrot.slane %v329, %v2048
        %v2050 = vsel %vm2042, %v2049, -1e+30
        %v2051 = vsel %vm2043, %v2049, -1e+30
        %v2052 = vsel %vm2044, %v2049, -1e+30
        %v2053 = vsel %vm2045, %v2049, -1e+30
        %v2054 = vmax.f32 %v2026, %v2050
        %v2055 = vmax.f32 %v2027, %v2051
        %v2056 = vmax.f32 %v2028, %v2052
        %v2057 = vmax.f32 %v2029, %v2053
        %2058 = vset.pattern.permute.xlu0 61
        %2059 = vperm.xlu0 %2058, %v346
        %v2060 = vpop.permute.xlu0 %2059
        %2061 = vset.pattern.permute.xlu0 61
        %2062 = vperm.xlu0 %2061, %v347
        %v2063 = vpop.permute.xlu0 %2062
        %2064 = vset.pattern.permute.xlu0 61
        %2065 = vperm.xlu0 %2064, %v348
        %v2066 = vpop.permute.xlu0 %2065
        %2067 = vset.pattern.permute.xlu0 61
        %2068 = vperm.xlu0 %2067, %v349
        %v2069 = vpop.permute.xlu0 %2068
        %vm2070 = vcmp.eq.s32.totalorder %v2060, 1
        %vm2071 = vcmp.eq.s32.totalorder %v2063, 1
        %vm2072 = vcmp.eq.s32.totalorder %v2066, 1
        %vm2073 = vcmp.eq.s32.totalorder %v2069, 1
        %v2074 = vlaneseq
        %v2075 = vshrl.u32 %v2074, 7
        %v2076 = vsub.s32 5, %v2075
        %v2077 = vrot.slane %v329, %v2076
        %v2078 = vsel %vm2070, %v2077, -1e+30
        %v2079 = vsel %vm2071, %v2077, -1e+30
        %v2080 = vsel %vm2072, %v2077, -1e+30
        %v2081 = vsel %vm2073, %v2077, -1e+30
        %v2082 = vmax.f32 %v2054, %v2078
        %v2083 = vmax.f32 %v2055, %v2079
        %v2084 = vmax.f32 %v2056, %v2080
        %v2085 = vmax.f32 %v2057, %v2081
        %2086 = vset.pattern.permute.xlu0 62
        %2087 = vperm.xlu0 %2086, %v346
        %v2088 = vpop.permute.xlu0 %2087
        %2089 = vset.pattern.permute.xlu0 62
        %2090 = vperm.xlu0 %2089, %v347
        %v2091 = vpop.permute.xlu0 %2090
        %2092 = vset.pattern.permute.xlu0 62
        %2093 = vperm.xlu0 %2092, %v348
        %v2094 = vpop.permute.xlu0 %2093
        %2095 = vset.pattern.permute.xlu0 62
        %2096 = vperm.xlu0 %2095, %v349
        %v2097 = vpop.permute.xlu0 %2096
        %vm2098 = vcmp.eq.s32.totalorder %v2088, 1
        %vm2099 = vcmp.eq.s32.totalorder %v2091, 1
        %vm2100 = vcmp.eq.s32.totalorder %v2094, 1
        %vm2101 = vcmp.eq.s32.totalorder %v2097, 1
        %v2102 = vlaneseq
        %v2103 = vshrl.u32 %v2102, 7
        %v2104 = vsub.s32 6, %v2103
        %v2105 = vrot.slane %v329, %v2104
        %v2106 = vsel %vm2098, %v2105, -1e+30
        %v2107 = vsel %vm2099, %v2105, -1e+30
        %v2108 = vsel %vm2100, %v2105, -1e+30
        %v2109 = vsel %vm2101, %v2105, -1e+30
        %v2110 = vmax.f32 %v2082, %v2106
        %v2111 = vmax.f32 %v2083, %v2107
        %v2112 = vmax.f32 %v2084, %v2108
        %v2113 = vmax.f32 %v2085, %v2109
        %2114 = vset.pattern.permute.xlu0 63
        %2115 = vperm.xlu0 %2114, %v346
        %v2116 = vpop.permute.xlu0 %2115
        %2117 = vset.pattern.permute.xlu0 63
        %2118 = vperm.xlu0 %2117, %v347
        %v2119 = vpop.permute.xlu0 %2118
        %2120 = vset.pattern.permute.xlu0 63
        %2121 = vperm.xlu0 %2120, %v348
        %v2122 = vpop.permute.xlu0 %2121
        %2123 = vset.pattern.permute.xlu0 63
        %2124 = vperm.xlu0 %2123, %v349
        %v2125 = vpop.permute.xlu0 %2124
        %vm2126 = vcmp.eq.s32.totalorder %v2116, 1
        %vm2127 = vcmp.eq.s32.totalorder %v2119, 1
        %vm2128 = vcmp.eq.s32.totalorder %v2122, 1
        %vm2129 = vcmp.eq.s32.totalorder %v2125, 1
        %v2130 = vlaneseq
        %v2131 = vshrl.u32 %v2130, 7
        %v2132 = vsub.s32 7, %v2131
        %v2133 = vrot.slane %v329, %v2132
        %v2134 = vsel %vm2126, %v2133, -1e+30
        %v2135 = vsel %vm2127, %v2133, -1e+30
        %v2136 = vsel %vm2128, %v2133, -1e+30
        %v2137 = vsel %vm2129, %v2133, -1e+30
        %v2138 = vmax.f32 %v2110, %v2134
        %v2139 = vmax.f32 %v2111, %v2135
        %v2140 = vmax.f32 %v2112, %v2136
        %v2141 = vmax.f32 %v2113, %v2137
        %2142 = vset.pattern.permute.xlu0 64
        %2143 = vperm.xlu0 %2142, %v346
        %v2144 = vpop.permute.xlu0 %2143
        %2145 = vset.pattern.permute.xlu0 64
        %2146 = vperm.xlu0 %2145, %v347
        %v2147 = vpop.permute.xlu0 %2146
        %2148 = vset.pattern.permute.xlu0 64
        %2149 = vperm.xlu0 %2148, %v348
        %v2150 = vpop.permute.xlu0 %2149
        %2151 = vset.pattern.permute.xlu0 64
        %2152 = vperm.xlu0 %2151, %v349
        %v2153 = vpop.permute.xlu0 %2152
        %vm2154 = vcmp.eq.s32.totalorder %v2144, 1
        %vm2155 = vcmp.eq.s32.totalorder %v2147, 1
        %vm2156 = vcmp.eq.s32.totalorder %v2150, 1
        %vm2157 = vcmp.eq.s32.totalorder %v2153, 1
        %v2158 = vlaneseq
        %v2159 = vshrl.u32 %v2158, 7
        %v2160 = vsub.s32 0, %v2159
        %v2161 = vrot.slane %v330, %v2160
        %v2162 = vsel %vm2154, %v2161, -1e+30
        %v2163 = vsel %vm2155, %v2161, -1e+30
        %v2164 = vsel %vm2156, %v2161, -1e+30
        %v2165 = vsel %vm2157, %v2161, -1e+30
        %v2166 = vmax.f32 %v2138, %v2162
        %v2167 = vmax.f32 %v2139, %v2163
        %v2168 = vmax.f32 %v2140, %v2164
        %v2169 = vmax.f32 %v2141, %v2165
        %2170 = vset.pattern.permute.xlu0 65
        %2171 = vperm.xlu0 %2170, %v346
        %v2172 = vpop.permute.xlu0 %2171
        %2173 = vset.pattern.permute.xlu0 65
        %2174 = vperm.xlu0 %2173, %v347
        %v2175 = vpop.permute.xlu0 %2174
        %2176 = vset.pattern.permute.xlu0 65
        %2177 = vperm.xlu0 %2176, %v348
        %v2178 = vpop.permute.xlu0 %2177
        %2179 = vset.pattern.permute.xlu0 65
        %2180 = vperm.xlu0 %2179, %v349
        %v2181 = vpop.permute.xlu0 %2180
        %vm2182 = vcmp.eq.s32.totalorder %v2172, 1
        %vm2183 = vcmp.eq.s32.totalorder %v2175, 1
        %vm2184 = vcmp.eq.s32.totalorder %v2178, 1
        %vm2185 = vcmp.eq.s32.totalorder %v2181, 1
        %v2186 = vlaneseq
        %v2187 = vshrl.u32 %v2186, 7
        %v2188 = vsub.s32 1, %v2187
        %v2189 = vrot.slane %v330, %v2188
        %v2190 = vsel %vm2182, %v2189, -1e+30
        %v2191 = vsel %vm2183, %v2189, -1e+30
        %v2192 = vsel %vm2184, %v2189, -1e+30
        %v2193 = vsel %vm2185, %v2189, -1e+30
        %v2194 = vmax.f32 %v2166, %v2190
        %v2195 = vmax.f32 %v2167, %v2191
        %v2196 = vmax.f32 %v2168, %v2192
        %v2197 = vmax.f32 %v2169, %v2193
        %2198 = vset.pattern.permute.xlu0 66
        %2199 = vperm.xlu0 %2198, %v346
        %v2200 = vpop.permute.xlu0 %2199
        %2201 = vset.pattern.permute.xlu0 66
        %2202 = vperm.xlu0 %2201, %v347
        %v2203 = vpop.permute.xlu0 %2202
        %2204 = vset.pattern.permute.xlu0 66
        %2205 = vperm.xlu0 %2204, %v348
        %v2206 = vpop.permute.xlu0 %2205
        %2207 = vset.pattern.permute.xlu0 66
        %2208 = vperm.xlu0 %2207, %v349
        %v2209 = vpop.permute.xlu0 %2208
        %vm2210 = vcmp.eq.s32.totalorder %v2200, 1
        %vm2211 = vcmp.eq.s32.totalorder %v2203, 1
        %vm2212 = vcmp.eq.s32.totalorder %v2206, 1
        %vm2213 = vcmp.eq.s32.totalorder %v2209, 1
        %v2214 = vlaneseq
        %v2215 = vshrl.u32 %v2214, 7
        %v2216 = vsub.s32 2, %v2215
        %v2217 = vrot.slane %v330, %v2216
        %v2218 = vsel %vm2210, %v2217, -1e+30
        %v2219 = vsel %vm2211, %v2217, -1e+30
        %v2220 = vsel %vm2212, %v2217, -1e+30
        %v2221 = vsel %vm2213, %v2217, -1e+30
        %v2222 = vmax.f32 %v2194, %v2218
        %v2223 = vmax.f32 %v2195, %v2219
        %v2224 = vmax.f32 %v2196, %v2220
        %v2225 = vmax.f32 %v2197, %v2221
        %2226 = vset.pattern.permute.xlu0 67
        %2227 = vperm.xlu0 %2226, %v346
        %v2228 = vpop.permute.xlu0 %2227
        %2229 = vset.pattern.permute.xlu0 67
        %2230 = vperm.xlu0 %2229, %v347
        %v2231 = vpop.permute.xlu0 %2230
        %2232 = vset.pattern.permute.xlu0 67
        %2233 = vperm.xlu0 %2232, %v348
        %v2234 = vpop.permute.xlu0 %2233
        %2235 = vset.pattern.permute.xlu0 67
        %2236 = vperm.xlu0 %2235, %v349
        %v2237 = vpop.permute.xlu0 %2236
        %vm2238 = vcmp.eq.s32.totalorder %v2228, 1
        %vm2239 = vcmp.eq.s32.totalorder %v2231, 1
        %vm2240 = vcmp.eq.s32.totalorder %v2234, 1
        %vm2241 = vcmp.eq.s32.totalorder %v2237, 1
        %v2242 = vlaneseq
        %v2243 = vshrl.u32 %v2242, 7
        %v2244 = vsub.s32 3, %v2243
        %v2245 = vrot.slane %v330, %v2244
        %v2246 = vsel %vm2238, %v2245, -1e+30
        %v2247 = vsel %vm2239, %v2245, -1e+30
        %v2248 = vsel %vm2240, %v2245, -1e+30
        %v2249 = vsel %vm2241, %v2245, -1e+30
        %v2250 = vmax.f32 %v2222, %v2246
        %v2251 = vmax.f32 %v2223, %v2247
        %v2252 = vmax.f32 %v2224, %v2248
        %v2253 = vmax.f32 %v2225, %v2249
        %2254 = vset.pattern.permute.xlu0 68
        %2255 = vperm.xlu0 %2254, %v346
        %v2256 = vpop.permute.xlu0 %2255
        %2257 = vset.pattern.permute.xlu0 68
        %2258 = vperm.xlu0 %2257, %v347
        %v2259 = vpop.permute.xlu0 %2258
        %2260 = vset.pattern.permute.xlu0 68
        %2261 = vperm.xlu0 %2260, %v348
        %v2262 = vpop.permute.xlu0 %2261
        %2263 = vset.pattern.permute.xlu0 68
        %2264 = vperm.xlu0 %2263, %v349
        %v2265 = vpop.permute.xlu0 %2264
        %vm2266 = vcmp.eq.s32.totalorder %v2256, 1
        %vm2267 = vcmp.eq.s32.totalorder %v2259, 1
        %vm2268 = vcmp.eq.s32.totalorder %v2262, 1
        %vm2269 = vcmp.eq.s32.totalorder %v2265, 1
        %v2270 = vlaneseq
        %v2271 = vshrl.u32 %v2270, 7
        %v2272 = vsub.s32 4, %v2271
        %v2273 = vrot.slane %v330, %v2272
        %v2274 = vsel %vm2266, %v2273, -1e+30
        %v2275 = vsel %vm2267, %v2273, -1e+30
        %v2276 = vsel %vm2268, %v2273, -1e+30
        %v2277 = vsel %vm2269, %v2273, -1e+30
        %v2278 = vmax.f32 %v2250, %v2274
        %v2279 = vmax.f32 %v2251, %v2275
        %v2280 = vmax.f32 %v2252, %v2276
        %v2281 = vmax.f32 %v2253, %v2277
        %2282 = vset.pattern.permute.xlu0 69
        %2283 = vperm.xlu0 %2282, %v346
        %v2284 = vpop.permute.xlu0 %2283
        %2285 = vset.pattern.permute.xlu0 69
        %2286 = vperm.xlu0 %2285, %v347
        %v2287 = vpop.permute.xlu0 %2286
        %2288 = vset.pattern.permute.xlu0 69
        %2289 = vperm.xlu0 %2288, %v348
        %v2290 = vpop.permute.xlu0 %2289
        %2291 = vset.pattern.permute.xlu0 69
        %2292 = vperm.xlu0 %2291, %v349
        %v2293 = vpop.permute.xlu0 %2292
        %vm2294 = vcmp.eq.s32.totalorder %v2284, 1
        %vm2295 = vcmp.eq.s32.totalorder %v2287, 1
        %vm2296 = vcmp.eq.s32.totalorder %v2290, 1
        %vm2297 = vcmp.eq.s32.totalorder %v2293, 1
        %v2298 = vlaneseq
        %v2299 = vshrl.u32 %v2298, 7
        %v2300 = vsub.s32 5, %v2299
        %v2301 = vrot.slane %v330, %v2300
        %v2302 = vsel %vm2294, %v2301, -1e+30
        %v2303 = vsel %vm2295, %v2301, -1e+30
        %v2304 = vsel %vm2296, %v2301, -1e+30
        %v2305 = vsel %vm2297, %v2301, -1e+30
        %v2306 = vmax.f32 %v2278, %v2302
        %v2307 = vmax.f32 %v2279, %v2303
        %v2308 = vmax.f32 %v2280, %v2304
        %v2309 = vmax.f32 %v2281, %v2305
        %2310 = vset.pattern.permute.xlu0 70
        %2311 = vperm.xlu0 %2310, %v346
        %v2312 = vpop.permute.xlu0 %2311
        %2313 = vset.pattern.permute.xlu0 70
        %2314 = vperm.xlu0 %2313, %v347
        %v2315 = vpop.permute.xlu0 %2314
        %2316 = vset.pattern.permute.xlu0 70
        %2317 = vperm.xlu0 %2316, %v348
        %v2318 = vpop.permute.xlu0 %2317
        %2319 = vset.pattern.permute.xlu0 70
        %2320 = vperm.xlu0 %2319, %v349
        %v2321 = vpop.permute.xlu0 %2320
        %vm2322 = vcmp.eq.s32.totalorder %v2312, 1
        %vm2323 = vcmp.eq.s32.totalorder %v2315, 1
        %vm2324 = vcmp.eq.s32.totalorder %v2318, 1
        %vm2325 = vcmp.eq.s32.totalorder %v2321, 1
        %v2326 = vlaneseq
        %v2327 = vshrl.u32 %v2326, 7
        %v2328 = vsub.s32 6, %v2327
        %v2329 = vrot.slane %v330, %v2328
        %v2330 = vsel %vm2322, %v2329, -1e+30
        %v2331 = vsel %vm2323, %v2329, -1e+30
        %v2332 = vsel %vm2324, %v2329, -1e+30
        %v2333 = vsel %vm2325, %v2329, -1e+30
        %v2334 = vmax.f32 %v2306, %v2330
        %v2335 = vmax.f32 %v2307, %v2331
        %v2336 = vmax.f32 %v2308, %v2332
        %v2337 = vmax.f32 %v2309, %v2333
        %2338 = vset.pattern.permute.xlu0 71
        %2339 = vperm.xlu0 %2338, %v346
        %v2340 = vpop.permute.xlu0 %2339
        %2341 = vset.pattern.permute.xlu0 71
        %2342 = vperm.xlu0 %2341, %v347
        %v2343 = vpop.permute.xlu0 %2342
        %2344 = vset.pattern.permute.xlu0 71
        %2345 = vperm.xlu0 %2344, %v348
        %v2346 = vpop.permute.xlu0 %2345
        %2347 = vset.pattern.permute.xlu0 71
        %2348 = vperm.xlu0 %2347, %v349
        %v2349 = vpop.permute.xlu0 %2348
        %vm2350 = vcmp.eq.s32.totalorder %v2340, 1
        %vm2351 = vcmp.eq.s32.totalorder %v2343, 1
        %vm2352 = vcmp.eq.s32.totalorder %v2346, 1
        %vm2353 = vcmp.eq.s32.totalorder %v2349, 1
        %v2354 = vlaneseq
        %v2355 = vshrl.u32 %v2354, 7
        %v2356 = vsub.s32 7, %v2355
        %v2357 = vrot.slane %v330, %v2356
        %v2358 = vsel %vm2350, %v2357, -1e+30
        %v2359 = vsel %vm2351, %v2357, -1e+30
        %v2360 = vsel %vm2352, %v2357, -1e+30
        %v2361 = vsel %vm2353, %v2357, -1e+30
        %v2362 = vmax.f32 %v2334, %v2358
        %v2363 = vmax.f32 %v2335, %v2359
        %v2364 = vmax.f32 %v2336, %v2360
        %v2365 = vmax.f32 %v2337, %v2361
        %2366 = vset.pattern.permute.xlu0 72
        %2367 = vperm.xlu0 %2366, %v346
        %v2368 = vpop.permute.xlu0 %2367
        %2369 = vset.pattern.permute.xlu0 72
        %2370 = vperm.xlu0 %2369, %v347
        %v2371 = vpop.permute.xlu0 %2370
        %2372 = vset.pattern.permute.xlu0 72
        %2373 = vperm.xlu0 %2372, %v348
        %v2374 = vpop.permute.xlu0 %2373
        %2375 = vset.pattern.permute.xlu0 72
        %2376 = vperm.xlu0 %2375, %v349
        %v2377 = vpop.permute.xlu0 %2376
        %vm2378 = vcmp.eq.s32.totalorder %v2368, 1
        %vm2379 = vcmp.eq.s32.totalorder %v2371, 1
        %vm2380 = vcmp.eq.s32.totalorder %v2374, 1
        %vm2381 = vcmp.eq.s32.totalorder %v2377, 1
        %v2382 = vlaneseq
        %v2383 = vshrl.u32 %v2382, 7
        %v2384 = vsub.s32 0, %v2383
        %v2385 = vrot.slane %v331, %v2384
        %v2386 = vsel %vm2378, %v2385, -1e+30
        %v2387 = vsel %vm2379, %v2385, -1e+30
        %v2388 = vsel %vm2380, %v2385, -1e+30
        %v2389 = vsel %vm2381, %v2385, -1e+30
        %v2390 = vmax.f32 %v2362, %v2386
        %v2391 = vmax.f32 %v2363, %v2387
        %v2392 = vmax.f32 %v2364, %v2388
        %v2393 = vmax.f32 %v2365, %v2389
        %2394 = vset.pattern.permute.xlu0 73
        %2395 = vperm.xlu0 %2394, %v346
        %v2396 = vpop.permute.xlu0 %2395
        %2397 = vset.pattern.permute.xlu0 73
        %2398 = vperm.xlu0 %2397, %v347
        %v2399 = vpop.permute.xlu0 %2398
        %2400 = vset.pattern.permute.xlu0 73
        %2401 = vperm.xlu0 %2400, %v348
        %v2402 = vpop.permute.xlu0 %2401
        %2403 = vset.pattern.permute.xlu0 73
        %2404 = vperm.xlu0 %2403, %v349
        %v2405 = vpop.permute.xlu0 %2404
        %vm2406 = vcmp.eq.s32.totalorder %v2396, 1
        %vm2407 = vcmp.eq.s32.totalorder %v2399, 1
        %vm2408 = vcmp.eq.s32.totalorder %v2402, 1
        %vm2409 = vcmp.eq.s32.totalorder %v2405, 1
        %v2410 = vlaneseq
        %v2411 = vshrl.u32 %v2410, 7
        %v2412 = vsub.s32 1, %v2411
        %v2413 = vrot.slane %v331, %v2412
        %v2414 = vsel %vm2406, %v2413, -1e+30
        %v2415 = vsel %vm2407, %v2413, -1e+30
        %v2416 = vsel %vm2408, %v2413, -1e+30
        %v2417 = vsel %vm2409, %v2413, -1e+30
        %v2418 = vmax.f32 %v2390, %v2414
        %v2419 = vmax.f32 %v2391, %v2415
        %v2420 = vmax.f32 %v2392, %v2416
        %v2421 = vmax.f32 %v2393, %v2417
        %2422 = vset.pattern.permute.xlu0 74
        %2423 = vperm.xlu0 %2422, %v346
        %v2424 = vpop.permute.xlu0 %2423
        %2425 = vset.pattern.permute.xlu0 74
        %2426 = vperm.xlu0 %2425, %v347
        %v2427 = vpop.permute.xlu0 %2426
        %2428 = vset.pattern.permute.xlu0 74
        %2429 = vperm.xlu0 %2428, %v348
        %v2430 = vpop.permute.xlu0 %2429
        %2431 = vset.pattern.permute.xlu0 74
        %2432 = vperm.xlu0 %2431, %v349
        %v2433 = vpop.permute.xlu0 %2432
        %vm2434 = vcmp.eq.s32.totalorder %v2424, 1
        %vm2435 = vcmp.eq.s32.totalorder %v2427, 1
        %vm2436 = vcmp.eq.s32.totalorder %v2430, 1
        %vm2437 = vcmp.eq.s32.totalorder %v2433, 1
        %v2438 = vlaneseq
        %v2439 = vshrl.u32 %v2438, 7
        %v2440 = vsub.s32 2, %v2439
        %v2441 = vrot.slane %v331, %v2440
        %v2442 = vsel %vm2434, %v2441, -1e+30
        %v2443 = vsel %vm2435, %v2441, -1e+30
        %v2444 = vsel %vm2436, %v2441, -1e+30
        %v2445 = vsel %vm2437, %v2441, -1e+30
        %v2446 = vmax.f32 %v2418, %v2442
        %v2447 = vmax.f32 %v2419, %v2443
        %v2448 = vmax.f32 %v2420, %v2444
        %v2449 = vmax.f32 %v2421, %v2445
        %2450 = vset.pattern.permute.xlu0 75
        %2451 = vperm.xlu0 %2450, %v346
        %v2452 = vpop.permute.xlu0 %2451
        %2453 = vset.pattern.permute.xlu0 75
        %2454 = vperm.xlu0 %2453, %v347
        %v2455 = vpop.permute.xlu0 %2454
        %2456 = vset.pattern.permute.xlu0 75
        %2457 = vperm.xlu0 %2456, %v348
        %v2458 = vpop.permute.xlu0 %2457
        %2459 = vset.pattern.permute.xlu0 75
        %2460 = vperm.xlu0 %2459, %v349
        %v2461 = vpop.permute.xlu0 %2460
        %vm2462 = vcmp.eq.s32.totalorder %v2452, 1
        %vm2463 = vcmp.eq.s32.totalorder %v2455, 1
        %vm2464 = vcmp.eq.s32.totalorder %v2458, 1
        %vm2465 = vcmp.eq.s32.totalorder %v2461, 1
        %v2466 = vlaneseq
        %v2467 = vshrl.u32 %v2466, 7
        %v2468 = vsub.s32 3, %v2467
        %v2469 = vrot.slane %v331, %v2468
        %v2470 = vsel %vm2462, %v2469, -1e+30
        %v2471 = vsel %vm2463, %v2469, -1e+30
        %v2472 = vsel %vm2464, %v2469, -1e+30
        %v2473 = vsel %vm2465, %v2469, -1e+30
        %v2474 = vmax.f32 %v2446, %v2470
        %v2475 = vmax.f32 %v2447, %v2471
        %v2476 = vmax.f32 %v2448, %v2472
        %v2477 = vmax.f32 %v2449, %v2473
        %2478 = vset.pattern.permute.xlu0 76
        %2479 = vperm.xlu0 %2478, %v346
        %v2480 = vpop.permute.xlu0 %2479
        %2481 = vset.pattern.permute.xlu0 76
        %2482 = vperm.xlu0 %2481, %v347
        %v2483 = vpop.permute.xlu0 %2482
        %2484 = vset.pattern.permute.xlu0 76
        %2485 = vperm.xlu0 %2484, %v348
        %v2486 = vpop.permute.xlu0 %2485
        %2487 = vset.pattern.permute.xlu0 76
        %2488 = vperm.xlu0 %2487, %v349
        %v2489 = vpop.permute.xlu0 %2488
        %vm2490 = vcmp.eq.s32.totalorder %v2480, 1
        %vm2491 = vcmp.eq.s32.totalorder %v2483, 1
        %vm2492 = vcmp.eq.s32.totalorder %v2486, 1
        %vm2493 = vcmp.eq.s32.totalorder %v2489, 1
        %v2494 = vlaneseq
        %v2495 = vshrl.u32 %v2494, 7
        %v2496 = vsub.s32 4, %v2495
        %v2497 = vrot.slane %v331, %v2496
        %v2498 = vsel %vm2490, %v2497, -1e+30
        %v2499 = vsel %vm2491, %v2497, -1e+30
        %v2500 = vsel %vm2492, %v2497, -1e+30
        %v2501 = vsel %vm2493, %v2497, -1e+30
        %v2502 = vmax.f32 %v2474, %v2498
        %v2503 = vmax.f32 %v2475, %v2499
        %v2504 = vmax.f32 %v2476, %v2500
        %v2505 = vmax.f32 %v2477, %v2501
        %2506 = vset.pattern.permute.xlu0 77
        %2507 = vperm.xlu0 %2506, %v346
        %v2508 = vpop.permute.xlu0 %2507
        %2509 = vset.pattern.permute.xlu0 77
        %2510 = vperm.xlu0 %2509, %v347
        %v2511 = vpop.permute.xlu0 %2510
        %2512 = vset.pattern.permute.xlu0 77
        %2513 = vperm.xlu0 %2512, %v348
        %v2514 = vpop.permute.xlu0 %2513
        %2515 = vset.pattern.permute.xlu0 77
        %2516 = vperm.xlu0 %2515, %v349
        %v2517 = vpop.permute.xlu0 %2516
        %vm2518 = vcmp.eq.s32.totalorder %v2508, 1
        %vm2519 = vcmp.eq.s32.totalorder %v2511, 1
        %vm2520 = vcmp.eq.s32.totalorder %v2514, 1
        %vm2521 = vcmp.eq.s32.totalorder %v2517, 1
        %v2522 = vlaneseq
        %v2523 = vshrl.u32 %v2522, 7
        %v2524 = vsub.s32 5, %v2523
        %v2525 = vrot.slane %v331, %v2524
        %v2526 = vsel %vm2518, %v2525, -1e+30
        %v2527 = vsel %vm2519, %v2525, -1e+30
        %v2528 = vsel %vm2520, %v2525, -1e+30
        %v2529 = vsel %vm2521, %v2525, -1e+30
        %v2530 = vmax.f32 %v2502, %v2526
        %v2531 = vmax.f32 %v2503, %v2527
        %v2532 = vmax.f32 %v2504, %v2528
        %v2533 = vmax.f32 %v2505, %v2529
        %2534 = vset.pattern.permute.xlu0 78
        %2535 = vperm.xlu0 %2534, %v346
        %v2536 = vpop.permute.xlu0 %2535
        %2537 = vset.pattern.permute.xlu0 78
        %2538 = vperm.xlu0 %2537, %v347
        %v2539 = vpop.permute.xlu0 %2538
        %2540 = vset.pattern.permute.xlu0 78
        %2541 = vperm.xlu0 %2540, %v348
        %v2542 = vpop.permute.xlu0 %2541
        %2543 = vset.pattern.permute.xlu0 78
        %2544 = vperm.xlu0 %2543, %v349
        %v2545 = vpop.permute.xlu0 %2544
        %vm2546 = vcmp.eq.s32.totalorder %v2536, 1
        %vm2547 = vcmp.eq.s32.totalorder %v2539, 1
        %vm2548 = vcmp.eq.s32.totalorder %v2542, 1
        %vm2549 = vcmp.eq.s32.totalorder %v2545, 1
        %v2550 = vlaneseq
        %v2551 = vshrl.u32 %v2550, 7
        %v2552 = vsub.s32 6, %v2551
        %v2553 = vrot.slane %v331, %v2552
        %v2554 = vsel %vm2546, %v2553, -1e+30
        %v2555 = vsel %vm2547, %v2553, -1e+30
        %v2556 = vsel %vm2548, %v2553, -1e+30
        %v2557 = vsel %vm2549, %v2553, -1e+30
        %v2558 = vmax.f32 %v2530, %v2554
        %v2559 = vmax.f32 %v2531, %v2555
        %v2560 = vmax.f32 %v2532, %v2556
        %v2561 = vmax.f32 %v2533, %v2557
        %2562 = vset.pattern.permute.xlu0 79
        %2563 = vperm.xlu0 %2562, %v346
        %v2564 = vpop.permute.xlu0 %2563
        %2565 = vset.pattern.permute.xlu0 79
        %2566 = vperm.xlu0 %2565, %v347
        %v2567 = vpop.permute.xlu0 %2566
        %2568 = vset.pattern.permute.xlu0 79
        %2569 = vperm.xlu0 %2568, %v348
        %v2570 = vpop.permute.xlu0 %2569
        %2571 = vset.pattern.permute.xlu0 79
        %2572 = vperm.xlu0 %2571, %v349
        %v2573 = vpop.permute.xlu0 %2572
        %vm2574 = vcmp.eq.s32.totalorder %v2564, 1
        %vm2575 = vcmp.eq.s32.totalorder %v2567, 1
        %vm2576 = vcmp.eq.s32.totalorder %v2570, 1
        %vm2577 = vcmp.eq.s32.totalorder %v2573, 1
        %v2578 = vlaneseq
        %v2579 = vshrl.u32 %v2578, 7
        %v2580 = vsub.s32 7, %v2579
        %v2581 = vrot.slane %v331, %v2580
        %v2582 = vsel %vm2574, %v2581, -1e+30
        %v2583 = vsel %vm2575, %v2581, -1e+30
        %v2584 = vsel %vm2576, %v2581, -1e+30
        %v2585 = vsel %vm2577, %v2581, -1e+30
        %v2586 = vmax.f32 %v2558, %v2582
        %v2587 = vmax.f32 %v2559, %v2583
        %v2588 = vmax.f32 %v2560, %v2584
        %v2589 = vmax.f32 %v2561, %v2585
        %2590 = vset.pattern.permute.xlu0 80
        %2591 = vperm.xlu0 %2590, %v346
        %v2592 = vpop.permute.xlu0 %2591
        %2593 = vset.pattern.permute.xlu0 80
        %2594 = vperm.xlu0 %2593, %v347
        %v2595 = vpop.permute.xlu0 %2594
        %2596 = vset.pattern.permute.xlu0 80
        %2597 = vperm.xlu0 %2596, %v348
        %v2598 = vpop.permute.xlu0 %2597
        %2599 = vset.pattern.permute.xlu0 80
        %2600 = vperm.xlu0 %2599, %v349
        %v2601 = vpop.permute.xlu0 %2600
        %vm2602 = vcmp.eq.s32.totalorder %v2592, 1
        %vm2603 = vcmp.eq.s32.totalorder %v2595, 1
        %vm2604 = vcmp.eq.s32.totalorder %v2598, 1
        %vm2605 = vcmp.eq.s32.totalorder %v2601, 1
        %v2606 = vlaneseq
        %v2607 = vshrl.u32 %v2606, 7
        %v2608 = vsub.s32 0, %v2607
        %v2609 = vrot.slane %v332, %v2608
        %v2610 = vsel %vm2602, %v2609, -1e+30
        %v2611 = vsel %vm2603, %v2609, -1e+30
        %v2612 = vsel %vm2604, %v2609, -1e+30
        %v2613 = vsel %vm2605, %v2609, -1e+30
        %v2614 = vmax.f32 %v2586, %v2610
        %v2615 = vmax.f32 %v2587, %v2611
        %v2616 = vmax.f32 %v2588, %v2612
        %v2617 = vmax.f32 %v2589, %v2613
        %2618 = vset.pattern.permute.xlu0 81
        %2619 = vperm.xlu0 %2618, %v346
        %v2620 = vpop.permute.xlu0 %2619
        %2621 = vset.pattern.permute.xlu0 81
        %2622 = vperm.xlu0 %2621, %v347
        %v2623 = vpop.permute.xlu0 %2622
        %2624 = vset.pattern.permute.xlu0 81
        %2625 = vperm.xlu0 %2624, %v348
        %v2626 = vpop.permute.xlu0 %2625
        %2627 = vset.pattern.permute.xlu0 81
        %2628 = vperm.xlu0 %2627, %v349
        %v2629 = vpop.permute.xlu0 %2628
        %vm2630 = vcmp.eq.s32.totalorder %v2620, 1
        %vm2631 = vcmp.eq.s32.totalorder %v2623, 1
        %vm2632 = vcmp.eq.s32.totalorder %v2626, 1
        %vm2633 = vcmp.eq.s32.totalorder %v2629, 1
        %v2634 = vlaneseq
        %v2635 = vshrl.u32 %v2634, 7
        %v2636 = vsub.s32 1, %v2635
        %v2637 = vrot.slane %v332, %v2636
        %v2638 = vsel %vm2630, %v2637, -1e+30
        %v2639 = vsel %vm2631, %v2637, -1e+30
        %v2640 = vsel %vm2632, %v2637, -1e+30
        %v2641 = vsel %vm2633, %v2637, -1e+30
        %v2642 = vmax.f32 %v2614, %v2638
        %v2643 = vmax.f32 %v2615, %v2639
        %v2644 = vmax.f32 %v2616, %v2640
        %v2645 = vmax.f32 %v2617, %v2641
        %2646 = vset.pattern.permute.xlu0 82
        %2647 = vperm.xlu0 %2646, %v346
        %v2648 = vpop.permute.xlu0 %2647
        %2649 = vset.pattern.permute.xlu0 82
        %2650 = vperm.xlu0 %2649, %v347
        %v2651 = vpop.permute.xlu0 %2650
        %2652 = vset.pattern.permute.xlu0 82
        %2653 = vperm.xlu0 %2652, %v348
        %v2654 = vpop.permute.xlu0 %2653
        %2655 = vset.pattern.permute.xlu0 82
        %2656 = vperm.xlu0 %2655, %v349
        %v2657 = vpop.permute.xlu0 %2656
        %vm2658 = vcmp.eq.s32.totalorder %v2648, 1
        %vm2659 = vcmp.eq.s32.totalorder %v2651, 1
        %vm2660 = vcmp.eq.s32.totalorder %v2654, 1
        %vm2661 = vcmp.eq.s32.totalorder %v2657, 1
        %v2662 = vlaneseq
        %v2663 = vshrl.u32 %v2662, 7
        %v2664 = vsub.s32 2, %v2663
        %v2665 = vrot.slane %v332, %v2664
        %v2666 = vsel %vm2658, %v2665, -1e+30
        %v2667 = vsel %vm2659, %v2665, -1e+30
        %v2668 = vsel %vm2660, %v2665, -1e+30
        %v2669 = vsel %vm2661, %v2665, -1e+30
        %v2670 = vmax.f32 %v2642, %v2666
        %v2671 = vmax.f32 %v2643, %v2667
        %v2672 = vmax.f32 %v2644, %v2668
        %v2673 = vmax.f32 %v2645, %v2669
        %2674 = vset.pattern.permute.xlu0 83
        %2675 = vperm.xlu0 %2674, %v346
        %v2676 = vpop.permute.xlu0 %2675
        %2677 = vset.pattern.permute.xlu0 83
        %2678 = vperm.xlu0 %2677, %v347
        %v2679 = vpop.permute.xlu0 %2678
        %2680 = vset.pattern.permute.xlu0 83
        %2681 = vperm.xlu0 %2680, %v348
        %v2682 = vpop.permute.xlu0 %2681
        %2683 = vset.pattern.permute.xlu0 83
        %2684 = vperm.xlu0 %2683, %v349
        %v2685 = vpop.permute.xlu0 %2684
        %vm2686 = vcmp.eq.s32.totalorder %v2676, 1
        %vm2687 = vcmp.eq.s32.totalorder %v2679, 1
        %vm2688 = vcmp.eq.s32.totalorder %v2682, 1
        %vm2689 = vcmp.eq.s32.totalorder %v2685, 1
        %v2690 = vlaneseq
        %v2691 = vshrl.u32 %v2690, 7
        %v2692 = vsub.s32 3, %v2691
        %v2693 = vrot.slane %v332, %v2692
        %v2694 = vsel %vm2686, %v2693, -1e+30
        %v2695 = vsel %vm2687, %v2693, -1e+30
        %v2696 = vsel %vm2688, %v2693, -1e+30
        %v2697 = vsel %vm2689, %v2693, -1e+30
        %v2698 = vmax.f32 %v2670, %v2694
        %v2699 = vmax.f32 %v2671, %v2695
        %v2700 = vmax.f32 %v2672, %v2696
        %v2701 = vmax.f32 %v2673, %v2697
        %2702 = vset.pattern.permute.xlu0 84
        %2703 = vperm.xlu0 %2702, %v346
        %v2704 = vpop.permute.xlu0 %2703
        %2705 = vset.pattern.permute.xlu0 84
        %2706 = vperm.xlu0 %2705, %v347
        %v2707 = vpop.permute.xlu0 %2706
        %2708 = vset.pattern.permute.xlu0 84
        %2709 = vperm.xlu0 %2708, %v348
        %v2710 = vpop.permute.xlu0 %2709
        %2711 = vset.pattern.permute.xlu0 84
        %2712 = vperm.xlu0 %2711, %v349
        %v2713 = vpop.permute.xlu0 %2712
        %vm2714 = vcmp.eq.s32.totalorder %v2704, 1
        %vm2715 = vcmp.eq.s32.totalorder %v2707, 1
        %vm2716 = vcmp.eq.s32.totalorder %v2710, 1
        %vm2717 = vcmp.eq.s32.totalorder %v2713, 1
        %v2718 = vlaneseq
        %v2719 = vshrl.u32 %v2718, 7
        %v2720 = vsub.s32 4, %v2719
        %v2721 = vrot.slane %v332, %v2720
        %v2722 = vsel %vm2714, %v2721, -1e+30
        %v2723 = vsel %vm2715, %v2721, -1e+30
        %v2724 = vsel %vm2716, %v2721, -1e+30
        %v2725 = vsel %vm2717, %v2721, -1e+30
        %v2726 = vmax.f32 %v2698, %v2722
        %v2727 = vmax.f32 %v2699, %v2723
        %v2728 = vmax.f32 %v2700, %v2724
        %v2729 = vmax.f32 %v2701, %v2725
        %2730 = vset.pattern.permute.xlu0 85
        %2731 = vperm.xlu0 %2730, %v346
        %v2732 = vpop.permute.xlu0 %2731
        %2733 = vset.pattern.permute.xlu0 85
        %2734 = vperm.xlu0 %2733, %v347
        %v2735 = vpop.permute.xlu0 %2734
        %2736 = vset.pattern.permute.xlu0 85
        %2737 = vperm.xlu0 %2736, %v348
        %v2738 = vpop.permute.xlu0 %2737
        %2739 = vset.pattern.permute.xlu0 85
        %2740 = vperm.xlu0 %2739, %v349
        %v2741 = vpop.permute.xlu0 %2740
        %vm2742 = vcmp.eq.s32.totalorder %v2732, 1
        %vm2743 = vcmp.eq.s32.totalorder %v2735, 1
        %vm2744 = vcmp.eq.s32.totalorder %v2738, 1
        %vm2745 = vcmp.eq.s32.totalorder %v2741, 1
        %v2746 = vlaneseq
        %v2747 = vshrl.u32 %v2746, 7
        %v2748 = vsub.s32 5, %v2747
        %v2749 = vrot.slane %v332, %v2748
        %v2750 = vsel %vm2742, %v2749, -1e+30
        %v2751 = vsel %vm2743, %v2749, -1e+30
        %v2752 = vsel %vm2744, %v2749, -1e+30
        %v2753 = vsel %vm2745, %v2749, -1e+30
        %v2754 = vmax.f32 %v2726, %v2750
        %v2755 = vmax.f32 %v2727, %v2751
        %v2756 = vmax.f32 %v2728, %v2752
        %v2757 = vmax.f32 %v2729, %v2753
        %2758 = vset.pattern.permute.xlu0 86
        %2759 = vperm.xlu0 %2758, %v346
        %v2760 = vpop.permute.xlu0 %2759
        %2761 = vset.pattern.permute.xlu0 86
        %2762 = vperm.xlu0 %2761, %v347
        %v2763 = vpop.permute.xlu0 %2762
        %2764 = vset.pattern.permute.xlu0 86
        %2765 = vperm.xlu0 %2764, %v348
        %v2766 = vpop.permute.xlu0 %2765
        %2767 = vset.pattern.permute.xlu0 86
        %2768 = vperm.xlu0 %2767, %v349
        %v2769 = vpop.permute.xlu0 %2768
        %vm2770 = vcmp.eq.s32.totalorder %v2760, 1
        %vm2771 = vcmp.eq.s32.totalorder %v2763, 1
        %vm2772 = vcmp.eq.s32.totalorder %v2766, 1
        %vm2773 = vcmp.eq.s32.totalorder %v2769, 1
        %v2774 = vlaneseq
        %v2775 = vshrl.u32 %v2774, 7
        %v2776 = vsub.s32 6, %v2775
        %v2777 = vrot.slane %v332, %v2776
        %v2778 = vsel %vm2770, %v2777, -1e+30
        %v2779 = vsel %vm2771, %v2777, -1e+30
        %v2780 = vsel %vm2772, %v2777, -1e+30
        %v2781 = vsel %vm2773, %v2777, -1e+30
        %v2782 = vmax.f32 %v2754, %v2778
        %v2783 = vmax.f32 %v2755, %v2779
        %v2784 = vmax.f32 %v2756, %v2780
        %v2785 = vmax.f32 %v2757, %v2781
        %2786 = vset.pattern.permute.xlu0 87
        %2787 = vperm.xlu0 %2786, %v346
        %v2788 = vpop.permute.xlu0 %2787
        %2789 = vset.pattern.permute.xlu0 87
        %2790 = vperm.xlu0 %2789, %v347
        %v2791 = vpop.permute.xlu0 %2790
        %2792 = vset.pattern.permute.xlu0 87
        %2793 = vperm.xlu0 %2792, %v348
        %v2794 = vpop.permute.xlu0 %2793
        %2795 = vset.pattern.permute.xlu0 87
        %2796 = vperm.xlu0 %2795, %v349
        %v2797 = vpop.permute.xlu0 %2796
        %vm2798 = vcmp.eq.s32.totalorder %v2788, 1
        %vm2799 = vcmp.eq.s32.totalorder %v2791, 1
        %vm2800 = vcmp.eq.s32.totalorder %v2794, 1
        %vm2801 = vcmp.eq.s32.totalorder %v2797, 1
        %v2802 = vlaneseq
        %v2803 = vshrl.u32 %v2802, 7
        %v2804 = vsub.s32 7, %v2803
        %v2805 = vrot.slane %v332, %v2804
        %v2806 = vsel %vm2798, %v2805, -1e+30
        %v2807 = vsel %vm2799, %v2805, -1e+30
        %v2808 = vsel %vm2800, %v2805, -1e+30
        %v2809 = vsel %vm2801, %v2805, -1e+30
        %v2810 = vmax.f32 %v2782, %v2806
        %v2811 = vmax.f32 %v2783, %v2807
        %v2812 = vmax.f32 %v2784, %v2808
        %v2813 = vmax.f32 %v2785, %v2809
        %2814 = vset.pattern.permute.xlu0 88
        %2815 = vperm.xlu0 %2814, %v346
        %v2816 = vpop.permute.xlu0 %2815
        %2817 = vset.pattern.permute.xlu0 88
        %2818 = vperm.xlu0 %2817, %v347
        %v2819 = vpop.permute.xlu0 %2818
        %2820 = vset.pattern.permute.xlu0 88
        %2821 = vperm.xlu0 %2820, %v348
        %v2822 = vpop.permute.xlu0 %2821
        %2823 = vset.pattern.permute.xlu0 88
        %2824 = vperm.xlu0 %2823, %v349
        %v2825 = vpop.permute.xlu0 %2824
        %vm2826 = vcmp.eq.s32.totalorder %v2816, 1
        %vm2827 = vcmp.eq.s32.totalorder %v2819, 1
        %vm2828 = vcmp.eq.s32.totalorder %v2822, 1
        %vm2829 = vcmp.eq.s32.totalorder %v2825, 1
        %v2830 = vlaneseq
        %v2831 = vshrl.u32 %v2830, 7
        %v2832 = vsub.s32 0, %v2831
        %v2833 = vrot.slane %v333, %v2832
        %v2834 = vsel %vm2826, %v2833, -1e+30
        %v2835 = vsel %vm2827, %v2833, -1e+30
        %v2836 = vsel %vm2828, %v2833, -1e+30
        %v2837 = vsel %vm2829, %v2833, -1e+30
        %v2838 = vmax.f32 %v2810, %v2834
        %v2839 = vmax.f32 %v2811, %v2835
        %v2840 = vmax.f32 %v2812, %v2836
        %v2841 = vmax.f32 %v2813, %v2837
        %2842 = vset.pattern.permute.xlu0 89
        %2843 = vperm.xlu0 %2842, %v346
        %v2844 = vpop.permute.xlu0 %2843
        %2845 = vset.pattern.permute.xlu0 89
        %2846 = vperm.xlu0 %2845, %v347
        %v2847 = vpop.permute.xlu0 %2846
        %2848 = vset.pattern.permute.xlu0 89
        %2849 = vperm.xlu0 %2848, %v348
        %v2850 = vpop.permute.xlu0 %2849
        %2851 = vset.pattern.permute.xlu0 89
        %2852 = vperm.xlu0 %2851, %v349
        %v2853 = vpop.permute.xlu0 %2852
        %vm2854 = vcmp.eq.s32.totalorder %v2844, 1
        %vm2855 = vcmp.eq.s32.totalorder %v2847, 1
        %vm2856 = vcmp.eq.s32.totalorder %v2850, 1
        %vm2857 = vcmp.eq.s32.totalorder %v2853, 1
        %v2858 = vlaneseq
        %v2859 = vshrl.u32 %v2858, 7
        %v2860 = vsub.s32 1, %v2859
        %v2861 = vrot.slane %v333, %v2860
        %v2862 = vsel %vm2854, %v2861, -1e+30
        %v2863 = vsel %vm2855, %v2861, -1e+30
        %v2864 = vsel %vm2856, %v2861, -1e+30
        %v2865 = vsel %vm2857, %v2861, -1e+30
        %v2866 = vmax.f32 %v2838, %v2862
        %v2867 = vmax.f32 %v2839, %v2863
        %v2868 = vmax.f32 %v2840, %v2864
        %v2869 = vmax.f32 %v2841, %v2865
        %2870 = vset.pattern.permute.xlu0 90
        %2871 = vperm.xlu0 %2870, %v346
        %v2872 = vpop.permute.xlu0 %2871
        %2873 = vset.pattern.permute.xlu0 90
        %2874 = vperm.xlu0 %2873, %v347
        %v2875 = vpop.permute.xlu0 %2874
        %2876 = vset.pattern.permute.xlu0 90
        %2877 = vperm.xlu0 %2876, %v348
        %v2878 = vpop.permute.xlu0 %2877
        %2879 = vset.pattern.permute.xlu0 90
        %2880 = vperm.xlu0 %2879, %v349
        %v2881 = vpop.permute.xlu0 %2880
        %vm2882 = vcmp.eq.s32.totalorder %v2872, 1
        %vm2883 = vcmp.eq.s32.totalorder %v2875, 1
        %vm2884 = vcmp.eq.s32.totalorder %v2878, 1
        %vm2885 = vcmp.eq.s32.totalorder %v2881, 1
        %v2886 = vlaneseq
        %v2887 = vshrl.u32 %v2886, 7
        %v2888 = vsub.s32 2, %v2887
        %v2889 = vrot.slane %v333, %v2888
        %v2890 = vsel %vm2882, %v2889, -1e+30
        %v2891 = vsel %vm2883, %v2889, -1e+30
        %v2892 = vsel %vm2884, %v2889, -1e+30
        %v2893 = vsel %vm2885, %v2889, -1e+30
        %v2894 = vmax.f32 %v2866, %v2890
        %v2895 = vmax.f32 %v2867, %v2891
        %v2896 = vmax.f32 %v2868, %v2892
        %v2897 = vmax.f32 %v2869, %v2893
        %2898 = vset.pattern.permute.xlu0 91
        %2899 = vperm.xlu0 %2898, %v346
        %v2900 = vpop.permute.xlu0 %2899
        %2901 = vset.pattern.permute.xlu0 91
        %2902 = vperm.xlu0 %2901, %v347
        %v2903 = vpop.permute.xlu0 %2902
        %2904 = vset.pattern.permute.xlu0 91
        %2905 = vperm.xlu0 %2904, %v348
        %v2906 = vpop.permute.xlu0 %2905
        %2907 = vset.pattern.permute.xlu0 91
        %2908 = vperm.xlu0 %2907, %v349
        %v2909 = vpop.permute.xlu0 %2908
        %vm2910 = vcmp.eq.s32.totalorder %v2900, 1
        %vm2911 = vcmp.eq.s32.totalorder %v2903, 1
        %vm2912 = vcmp.eq.s32.totalorder %v2906, 1
        %vm2913 = vcmp.eq.s32.totalorder %v2909, 1
        %v2914 = vlaneseq
        %v2915 = vshrl.u32 %v2914, 7
        %v2916 = vsub.s32 3, %v2915
        %v2917 = vrot.slane %v333, %v2916
        %v2918 = vsel %vm2910, %v2917, -1e+30
        %v2919 = vsel %vm2911, %v2917, -1e+30
        %v2920 = vsel %vm2912, %v2917, -1e+30
        %v2921 = vsel %vm2913, %v2917, -1e+30
        %v2922 = vmax.f32 %v2894, %v2918
        %v2923 = vmax.f32 %v2895, %v2919
        %v2924 = vmax.f32 %v2896, %v2920
        %v2925 = vmax.f32 %v2897, %v2921
        %2926 = vset.pattern.permute.xlu0 92
        %2927 = vperm.xlu0 %2926, %v346
        %v2928 = vpop.permute.xlu0 %2927
        %2929 = vset.pattern.permute.xlu0 92
        %2930 = vperm.xlu0 %2929, %v347
        %v2931 = vpop.permute.xlu0 %2930
        %2932 = vset.pattern.permute.xlu0 92
        %2933 = vperm.xlu0 %2932, %v348
        %v2934 = vpop.permute.xlu0 %2933
        %2935 = vset.pattern.permute.xlu0 92
        %2936 = vperm.xlu0 %2935, %v349
        %v2937 = vpop.permute.xlu0 %2936
        %vm2938 = vcmp.eq.s32.totalorder %v2928, 1
        %vm2939 = vcmp.eq.s32.totalorder %v2931, 1
        %vm2940 = vcmp.eq.s32.totalorder %v2934, 1
        %vm2941 = vcmp.eq.s32.totalorder %v2937, 1
        %v2942 = vlaneseq
        %v2943 = vshrl.u32 %v2942, 7
        %v2944 = vsub.s32 4, %v2943
        %v2945 = vrot.slane %v333, %v2944
        %v2946 = vsel %vm2938, %v2945, -1e+30
        %v2947 = vsel %vm2939, %v2945, -1e+30
        %v2948 = vsel %vm2940, %v2945, -1e+30
        %v2949 = vsel %vm2941, %v2945, -1e+30
        %v2950 = vmax.f32 %v2922, %v2946
        %v2951 = vmax.f32 %v2923, %v2947
        %v2952 = vmax.f32 %v2924, %v2948
        %v2953 = vmax.f32 %v2925, %v2949
        %2954 = vset.pattern.permute.xlu0 93
        %2955 = vperm.xlu0 %2954, %v346
        %v2956 = vpop.permute.xlu0 %2955
        %2957 = vset.pattern.permute.xlu0 93
        %2958 = vperm.xlu0 %2957, %v347
        %v2959 = vpop.permute.xlu0 %2958
        %2960 = vset.pattern.permute.xlu0 93
        %2961 = vperm.xlu0 %2960, %v348
        %v2962 = vpop.permute.xlu0 %2961
        %2963 = vset.pattern.permute.xlu0 93
        %2964 = vperm.xlu0 %2963, %v349
        %v2965 = vpop.permute.xlu0 %2964
        %vm2966 = vcmp.eq.s32.totalorder %v2956, 1
        %vm2967 = vcmp.eq.s32.totalorder %v2959, 1
        %vm2968 = vcmp.eq.s32.totalorder %v2962, 1
        %vm2969 = vcmp.eq.s32.totalorder %v2965, 1
        %v2970 = vlaneseq
        %v2971 = vshrl.u32 %v2970, 7
        %v2972 = vsub.s32 5, %v2971
        %v2973 = vrot.slane %v333, %v2972
        %v2974 = vsel %vm2966, %v2973, -1e+30
        %v2975 = vsel %vm2967, %v2973, -1e+30
        %v2976 = vsel %vm2968, %v2973, -1e+30
        %v2977 = vsel %vm2969, %v2973, -1e+30
        %v2978 = vmax.f32 %v2950, %v2974
        %v2979 = vmax.f32 %v2951, %v2975
        %v2980 = vmax.f32 %v2952, %v2976
        %v2981 = vmax.f32 %v2953, %v2977
        %2982 = vset.pattern.permute.xlu0 94
        %2983 = vperm.xlu0 %2982, %v346
        %v2984 = vpop.permute.xlu0 %2983
        %2985 = vset.pattern.permute.xlu0 94
        %2986 = vperm.xlu0 %2985, %v347
        %v2987 = vpop.permute.xlu0 %2986
        %2988 = vset.pattern.permute.xlu0 94
        %2989 = vperm.xlu0 %2988, %v348
        %v2990 = vpop.permute.xlu0 %2989
        %2991 = vset.pattern.permute.xlu0 94
        %2992 = vperm.xlu0 %2991, %v349
        %v2993 = vpop.permute.xlu0 %2992
        %vm2994 = vcmp.eq.s32.totalorder %v2984, 1
        %vm2995 = vcmp.eq.s32.totalorder %v2987, 1
        %vm2996 = vcmp.eq.s32.totalorder %v2990, 1
        %vm2997 = vcmp.eq.s32.totalorder %v2993, 1
        %v2998 = vlaneseq
        %v2999 = vshrl.u32 %v2998, 7
        %v3000 = vsub.s32 6, %v2999
        %v3001 = vrot.slane %v333, %v3000
        %v3002 = vsel %vm2994, %v3001, -1e+30
        %v3003 = vsel %vm2995, %v3001, -1e+30
        %v3004 = vsel %vm2996, %v3001, -1e+30
        %v3005 = vsel %vm2997, %v3001, -1e+30
        %v3006 = vmax.f32 %v2978, %v3002
        %v3007 = vmax.f32 %v2979, %v3003
        %v3008 = vmax.f32 %v2980, %v3004
        %v3009 = vmax.f32 %v2981, %v3005
        %3010 = vset.pattern.permute.xlu0 95
        %3011 = vperm.xlu0 %3010, %v346
        %v3012 = vpop.permute.xlu0 %3011
        %3013 = vset.pattern.permute.xlu0 95
        %3014 = vperm.xlu0 %3013, %v347
        %v3015 = vpop.permute.xlu0 %3014
        %3016 = vset.pattern.permute.xlu0 95
        %3017 = vperm.xlu0 %3016, %v348
        %v3018 = vpop.permute.xlu0 %3017
        %3019 = vset.pattern.permute.xlu0 95
        %3020 = vperm.xlu0 %3019, %v349
        %v3021 = vpop.permute.xlu0 %3020
        %vm3022 = vcmp.eq.s32.totalorder %v3012, 1
        %vm3023 = vcmp.eq.s32.totalorder %v3015, 1
        %vm3024 = vcmp.eq.s32.totalorder %v3018, 1
        %vm3025 = vcmp.eq.s32.totalorder %v3021, 1
        %v3026 = vlaneseq
        %v3027 = vshrl.u32 %v3026, 7
        %v3028 = vsub.s32 7, %v3027
        %v3029 = vrot.slane %v333, %v3028
        %v3030 = vsel %vm3022, %v3029, -1e+30
        %v3031 = vsel %vm3023, %v3029, -1e+30
        %v3032 = vsel %vm3024, %v3029, -1e+30
        %v3033 = vsel %vm3025, %v3029, -1e+30
        %v3034 = vmax.f32 %v3006, %v3030
        %v3035 = vmax.f32 %v3007, %v3031
        %v3036 = vmax.f32 %v3008, %v3032
        %v3037 = vmax.f32 %v3009, %v3033
        %3038 = vset.pattern.permute.xlu0 96
        %3039 = vperm.xlu0 %3038, %v346
        %v3040 = vpop.permute.xlu0 %3039
        %3041 = vset.pattern.permute.xlu0 96
        %3042 = vperm.xlu0 %3041, %v347
        %v3043 = vpop.permute.xlu0 %3042
        %3044 = vset.pattern.permute.xlu0 96
        %3045 = vperm.xlu0 %3044, %v348
        %v3046 = vpop.permute.xlu0 %3045
        %3047 = vset.pattern.permute.xlu0 96
        %3048 = vperm.xlu0 %3047, %v349
        %v3049 = vpop.permute.xlu0 %3048
        %vm3050 = vcmp.eq.s32.totalorder %v3040, 1
        %vm3051 = vcmp.eq.s32.totalorder %v3043, 1
        %vm3052 = vcmp.eq.s32.totalorder %v3046, 1
        %vm3053 = vcmp.eq.s32.totalorder %v3049, 1
        %v3054 = vlaneseq
        %v3055 = vshrl.u32 %v3054, 7
        %v3056 = vsub.s32 0, %v3055
        %v3057 = vrot.slane %v334, %v3056
        %v3058 = vsel %vm3050, %v3057, -1e+30
        %v3059 = vsel %vm3051, %v3057, -1e+30
        %v3060 = vsel %vm3052, %v3057, -1e+30
        %v3061 = vsel %vm3053, %v3057, -1e+30
        %v3062 = vmax.f32 %v3034, %v3058
        %v3063 = vmax.f32 %v3035, %v3059
        %v3064 = vmax.f32 %v3036, %v3060
        %v3065 = vmax.f32 %v3037, %v3061
        %3066 = vset.pattern.permute.xlu0 97
        %3067 = vperm.xlu0 %3066, %v346
        %v3068 = vpop.permute.xlu0 %3067
        %3069 = vset.pattern.permute.xlu0 97
        %3070 = vperm.xlu0 %3069, %v347
        %v3071 = vpop.permute.xlu0 %3070
        %3072 = vset.pattern.permute.xlu0 97
        %3073 = vperm.xlu0 %3072, %v348
        %v3074 = vpop.permute.xlu0 %3073
        %3075 = vset.pattern.permute.xlu0 97
        %3076 = vperm.xlu0 %3075, %v349
        %v3077 = vpop.permute.xlu0 %3076
        %vm3078 = vcmp.eq.s32.totalorder %v3068, 1
        %vm3079 = vcmp.eq.s32.totalorder %v3071, 1
        %vm3080 = vcmp.eq.s32.totalorder %v3074, 1
        %vm3081 = vcmp.eq.s32.totalorder %v3077, 1
        %v3082 = vlaneseq
        %v3083 = vshrl.u32 %v3082, 7
        %v3084 = vsub.s32 1, %v3083
        %v3085 = vrot.slane %v334, %v3084
        %v3086 = vsel %vm3078, %v3085, -1e+30
        %v3087 = vsel %vm3079, %v3085, -1e+30
        %v3088 = vsel %vm3080, %v3085, -1e+30
        %v3089 = vsel %vm3081, %v3085, -1e+30
        %v3090 = vmax.f32 %v3062, %v3086
        %v3091 = vmax.f32 %v3063, %v3087
        %v3092 = vmax.f32 %v3064, %v3088
        %v3093 = vmax.f32 %v3065, %v3089
        %3094 = vset.pattern.permute.xlu0 98
        %3095 = vperm.xlu0 %3094, %v346
        %v3096 = vpop.permute.xlu0 %3095
        %3097 = vset.pattern.permute.xlu0 98
        %3098 = vperm.xlu0 %3097, %v347
        %v3099 = vpop.permute.xlu0 %3098
        %3100 = vset.pattern.permute.xlu0 98
        %3101 = vperm.xlu0 %3100, %v348
        %v3102 = vpop.permute.xlu0 %3101
        %3103 = vset.pattern.permute.xlu0 98
        %3104 = vperm.xlu0 %3103, %v349
        %v3105 = vpop.permute.xlu0 %3104
        %vm3106 = vcmp.eq.s32.totalorder %v3096, 1
        %vm3107 = vcmp.eq.s32.totalorder %v3099, 1
        %vm3108 = vcmp.eq.s32.totalorder %v3102, 1
        %vm3109 = vcmp.eq.s32.totalorder %v3105, 1
        %v3110 = vlaneseq
        %v3111 = vshrl.u32 %v3110, 7
        %v3112 = vsub.s32 2, %v3111
        %v3113 = vrot.slane %v334, %v3112
        %v3114 = vsel %vm3106, %v3113, -1e+30
        %v3115 = vsel %vm3107, %v3113, -1e+30
        %v3116 = vsel %vm3108, %v3113, -1e+30
        %v3117 = vsel %vm3109, %v3113, -1e+30
        %v3118 = vmax.f32 %v3090, %v3114
        %v3119 = vmax.f32 %v3091, %v3115
        %v3120 = vmax.f32 %v3092, %v3116
        %v3121 = vmax.f32 %v3093, %v3117
        %3122 = vset.pattern.permute.xlu0 99
        %3123 = vperm.xlu0 %3122, %v346
        %v3124 = vpop.permute.xlu0 %3123
        %3125 = vset.pattern.permute.xlu0 99
        %3126 = vperm.xlu0 %3125, %v347
        %v3127 = vpop.permute.xlu0 %3126
        %3128 = vset.pattern.permute.xlu0 99
        %3129 = vperm.xlu0 %3128, %v348
        %v3130 = vpop.permute.xlu0 %3129
        %3131 = vset.pattern.permute.xlu0 99
        %3132 = vperm.xlu0 %3131, %v349
        %v3133 = vpop.permute.xlu0 %3132
        %vm3134 = vcmp.eq.s32.totalorder %v3124, 1
        %vm3135 = vcmp.eq.s32.totalorder %v3127, 1
        %vm3136 = vcmp.eq.s32.totalorder %v3130, 1
        %vm3137 = vcmp.eq.s32.totalorder %v3133, 1
        %v3138 = vlaneseq
        %v3139 = vshrl.u32 %v3138, 7
        %v3140 = vsub.s32 3, %v3139
        %v3141 = vrot.slane %v334, %v3140
        %v3142 = vsel %vm3134, %v3141, -1e+30
        %v3143 = vsel %vm3135, %v3141, -1e+30
        %v3144 = vsel %vm3136, %v3141, -1e+30
        %v3145 = vsel %vm3137, %v3141, -1e+30
        %v3146 = vmax.f32 %v3118, %v3142
        %v3147 = vmax.f32 %v3119, %v3143
        %v3148 = vmax.f32 %v3120, %v3144
        %v3149 = vmax.f32 %v3121, %v3145
        %3150 = vset.pattern.permute.xlu0 100
        %3151 = vperm.xlu0 %3150, %v346
        %v3152 = vpop.permute.xlu0 %3151
        %3153 = vset.pattern.permute.xlu0 100
        %3154 = vperm.xlu0 %3153, %v347
        %v3155 = vpop.permute.xlu0 %3154
        %3156 = vset.pattern.permute.xlu0 100
        %3157 = vperm.xlu0 %3156, %v348
        %v3158 = vpop.permute.xlu0 %3157
        %3159 = vset.pattern.permute.xlu0 100
        %3160 = vperm.xlu0 %3159, %v349
        %v3161 = vpop.permute.xlu0 %3160
        %vm3162 = vcmp.eq.s32.totalorder %v3152, 1
        %vm3163 = vcmp.eq.s32.totalorder %v3155, 1
        %vm3164 = vcmp.eq.s32.totalorder %v3158, 1
        %vm3165 = vcmp.eq.s32.totalorder %v3161, 1
        %v3166 = vlaneseq
        %v3167 = vshrl.u32 %v3166, 7
        %v3168 = vsub.s32 4, %v3167
        %v3169 = vrot.slane %v334, %v3168
        %v3170 = vsel %vm3162, %v3169, -1e+30
        %v3171 = vsel %vm3163, %v3169, -1e+30
        %v3172 = vsel %vm3164, %v3169, -1e+30
        %v3173 = vsel %vm3165, %v3169, -1e+30
        %v3174 = vmax.f32 %v3146, %v3170
        %v3175 = vmax.f32 %v3147, %v3171
        %v3176 = vmax.f32 %v3148, %v3172
        %v3177 = vmax.f32 %v3149, %v3173
        %3178 = vset.pattern.permute.xlu0 101
        %3179 = vperm.xlu0 %3178, %v346
        %v3180 = vpop.permute.xlu0 %3179
        %3181 = vset.pattern.permute.xlu0 101
        %3182 = vperm.xlu0 %3181, %v347
        %v3183 = vpop.permute.xlu0 %3182
        %3184 = vset.pattern.permute.xlu0 101
        %3185 = vperm.xlu0 %3184, %v348
        %v3186 = vpop.permute.xlu0 %3185
        %3187 = vset.pattern.permute.xlu0 101
        %3188 = vperm.xlu0 %3187, %v349
        %v3189 = vpop.permute.xlu0 %3188
        %vm3190 = vcmp.eq.s32.totalorder %v3180, 1
        %vm3191 = vcmp.eq.s32.totalorder %v3183, 1
        %vm3192 = vcmp.eq.s32.totalorder %v3186, 1
        %vm3193 = vcmp.eq.s32.totalorder %v3189, 1
        %v3194 = vlaneseq
        %v3195 = vshrl.u32 %v3194, 7
        %v3196 = vsub.s32 5, %v3195
        %v3197 = vrot.slane %v334, %v3196
        %v3198 = vsel %vm3190, %v3197, -1e+30
        %v3199 = vsel %vm3191, %v3197, -1e+30
        %v3200 = vsel %vm3192, %v3197, -1e+30
        %v3201 = vsel %vm3193, %v3197, -1e+30
        %v3202 = vmax.f32 %v3174, %v3198
        %v3203 = vmax.f32 %v3175, %v3199
        %v3204 = vmax.f32 %v3176, %v3200
        %v3205 = vmax.f32 %v3177, %v3201
        %3206 = vset.pattern.permute.xlu0 102
        %3207 = vperm.xlu0 %3206, %v346
        %v3208 = vpop.permute.xlu0 %3207
        %3209 = vset.pattern.permute.xlu0 102
        %3210 = vperm.xlu0 %3209, %v347
        %v3211 = vpop.permute.xlu0 %3210
        %3212 = vset.pattern.permute.xlu0 102
        %3213 = vperm.xlu0 %3212, %v348
        %v3214 = vpop.permute.xlu0 %3213
        %3215 = vset.pattern.permute.xlu0 102
        %3216 = vperm.xlu0 %3215, %v349
        %v3217 = vpop.permute.xlu0 %3216
        %vm3218 = vcmp.eq.s32.totalorder %v3208, 1
        %vm3219 = vcmp.eq.s32.totalorder %v3211, 1
        %vm3220 = vcmp.eq.s32.totalorder %v3214, 1
        %vm3221 = vcmp.eq.s32.totalorder %v3217, 1
        %v3222 = vlaneseq
        %v3223 = vshrl.u32 %v3222, 7
        %v3224 = vsub.s32 6, %v3223
        %v3225 = vrot.slane %v334, %v3224
        %v3226 = vsel %vm3218, %v3225, -1e+30
        %v3227 = vsel %vm3219, %v3225, -1e+30
        %v3228 = vsel %vm3220, %v3225, -1e+30
        %v3229 = vsel %vm3221, %v3225, -1e+30
        %v3230 = vmax.f32 %v3202, %v3226
        %v3231 = vmax.f32 %v3203, %v3227
        %v3232 = vmax.f32 %v3204, %v3228
        %v3233 = vmax.f32 %v3205, %v3229
        %3234 = vset.pattern.permute.xlu0 103
        %3235 = vperm.xlu0 %3234, %v346
        %v3236 = vpop.permute.xlu0 %3235
        %3237 = vset.pattern.permute.xlu0 103
        %3238 = vperm.xlu0 %3237, %v347
        %v3239 = vpop.permute.xlu0 %3238
        %3240 = vset.pattern.permute.xlu0 103
        %3241 = vperm.xlu0 %3240, %v348
        %v3242 = vpop.permute.xlu0 %3241
        %3243 = vset.pattern.permute.xlu0 103
        %3244 = vperm.xlu0 %3243, %v349
        %v3245 = vpop.permute.xlu0 %3244
        %vm3246 = vcmp.eq.s32.totalorder %v3236, 1
        %vm3247 = vcmp.eq.s32.totalorder %v3239, 1
        %vm3248 = vcmp.eq.s32.totalorder %v3242, 1
        %vm3249 = vcmp.eq.s32.totalorder %v3245, 1
        %v3250 = vlaneseq
        %v3251 = vshrl.u32 %v3250, 7
        %v3252 = vsub.s32 7, %v3251
        %v3253 = vrot.slane %v334, %v3252
        %v3254 = vsel %vm3246, %v3253, -1e+30
        %v3255 = vsel %vm3247, %v3253, -1e+30
        %v3256 = vsel %vm3248, %v3253, -1e+30
        %v3257 = vsel %vm3249, %v3253, -1e+30
        %v3258 = vmax.f32 %v3230, %v3254
        %v3259 = vmax.f32 %v3231, %v3255
        %v3260 = vmax.f32 %v3232, %v3256
        %v3261 = vmax.f32 %v3233, %v3257
        %3262 = vset.pattern.permute.xlu0 104
        %3263 = vperm.xlu0 %3262, %v346
        %v3264 = vpop.permute.xlu0 %3263
        %3265 = vset.pattern.permute.xlu0 104
        %3266 = vperm.xlu0 %3265, %v347
        %v3267 = vpop.permute.xlu0 %3266
        %3268 = vset.pattern.permute.xlu0 104
        %3269 = vperm.xlu0 %3268, %v348
        %v3270 = vpop.permute.xlu0 %3269
        %3271 = vset.pattern.permute.xlu0 104
        %3272 = vperm.xlu0 %3271, %v349
        %v3273 = vpop.permute.xlu0 %3272
        %vm3274 = vcmp.eq.s32.totalorder %v3264, 1
        %vm3275 = vcmp.eq.s32.totalorder %v3267, 1
        %vm3276 = vcmp.eq.s32.totalorder %v3270, 1
        %vm3277 = vcmp.eq.s32.totalorder %v3273, 1
        %v3278 = vlaneseq
        %v3279 = vshrl.u32 %v3278, 7
        %v3280 = vsub.s32 0, %v3279
        %v3281 = vrot.slane %v335, %v3280
        %v3282 = vsel %vm3274, %v3281, -1e+30
        %v3283 = vsel %vm3275, %v3281, -1e+30
        %v3284 = vsel %vm3276, %v3281, -1e+30
        %v3285 = vsel %vm3277, %v3281, -1e+30
        %v3286 = vmax.f32 %v3258, %v3282
        %v3287 = vmax.f32 %v3259, %v3283
        %v3288 = vmax.f32 %v3260, %v3284
        %v3289 = vmax.f32 %v3261, %v3285
        %3290 = vset.pattern.permute.xlu0 105
        %3291 = vperm.xlu0 %3290, %v346
        %v3292 = vpop.permute.xlu0 %3291
        %3293 = vset.pattern.permute.xlu0 105
        %3294 = vperm.xlu0 %3293, %v347
        %v3295 = vpop.permute.xlu0 %3294
        %3296 = vset.pattern.permute.xlu0 105
        %3297 = vperm.xlu0 %3296, %v348
        %v3298 = vpop.permute.xlu0 %3297
        %3299 = vset.pattern.permute.xlu0 105
        %3300 = vperm.xlu0 %3299, %v349
        %v3301 = vpop.permute.xlu0 %3300
        %vm3302 = vcmp.eq.s32.totalorder %v3292, 1
        %vm3303 = vcmp.eq.s32.totalorder %v3295, 1
        %vm3304 = vcmp.eq.s32.totalorder %v3298, 1
        %vm3305 = vcmp.eq.s32.totalorder %v3301, 1
        %v3306 = vlaneseq
        %v3307 = vshrl.u32 %v3306, 7
        %v3308 = vsub.s32 1, %v3307
        %v3309 = vrot.slane %v335, %v3308
        %v3310 = vsel %vm3302, %v3309, -1e+30
        %v3311 = vsel %vm3303, %v3309, -1e+30
        %v3312 = vsel %vm3304, %v3309, -1e+30
        %v3313 = vsel %vm3305, %v3309, -1e+30
        %v3314 = vmax.f32 %v3286, %v3310
        %v3315 = vmax.f32 %v3287, %v3311
        %v3316 = vmax.f32 %v3288, %v3312
        %v3317 = vmax.f32 %v3289, %v3313
        %3318 = vset.pattern.permute.xlu0 106
        %3319 = vperm.xlu0 %3318, %v346
        %v3320 = vpop.permute.xlu0 %3319
        %3321 = vset.pattern.permute.xlu0 106
        %3322 = vperm.xlu0 %3321, %v347
        %v3323 = vpop.permute.xlu0 %3322
        %3324 = vset.pattern.permute.xlu0 106
        %3325 = vperm.xlu0 %3324, %v348
        %v3326 = vpop.permute.xlu0 %3325
        %3327 = vset.pattern.permute.xlu0 106
        %3328 = vperm.xlu0 %3327, %v349
        %v3329 = vpop.permute.xlu0 %3328
        %vm3330 = vcmp.eq.s32.totalorder %v3320, 1
        %vm3331 = vcmp.eq.s32.totalorder %v3323, 1
        %vm3332 = vcmp.eq.s32.totalorder %v3326, 1
        %vm3333 = vcmp.eq.s32.totalorder %v3329, 1
        %v3334 = vlaneseq
        %v3335 = vshrl.u32 %v3334, 7
        %v3336 = vsub.s32 2, %v3335
        %v3337 = vrot.slane %v335, %v3336
        %v3338 = vsel %vm3330, %v3337, -1e+30
        %v3339 = vsel %vm3331, %v3337, -1e+30
        %v3340 = vsel %vm3332, %v3337, -1e+30
        %v3341 = vsel %vm3333, %v3337, -1e+30
        %v3342 = vmax.f32 %v3314, %v3338
        %v3343 = vmax.f32 %v3315, %v3339
        %v3344 = vmax.f32 %v3316, %v3340
        %v3345 = vmax.f32 %v3317, %v3341
        %3346 = vset.pattern.permute.xlu0 107
        %3347 = vperm.xlu0 %3346, %v346
        %v3348 = vpop.permute.xlu0 %3347
        %3349 = vset.pattern.permute.xlu0 107
        %3350 = vperm.xlu0 %3349, %v347
        %v3351 = vpop.permute.xlu0 %3350
        %3352 = vset.pattern.permute.xlu0 107
        %3353 = vperm.xlu0 %3352, %v348
        %v3354 = vpop.permute.xlu0 %3353
        %3355 = vset.pattern.permute.xlu0 107
        %3356 = vperm.xlu0 %3355, %v349
        %v3357 = vpop.permute.xlu0 %3356
        %vm3358 = vcmp.eq.s32.totalorder %v3348, 1
        %vm3359 = vcmp.eq.s32.totalorder %v3351, 1
        %vm3360 = vcmp.eq.s32.totalorder %v3354, 1
        %vm3361 = vcmp.eq.s32.totalorder %v3357, 1
        %v3362 = vlaneseq
        %v3363 = vshrl.u32 %v3362, 7
        %v3364 = vsub.s32 3, %v3363
        %v3365 = vrot.slane %v335, %v3364
        %v3366 = vsel %vm3358, %v3365, -1e+30
        %v3367 = vsel %vm3359, %v3365, -1e+30
        %v3368 = vsel %vm3360, %v3365, -1e+30
        %v3369 = vsel %vm3361, %v3365, -1e+30
        %v3370 = vmax.f32 %v3342, %v3366
        %v3371 = vmax.f32 %v3343, %v3367
        %v3372 = vmax.f32 %v3344, %v3368
        %v3373 = vmax.f32 %v3345, %v3369
        %3374 = vset.pattern.permute.xlu0 108
        %3375 = vperm.xlu0 %3374, %v346
        %v3376 = vpop.permute.xlu0 %3375
        %3377 = vset.pattern.permute.xlu0 108
        %3378 = vperm.xlu0 %3377, %v347
        %v3379 = vpop.permute.xlu0 %3378
        %3380 = vset.pattern.permute.xlu0 108
        %3381 = vperm.xlu0 %3380, %v348
        %v3382 = vpop.permute.xlu0 %3381
        %3383 = vset.pattern.permute.xlu0 108
        %3384 = vperm.xlu0 %3383, %v349
        %v3385 = vpop.permute.xlu0 %3384
        %vm3386 = vcmp.eq.s32.totalorder %v3376, 1
        %vm3387 = vcmp.eq.s32.totalorder %v3379, 1
        %vm3388 = vcmp.eq.s32.totalorder %v3382, 1
        %vm3389 = vcmp.eq.s32.totalorder %v3385, 1
        %v3390 = vlaneseq
        %v3391 = vshrl.u32 %v3390, 7
        %v3392 = vsub.s32 4, %v3391
        %v3393 = vrot.slane %v335, %v3392
        %v3394 = vsel %vm3386, %v3393, -1e+30
        %v3395 = vsel %vm3387, %v3393, -1e+30
        %v3396 = vsel %vm3388, %v3393, -1e+30
        %v3397 = vsel %vm3389, %v3393, -1e+30
        %v3398 = vmax.f32 %v3370, %v3394
        %v3399 = vmax.f32 %v3371, %v3395
        %v3400 = vmax.f32 %v3372, %v3396
        %v3401 = vmax.f32 %v3373, %v3397
        %3402 = vset.pattern.permute.xlu0 109
        %3403 = vperm.xlu0 %3402, %v346
        %v3404 = vpop.permute.xlu0 %3403
        %3405 = vset.pattern.permute.xlu0 109
        %3406 = vperm.xlu0 %3405, %v347
        %v3407 = vpop.permute.xlu0 %3406
        %3408 = vset.pattern.permute.xlu0 109
        %3409 = vperm.xlu0 %3408, %v348
        %v3410 = vpop.permute.xlu0 %3409
        %3411 = vset.pattern.permute.xlu0 109
        %3412 = vperm.xlu0 %3411, %v349
        %v3413 = vpop.permute.xlu0 %3412
        %vm3414 = vcmp.eq.s32.totalorder %v3404, 1
        %vm3415 = vcmp.eq.s32.totalorder %v3407, 1
        %vm3416 = vcmp.eq.s32.totalorder %v3410, 1
        %vm3417 = vcmp.eq.s32.totalorder %v3413, 1
        %v3418 = vlaneseq
        %v3419 = vshrl.u32 %v3418, 7
        %v3420 = vsub.s32 5, %v3419
        %v3421 = vrot.slane %v335, %v3420
        %v3422 = vsel %vm3414, %v3421, -1e+30
        %v3423 = vsel %vm3415, %v3421, -1e+30
        %v3424 = vsel %vm3416, %v3421, -1e+30
        %v3425 = vsel %vm3417, %v3421, -1e+30
        %v3426 = vmax.f32 %v3398, %v3422
        %v3427 = vmax.f32 %v3399, %v3423
        %v3428 = vmax.f32 %v3400, %v3424
        %v3429 = vmax.f32 %v3401, %v3425
        %3430 = vset.pattern.permute.xlu0 110
        %3431 = vperm.xlu0 %3430, %v346
        %v3432 = vpop.permute.xlu0 %3431
        %3433 = vset.pattern.permute.xlu0 110
        %3434 = vperm.xlu0 %3433, %v347
        %v3435 = vpop.permute.xlu0 %3434
        %3436 = vset.pattern.permute.xlu0 110
        %3437 = vperm.xlu0 %3436, %v348
        %v3438 = vpop.permute.xlu0 %3437
        %3439 = vset.pattern.permute.xlu0 110
        %3440 = vperm.xlu0 %3439, %v349
        %v3441 = vpop.permute.xlu0 %3440
        %vm3442 = vcmp.eq.s32.totalorder %v3432, 1
        %vm3443 = vcmp.eq.s32.totalorder %v3435, 1
        %vm3444 = vcmp.eq.s32.totalorder %v3438, 1
        %vm3445 = vcmp.eq.s32.totalorder %v3441, 1
        %v3446 = vlaneseq
        %v3447 = vshrl.u32 %v3446, 7
        %v3448 = vsub.s32 6, %v3447
        %v3449 = vrot.slane %v335, %v3448
        %v3450 = vsel %vm3442, %v3449, -1e+30
        %v3451 = vsel %vm3443, %v3449, -1e+30
        %v3452 = vsel %vm3444, %v3449, -1e+30
        %v3453 = vsel %vm3445, %v3449, -1e+30
        %v3454 = vmax.f32 %v3426, %v3450
        %v3455 = vmax.f32 %v3427, %v3451
        %v3456 = vmax.f32 %v3428, %v3452
        %v3457 = vmax.f32 %v3429, %v3453
        %3458 = vset.pattern.permute.xlu0 111
        %3459 = vperm.xlu0 %3458, %v346
        %v3460 = vpop.permute.xlu0 %3459
        %3461 = vset.pattern.permute.xlu0 111
        %3462 = vperm.xlu0 %3461, %v347
        %v3463 = vpop.permute.xlu0 %3462
        %3464 = vset.pattern.permute.xlu0 111
        %3465 = vperm.xlu0 %3464, %v348
        %v3466 = vpop.permute.xlu0 %3465
        %3467 = vset.pattern.permute.xlu0 111
        %3468 = vperm.xlu0 %3467, %v349
        %v3469 = vpop.permute.xlu0 %3468
        %vm3470 = vcmp.eq.s32.totalorder %v3460, 1
        %vm3471 = vcmp.eq.s32.totalorder %v3463, 1
        %vm3472 = vcmp.eq.s32.totalorder %v3466, 1
        %vm3473 = vcmp.eq.s32.totalorder %v3469, 1
        %v3474 = vlaneseq
        %v3475 = vshrl.u32 %v3474, 7
        %v3476 = vsub.s32 7, %v3475
        %v3477 = vrot.slane %v335, %v3476
        %v3478 = vsel %vm3470, %v3477, -1e+30
        %v3479 = vsel %vm3471, %v3477, -1e+30
        %v3480 = vsel %vm3472, %v3477, -1e+30
        %v3481 = vsel %vm3473, %v3477, -1e+30
        %v3482 = vmax.f32 %v3454, %v3478
        %v3483 = vmax.f32 %v3455, %v3479
        %v3484 = vmax.f32 %v3456, %v3480
        %v3485 = vmax.f32 %v3457, %v3481
        %3486 = vset.pattern.permute.xlu0 112
        %3487 = vperm.xlu0 %3486, %v346
        %v3488 = vpop.permute.xlu0 %3487
        %3489 = vset.pattern.permute.xlu0 112
        %3490 = vperm.xlu0 %3489, %v347
        %v3491 = vpop.permute.xlu0 %3490
        %3492 = vset.pattern.permute.xlu0 112
        %3493 = vperm.xlu0 %3492, %v348
        %v3494 = vpop.permute.xlu0 %3493
        %3495 = vset.pattern.permute.xlu0 112
        %3496 = vperm.xlu0 %3495, %v349
        %v3497 = vpop.permute.xlu0 %3496
        %vm3498 = vcmp.eq.s32.totalorder %v3488, 1
        %vm3499 = vcmp.eq.s32.totalorder %v3491, 1
        %vm3500 = vcmp.eq.s32.totalorder %v3494, 1
        %vm3501 = vcmp.eq.s32.totalorder %v3497, 1
        %v3502 = vlaneseq
        %v3503 = vshrl.u32 %v3502, 7
        %v3504 = vsub.s32 0, %v3503
        %v3505 = vrot.slane %v336, %v3504
        %v3506 = vsel %vm3498, %v3505, -1e+30
        %v3507 = vsel %vm3499, %v3505, -1e+30
        %v3508 = vsel %vm3500, %v3505, -1e+30
        %v3509 = vsel %vm3501, %v3505, -1e+30
        %v3510 = vmax.f32 %v3482, %v3506
        %v3511 = vmax.f32 %v3483, %v3507
        %v3512 = vmax.f32 %v3484, %v3508
        %v3513 = vmax.f32 %v3485, %v3509
        %3514 = vset.pattern.permute.xlu0 113
        %3515 = vperm.xlu0 %3514, %v346
        %v3516 = vpop.permute.xlu0 %3515
        %3517 = vset.pattern.permute.xlu0 113
        %3518 = vperm.xlu0 %3517, %v347
        %v3519 = vpop.permute.xlu0 %3518
        %3520 = vset.pattern.permute.xlu0 113
        %3521 = vperm.xlu0 %3520, %v348
        %v3522 = vpop.permute.xlu0 %3521
        %3523 = vset.pattern.permute.xlu0 113
        %3524 = vperm.xlu0 %3523, %v349
        %v3525 = vpop.permute.xlu0 %3524
        %vm3526 = vcmp.eq.s32.totalorder %v3516, 1
        %vm3527 = vcmp.eq.s32.totalorder %v3519, 1
        %vm3528 = vcmp.eq.s32.totalorder %v3522, 1
        %vm3529 = vcmp.eq.s32.totalorder %v3525, 1
        %v3530 = vlaneseq
        %v3531 = vshrl.u32 %v3530, 7
        %v3532 = vsub.s32 1, %v3531
        %v3533 = vrot.slane %v336, %v3532
        %v3534 = vsel %vm3526, %v3533, -1e+30
        %v3535 = vsel %vm3527, %v3533, -1e+30
        %v3536 = vsel %vm3528, %v3533, -1e+30
        %v3537 = vsel %vm3529, %v3533, -1e+30
        %v3538 = vmax.f32 %v3510, %v3534
        %v3539 = vmax.f32 %v3511, %v3535
        %v3540 = vmax.f32 %v3512, %v3536
        %v3541 = vmax.f32 %v3513, %v3537
        %3542 = vset.pattern.permute.xlu0 114
        %3543 = vperm.xlu0 %3542, %v346
        %v3544 = vpop.permute.xlu0 %3543
        %3545 = vset.pattern.permute.xlu0 114
        %3546 = vperm.xlu0 %3545, %v347
        %v3547 = vpop.permute.xlu0 %3546
        %3548 = vset.pattern.permute.xlu0 114
        %3549 = vperm.xlu0 %3548, %v348
        %v3550 = vpop.permute.xlu0 %3549
        %3551 = vset.pattern.permute.xlu0 114
        %3552 = vperm.xlu0 %3551, %v349
        %v3553 = vpop.permute.xlu0 %3552
        %vm3554 = vcmp.eq.s32.totalorder %v3544, 1
        %vm3555 = vcmp.eq.s32.totalorder %v3547, 1
        %vm3556 = vcmp.eq.s32.totalorder %v3550, 1
        %vm3557 = vcmp.eq.s32.totalorder %v3553, 1
        %v3558 = vlaneseq
        %v3559 = vshrl.u32 %v3558, 7
        %v3560 = vsub.s32 2, %v3559
        %v3561 = vrot.slane %v336, %v3560
        %v3562 = vsel %vm3554, %v3561, -1e+30
        %v3563 = vsel %vm3555, %v3561, -1e+30
        %v3564 = vsel %vm3556, %v3561, -1e+30
        %v3565 = vsel %vm3557, %v3561, -1e+30
        %v3566 = vmax.f32 %v3538, %v3562
        %v3567 = vmax.f32 %v3539, %v3563
        %v3568 = vmax.f32 %v3540, %v3564
        %v3569 = vmax.f32 %v3541, %v3565
        %3570 = vset.pattern.permute.xlu0 115
        %3571 = vperm.xlu0 %3570, %v346
        %v3572 = vpop.permute.xlu0 %3571
        %3573 = vset.pattern.permute.xlu0 115
        %3574 = vperm.xlu0 %3573, %v347
        %v3575 = vpop.permute.xlu0 %3574
        %3576 = vset.pattern.permute.xlu0 115
        %3577 = vperm.xlu0 %3576, %v348
        %v3578 = vpop.permute.xlu0 %3577
        %3579 = vset.pattern.permute.xlu0 115
        %3580 = vperm.xlu0 %3579, %v349
        %v3581 = vpop.permute.xlu0 %3580
        %vm3582 = vcmp.eq.s32.totalorder %v3572, 1
        %vm3583 = vcmp.eq.s32.totalorder %v3575, 1
        %vm3584 = vcmp.eq.s32.totalorder %v3578, 1
        %vm3585 = vcmp.eq.s32.totalorder %v3581, 1
        %v3586 = vlaneseq
        %v3587 = vshrl.u32 %v3586, 7
        %v3588 = vsub.s32 3, %v3587
        %v3589 = vrot.slane %v336, %v3588
        %v3590 = vsel %vm3582, %v3589, -1e+30
        %v3591 = vsel %vm3583, %v3589, -1e+30
        %v3592 = vsel %vm3584, %v3589, -1e+30
        %v3593 = vsel %vm3585, %v3589, -1e+30
        %v3594 = vmax.f32 %v3566, %v3590
        %v3595 = vmax.f32 %v3567, %v3591
        %v3596 = vmax.f32 %v3568, %v3592
        %v3597 = vmax.f32 %v3569, %v3593
        %3598 = vset.pattern.permute.xlu0 116
        %3599 = vperm.xlu0 %3598, %v346
        %v3600 = vpop.permute.xlu0 %3599
        %3601 = vset.pattern.permute.xlu0 116
        %3602 = vperm.xlu0 %3601, %v347
        %v3603 = vpop.permute.xlu0 %3602
        %3604 = vset.pattern.permute.xlu0 116
        %3605 = vperm.xlu0 %3604, %v348
        %v3606 = vpop.permute.xlu0 %3605
        %3607 = vset.pattern.permute.xlu0 116
        %3608 = vperm.xlu0 %3607, %v349
        %v3609 = vpop.permute.xlu0 %3608
        %vm3610 = vcmp.eq.s32.totalorder %v3600, 1
        %vm3611 = vcmp.eq.s32.totalorder %v3603, 1
        %vm3612 = vcmp.eq.s32.totalorder %v3606, 1
        %vm3613 = vcmp.eq.s32.totalorder %v3609, 1
        %v3614 = vlaneseq
        %v3615 = vshrl.u32 %v3614, 7
        %v3616 = vsub.s32 4, %v3615
        %v3617 = vrot.slane %v336, %v3616
        %v3618 = vsel %vm3610, %v3617, -1e+30
        %v3619 = vsel %vm3611, %v3617, -1e+30
        %v3620 = vsel %vm3612, %v3617, -1e+30
        %v3621 = vsel %vm3613, %v3617, -1e+30
        %v3622 = vmax.f32 %v3594, %v3618
        %v3623 = vmax.f32 %v3595, %v3619
        %v3624 = vmax.f32 %v3596, %v3620
        %v3625 = vmax.f32 %v3597, %v3621
        %3626 = vset.pattern.permute.xlu0 117
        %3627 = vperm.xlu0 %3626, %v346
        %v3628 = vpop.permute.xlu0 %3627
        %3629 = vset.pattern.permute.xlu0 117
        %3630 = vperm.xlu0 %3629, %v347
        %v3631 = vpop.permute.xlu0 %3630
        %3632 = vset.pattern.permute.xlu0 117
        %3633 = vperm.xlu0 %3632, %v348
        %v3634 = vpop.permute.xlu0 %3633
        %3635 = vset.pattern.permute.xlu0 117
        %3636 = vperm.xlu0 %3635, %v349
        %v3637 = vpop.permute.xlu0 %3636
        %vm3638 = vcmp.eq.s32.totalorder %v3628, 1
        %vm3639 = vcmp.eq.s32.totalorder %v3631, 1
        %vm3640 = vcmp.eq.s32.totalorder %v3634, 1
        %vm3641 = vcmp.eq.s32.totalorder %v3637, 1
        %v3642 = vlaneseq
        %v3643 = vshrl.u32 %v3642, 7
        %v3644 = vsub.s32 5, %v3643
        %v3645 = vrot.slane %v336, %v3644
        %v3646 = vsel %vm3638, %v3645, -1e+30
        %v3647 = vsel %vm3639, %v3645, -1e+30
        %v3648 = vsel %vm3640, %v3645, -1e+30
        %v3649 = vsel %vm3641, %v3645, -1e+30
        %v3650 = vmax.f32 %v3622, %v3646
        %v3651 = vmax.f32 %v3623, %v3647
        %v3652 = vmax.f32 %v3624, %v3648
        %v3653 = vmax.f32 %v3625, %v3649
        %3654 = vset.pattern.permute.xlu0 118
        %3655 = vperm.xlu0 %3654, %v346
        %v3656 = vpop.permute.xlu0 %3655
        %3657 = vset.pattern.permute.xlu0 118
        %3658 = vperm.xlu0 %3657, %v347
        %v3659 = vpop.permute.xlu0 %3658
        %3660 = vset.pattern.permute.xlu0 118
        %3661 = vperm.xlu0 %3660, %v348
        %v3662 = vpop.permute.xlu0 %3661
        %3663 = vset.pattern.permute.xlu0 118
        %3664 = vperm.xlu0 %3663, %v349
        %v3665 = vpop.permute.xlu0 %3664
        %vm3666 = vcmp.eq.s32.totalorder %v3656, 1
        %vm3667 = vcmp.eq.s32.totalorder %v3659, 1
        %vm3668 = vcmp.eq.s32.totalorder %v3662, 1
        %vm3669 = vcmp.eq.s32.totalorder %v3665, 1
        %v3670 = vlaneseq
        %v3671 = vshrl.u32 %v3670, 7
        %v3672 = vsub.s32 6, %v3671
        %v3673 = vrot.slane %v336, %v3672
        %v3674 = vsel %vm3666, %v3673, -1e+30
        %v3675 = vsel %vm3667, %v3673, -1e+30
        %v3676 = vsel %vm3668, %v3673, -1e+30
        %v3677 = vsel %vm3669, %v3673, -1e+30
        %v3678 = vmax.f32 %v3650, %v3674
        %v3679 = vmax.f32 %v3651, %v3675
        %v3680 = vmax.f32 %v3652, %v3676
        %v3681 = vmax.f32 %v3653, %v3677
        %3682 = vset.pattern.permute.xlu0 119
        %3683 = vperm.xlu0 %3682, %v346
        %v3684 = vpop.permute.xlu0 %3683
        %3685 = vset.pattern.permute.xlu0 119
        %3686 = vperm.xlu0 %3685, %v347
        %v3687 = vpop.permute.xlu0 %3686
        %3688 = vset.pattern.permute.xlu0 119
        %3689 = vperm.xlu0 %3688, %v348
        %v3690 = vpop.permute.xlu0 %3689
        %3691 = vset.pattern.permute.xlu0 119
        %3692 = vperm.xlu0 %3691, %v349
        %v3693 = vpop.permute.xlu0 %3692
        %vm3694 = vcmp.eq.s32.totalorder %v3684, 1
        %vm3695 = vcmp.eq.s32.totalorder %v3687, 1
        %vm3696 = vcmp.eq.s32.totalorder %v3690, 1
        %vm3697 = vcmp.eq.s32.totalorder %v3693, 1
        %v3698 = vlaneseq
        %v3699 = vshrl.u32 %v3698, 7
        %v3700 = vsub.s32 7, %v3699
        %v3701 = vrot.slane %v336, %v3700
        %v3702 = vsel %vm3694, %v3701, -1e+30
        %v3703 = vsel %vm3695, %v3701, -1e+30
        %v3704 = vsel %vm3696, %v3701, -1e+30
        %v3705 = vsel %vm3697, %v3701, -1e+30
        %v3706 = vmax.f32 %v3678, %v3702
        %v3707 = vmax.f32 %v3679, %v3703
        %v3708 = vmax.f32 %v3680, %v3704
        %v3709 = vmax.f32 %v3681, %v3705
        %3710 = vset.pattern.permute.xlu0 120
        %3711 = vperm.xlu0 %3710, %v346
        %v3712 = vpop.permute.xlu0 %3711
        %3713 = vset.pattern.permute.xlu0 120
        %3714 = vperm.xlu0 %3713, %v347
        %v3715 = vpop.permute.xlu0 %3714
        %3716 = vset.pattern.permute.xlu0 120
        %3717 = vperm.xlu0 %3716, %v348
        %v3718 = vpop.permute.xlu0 %3717
        %3719 = vset.pattern.permute.xlu0 120
        %3720 = vperm.xlu0 %3719, %v349
        %v3721 = vpop.permute.xlu0 %3720
        %vm3722 = vcmp.eq.s32.totalorder %v3712, 1
        %vm3723 = vcmp.eq.s32.totalorder %v3715, 1
        %vm3724 = vcmp.eq.s32.totalorder %v3718, 1
        %vm3725 = vcmp.eq.s32.totalorder %v3721, 1
        %v3726 = vlaneseq
        %v3727 = vshrl.u32 %v3726, 7
        %v3728 = vsub.s32 0, %v3727
        %v3729 = vrot.slane %v337, %v3728
        %v3730 = vsel %vm3722, %v3729, -1e+30
        %v3731 = vsel %vm3723, %v3729, -1e+30
        %v3732 = vsel %vm3724, %v3729, -1e+30
        %v3733 = vsel %vm3725, %v3729, -1e+30
        %v3734 = vmax.f32 %v3706, %v3730
        %v3735 = vmax.f32 %v3707, %v3731
        %v3736 = vmax.f32 %v3708, %v3732
        %v3737 = vmax.f32 %v3709, %v3733
        %3738 = vset.pattern.permute.xlu0 121
        %3739 = vperm.xlu0 %3738, %v346
        %v3740 = vpop.permute.xlu0 %3739
        %3741 = vset.pattern.permute.xlu0 121
        %3742 = vperm.xlu0 %3741, %v347
        %v3743 = vpop.permute.xlu0 %3742
        %3744 = vset.pattern.permute.xlu0 121
        %3745 = vperm.xlu0 %3744, %v348
        %v3746 = vpop.permute.xlu0 %3745
        %3747 = vset.pattern.permute.xlu0 121
        %3748 = vperm.xlu0 %3747, %v349
        %v3749 = vpop.permute.xlu0 %3748
        %vm3750 = vcmp.eq.s32.totalorder %v3740, 1
        %vm3751 = vcmp.eq.s32.totalorder %v3743, 1
        %vm3752 = vcmp.eq.s32.totalorder %v3746, 1
        %vm3753 = vcmp.eq.s32.totalorder %v3749, 1
        %v3754 = vlaneseq
        %v3755 = vshrl.u32 %v3754, 7
        %v3756 = vsub.s32 1, %v3755
        %v3757 = vrot.slane %v337, %v3756
        %v3758 = vsel %vm3750, %v3757, -1e+30
        %v3759 = vsel %vm3751, %v3757, -1e+30
        %v3760 = vsel %vm3752, %v3757, -1e+30
        %v3761 = vsel %vm3753, %v3757, -1e+30
        %v3762 = vmax.f32 %v3734, %v3758
        %v3763 = vmax.f32 %v3735, %v3759
        %v3764 = vmax.f32 %v3736, %v3760
        %v3765 = vmax.f32 %v3737, %v3761
        %3766 = vset.pattern.permute.xlu0 122
        %3767 = vperm.xlu0 %3766, %v346
        %v3768 = vpop.permute.xlu0 %3767
        %3769 = vset.pattern.permute.xlu0 122
        %3770 = vperm.xlu0 %3769, %v347
        %v3771 = vpop.permute.xlu0 %3770
        %3772 = vset.pattern.permute.xlu0 122
        %3773 = vperm.xlu0 %3772, %v348
        %v3774 = vpop.permute.xlu0 %3773
        %3775 = vset.pattern.permute.xlu0 122
        %3776 = vperm.xlu0 %3775, %v349
        %v3777 = vpop.permute.xlu0 %3776
        %vm3778 = vcmp.eq.s32.totalorder %v3768, 1
        %vm3779 = vcmp.eq.s32.totalorder %v3771, 1
        %vm3780 = vcmp.eq.s32.totalorder %v3774, 1
        %vm3781 = vcmp.eq.s32.totalorder %v3777, 1
        %v3782 = vlaneseq
        %v3783 = vshrl.u32 %v3782, 7
        %v3784 = vsub.s32 2, %v3783
        %v3785 = vrot.slane %v337, %v3784
        %v3786 = vsel %vm3778, %v3785, -1e+30
        %v3787 = vsel %vm3779, %v3785, -1e+30
        %v3788 = vsel %vm3780, %v3785, -1e+30
        %v3789 = vsel %vm3781, %v3785, -1e+30
        %v3790 = vmax.f32 %v3762, %v3786
        %v3791 = vmax.f32 %v3763, %v3787
        %v3792 = vmax.f32 %v3764, %v3788
        %v3793 = vmax.f32 %v3765, %v3789
        %3794 = vset.pattern.permute.xlu0 123
        %3795 = vperm.xlu0 %3794, %v346
        %v3796 = vpop.permute.xlu0 %3795
        %3797 = vset.pattern.permute.xlu0 123
        %3798 = vperm.xlu0 %3797, %v347
        %v3799 = vpop.permute.xlu0 %3798
        %3800 = vset.pattern.permute.xlu0 123
        %3801 = vperm.xlu0 %3800, %v348
        %v3802 = vpop.permute.xlu0 %3801
        %3803 = vset.pattern.permute.xlu0 123
        %3804 = vperm.xlu0 %3803, %v349
        %v3805 = vpop.permute.xlu0 %3804
        %vm3806 = vcmp.eq.s32.totalorder %v3796, 1
        %vm3807 = vcmp.eq.s32.totalorder %v3799, 1
        %vm3808 = vcmp.eq.s32.totalorder %v3802, 1
        %vm3809 = vcmp.eq.s32.totalorder %v3805, 1
        %v3810 = vlaneseq
        %v3811 = vshrl.u32 %v3810, 7
        %v3812 = vsub.s32 3, %v3811
        %v3813 = vrot.slane %v337, %v3812
        %v3814 = vsel %vm3806, %v3813, -1e+30
        %v3815 = vsel %vm3807, %v3813, -1e+30
        %v3816 = vsel %vm3808, %v3813, -1e+30
        %v3817 = vsel %vm3809, %v3813, -1e+30
        %v3818 = vmax.f32 %v3790, %v3814
        %v3819 = vmax.f32 %v3791, %v3815
        %v3820 = vmax.f32 %v3792, %v3816
        %v3821 = vmax.f32 %v3793, %v3817
        %3822 = vset.pattern.permute.xlu0 124
        %3823 = vperm.xlu0 %3822, %v346
        %v3824 = vpop.permute.xlu0 %3823
        %3825 = vset.pattern.permute.xlu0 124
        %3826 = vperm.xlu0 %3825, %v347
        %v3827 = vpop.permute.xlu0 %3826
        %3828 = vset.pattern.permute.xlu0 124
        %3829 = vperm.xlu0 %3828, %v348
        %v3830 = vpop.permute.xlu0 %3829
        %3831 = vset.pattern.permute.xlu0 124
        %3832 = vperm.xlu0 %3831, %v349
        %v3833 = vpop.permute.xlu0 %3832
        %vm3834 = vcmp.eq.s32.totalorder %v3824, 1
        %vm3835 = vcmp.eq.s32.totalorder %v3827, 1
        %vm3836 = vcmp.eq.s32.totalorder %v3830, 1
        %vm3837 = vcmp.eq.s32.totalorder %v3833, 1
        %v3838 = vlaneseq
        %v3839 = vshrl.u32 %v3838, 7
        %v3840 = vsub.s32 4, %v3839
        %v3841 = vrot.slane %v337, %v3840
        %v3842 = vsel %vm3834, %v3841, -1e+30
        %v3843 = vsel %vm3835, %v3841, -1e+30
        %v3844 = vsel %vm3836, %v3841, -1e+30
        %v3845 = vsel %vm3837, %v3841, -1e+30
        %v3846 = vmax.f32 %v3818, %v3842
        %v3847 = vmax.f32 %v3819, %v3843
        %v3848 = vmax.f32 %v3820, %v3844
        %v3849 = vmax.f32 %v3821, %v3845
        %3850 = vset.pattern.permute.xlu0 125
        %3851 = vperm.xlu0 %3850, %v346
        %v3852 = vpop.permute.xlu0 %3851
        %3853 = vset.pattern.permute.xlu0 125
        %3854 = vperm.xlu0 %3853, %v347
        %v3855 = vpop.permute.xlu0 %3854
        %3856 = vset.pattern.permute.xlu0 125
        %3857 = vperm.xlu0 %3856, %v348
        %v3858 = vpop.permute.xlu0 %3857
        %3859 = vset.pattern.permute.xlu0 125
        %3860 = vperm.xlu0 %3859, %v349
        %v3861 = vpop.permute.xlu0 %3860
        %vm3862 = vcmp.eq.s32.totalorder %v3852, 1
        %vm3863 = vcmp.eq.s32.totalorder %v3855, 1
        %vm3864 = vcmp.eq.s32.totalorder %v3858, 1
        %vm3865 = vcmp.eq.s32.totalorder %v3861, 1
        %v3866 = vlaneseq
        %v3867 = vshrl.u32 %v3866, 7
        %v3868 = vsub.s32 5, %v3867
        %v3869 = vrot.slane %v337, %v3868
        %v3870 = vsel %vm3862, %v3869, -1e+30
        %v3871 = vsel %vm3863, %v3869, -1e+30
        %v3872 = vsel %vm3864, %v3869, -1e+30
        %v3873 = vsel %vm3865, %v3869, -1e+30
        %v3874 = vmax.f32 %v3846, %v3870
        %v3875 = vmax.f32 %v3847, %v3871
        %v3876 = vmax.f32 %v3848, %v3872
        %v3877 = vmax.f32 %v3849, %v3873
        %3878 = vset.pattern.permute.xlu0 126
        %3879 = vperm.xlu0 %3878, %v346
        %v3880 = vpop.permute.xlu0 %3879
        %3881 = vset.pattern.permute.xlu0 126
        %3882 = vperm.xlu0 %3881, %v347
        %v3883 = vpop.permute.xlu0 %3882
        %3884 = vset.pattern.permute.xlu0 126
        %3885 = vperm.xlu0 %3884, %v348
        %v3886 = vpop.permute.xlu0 %3885
        %3887 = vset.pattern.permute.xlu0 126
        %3888 = vperm.xlu0 %3887, %v349
        %v3889 = vpop.permute.xlu0 %3888
        %vm3890 = vcmp.eq.s32.totalorder %v3880, 1
        %vm3891 = vcmp.eq.s32.totalorder %v3883, 1
        %vm3892 = vcmp.eq.s32.totalorder %v3886, 1
        %vm3893 = vcmp.eq.s32.totalorder %v3889, 1
        %v3894 = vlaneseq
        %v3895 = vshrl.u32 %v3894, 7
        %v3896 = vsub.s32 6, %v3895
        %v3897 = vrot.slane %v337, %v3896
        %v3898 = vsel %vm3890, %v3897, -1e+30
        %v3899 = vsel %vm3891, %v3897, -1e+30
        %v3900 = vsel %vm3892, %v3897, -1e+30
        %v3901 = vsel %vm3893, %v3897, -1e+30
        %v3902 = vmax.f32 %v3874, %v3898
        %v3903 = vmax.f32 %v3875, %v3899
        %v3904 = vmax.f32 %v3876, %v3900
        %v3905 = vmax.f32 %v3877, %v3901
        %3906 = vset.pattern.permute.xlu0 127
        %3907 = vperm.xlu0 %3906, %v346
        %v3908 = vpop.permute.xlu0 %3907
        %3909 = vset.pattern.permute.xlu0 127
        %3910 = vperm.xlu0 %3909, %v347
        %v3911 = vpop.permute.xlu0 %3910
        %3912 = vset.pattern.permute.xlu0 127
        %3913 = vperm.xlu0 %3912, %v348
        %v3914 = vpop.permute.xlu0 %3913
        %3915 = vset.pattern.permute.xlu0 127
        %3916 = vperm.xlu0 %3915, %v349
        %v3917 = vpop.permute.xlu0 %3916
        %vm3918 = vcmp.eq.s32.totalorder %v3908, 1
        %vm3919 = vcmp.eq.s32.totalorder %v3911, 1
        %vm3920 = vcmp.eq.s32.totalorder %v3914, 1
        %vm3921 = vcmp.eq.s32.totalorder %v3917, 1
        %v3922 = vlaneseq
        %v3923 = vshrl.u32 %v3922, 7
        %v3924 = vsub.s32 7, %v3923
        %v3925 = vrot.slane %v337, %v3924
        %v3926 = vsel %vm3918, %v3925, -1e+30
        %v3927 = vsel %vm3919, %v3925, -1e+30
        %v3928 = vsel %vm3920, %v3925, -1e+30
        %v3929 = vsel %vm3921, %v3925, -1e+30
        %v3930 = vmax.f32 %v3902, %v3926
        %v3931 = vmax.f32 %v3903, %v3927
        %v3932 = vmax.f32 %v3904, %v3928
        %v3933 = vmax.f32 %v3905, %v3929
        %3934 = vst [vmem:[#allocation2] sm:$0xff] %v3930
        %3935 = vst [vmem:[#allocation2 + $0x8] sm:$0xff] %v3931
        %3936 = vst [vmem:[#allocation2 + $0x10] sm:$0xff] %v3932
        %3937 = vst [vmem:[#allocation2 + $0x18] sm:$0xff] %v3933
        %p3938 = scmp.eq.s32.totalorder %s20, 1
        // Predicated region
        $region79: #{fwd.10} parent=69 // pred_check
          %p3939 = pneg %p3938
        $region80: #{fwd.10} parent=69 // pred_check_branch
          %3941 = sbr.rel (%p3939) target = $region82
        $region81: #{fwd.10} parent=69 // pred_region
          %v3942 = vld [vmem:[%s294] sm:$0xff]
          %v3943 = vld [vmem:[%s294 + $0x8] sm:$0xff]
          %v3944 = vld [vmem:[%s294 + $0x10] sm:$0xff]
          %v3945 = vld [vmem:[%s294 + $0x18] sm:$0xff]
          %vm3946 = vcmp.gt.f32.partialorder %v3942, 0.0
          %vm3947 = vcmp.gt.f32.partialorder %v3943, 0.0
          %vm3948 = vcmp.gt.f32.partialorder %v3944, 0.0
          %vm3949 = vcmp.gt.f32.partialorder %v3945, 0.0
          %v3950 = vld [vmem:[%s300] sm:$0xff]
          %v3951 = vld [vmem:[%s300 + $0x8] sm:$0xff]
          %v3952 = vld [vmem:[%s300 + $0x10] sm:$0xff]
          %v3953 = vld [vmem:[%s300 + $0x18] sm:$0xff]
          %v3954 = vld [vmem:[#allocation2] sm:$0xff]
          %v3955 = vld [vmem:[#allocation2 + $0x8] sm:$0xff]
          %v3956 = vld [vmem:[#allocation2 + $0x10] sm:$0xff]
          %v3957 = vld [vmem:[#allocation2 + $0x18] sm:$0xff]
          %v3958 = vadd.f32 %v3950, %v3954
          %v3959 = vadd.f32 %v3951, %v3955
          %v3960 = vadd.f32 %v3952, %v3956
          %v3961 = vadd.f32 %v3953, %v3957
          %v3962 = vsel %vm3946, 1, 0
          %v3963 = vsel %vm3947, 1, 0
          %v3964 = vsel %vm3948, 1, 0
          %v3965 = vsel %vm3949, 1, 0
          %3966 = vset.pattern.permute.xlu0 0
          %3967 = vperm.xlu0 %3966, %v3962
          %v3968 = vpop.permute.xlu0 %3967
          %3969 = vset.pattern.permute.xlu0 0
          %3970 = vperm.xlu0 %3969, %v3963
          %v3971 = vpop.permute.xlu0 %3970
          %3972 = vset.pattern.permute.xlu0 0
          %3973 = vperm.xlu0 %3972, %v3964
          %v3974 = vpop.permute.xlu0 %3973
          %3975 = vset.pattern.permute.xlu0 0
          %3976 = vperm.xlu0 %3975, %v3965
          %v3977 = vpop.permute.xlu0 %3976
          %vm3978 = vcmp.eq.s32.totalorder %v3968, 1
          %vm3979 = vcmp.eq.s32.totalorder %v3971, 1
          %vm3980 = vcmp.eq.s32.totalorder %v3974, 1
          %vm3981 = vcmp.eq.s32.totalorder %v3977, 1
          %v3982 = vsel %vm3978, %v3958, 0.0
          %v3983 = vsel %vm3979, %v3959, 0.0
          %v3984 = vsel %vm3980, %v3960, 0.0
          %v3985 = vsel %vm3981, %v3961, 0.0
          %vm3986 = vcmp.ge.f32.partialorder %v3982, 0.0
          %vm3987 = vcmp.ge.f32.partialorder %v3983, 0.0
          %vm3988 = vcmp.ge.f32.partialorder %v3984, 0.0
          %vm3989 = vcmp.ge.f32.partialorder %v3985, 0.0
          %v3990 = vmul.f32 %v3982, 0.01
          %v3991 = vmul.f32 %v3983, 0.01
          %v3992 = vmul.f32 %v3984, 0.01
          %v3993 = vmul.f32 %v3985, 0.01
          %v3994 = vsel %vm3986, %v3982, %v3990
          %v3995 = vsel %vm3987, %v3983, %v3991
          %v3996 = vsel %vm3988, %v3984, %v3992
          %v3997 = vsel %vm3989, %v3985, %v3993
          %3998 = vst [vmem:[%s306] sm:$0xff] %v3994
          %3999 = vst [vmem:[%s306 + $0x8] sm:$0xff] %v3995
          %4000 = vst [vmem:[%s306 + $0x10] sm:$0xff] %v3996
          %4001 = vst [vmem:[%s306 + $0x18] sm:$0xff] %v3997
        $region82: #{fwd.10} parent=69 // pred_fallthru
          _
        %s4002 = smul.u32 4, %s19
        %p4003 = scmp.lt.s32.totalorder %s4002, 31
        %s4004 = scalar_select %p4003, %s4002, 31
        %s4005 = smul.addr %s4004, 8
        %s4006 = scalar_lea.vmem %s4, %s4005
        // Predicated region
        $region83: #{fwd.10} parent=69 // pred_check
          %p4007 = pneg %p146
        $region84: #{fwd.10} parent=69 // pred_check_branch
          %4009 = sbr.rel (%p4007) target = $region86
        $region85: #{fwd.10} parent=69 // pred_region
          %s4010 = smul.u32 4, %s19
        $region86: #{fwd.10} parent=69 // pred_fallthru
          _
      $region70: #{fwd.10} parent=5 // pred_fallthru
        _
      %p4011 = scmp.le.s32.totalorder 2, %s10
      // Predicated region
      $region87: #{fwd.10} parent=5 // pred_check
        %p4012 = pneg %p4011
      $region88: #{fwd.10} parent=5 // pred_check_branch
        %4014 = sbr.rel (%p4012) target = $region90
      $region89: #{fwd.10} parent=5 // pred_region
        %s4015 = ssub.s32 %s10, 2
        // Predicated region
        $region91: #{fwd.10} parent=89 // pred_check
          %p4016 = pneg %p152
        $region92: #{fwd.10} parent=89 // pred_check_branch
          %4018 = sbr.rel (%p4016) target = $region94
        $region93: #{fwd.10} parent=89 // pred_region
          %s4019 = smul.u32 4, %s21
          %p4020 = scmp.lt.s32.totalorder %s4019, 31
          %s4021 = scalar_select %p4020, %s4019, 31
          %s4022 = smul.addr %s4021, 8
          %s4023 = scalar_lea.vmem %s4, %s4022
        $region94: #{fwd.10} parent=89 // pred_fallthru
          _
      $region90: #{fwd.10} parent=5 // pred_fallthru
        _
    $region6: #{fwd.10} parent=1 // loop_footer
      %s14 = sadd.s32 1, %s10
    $region7: #{fwd.10} parent=1 // loop_footer_branch
      %9 = sbr.rel target = $region3
    $region8: #{fwd.10} parent=1 // loop_exit
      _

// kernel: fwd.15
$region0: #{fwd.15}
  #allocation0 [shape = 'u32[]', space=smem, size = 0x4, offset = 0x4, fixed_abs, tag = 'smem constant byte address 0x4 - core index']
  #allocation1 [shape = 'u32[144,128]{1,0:T(1,128)}', space=vmem, size = 0x12000, scoped, tag = 'internal scratch']
  %s0 = inlined_call_operand.vmem [shape: f32[256,640], index: 0, kind: input, shape index: {}]
  %s1 = inlined_call_operand.vmem [shape: f32[512,256], index: 1, kind: input, shape index: {}]
  %s2 = inlined_call_operand.vmem [shape: f32[1,128], index: 2, kind: input, shape index: {}]
  %s3 = inlined_call_operand.vmem [shape: f32[256,128], index: 3, kind: output, shape index: {0}]
  %s4 = inlined_call_operand.vmem [shape: f32[256,128], index: 4, kind: output, shape index: {1}]
  %5 = xla_tuple %s3, %s4
  %s6 = sld [smem:[#allocation0]]
  $region76: #{fwd.15} parent=0
    _
  %s8 = ssub.s32 1, %s6
  %s9 = scalar_select 0, %s8, %s6
  $region1: #{fwd.15} parent=0
    #allocation2 [shape = 'u8[131072]{0}', space=vmem, size = 0x20000, scoped, tag = 'input window, operand 0']
    loop: start=0, step=1, limit=10
    $region2: #{fwd.15} parent=1 // loop_pre_header
      _
    $region3: #{fwd.15} parent=1 // loop_header
      %s11 = sphi 0, %s15
      %p12 = scmp.ge.s32.totalorder %s11, 10
      %s21 = sphi 0, %s23
      %s24 = sphi 0, %s21
      %s25 = sphi 0, %s24
      %s41 = sphi 0, %s25
      %s45 = sphi 0, %s45
      %s47 = sphi 0, %s45
      %s48 = sphi 0, %s47
      %s62 = sphi 0, %s48
      %s66 = sphi 0, %s66
      %s68 = sphi 0, %s66
      %s69 = sphi 0, %s68
      %s83 = sphi 0, %s69
      %s89 = sphi 0, %s91
      %s92 = sphi 0, %s89
      %s93 = sphi 0, %s92
      %s109 = sphi 0, %s93
      %s115 = sphi 0, %s117
      %s118 = sphi 0, %s115
      %s119 = sphi 0, %s118
      %s135 = sphi 0, %s119
    $region4: #{fwd.15} parent=1 // loop_header_branch
      %14 = sbr.rel (%p12) target = $region8
    $region5: #{fwd.15} parent=1 // loop_body
      %s16 = ssub.s32 %s11, 1
      %s17 = ssub.s32 %s11, 2
      %s18 = sadd.s32 %s11, 1
      %s19 = ssub.s32 %s11, %s18
      %p20 = scmp.eq.s32.totalorder %s19, 0
      %s22 = sadd.s32 %s21, 1
      %s23 = scalar_select %p20, %s21, %s22
      %p26 = pneg %p20
      %p27 = scmp.eq.s32.totalorder %s11, 7
      %p28 = por %p26, %p27
      %p29 = scmp.ne.s32.totalorder %s21, %s24
      %p30 = scmp.eq.s32.totalorder %s11, 0
      %p31 = por %p29, %p30
      %p32 = scmp.ne.s32.totalorder %s21, %s24
      %p33 = scmp.eq.s32.totalorder %s16, 7
      %p34 = por %p32, %p33
      %p35 = scmp.ne.s32.totalorder %s24, %s25
      %p36 = scmp.eq.s32.totalorder %s16, 0
      %p37 = por %p35, %p36
      %p38 = scmp.ne.s32.totalorder %s24, %s25
      %p39 = scmp.eq.s32.totalorder %s17, 7
      %p40 = por %p38, %p39
      %p42 = scmp.ne.s32.totalorder %s25, %s41
      %p43 = scmp.eq.s32.totalorder %s17, 0
      %p44 = por %p42, %p43
      %s46 = sadd.s32 %s45, 1
      %p49 = scmp.eq.s32.totalorder %s11, 7
      %p50 = scmp.ne.s32.totalorder %s45, %s47
      %p51 = scmp.eq.s32.totalorder %s11, 0
      %p52 = por %p50, %p51
      %p53 = scmp.ne.s32.totalorder %s45, %s47
      %p54 = scmp.eq.s32.totalorder %s16, 7
      %p55 = por %p53, %p54
      %p56 = scmp.ne.s32.totalorder %s47, %s48
      %p57 = scmp.eq.s32.totalorder %s16, 0
      %p58 = por %p56, %p57
      %p59 = scmp.ne.s32.totalorder %s47, %s48
      %p60 = scmp.eq.s32.totalorder %s17, 7
      %p61 = por %p59, %p60
      %p63 = scmp.ne.s32.totalorder %s48, %s62
      %p64 = scmp.eq.s32.totalorder %s17, 0
      %p65 = por %p63, %p64
      %s67 = sadd.s32 %s66, 1
      %p70 = scmp.eq.s32.totalorder %s11, 7
      %p71 = scmp.ne.s32.totalorder %s66, %s68
      %p72 = scmp.eq.s32.totalorder %s11, 0
      %p73 = por %p71, %p72
      %p74 = scmp.ne.s32.totalorder %s66, %s68
      %p75 = scmp.eq.s32.totalorder %s16, 7
      %p76 = por %p74, %p75
      %p77 = scmp.ne.s32.totalorder %s68, %s69
      %p78 = scmp.eq.s32.totalorder %s16, 0
      %p79 = por %p77, %p78
      %p80 = scmp.ne.s32.totalorder %s68, %s69
      %p81 = scmp.eq.s32.totalorder %s17, 7
      %p82 = por %p80, %p81
      %p84 = scmp.ne.s32.totalorder %s69, %s83
      %p85 = scmp.eq.s32.totalorder %s17, 0
      %p86 = por %p84, %p85
      %s87 = ssub.s32 %s11, %s18
      %p88 = scmp.eq.s32.totalorder %s87, 0
      %s90 = sadd.s32 %s89, 1
      %s91 = scalar_select %p88, %s89, %s90
      %p94 = pneg %p88
      %p95 = scmp.eq.s32.totalorder %s11, 7
      %p96 = por %p94, %p95
      %p97 = scmp.ne.s32.totalorder %s89, %s92
      %p98 = scmp.eq.s32.totalorder %s11, 0
      %p99 = por %p97, %p98
      %p100 = scmp.ne.s32.totalorder %s89, %s92
      %p101 = scmp.eq.s32.totalorder %s16, 7
      %p102 = por %p100, %p101
      %p103 = scmp.ne.s32.totalorder %s92, %s93
      %p104 = scmp.eq.s32.totalorder %s16, 0
      %p105 = por %p103, %p104
      %p106 = scmp.ne.s32.totalorder %s92, %s93
      %p107 = scmp.eq.s32.totalorder %s17, 7
      %p108 = por %p106, %p107
      %p110 = scmp.ne.s32.totalorder %s93, %s109
      %p111 = scmp.eq.s32.totalorder %s17, 0
      %p112 = por %p110, %p111
      %s113 = ssub.s32 %s11, %s18
      %p114 = scmp.eq.s32.totalorder %s113, 0
      %s116 = sadd.s32 %s115, 1
      %s117 = scalar_select %p114, %s115, %s116
      %p120 = pneg %p114
      %p121 = scmp.eq.s32.totalorder %s11, 7
      %p122 = por %p120, %p121
      %p123 = scmp.ne.s32.totalorder %s115, %s118
      %p124 = scmp.eq.s32.totalorder %s11, 0
      %p125 = por %p123, %p124
      %p126 = scmp.ne.s32.totalorder %s115, %s118
      %p127 = scmp.eq.s32.totalorder %s16, 7
      %p128 = por %p126, %p127
      %p129 = scmp.ne.s32.totalorder %s118, %s119
      %p130 = scmp.eq.s32.totalorder %s16, 0
      %p131 = por %p129, %p130
      %p132 = scmp.ne.s32.totalorder %s118, %s119
      %p133 = scmp.eq.s32.totalorder %s17, 7
      %p134 = por %p132, %p133
      %p136 = scmp.ne.s32.totalorder %s119, %s135
      %p137 = scmp.eq.s32.totalorder %s17, 0
      %p138 = por %p136, %p137
      %p139 = scmp.le.s32.totalorder 1, %s11
      %p140 = scmp.lt.s32.totalorder %s11, 9
      %p141 = pnand %p139, %p140
      %p142 = pneg %p141
      // Predicated region
      $region9: #{fwd.15} parent=5 // pred_check
        _
      $region10: #{fwd.15} parent=5 // pred_check_branch
        %144 = sbr.rel (%p141) target = $region12
      $region11: #{fwd.15} parent=5 // pred_region
        %s145 = ssub.s32 %s11, 1
        // Predicated region
        $region13: #{fwd.15} parent=11 // pred_check
          %p146 = pneg %p58
        $region14: #{fwd.15} parent=11 // pred_check_branch
          %148 = sbr.rel (%p146) target = $region16
        $region15: #{fwd.15} parent=11 // pred_region
          _
        $region16: #{fwd.15} parent=11 // pred_fallthru
          _
        // Predicated region
        $region17: #{fwd.15} parent=11 // pred_check
          %p149 = pneg %p79
        $region18: #{fwd.15} parent=11 // pred_check_branch
          %151 = sbr.rel (%p149) target = $region20
        $region19: #{fwd.15} parent=11 // pred_region
          _
        $region20: #{fwd.15} parent=11 // pred_fallthru
          _
      $region12: #{fwd.15} parent=5 // pred_fallthru
        _
      %p152 = scmp.lt.s32.totalorder %s11, 8
      // Predicated region
      $region21: #{fwd.15} parent=5 // pred_check
        %p153 = pneg %p152
      $region22: #{fwd.15} parent=5 // pred_check_branch
        %155 = sbr.rel (%p153) target = $region24
      $region23: #{fwd.15} parent=5 // pred_region
        // Predicated region
        $region25: #{fwd.15} parent=23 // pred_check
          %p156 = pneg %p31
        $region26: #{fwd.15} parent=23 // pred_check_branch
          %158 = sbr.rel (%p156) target = $region28
        $region27: #{fwd.15} parent=23 // pred_region
          %s159 = sand.u32 %s21, 1
          %s160 = sand.u32 %s21, 1
          %s161 = smul.addr %s160, 128
          %s162 = scalar_lea.vmem [#allocation2], %s161
          %s163 = smul.u32 4, %s11
          %s164 = smul.addr %s163, 5
          %s165 = smul.addr %s164, 8
          %s166 = scalar_lea.vmem %s0, %s165
          // Predicated region
          $region29: #{fwd.15} parent=27 // pred_check
            _
          $region30: #{fwd.15} parent=27 // pred_check_branch
            %168 = sbr.rel (0) target = $region32
          $region31: #{fwd.15} parent=27 // pred_region
            // Predicated region
            $region33: #{fwd.15} parent=31 // pred_check
              _
            $region34: #{fwd.15} parent=31 // pred_check_branch
              %170 = sbr.rel (0) target = $region36
            $region35: #{fwd.15} parent=31 // pred_region
              loop: start=0, step=1, limit=1
              $region37: #{fwd.15} parent=35 // loop_pre_header
                _
              $region38: #{fwd.15} parent=35 // loop_header
                %s172 = sphi 0, %s176
                %p173 = scmp.ge.s32.totalorder %s172, 1
                %s177 = sphi %s166, %s166
                %s178 = sphi %s162, %s162
              $region39: #{fwd.15} parent=35 // loop_header_branch
                %175 = sbr.rel (%p173) target = $region43
              $region40: #{fwd.15} parent=35 // loop_body
                %v179 = vld [vmem:[%s177] sm:$0xff]
                %180 = vst [vmem:[%s178] sm:$0xff] %v179
                %v181 = vld [vmem:[%s177 + $0x8] sm:$0xff]
                %182 = vst [vmem:[%s178 + $0x8] sm:$0xff] %v181
                %v183 = vld [vmem:[%s177 + $0x10] sm:$0xff]
                %184 = vst [vmem:[%s178 + $0x10] sm:$0xff] %v183
                %v185 = vld [vmem:[%s177 + $0x18] sm:$0xff]
                %186 = vst [vmem:[%s178 + $0x18] sm:$0xff] %v185
                %v187 = vld [vmem:[%s177 + $0x28] sm:$0xff]
                %188 = vst [vmem:[%s178 + $0x20] sm:$0xff] %v187
                %v189 = vld [vmem:[%s177 + $0x30] sm:$0xff]
                %190 = vst [vmem:[%s178 + $0x28] sm:$0xff] %v189
                %v191 = vld [vmem:[%s177 + $0x38] sm:$0xff]
                %192 = vst [vmem:[%s178 + $0x30] sm:$0xff] %v191
                %v193 = vld [vmem:[%s177 + $0x40] sm:$0xff]
                %194 = vst [vmem:[%s178 + $0x38] sm:$0xff] %v193
                %v195 = vld [vmem:[%s177 + $0x50] sm:$0xff]
                %196 = vst [vmem:[%s178 + $0x40] sm:$0xff] %v195
                %v197 = vld [vmem:[%s177 + $0x58] sm:$0xff]
                %198 = vst [vmem:[%s178 + $0x48] sm:$0xff] %v197
                %v199 = vld [vmem:[%s177 + $0x60] sm:$0xff]
                %200 = vst [vmem:[%s178 + $0x50] sm:$0xff] %v199
                %v201 = vld [vmem:[%s177 + $0x68] sm:$0xff]
                %202 = vst [vmem:[%s178 + $0x58] sm:$0xff] %v201
                %v203 = vld [vmem:[%s177 + $0x78] sm:$0xff]
                %204 = vst [vmem:[%s178 + $0x60] sm:$0xff] %v203
                %v205 = vld [vmem:[%s177 + $0x80] sm:$0xff]
                %206 = vst [vmem:[%s178 + $0x68] sm:$0xff] %v205
                %v207 = vld [vmem:[%s177 + $0x88] sm:$0xff]
                %208 = vst [vmem:[%s178 + $0x70] sm:$0xff] %v207
                %v209 = vld [vmem:[%s177 + $0x90] sm:$0xff]
                %210 = vst [vmem:[%s178 + $0x78] sm:$0xff] %v209
              $region41: #{fwd.15} parent=35 // loop_footer
                %s176 = sadd.s32 1, %s172
              $region42: #{fwd.15} parent=35 // loop_footer_branch
                %171 = sbr.rel target = $region38
              $region43: #{fwd.15} parent=35 // loop_exit
                _
            $region36: #{fwd.15} parent=31 // pred_fallthru
              _
            // Predicated region
            $region44: #{fwd.15} parent=31 // pred_check
              _
            $region45: #{fwd.15} parent=31 // pred_check_branch
              %212 = sbr.rel target = $region47
            $region46: #{fwd.15} parent=31 // pred_region
              _
            $region47: #{fwd.15} parent=31 // pred_fallthru
              _
          $region32: #{fwd.15} parent=27 // pred_fallthru
            _
          %213 = vnop
        $region28: #{fwd.15} parent=23 // pred_fallthru
          _
      $region24: #{fwd.15} parent=5 // pred_fallthru
        _
      %p214 = scmp.le.s32.totalorder 1, %s11
      %p215 = scmp.lt.s32.totalorder %s11, 9
      %p216 = pnand %p214, %p215
      %p217 = pneg %p216
      // Predicated region
      $region48: #{fwd.15} parent=5 // pred_check
        _
      $region49: #{fwd.15} parent=5 // pred_check_branch
        %219 = sbr.rel (%p216) target = $region51
      $region50: #{fwd.15} parent=5 // pred_region
        %s220 = ssub.s32 %s11, 1
        %s221 = sand.u32 %s24, 1
        %s222 = sand.u32 %s24, 1
        %s223 = smul.addr %s222, 128
        %s224 = scalar_lea.vmem [#allocation2], %s223
        // Predicated region
        $region52: #{fwd.15} parent=50 // pred_check
          %p225 = pneg %p37
        $region53: #{fwd.15} parent=50 // pred_check_branch
          %227 = sbr.rel (%p225) target = $region55
        $region54: #{fwd.15} parent=50 // pred_region
          _
        $region55: #{fwd.15} parent=50 // pred_fallthru
          _
        %s228 = sand.u32 %s24, 1
        %s229 = sand.u32 %s24, 1
        %s230 = smul.addr %s229, 128
        %s231 = scalar_lea.vmem [#allocation2], %s230
        %p232 = pneg %p37
        %p233 = pneg %p34
        %p234 = pneg %p58
        %p235 = pneg %p55
        %p236 = pneg %p79
        %p237 = pneg %p76
        %p238 = pneg %p105
        %p239 = pneg %p102
        %s240 = smul.u32 4, %s16
        %p241 = scmp.lt.s32.totalorder %s240, 31
        %s242 = scalar_select %p241, %s240, 31
        %s243 = smul.addr %s242, 8
        %s244 = scalar_lea.vmem %s3, %s243
        %p245 = pneg %p131
        %p246 = pneg %p128
        %s247 = smul.u32 4, %s16
        %p248 = scmp.lt.s32.totalorder %s247, 31
        %s249 = scalar_select %p248, %s247, 31
        %s250 = smul.addr %s249, 8
        %s251 = scalar_lea.vmem %s4, %s250
        %s252 = smul.u32 4, %s16
        %s253 = smul.u32 4, %s16
        %p254 = scmp.lt.s32.totalorder %s253, 31
        %s255 = scalar_select %p254, %s253, 31
        %s256 = smul.addr %s255, 8
        %s257 = scalar_lea.vmem %s3, %s256
        %s258 = smul.u32 4, %s16
        %s259 = smul.u32 4, %s16
        %p260 = scmp.lt.s32.totalorder %s259, 31
        %s261 = scalar_select %p260, %s259, 31
        %s262 = smul.addr %s261, 8
        %s263 = scalar_lea.vmem %s4, %s262
        %s264 = smul.u32 4, %s16
        %v265 = vld [vmem:[%s224] sm:$0xff]
        %v266 = vld [vmem:[%s224 + $0x8] sm:$0xff]
        %v267 = vld [vmem:[%s224 + $0x10] sm:$0xff]
        %v268 = vld [vmem:[%s224 + $0x18] sm:$0xff]
        %v269 = vld [vmem:[%s224 + $0x20] sm:$0xff]
        %v270 = vld [vmem:[%s224 + $0x28] sm:$0xff]
        %v271 = vld [vmem:[%s224 + $0x30] sm:$0xff]
        %v272 = vld [vmem:[%s224 + $0x38] sm:$0xff]
        %v273 = vld [vmem:[%s224 + $0x40] sm:$0xff]
        %v274 = vld [vmem:[%s224 + $0x48] sm:$0xff]
        %v275 = vld [vmem:[%s224 + $0x50] sm:$0xff]
        %v276 = vld [vmem:[%s224 + $0x58] sm:$0xff]
        %v277 = vld [vmem:[%s224 + $0x60] sm:$0xff]
        %v278 = vld [vmem:[%s224 + $0x68] sm:$0xff]
        %v279 = vld [vmem:[%s224 + $0x70] sm:$0xff]
        %v280 = vld [vmem:[%s224 + $0x78] sm:$0xff]
        %v281 = vld [vmem:[%s1] sm:$0xff]
        %v282 = vld [vmem:[%s1 + $0x8] sm:$0xff]
        %v283 = vld [vmem:[%s1 + $0x10] sm:$0xff]
        %v284 = vld [vmem:[%s1 + $0x18] sm:$0xff]
        %v285 = vld [vmem:[%s1 + $0x20] sm:$0xff]
        %v286 = vld [vmem:[%s1 + $0x28] sm:$0xff]
        %v287 = vld [vmem:[%s1 + $0x30] sm:$0xff]
        %v288 = vld [vmem:[%s1 + $0x38] sm:$0xff]
        %v289 = vld [vmem:[%s1 + $0x40] sm:$0xff]
        %v290 = vld [vmem:[%s1 + $0x48] sm:$0xff]
        %v291 = vld [vmem:[%s1 + $0x50] sm:$0xff]
        %v292 = vld [vmem:[%s1 + $0x58] sm:$0xff]
        %v293 = vld [vmem:[%s1 + $0x60] sm:$0xff]
        %v294 = vld [vmem:[%s1 + $0x68] sm:$0xff]
        %v295 = vld [vmem:[%s1 + $0x70] sm:$0xff]
        %v296 = vld [vmem:[%s1 + $0x78] sm:$0xff]
        %v297 = vld [vmem:[%s1 + $0x80] sm:$0xff]
        %v298 = vld [vmem:[%s1 + $0x88] sm:$0xff]
        %v299 = vld [vmem:[%s1 + $0x90] sm:$0xff]
        %v300 = vld [vmem:[%s1 + $0x98] sm:$0xff]
        %v301 = vld [vmem:[%s1 + $0xa0] sm:$0xff]
        %v302 = vld [vmem:[%s1 + $0xa8] sm:$0xff]
        %v303 = vld [vmem:[%s1 + $0xb0] sm:$0xff]
        %v304 = vld [vmem:[%s1 + $0xb8] sm:$0xff]
        %v305 = vld [vmem:[%s1 + $0xc0] sm:$0xff]
        %v306 = vld [vmem:[%s1 + $0xc8] sm:$0xff]
        %v307 = vld [vmem:[%s1 + $0xd0] sm:$0xff]
        %v308 = vld [vmem:[%s1 + $0xd8] sm:$0xff]
        %v309 = vld [vmem:[%s1 + $0xe0] sm:$0xff]
        %v310 = vld [vmem:[%s1 + $0xe8] sm:$0xff]
        %v311 = vld [vmem:[%s1 + $0xf0] sm:$0xff]
        %v312 = vld [vmem:[%s1 + $0xf8] sm:$0xff]
        %v313 = vld [vmem:[%s1 + $0x100] sm:$0xff]
        %v314 = vld [vmem:[%s1 + $0x108] sm:$0xff]
        %v315 = vld [vmem:[%s1 + $0x110] sm:$0xff]
        %v316 = vld [vmem:[%s1 + $0x118] sm:$0xff]
        %v317 = vld [vmem:[%s1 + $0x120] sm:$0xff]
        %v318 = vld [vmem:[%s1 + $0x128] sm:$0xff]
        %v319 = vld [vmem:[%s1 + $0x130] sm:$0xff]
        %v320 = vld [vmem:[%s1 + $0x138] sm:$0xff]
        %v321 = vld [vmem:[%s1 + $0x140] sm:$0xff]
        %v322 = vld [vmem:[%s1 + $0x148] sm:$0xff]
        %v323 = vld [vmem:[%s1 + $0x150] sm:$0xff]
        %v324 = vld [vmem:[%s1 + $0x158] sm:$0xff]
        %v325 = vld [vmem:[%s1 + $0x160] sm:$0xff]
        %v326 = vld [vmem:[%s1 + $0x168] sm:$0xff]
        %v327 = vld [vmem:[%s1 + $0x170] sm:$0xff]
        %v328 = vld [vmem:[%s1 + $0x178] sm:$0xff]
        %v329 = vld [vmem:[%s1 + $0x180] sm:$0xff]
        %v330 = vld [vmem:[%s1 + $0x188] sm:$0xff]
        %v331 = vld [vmem:[%s1 + $0x190] sm:$0xff]
        %v332 = vld [vmem:[%s1 + $0x198] sm:$0xff]
        %v333 = vld [vmem:[%s1 + $0x1a0] sm:$0xff]
        %v334 = vld [vmem:[%s1 + $0x1a8] sm:$0xff]
        %v335 = vld [vmem:[%s1 + $0x1b0] sm:$0xff]
        %v336 = vld [vmem:[%s1 + $0x1b8] sm:$0xff]
        %v337 = vld [vmem:[%s1 + $0x1c0] sm:$0xff]
        %v338 = vld [vmem:[%s1 + $0x1c8] sm:$0xff]
        %v339 = vld [vmem:[%s1 + $0x1d0] sm:$0xff]
        %v340 = vld [vmem:[%s1 + $0x1d8] sm:$0xff]
        %v341 = vld [vmem:[%s1 + $0x1e0] sm:$0xff]
        %v342 = vld [vmem:[%s1 + $0x1e8] sm:$0xff]
        %v343 = vld [vmem:[%s1 + $0x1f0] sm:$0xff]
        %v344 = vld [vmem:[%s1 + $0x1f8] sm:$0xff]
        %v345 = vld [vmem:[%s1 + $0x200] sm:$0xff]
        %v346 = vld [vmem:[%s1 + $0x208] sm:$0xff]
        %v347 = vld [vmem:[%s1 + $0x210] sm:$0xff]
        %v348 = vld [vmem:[%s1 + $0x218] sm:$0xff]
        %v349 = vld [vmem:[%s1 + $0x220] sm:$0xff]
        %v350 = vld [vmem:[%s1 + $0x228] sm:$0xff]
        %v351 = vld [vmem:[%s1 + $0x230] sm:$0xff]
        %v352 = vld [vmem:[%s1 + $0x238] sm:$0xff]
        %v353 = vld [vmem:[%s1 + $0x240] sm:$0xff]
        %v354 = vld [vmem:[%s1 + $0x248] sm:$0xff]
        %v355 = vld [vmem:[%s1 + $0x250] sm:$0xff]
        %v356 = vld [vmem:[%s1 + $0x258] sm:$0xff]
        %v357 = vld [vmem:[%s1 + $0x260] sm:$0xff]
        %v358 = vld [vmem:[%s1 + $0x268] sm:$0xff]
        %v359 = vld [vmem:[%s1 + $0x270] sm:$0xff]
        %v360 = vld [vmem:[%s1 + $0x278] sm:$0xff]
        %v361 = vld [vmem:[%s1 + $0x280] sm:$0xff]
        %v362 = vld [vmem:[%s1 + $0x288] sm:$0xff]
        %v363 = vld [vmem:[%s1 + $0x290] sm:$0xff]
        %v364 = vld [vmem:[%s1 + $0x298] sm:$0xff]
        %v365 = vld [vmem:[%s1 + $0x2a0] sm:$0xff]
        %v366 = vld [vmem:[%s1 + $0x2a8] sm:$0xff]
        %v367 = vld [vmem:[%s1 + $0x2b0] sm:$0xff]
        %v368 = vld [vmem:[%s1 + $0x2b8] sm:$0xff]
        %v369 = vld [vmem:[%s1 + $0x2c0] sm:$0xff]
        %v370 = vld [vmem:[%s1 + $0x2c8] sm:$0xff]
        %v371 = vld [vmem:[%s1 + $0x2d0] sm:$0xff]
        %v372 = vld [vmem:[%s1 + $0x2d8] sm:$0xff]
        %v373 = vld [vmem:[%s1 + $0x2e0] sm:$0xff]
        %v374 = vld [vmem:[%s1 + $0x2e8] sm:$0xff]
        %v375 = vld [vmem:[%s1 + $0x2f0] sm:$0xff]
        %v376 = vld [vmem:[%s1 + $0x2f8] sm:$0xff]
        %v377 = vld [vmem:[%s1 + $0x300] sm:$0xff]
        %v378 = vld [vmem:[%s1 + $0x308] sm:$0xff]
        %v379 = vld [vmem:[%s1 + $0x310] sm:$0xff]
        %v380 = vld [vmem:[%s1 + $0x318] sm:$0xff]
        %v381 = vld [vmem:[%s1 + $0x320] sm:$0xff]
        %v382 = vld [vmem:[%s1 + $0x328] sm:$0xff]
        %v383 = vld [vmem:[%s1 + $0x330] sm:$0xff]
        %v384 = vld [vmem:[%s1 + $0x338] sm:$0xff]
        %v385 = vld [vmem:[%s1 + $0x340] sm:$0xff]
        %v386 = vld [vmem:[%s1 + $0x348] sm:$0xff]
        %v387 = vld [vmem:[%s1 + $0x350] sm:$0xff]
        %v388 = vld [vmem:[%s1 + $0x358] sm:$0xff]
        %v389 = vld [vmem:[%s1 + $0x360] sm:$0xff]
        %v390 = vld [vmem:[%s1 + $0x368] sm:$0xff]
        %v391 = vld [vmem:[%s1 + $0x370] sm:$0xff]
        %v392 = vld [vmem:[%s1 + $0x378] sm:$0xff]
        %v393 = vld [vmem:[%s1 + $0x380] sm:$0xff]
        %v394 = vld [vmem:[%s1 + $0x388] sm:$0xff]
        %v395 = vld [vmem:[%s1 + $0x390] sm:$0xff]
        %v396 = vld [vmem:[%s1 + $0x398] sm:$0xff]
        %v397 = vld [vmem:[%s1 + $0x3a0] sm:$0xff]
        %v398 = vld [vmem:[%s1 + $0x3a8] sm:$0xff]
        %v399 = vld [vmem:[%s1 + $0x3b0] sm:$0xff]
        %v400 = vld [vmem:[%s1 + $0x3b8] sm:$0xff]
        %v401 = vld [vmem:[%s1 + $0x3c0] sm:$0xff]
        %v402 = vld [vmem:[%s1 + $0x3c8] sm:$0xff]
        %v403 = vld [vmem:[%s1 + $0x3d0] sm:$0xff]
        %v404 = vld [vmem:[%s1 + $0x3d8] sm:$0xff]
        %v405 = vld [vmem:[%s1 + $0x3e0] sm:$0xff]
        %v406 = vld [vmem:[%s1 + $0x3e8] sm:$0xff]
        %v407 = vld [vmem:[%s1 + $0x3f0] sm:$0xff]
        %v408 = vld [vmem:[%s1 + $0x3f8] sm:$0xff]
        %409 = vmatprep.subr.mxu0 %v312
        %410 = vmatpush1.msra.mxu0 %v311
        %411 = vmatprep.subr.mxu0 %v310
        %412 = vmatpush1.msra.mxu0 %v309
        %413 = vmatprep.subr.mxu0 %v308
        %414 = vmatpush1.msra.mxu0 %v307
        %415 = vmatprep.subr.mxu0 %v306
        %416 = vmatpush1.msra.mxu0 %v305
        %417 = vmatprep.subr.mxu0 %v304
        %418 = vmatpush1.msra.mxu0 %v303
        %419 = vmatprep.subr.mxu0 %v302
        %420 = vmatpush1.msra.mxu0 %v301
        %421 = vmatprep.subr.mxu0 %v300
        %422 = vmatpush1.msra.mxu0 %v299
        %423 = vmatprep.subr.mxu0 %v298
        %424 = vmatpush1.msra.mxu0 %v297
        %425 = vmatprep.subr.mxu0 %v296
        %426 = vmatpush1.msra.mxu0 %v295
        %427 = vmatprep.subr.mxu0 %v294
        %428 = vmatpush1.msra.mxu0 %v293
        %429 = vmatprep.subr.mxu0 %v292
        %430 = vmatpush1.msra.mxu0 %v291
        %431 = vmatprep.subr.mxu0 %v290
        %432 = vmatpush1.msra.mxu0 %v289
        %433 = vmatprep.subr.mxu0 %v288
        %434 = vmatpush1.msra.mxu0 %v287
        %435 = vmatprep.subr.mxu0 %v286
        %436 = vmatpush1.msra.mxu0 %v285
        %437 = vmatprep.subr.mxu0 %v284
        %438 = vmatpush1.msra.mxu0 %v283
        %439 = vmatprep.subr.mxu0 %v282
        %440 = vmatpush1.msra.mxu0 %v281
        %441 = vmatprep.subr.mxu0 %v344
        %442 = vmatpush2.msra.mxu0 %v343
        %443 = vmatprep.subr.mxu0 %v342
        %444 = vmatpush2.msra.mxu0 %v341
        %445 = vmatprep.subr.mxu0 %v340
        %446 = vmatpush2.msra.mxu0 %v339
        %447 = vmatprep.subr.mxu0 %v338
        %448 = vmatpush2.msra.mxu0 %v337
        %449 = vmatprep.subr.mxu0 %v336
        %450 = vmatpush2.msra.mxu0 %v335
        %451 = vmatprep.subr.mxu0 %v334
        %452 = vmatpush2.msra.mxu0 %v333
        %453 = vmatprep.subr.mxu0 %v332
        %454 = vmatpush2.msra.mxu0 %v331
        %455 = vmatprep.subr.mxu0 %v330
        %456 = vmatpush2.msra.mxu0 %v329
        %457 = vmatprep.subr.mxu0 %v328
        %458 = vmatpush2.msra.mxu0 %v327
        %459 = vmatprep.subr.mxu0 %v326
        %460 = vmatpush2.msra.mxu0 %v325
        %461 = vmatprep.subr.mxu0 %v324
        %462 = vmatpush2.msra.mxu0 %v323
        %463 = vmatprep.subr.mxu0 %v322
        %464 = vmatpush2.msra.mxu0 %v321
        %465 = vmatprep.subr.mxu0 %v320
        %466 = vmatpush2.msra.mxu0 %v319
        %467 = vmatprep.subr.mxu0 %v318
        %468 = vmatpush2.msra.mxu0 %v317
        %469 = vmatprep.subr.mxu0 %v316
        %470 = vmatpush2.msra.mxu0 %v315
        %471 = vmatprep.subr.mxu0 %v314
        %472 = vmatpush2.msra.mxu0 %v313
        %473 = vmatprep.mubr.f32.mxu0 %v266
        %474 = vmatmul.mubr.f32.gmra.mxu0 %v265
        %v475 = vpop.f32.mrf.mxu0
        %v476 = vadd.f32 0.0, %v475
        %v477 = vpop.f32.mrf.mxu0
        %v478 = vadd.f32 0.0, %v477
        %479 = vmatprep.mubr.f32.mxu0 %v270
        %480 = vmatmul.mubr.f32.gmra.mxu0 %v269
        %v481 = vpop.f32.mrf.mxu0
        %v482 = vadd.f32 0.0, %v481
        %v483 = vpop.f32.mrf.mxu0
        %v484 = vadd.f32 0.0, %v483
        %485 = vmatprep.mubr.f32.mxu0 %v274
        %486 = vmatmul.mubr.f32.gmra.mxu0 %v273
        %v487 = vpop.f32.mrf.mxu0
        %v488 = vadd.f32 0.0, %v487
        %v489 = vpop.f32.mrf.mxu0
        %v490 = vadd.f32 0.0, %v489
        %491 = vmatprep.mubr.f32.mxu0 %v278
        %492 = vmatmul.mubr.f32.gmra.mxu0 %v277
        %v493 = vpop.f32.mrf.mxu0
        %v494 = vadd.f32 0.0, %v493
        %v495 = vpop.f32.mrf.mxu0
        %v496 = vadd.f32 0.0, %v495
        %497 = vdwg.mxu0
        %498 = vmatprep.subr.mxu0 %v376
        %499 = vmatpush1.msra.mxu0 %v375
        %500 = vmatprep.subr.mxu0 %v374
        %501 = vmatpush1.msra.mxu0 %v373
        %502 = vmatprep.subr.mxu0 %v372
        %503 = vmatpush1.msra.mxu0 %v371
        %504 = vmatprep.subr.mxu0 %v370
        %505 = vmatpush1.msra.mxu0 %v369
        %506 = vmatprep.subr.mxu0 %v368
        %507 = vmatpush1.msra.mxu0 %v367
        %508 = vmatprep.subr.mxu0 %v366
        %509 = vmatpush1.msra.mxu0 %v365
        %510 = vmatprep.subr.mxu0 %v364
        %511 = vmatpush1.msra.mxu0 %v363
        %512 = vmatprep.subr.mxu0 %v362
        %513 = vmatpush1.msra.mxu0 %v361
        %514 = vmatprep.subr.mxu0 %v360
        %515 = vmatpush1.msra.mxu0 %v359
        %516 = vmatprep.subr.mxu0 %v358
        %517 = vmatpush1.msra.mxu0 %v357
        %518 = vmatprep.subr.mxu0 %v356
        %519 = vmatpush1.msra.mxu0 %v355
        %520 = vmatprep.subr.mxu0 %v354
        %521 = vmatpush1.msra.mxu0 %v353
        %522 = vmatprep.subr.mxu0 %v352
        %523 = vmatpush1.msra.mxu0 %v351
        %524 = vmatprep.subr.mxu0 %v350
        %525 = vmatpush1.msra.mxu0 %v349
        %526 = vmatprep.subr.mxu0 %v348
        %527 = vmatpush1.msra.mxu0 %v347
        %528 = vmatprep.subr.mxu0 %v346
        %529 = vmatpush1.msra.mxu0 %v345
        %530 = vmatprep.subr.mxu0 %v408
        %531 = vmatpush2.msra.mxu0 %v407
        %532 = vmatprep.subr.mxu0 %v406
        %533 = vmatpush2.msra.mxu0 %v405
        %534 = vmatprep.subr.mxu0 %v404
        %535 = vmatpush2.msra.mxu0 %v403
        %536 = vmatprep.subr.mxu0 %v402
        %537 = vmatpush2.msra.mxu0 %v401
        %538 = vmatprep.subr.mxu0 %v400
        %539 = vmatpush2.msra.mxu0 %v399
        %540 = vmatprep.subr.mxu0 %v398
        %541 = vmatpush2.msra.mxu0 %v397
        %542 = vmatprep.subr.mxu0 %v396
        %543 = vmatpush2.msra.mxu0 %v395
        %544 = vmatprep.subr.mxu0 %v394
        %545 = vmatpush2.msra.mxu0 %v393
        %546 = vmatprep.subr.mxu0 %v392
        %547 = vmatpush2.msra.mxu0 %v391
        %548 = vmatprep.subr.mxu0 %v390
        %549 = vmatpush2.msra.mxu0 %v389
        %550 = vmatprep.subr.mxu0 %v388
        %551 = vmatpush2.msra.mxu0 %v387
        %552 = vmatprep.subr.mxu0 %v386
        %553 = vmatpush2.msra.mxu0 %v385
        %554 = vmatprep.subr.mxu0 %v384
        %555 = vmatpush2.msra.mxu0 %v383
        %556 = vmatprep.subr.mxu0 %v382
        %557 = vmatpush2.msra.mxu0 %v381
        %558 = vmatprep.subr.mxu0 %v380
        %559 = vmatpush2.msra.mxu0 %v379
        %560 = vmatprep.subr.mxu0 %v378
        %561 = vmatpush2.msra.mxu0 %v377
        %562 = vmatprep.mubr.f32.mxu0 %v268
        %563 = vmatmul.mubr.f32.gmra.mxu0 %v267
        %v564 = vpop.f32.mrf.mxu0
        %v565 = vadd.f32 %v476, %v564
        %v566 = vpop.f32.mrf.mxu0
        %v567 = vadd.f32 %v478, %v566
        %568 = vmatprep.mubr.f32.mxu0 %v272
        %569 = vmatmul.mubr.f32.gmra.mxu0 %v271
        %v570 = vpop.f32.mrf.mxu0
        %v571 = vadd.f32 %v482, %v570
        %v572 = vpop.f32.mrf.mxu0
        %v573 = vadd.f32 %v484, %v572
        %574 = vmatprep.mubr.f32.mxu0 %v276
        %575 = vmatmul.mubr.f32.gmra.mxu0 %v275
        %v576 = vpop.f32.mrf.mxu0
        %v577 = vadd.f32 %v488, %v576
        %v578 = vpop.f32.mrf.mxu0
        %v579 = vadd.f32 %v490, %v578
        %580 = vmatprep.mubr.f32.mxu0 %v280
        %581 = vmatmul.mubr.f32.gmra.mxu0 %v279
        %v582 = vpop.f32.mrf.mxu0
        %v583 = vadd.f32 %v494, %v582
        %v584 = vpop.f32.mrf.mxu0
        %v585 = vadd.f32 %v496, %v584
        %586 = vdwg.mxu0
        %v587 = vld [vmem:[%s2] sm:$0x1]
        %v589 = vlaneseq
        %v590 = vshrl.u32 %v589, 7
        %v591 = vsub.s32 0, %v590
        %v592 = vrot.slane %v587, %v591
        %v594 = vadd.f32 %v565, %v592
        %v595 = vadd.f32 %v571, %v592
        %v596 = vadd.f32 %v577, %v592
        %v597 = vadd.f32 %v583, %v592
        %598 = vst [vmem:[%s257] sm:$0xff] %v594
        %599 = vst [vmem:[%s257 + $0x8] sm:$0xff] %v595
        %600 = vst [vmem:[%s257 + $0x10] sm:$0xff] %v596
        %601 = vst [vmem:[%s257 + $0x18] sm:$0xff] %v597
        %602 = vst [vmem:[%s263] sm:$0xff] %v567
        %603 = vst [vmem:[%s263 + $0x8] sm:$0xff] %v573
        %604 = vst [vmem:[%s263 + $0x10] sm:$0xff] %v579
        %605 = vst [vmem:[%s263 + $0x18] sm:$0xff] %v585
        %s606 = smul.u32 4, %s16
        %p607 = scmp.lt.s32.totalorder %s606, 31
        %s608 = scalar_select %p607, %s606, 31
        %s609 = smul.addr %s608, 8
        %s610 = scalar_lea.vmem %s3, %s609
        %s611 = smul.u32 4, %s16
        %p612 = scmp.lt.s32.totalorder %s611, 31
        %s613 = scalar_select %p612, %s611, 31
        %s614 = smul.addr %s613, 8
        %s615 = scalar_lea.vmem %s4, %s614
        // Predicated region
        $region56: #{fwd.15} parent=50 // pred_check
          %p616 = pneg %p102
        $region57: #{fwd.15} parent=50 // pred_check_branch
          %618 = sbr.rel (%p616) target = $region59
        $region58: #{fwd.15} parent=50 // pred_region
          %s619 = smul.u32 4, %s16
        $region59: #{fwd.15} parent=50 // pred_fallthru
          _
        // Predicated region
        $region60: #{fwd.15} parent=50 // pred_check
          %p620 = pneg %p128
        $region61: #{fwd.15} parent=50 // pred_check_branch
          %622 = sbr.rel (%p620) target = $region63
        $region62: #{fwd.15} parent=50 // pred_region
          %s623 = smul.u32 4, %s16
        $region63: #{fwd.15} parent=50 // pred_fallthru
          _
      $region51: #{fwd.15} parent=5 // pred_fallthru
        _
      %p624 = scmp.le.s32.totalorder 2, %s11
      // Predicated region
      $region64: #{fwd.15} parent=5 // pred_check
        %p625 = pneg %p624
      $region65: #{fwd.15} parent=5 // pred_check_branch
        %627 = sbr.rel (%p625) target = $region67
      $region66: #{fwd.15} parent=5 // pred_region
        %s628 = ssub.s32 %s11, 2
        // Predicated region
        $region68: #{fwd.15} parent=66 // pred_check
          %p629 = pneg %p108
        $region69: #{fwd.15} parent=66 // pred_check_branch
          %631 = sbr.rel (%p629) target = $region71
        $region70: #{fwd.15} parent=66 // pred_region
          %s632 = smul.u32 4, %s17
          %p633 = scmp.lt.s32.totalorder %s632, 31
          %s634 = scalar_select %p633, %s632, 31
          %s635 = smul.addr %s634, 8
          %s636 = scalar_lea.vmem %s3, %s635
        $region71: #{fwd.15} parent=66 // pred_fallthru
          _
        // Predicated region
        $region72: #{fwd.15} parent=66 // pred_check
          %p637 = pneg %p134
        $region73: #{fwd.15} parent=66 // pred_check_branch
          %639 = sbr.rel (%p637) target = $region75
        $region74: #{fwd.15} parent=66 // pred_region
          %s640 = smul.u32 4, %s17
          %p641 = scmp.lt.s32.totalorder %s640, 31
          %s642 = scalar_select %p641, %s640, 31
          %s643 = smul.addr %s642, 8
          %s644 = scalar_lea.vmem %s4, %s643
        $region75: #{fwd.15} parent=66 // pred_fallthru
          _
      $region67: #{fwd.15} parent=5 // pred_fallthru
        _
    $region6: #{fwd.15} parent=1 // loop_footer
      %s15 = sadd.s32 1, %s11
    $region7: #{fwd.15} parent=1 // loop_footer_branch
      %10 = sbr.rel target = $region3
    $region8: #{fwd.15} parent=1 // loop_exit
      _

// kernel: fwd.17
$region0: #{fwd.17}
  #allocation0 [shape = 'u32[]', space=smem, size = 0x4, offset = 0x4, fixed_abs, tag = 'smem constant byte address 0x4 - core index']
  #allocation1 [shape = 'u32[144,128]{1,0:T(1,128)}', space=vmem, size = 0x12000, scoped, tag = 'internal scratch']
  %s0 = inlined_call_operand.vmem [shape: f32[256,640], index: 0, kind: input, shape index: {}]
  %s1 = inlined_call_operand.vmem [shape: f32[640,128], index: 1, kind: input, shape index: {}]
  %s2 = inlined_call_operand.vmem [shape: f32[1,128], index: 2, kind: input, shape index: {}]
  %s3 = inlined_call_operand.vmem [shape: f32[128,128], index: 3, kind: input, shape index: {}]
  %s4 = inlined_call_operand.vmem [shape: f32[1,128], index: 4, kind: input, shape index: {}]
  %s5 = inlined_call_operand.vmem [shape: f32[256,128], index: 5, kind: output, shape index: {}]
  %s6 = sld [smem:[#allocation0]]
  $region53: #{fwd.17} parent=0
    _
  %s8 = ssub.s32 1, %s6
  %s9 = scalar_select 0, %s8, %s6
  loop: start=0, step=1, limit=10
  $region2: #{fwd.17} parent=0 // loop_pre_header
    _
  $region3: #{fwd.17} parent=0 // loop_header
    %s11 = sphi 0, %s15
    %p12 = scmp.ge.s32.totalorder %s11, 10
    %s21 = sphi 0, %s23
    %s24 = sphi 0, %s21
    %s25 = sphi 0, %s24
    %s41 = sphi 0, %s25
    %s45 = sphi 0, %s45
    %s47 = sphi 0, %s45
    %s48 = sphi 0, %s47
    %s62 = sphi 0, %s48
    %s66 = sphi 0, %s66
    %s68 = sphi 0, %s66
    %s69 = sphi 0, %s68
    %s83 = sphi 0, %s69
    %s87 = sphi 0, %s87
    %s89 = sphi 0, %s87
    %s90 = sphi 0, %s89
    %s104 = sphi 0, %s90
    %s108 = sphi 0, %s108
    %s110 = sphi 0, %s108
    %s111 = sphi 0, %s110
    %s125 = sphi 0, %s111
    %s131 = sphi 0, %s133
    %s134 = sphi 0, %s131
    %s135 = sphi 0, %s134
    %s151 = sphi 0, %s135
  $region4: #{fwd.17} parent=0 // loop_header_branch
    %14 = sbr.rel (%p12) target = $region8
  $region5: #{fwd.17} parent=0 // loop_body
    %s16 = ssub.s32 %s11, 1
    %s17 = ssub.s32 %s11, 2
    %s18 = sadd.s32 %s11, 1
    %s19 = ssub.s32 %s11, %s18
    %p20 = scmp.eq.s32.totalorder %s19, 0
    %s22 = sadd.s32 %s21, 1
    %s23 = scalar_select %p20, %s21, %s22
    %p26 = pneg %p20
    %p27 = scmp.eq.s32.totalorder %s11, 7
    %p28 = por %p26, %p27
    %p29 = scmp.ne.s32.totalorder %s21, %s24
    %p30 = scmp.eq.s32.totalorder %s11, 0
    %p31 = por %p29, %p30
    %p32 = scmp.ne.s32.totalorder %s21, %s24
    %p33 = scmp.eq.s32.totalorder %s16, 7
    %p34 = por %p32, %p33
    %p35 = scmp.ne.s32.totalorder %s24, %s25
    %p36 = scmp.eq.s32.totalorder %s16, 0
    %p37 = por %p35, %p36
    %p38 = scmp.ne.s32.totalorder %s24, %s25
    %p39 = scmp.eq.s32.totalorder %s17, 7
    %p40 = por %p38, %p39
    %p42 = scmp.ne.s32.totalorder %s25, %s41
    %p43 = scmp.eq.s32.totalorder %s17, 0
    %p44 = por %p42, %p43
    %s46 = sadd.s32 %s45, 1
    %p49 = scmp.eq.s32.totalorder %s11, 7
    %p50 = scmp.ne.s32.totalorder %s45, %s47
    %p51 = scmp.eq.s32.totalorder %s11, 0
    %p52 = por %p50, %p51
    %p53 = scmp.ne.s32.totalorder %s45, %s47
    %p54 = scmp.eq.s32.totalorder %s16, 7
    %p55 = por %p53, %p54
    %p56 = scmp.ne.s32.totalorder %s47, %s48
    %p57 = scmp.eq.s32.totalorder %s16, 0
    %p58 = por %p56, %p57
    %p59 = scmp.ne.s32.totalorder %s47, %s48
    %p60 = scmp.eq.s32.totalorder %s17, 7
    %p61 = por %p59, %p60
    %p63 = scmp.ne.s32.totalorder %s48, %s62
    %p64 = scmp.eq.s32.totalorder %s17, 0
    %p65 = por %p63, %p64
    %s67 = sadd.s32 %s66, 1
    %p70 = scmp.eq.s32.totalorder %s11, 7
    %p71 = scmp.ne.s32.totalorder %s66, %s68
    %p72 = scmp.eq.s32.totalorder %s11, 0
    %p73 = por %p71, %p72
    %p74 = scmp.ne.s32.totalorder %s66, %s68
    %p75 = scmp.eq.s32.totalorder %s16, 7
    %p76 = por %p74, %p75
    %p77 = scmp.ne.s32.totalorder %s68, %s69
    %p78 = scmp.eq.s32.totalorder %s16, 0
    %p79 = por %p77, %p78
    %p80 = scmp.ne.s32.totalorder %s68, %s69
    %p81 = scmp.eq.s32.totalorder %s17, 7
    %p82 = por %p80, %p81
    %p84 = scmp.ne.s32.totalorder %s69, %s83
    %p85 = scmp.eq.s32.totalorder %s17, 0
    %p86 = por %p84, %p85
    %s88 = sadd.s32 %s87, 1
    %p91 = scmp.eq.s32.totalorder %s11, 7
    %p92 = scmp.ne.s32.totalorder %s87, %s89
    %p93 = scmp.eq.s32.totalorder %s11, 0
    %p94 = por %p92, %p93
    %p95 = scmp.ne.s32.totalorder %s87, %s89
    %p96 = scmp.eq.s32.totalorder %s16, 7
    %p97 = por %p95, %p96
    %p98 = scmp.ne.s32.totalorder %s89, %s90
    %p99 = scmp.eq.s32.totalorder %s16, 0
    %p100 = por %p98, %p99
    %p101 = scmp.ne.s32.totalorder %s89, %s90
    %p102 = scmp.eq.s32.totalorder %s17, 7
    %p103 = por %p101, %p102
    %p105 = scmp.ne.s32.totalorder %s90, %s104
    %p106 = scmp.eq.s32.totalorder %s17, 0
    %p107 = por %p105, %p106
    %s109 = sadd.s32 %s108, 1
    %p112 = scmp.eq.s32.totalorder %s11, 7
    %p113 = scmp.ne.s32.totalorder %s108, %s110
    %p114 = scmp.eq.s32.totalorder %s11, 0
    %p115 = por %p113, %p114
    %p116 = scmp.ne.s32.totalorder %s108, %s110
    %p117 = scmp.eq.s32.totalorder %s16, 7
    %p118 = por %p116, %p117
    %p119 = scmp.ne.s32.totalorder %s110, %s111
    %p120 = scmp.eq.s32.totalorder %s16, 0
    %p121 = por %p119, %p120
    %p122 = scmp.ne.s32.totalorder %s110, %s111
    %p123 = scmp.eq.s32.totalorder %s17, 7
    %p124 = por %p122, %p123
    %p126 = scmp.ne.s32.totalorder %s111, %s125
    %p127 = scmp.eq.s32.totalorder %s17, 0
    %p128 = por %p126, %p127
    %s129 = ssub.s32 %s11, %s18
    %p130 = scmp.eq.s32.totalorder %s129, 0
    %s132 = sadd.s32 %s131, 1
    %s133 = scalar_select %p130, %s131, %s132
    %p136 = pneg %p130
    %p137 = scmp.eq.s32.totalorder %s11, 7
    %p138 = por %p136, %p137
    %p139 = scmp.ne.s32.totalorder %s131, %s134
    %p140 = scmp.eq.s32.totalorder %s11, 0
    %p141 = por %p139, %p140
    %p142 = scmp.ne.s32.totalorder %s131, %s134
    %p143 = scmp.eq.s32.totalorder %s16, 7
    %p144 = por %p142, %p143
    %p145 = scmp.ne.s32.totalorder %s134, %s135
    %p146 = scmp.eq.s32.totalorder %s16, 0
    %p147 = por %p145, %p146
    %p148 = scmp.ne.s32.totalorder %s134, %s135
    %p149 = scmp.eq.s32.totalorder %s17, 7
    %p150 = por %p148, %p149
    %p152 = scmp.ne.s32.totalorder %s135, %s151
    %p153 = scmp.eq.s32.totalorder %s17, 0
    %p154 = por %p152, %p153
    %p155 = scmp.le.s32.totalorder 1, %s11
    %p156 = scmp.lt.s32.totalorder %s11, 9
    %p157 = pnand %p155, %p156
    %p158 = pneg %p157
    // Predicated region
    $region9: #{fwd.17} parent=5 // pred_check
      _
    $region10: #{fwd.17} parent=5 // pred_check_branch
      %160 = sbr.rel (%p157) target = $region12
    $region11: #{fwd.17} parent=5 // pred_region
      %s161 = ssub.s32 %s11, 1
      // Predicated region
      $region13: #{fwd.17} parent=11 // pred_check
        %p162 = pneg %p58
      $region14: #{fwd.17} parent=11 // pred_check_branch
        %164 = sbr.rel (%p162) target = $region16
      $region15: #{fwd.17} parent=11 // pred_region
        _
      $region16: #{fwd.17} parent=11 // pred_fallthru
        _
      // Predicated region
      $region17: #{fwd.17} parent=11 // pred_check
        %p165 = pneg %p79
      $region18: #{fwd.17} parent=11 // pred_check_branch
        %167 = sbr.rel (%p165) target = $region20
      $region19: #{fwd.17} parent=11 // pred_region
        _
      $region20: #{fwd.17} parent=11 // pred_fallthru
        _
      // Predicated region
      $region21: #{fwd.17} parent=11 // pred_check
        %p168 = pneg %p100
      $region22: #{fwd.17} parent=11 // pred_check_branch
        %170 = sbr.rel (%p168) target = $region24
      $region23: #{fwd.17} parent=11 // pred_region
        _
      $region24: #{fwd.17} parent=11 // pred_fallthru
        _
      // Predicated region
      $region25: #{fwd.17} parent=11 // pred_check
        %p171 = pneg %p121
      $region26: #{fwd.17} parent=11 // pred_check_branch
        %173 = sbr.rel (%p171) target = $region28
      $region27: #{fwd.17} parent=11 // pred_region
        _
      $region28: #{fwd.17} parent=11 // pred_fallthru
        _
    $region12: #{fwd.17} parent=5 // pred_fallthru
      _
    %p174 = scmp.lt.s32.totalorder %s11, 8
    // Predicated region
    $region29: #{fwd.17} parent=5 // pred_check
      %p175 = pneg %p174
    $region30: #{fwd.17} parent=5 // pred_check_branch
      %177 = sbr.rel (%p175) target = $region32
    $region31: #{fwd.17} parent=5 // pred_region
      // Predicated region
      $region33: #{fwd.17} parent=31 // pred_check
        %p178 = pneg %p31
      $region34: #{fwd.17} parent=31 // pred_check_branch
        %180 = sbr.rel (%p178) target = $region36
      $region35: #{fwd.17} parent=31 // pred_region
        %s181 = smul.u32 4, %s11
        %p182 = scmp.lt.s32.totalorder %s181, 31
        %s183 = scalar_select %p182, %s181, 31
        %s184 = smul.addr %s183, 5
        %s185 = smul.addr %s184, 8
        %s186 = scalar_lea.vmem %s0, %s185
        %s187 = smul.u32 4, %s11
      $region36: #{fwd.17} parent=31 // pred_fallthru
        _
    $region32: #{fwd.17} parent=5 // pred_fallthru
      _
    %p188 = scmp.le.s32.totalorder 1, %s11
    %p189 = scmp.lt.s32.totalorder %s11, 9
    %p190 = pnand %p188, %p189
    %p191 = pneg %p190
    // Predicated region
    $region37: #{fwd.17} parent=5 // pred_check
      _
    $region38: #{fwd.17} parent=5 // pred_check_branch
      %193 = sbr.rel (%p190) target = $region40
    $region39: #{fwd.17} parent=5 // pred_region
      %s194 = ssub.s32 %s11, 1
      %s195 = smul.u32 4, %s16
      %p196 = scmp.lt.s32.totalorder %s195, 31
      %s197 = scalar_select %p196, %s195, 31
      %s198 = smul.addr %s197, 5
      %s199 = smul.addr %s198, 8
      %s200 = scalar_lea.vmem %s0, %s199
      %p201 = pneg %p37
      %p202 = pneg %p34
      %p203 = pneg %p58
      %p204 = pneg %p55
      %p205 = pneg %p79
      %p206 = pneg %p76
      %p207 = pneg %p100
      %p208 = pneg %p97
      %p209 = pneg %p121
      %p210 = pneg %p118
      %p211 = pneg %p147
      %p212 = pneg %p144
      %s213 = smul.u32 4, %s16
      %p214 = scmp.lt.s32.totalorder %s213, 31
      %s215 = scalar_select %p214, %s213, 31
      %s216 = smul.addr %s215, 8
      %s217 = scalar_lea.vmem %s5, %s216
      %s218 = smul.u32 4, %s16
      %p219 = scmp.lt.s32.totalorder %s218, 31
      %s220 = scalar_select %p219, %s218, 31
      %s221 = smul.addr %s220, 5
      %s222 = smul.addr %s221, 8
      %s223 = scalar_lea.vmem %s0, %s222
      %s224 = smul.u32 4, %s16
      %s225 = smul.u32 4, %s16
      %p226 = scmp.lt.s32.totalorder %s225, 31
      %s227 = scalar_select %p226, %s225, 31
      %s228 = smul.addr %s227, 8
      %s229 = scalar_lea.vmem %s5, %s228
      %s230 = smul.u32 4, %s16
      %v231 = vld [vmem:[%s223] sm:$0xff]
      %v232 = vld [vmem:[%s223 + $0x8] sm:$0xff]
      %v233 = vld [vmem:[%s223 + $0x10] sm:$0xff]
      %v234 = vld [vmem:[%s223 + $0x18] sm:$0xff]
      %v235 = vld [vmem:[%s223 + $0x20] sm:$0xff]
      %v236 = vld [vmem:[%s223 + $0x28] sm:$0xff]
      %v237 = vld [vmem:[%s223 + $0x30] sm:$0xff]
      %v238 = vld [vmem:[%s223 + $0x38] sm:$0xff]
      %v239 = vld [vmem:[%s223 + $0x40] sm:$0xff]
      %v240 = vld [vmem:[%s223 + $0x48] sm:$0xff]
      %v241 = vld [vmem:[%s223 + $0x50] sm:$0xff]
      %v242 = vld [vmem:[%s223 + $0x58] sm:$0xff]
      %v243 = vld [vmem:[%s223 + $0x60] sm:$0xff]
      %v244 = vld [vmem:[%s223 + $0x68] sm:$0xff]
      %v245 = vld [vmem:[%s223 + $0x70] sm:$0xff]
      %v246 = vld [vmem:[%s223 + $0x78] sm:$0xff]
      %v247 = vld [vmem:[%s223 + $0x80] sm:$0xff]
      %v248 = vld [vmem:[%s223 + $0x88] sm:$0xff]
      %v249 = vld [vmem:[%s223 + $0x90] sm:$0xff]
      %v250 = vld [vmem:[%s223 + $0x98] sm:$0xff]
      %v251 = vld [vmem:[%s1] sm:$0xff]
      %v252 = vld [vmem:[%s1 + $0x8] sm:$0xff]
      %v253 = vld [vmem:[%s1 + $0x10] sm:$0xff]
      %v254 = vld [vmem:[%s1 + $0x18] sm:$0xff]
      %v255 = vld [vmem:[%s1 + $0x20] sm:$0xff]
      %v256 = vld [vmem:[%s1 + $0x28] sm:$0xff]
      %v257 = vld [vmem:[%s1 + $0x30] sm:$0xff]
      %v258 = vld [vmem:[%s1 + $0x38] sm:$0xff]
      %v259 = vld [vmem:[%s1 + $0x40] sm:$0xff]
      %v260 = vld [vmem:[%s1 + $0x48] sm:$0xff]
      %v261 = vld [vmem:[%s1 + $0x50] sm:$0xff]
      %v262 = vld [vmem:[%s1 + $0x58] sm:$0xff]
      %v263 = vld [vmem:[%s1 + $0x60] sm:$0xff]
      %v264 = vld [vmem:[%s1 + $0x68] sm:$0xff]
      %v265 = vld [vmem:[%s1 + $0x70] sm:$0xff]
      %v266 = vld [vmem:[%s1 + $0x78] sm:$0xff]
      %v267 = vld [vmem:[%s1 + $0x80] sm:$0xff]
      %v268 = vld [vmem:[%s1 + $0x88] sm:$0xff]
      %v269 = vld [vmem:[%s1 + $0x90] sm:$0xff]
      %v270 = vld [vmem:[%s1 + $0x98] sm:$0xff]
      %v271 = vld [vmem:[%s1 + $0xa0] sm:$0xff]
      %v272 = vld [vmem:[%s1 + $0xa8] sm:$0xff]
      %v273 = vld [vmem:[%s1 + $0xb0] sm:$0xff]
      %v274 = vld [vmem:[%s1 + $0xb8] sm:$0xff]
      %v275 = vld [vmem:[%s1 + $0xc0] sm:$0xff]
      %v276 = vld [vmem:[%s1 + $0xc8] sm:$0xff]
      %v277 = vld [vmem:[%s1 + $0xd0] sm:$0xff]
      %v278 = vld [vmem:[%s1 + $0xd8] sm:$0xff]
      %v279 = vld [vmem:[%s1 + $0xe0] sm:$0xff]
      %v280 = vld [vmem:[%s1 + $0xe8] sm:$0xff]
      %v281 = vld [vmem:[%s1 + $0xf0] sm:$0xff]
      %v282 = vld [vmem:[%s1 + $0xf8] sm:$0xff]
      %v283 = vld [vmem:[%s1 + $0x100] sm:$0xff]
      %v284 = vld [vmem:[%s1 + $0x108] sm:$0xff]
      %v285 = vld [vmem:[%s1 + $0x110] sm:$0xff]
      %v286 = vld [vmem:[%s1 + $0x118] sm:$0xff]
      %v287 = vld [vmem:[%s1 + $0x120] sm:$0xff]
      %v288 = vld [vmem:[%s1 + $0x128] sm:$0xff]
      %v289 = vld [vmem:[%s1 + $0x130] sm:$0xff]
      %v290 = vld [vmem:[%s1 + $0x138] sm:$0xff]
      %v291 = vld [vmem:[%s1 + $0x140] sm:$0xff]
      %v292 = vld [vmem:[%s1 + $0x148] sm:$0xff]
      %v293 = vld [vmem:[%s1 + $0x150] sm:$0xff]
      %v294 = vld [vmem:[%s1 + $0x158] sm:$0xff]
      %v295 = vld [vmem:[%s1 + $0x160] sm:$0xff]
      %v296 = vld [vmem:[%s1 + $0x168] sm:$0xff]
      %v297 = vld [vmem:[%s1 + $0x170] sm:$0xff]
      %v298 = vld [vmem:[%s1 + $0x178] sm:$0xff]
      %v299 = vld [vmem:[%s1 + $0x180] sm:$0xff]
      %v300 = vld [vmem:[%s1 + $0x188] sm:$0xff]
      %v301 = vld [vmem:[%s1 + $0x190] sm:$0xff]
      %v302 = vld [vmem:[%s1 + $0x198] sm:$0xff]
      %v303 = vld [vmem:[%s1 + $0x1a0] sm:$0xff]
      %v304 = vld [vmem:[%s1 + $0x1a8] sm:$0xff]
      %v305 = vld [vmem:[%s1 + $0x1b0] sm:$0xff]
      %v306 = vld [vmem:[%s1 + $0x1b8] sm:$0xff]
      %v307 = vld [vmem:[%s1 + $0x1c0] sm:$0xff]
      %v308 = vld [vmem:[%s1 + $0x1c8] sm:$0xff]
      %v309 = vld [vmem:[%s1 + $0x1d0] sm:$0xff]
      %v310 = vld [vmem:[%s1 + $0x1d8] sm:$0xff]
      %v311 = vld [vmem:[%s1 + $0x1e0] sm:$0xff]
      %v312 = vld [vmem:[%s1 + $0x1e8] sm:$0xff]
      %v313 = vld [vmem:[%s1 + $0x1f0] sm:$0xff]
      %v314 = vld [vmem:[%s1 + $0x1f8] sm:$0xff]
      %v315 = vld [vmem:[%s1 + $0x200] sm:$0xff]
      %v316 = vld [vmem:[%s1 + $0x208] sm:$0xff]
      %v317 = vld [vmem:[%s1 + $0x210] sm:$0xff]
      %v318 = vld [vmem:[%s1 + $0x218] sm:$0xff]
      %v319 = vld [vmem:[%s1 + $0x220] sm:$0xff]
      %v320 = vld [vmem:[%s1 + $0x228] sm:$0xff]
      %v321 = vld [vmem:[%s1 + $0x230] sm:$0xff]
      %v322 = vld [vmem:[%s1 + $0x238] sm:$0xff]
      %v323 = vld [vmem:[%s1 + $0x240] sm:$0xff]
      %v324 = vld [vmem:[%s1 + $0x248] sm:$0xff]
      %v325 = vld [vmem:[%s1 + $0x250] sm:$0xff]
      %v326 = vld [vmem:[%s1 + $0x258] sm:$0xff]
      %v327 = vld [vmem:[%s1 + $0x260] sm:$0xff]
      %v328 = vld [vmem:[%s1 + $0x268] sm:$0xff]
      %v329 = vld [vmem:[%s1 + $0x270] sm:$0xff]
      %v330 = vld [vmem:[%s1 + $0x278] sm:$0xff]
      %v331 = vld [vmem:[%s2] sm:$0x1]
      %v333 = vlaneseq
      %v334 = vshrl.u32 %v333, 7
      %v335 = vsub.s32 0, %v334
      %v336 = vrot.slane %v331, %v335
      %338 = vmatprep.subr.mxu0 0.0
      %339 = vmatpush1.msra.mxu0 %v266
      %340 = vmatprep.subr.mxu0 0.0
      %341 = vmatpush1.msra.mxu0 %v265
      %342 = vmatprep.subr.mxu0 0.0
      %343 = vmatpush1.msra.mxu0 %v264
      %344 = vmatprep.subr.mxu0 0.0
      %345 = vmatpush1.msra.mxu0 %v263
      %346 = vmatprep.subr.mxu0 0.0
      %347 = vmatpush1.msra.mxu0 %v262
      %348 = vmatprep.subr.mxu0 0.0
      %349 = vmatpush1.msra.mxu0 %v261
      %350 = vmatprep.subr.mxu0 0.0
      %351 = vmatpush1.msra.mxu0 %v260
      %352 = vmatprep.subr.mxu0 0.0
      %353 = vmatpush1.msra.mxu0 %v259
      %354 = vmatprep.subr.mxu0 0.0
      %355 = vmatpush1.msra.mxu0 %v258
      %356 = vmatprep.subr.mxu0 0.0
      %357 = vmatpush1.msra.mxu0 %v257
      %358 = vmatprep.subr.mxu0 0.0
      %359 = vmatpush1.msra.mxu0 %v256
      %360 = vmatprep.subr.mxu0 0.0
      %361 = vmatpush1.msra.mxu0 %v255
      %362 = vmatprep.subr.mxu0 0.0
      %363 = vmatpush1.msra.mxu0 %v254
      %364 = vmatprep.subr.mxu0 0.0
      %365 = vmatpush1.msra.mxu0 %v253
      %366 = vmatprep.subr.mxu0 0.0
      %367 = vmatpush1.msra.mxu0 %v252
      %368 = vmatprep.subr.mxu0 0.0
      %369 = vmatpush1.msra.mxu0 %v251
      %370 = vmatprep.subr.mxu0 0.0
      %371 = vmatpush2.msra.mxu0 %v282
      %372 = vmatprep.subr.mxu0 0.0
      %373 = vmatpush2.msra.mxu0 %v281
      %374 = vmatprep.subr.mxu0 0.0
      %375 = vmatpush2.msra.mxu0 %v280
      %376 = vmatprep.subr.mxu0 0.0
      %377 = vmatpush2.msra.mxu0 %v279
      %378 = vmatprep.subr.mxu0 0.0
      %379 = vmatpush2.msra.mxu0 %v278
      %380 = vmatprep.subr.mxu0 0.0
      %381 = vmatpush2.msra.mxu0 %v277
      %382 = vmatprep.subr.mxu0 0.0
      %383 = vmatpush2.msra.mxu0 %v276
      %384 = vmatprep.subr.mxu0 0.0
      %385 = vmatpush2.msra.mxu0 %v275
      %386 = vmatprep.subr.mxu0 0.0
      %387 = vmatpush2.msra.mxu0 %v274
      %388 = vmatprep.subr.mxu0 0.0
      %389 = vmatpush2.msra.mxu0 %v273
      %390 = vmatprep.subr.mxu0 0.0
      %391 = vmatpush2.msra.mxu0 %v272
      %392 = vmatprep.subr.mxu0 0.0
      %393 = vmatpush2.msra.mxu0 %v271
      %394 = vmatprep.subr.mxu0 0.0
      %395 = vmatpush2.msra.mxu0 %v270
      %396 = vmatprep.subr.mxu0 0.0
      %397 = vmatpush2.msra.mxu0 %v269
      %398 = vmatprep.subr.mxu0 0.0
      %399 = vmatpush2.msra.mxu0 %v268
      %400 = vmatprep.subr.mxu0 0.0
      %401 = vmatpush2.msra.mxu0 %v267
      %402 = vmatprep.mubr.f32.mxu0 %v232
      %403 = vmatmul.mubr.f32.gmra.mxu0 %v231
      %v404 = vpop.f32.mrf.mxu0
      %v405 = vadd.f32 %v336, %v404
      %v406 = vpop.f32.mrf.mxu0
      %407 = vmatprep.mubr.f32.mxu0 %v237
      %408 = vmatmul.mubr.f32.gmra.mxu0 %v236
      %v409 = vpop.f32.mrf.mxu0
      %v410 = vadd.f32 %v336, %v409
      %v411 = vpop.f32.mrf.mxu0
      %412 = vmatprep.mubr.f32.mxu0 %v242
      %413 = vmatmul.mubr.f32.gmra.mxu0 %v241
      %v414 = vpop.f32.mrf.mxu0
      %v415 = vadd.f32 %v336, %v414
      %v416 = vpop.f32.mrf.mxu0
      %417 = vmatprep.mubr.f32.mxu0 %v247
      %418 = vmatmul.mubr.f32.gmra.mxu0 %v246
      %v419 = vpop.f32.mrf.mxu0
      %v420 = vadd.f32 %v336, %v419
      %v421 = vpop.f32.mrf.mxu0
      %422 = vdwg.mxu0
      %423 = vmatprep.subr.mxu0 0.0
      %424 = vmatpush1.msra.mxu0 %v298
      %425 = vmatprep.subr.mxu0 0.0
      %426 = vmatpush1.msra.mxu0 %v297
      %427 = vmatprep.subr.mxu0 0.0
      %428 = vmatpush1.msra.mxu0 %v296
      %429 = vmatprep.subr.mxu0 0.0
      %430 = vmatpush1.msra.mxu0 %v295
      %431 = vmatprep.subr.mxu0 0.0
      %432 = vmatpush1.msra.mxu0 %v294
      %433 = vmatprep.subr.mxu0 0.0
      %434 = vmatpush1.msra.mxu0 %v293
      %435 = vmatprep.subr.mxu0 0.0
      %436 = vmatpush1.msra.mxu0 %v292
      %437 = vmatprep.subr.mxu0 0.0
      %438 = vmatpush1.msra.mxu0 %v291
      %439 = vmatprep.subr.mxu0 0.0
      %440 = vmatpush1.msra.mxu0 %v290
      %441 = vmatprep.subr.mxu0 0.0
      %442 = vmatpush1.msra.mxu0 %v289
      %443 = vmatprep.subr.mxu0 0.0
      %444 = vmatpush1.msra.mxu0 %v288
      %445 = vmatprep.subr.mxu0 0.0
      %446 = vmatpush1.msra.mxu0 %v287
      %447 = vmatprep.subr.mxu0 0.0
      %448 = vmatpush1.msra.mxu0 %v286
      %449 = vmatprep.subr.mxu0 0.0
      %450 = vmatpush1.msra.mxu0 %v285
      %451 = vmatprep.subr.mxu0 0.0
      %452 = vmatpush1.msra.mxu0 %v284
      %453 = vmatprep.subr.mxu0 0.0
      %454 = vmatpush1.msra.mxu0 %v283
      %455 = vmatprep.subr.mxu0 0.0
      %456 = vmatpush2.msra.mxu0 %v314
      %457 = vmatprep.subr.mxu0 0.0
      %458 = vmatpush2.msra.mxu0 %v313
      %459 = vmatprep.subr.mxu0 0.0
      %460 = vmatpush2.msra.mxu0 %v312
      %461 = vmatprep.subr.mxu0 0.0
      %462 = vmatpush2.msra.mxu0 %v311
      %463 = vmatprep.subr.mxu0 0.0
      %464 = vmatpush2.msra.mxu0 %v310
      %465 = vmatprep.subr.mxu0 0.0
      %466 = vmatpush2.msra.mxu0 %v309
      %467 = vmatprep.subr.mxu0 0.0
      %468 = vmatpush2.msra.mxu0 %v308
      %469 = vmatprep.subr.mxu0 0.0
      %470 = vmatpush2.msra.mxu0 %v307
      %471 = vmatprep.subr.mxu0 0.0
      %472 = vmatpush2.msra.mxu0 %v306
      %473 = vmatprep.subr.mxu0 0.0
      %474 = vmatpush2.msra.mxu0 %v305
      %475 = vmatprep.subr.mxu0 0.0
      %476 = vmatpush2.msra.mxu0 %v304
      %477 = vmatprep.subr.mxu0 0.0
      %478 = vmatpush2.msra.mxu0 %v303
      %479 = vmatprep.subr.mxu0 0.0
      %480 = vmatpush2.msra.mxu0 %v302
      %481 = vmatprep.subr.mxu0 0.0
      %482 = vmatpush2.msra.mxu0 %v301
      %483 = vmatprep.subr.mxu0 0.0
      %484 = vmatpush2.msra.mxu0 %v300
      %485 = vmatprep.subr.mxu0 0.0
      %486 = vmatpush2.msra.mxu0 %v299
      %487 = vmatprep.mubr.f32.mxu0 %v234
      %488 = vmatmul.mubr.f32.gmra.mxu0 %v233
      %v489 = vpop.f32.mrf.mxu0
      %v490 = vadd.f32 %v405, %v489
      %v491 = vpop.f32.mrf.mxu0
      %492 = vmatprep.mubr.f32.mxu0 %v239
      %493 = vmatmul.mubr.f32.gmra.mxu0 %v238
      %v494 = vpop.f32.mrf.mxu0
      %v495 = vadd.f32 %v410, %v494
      %v496 = vpop.f32.mrf.mxu0
      %497 = vmatprep.mubr.f32.mxu0 %v244
      %498 = vmatmul.mubr.f32.gmra.mxu0 %v243
      %v499 = vpop.f32.mrf.mxu0
      %v500 = vadd.f32 %v415, %v499
      %v501 = vpop.f32.mrf.mxu0
      %502 = vmatprep.mubr.f32.mxu0 %v249
      %503 = vmatmul.mubr.f32.gmra.mxu0 %v248
      %v504 = vpop.f32.mrf.mxu0
      %v505 = vadd.f32 %v420, %v504
      %v506 = vpop.f32.mrf.mxu0
      %507 = vdwg.mxu0
      %508 = vmatprep.subr.mxu0 0.0
      %509 = vmatpush1.msra.mxu0 %v330
      %510 = vmatprep.subr.mxu0 0.0
      %511 = vmatpush1.msra.mxu0 %v329
      %512 = vmatprep.subr.mxu0 0.0
      %513 = vmatpush1.msra.mxu0 %v328
      %514 = vmatprep.subr.mxu0 0.0
      %515 = vmatpush1.msra.mxu0 %v327
      %516 = vmatprep.subr.mxu0 0.0
      %517 = vmatpush1.msra.mxu0 %v326
      %518 = vmatprep.subr.mxu0 0.0
      %519 = vmatpush1.msra.mxu0 %v325
      %520 = vmatprep.subr.mxu0 0.0
      %521 = vmatpush1.msra.mxu0 %v324
      %522 = vmatprep.subr.mxu0 0.0
      %523 = vmatpush1.msra.mxu0 %v323
      %524 = vmatprep.subr.mxu0 0.0
      %525 = vmatpush1.msra.mxu0 %v322
      %526 = vmatprep.subr.mxu0 0.0
      %527 = vmatpush1.msra.mxu0 %v321
      %528 = vmatprep.subr.mxu0 0.0
      %529 = vmatpush1.msra.mxu0 %v320
      %530 = vmatprep.subr.mxu0 0.0
      %531 = vmatpush1.msra.mxu0 %v319
      %532 = vmatprep.subr.mxu0 0.0
      %533 = vmatpush1.msra.mxu0 %v318
      %534 = vmatprep.subr.mxu0 0.0
      %535 = vmatpush1.msra.mxu0 %v317
      %536 = vmatprep.subr.mxu0 0.0
      %537 = vmatpush1.msra.mxu0 %v316
      %538 = vmatprep.subr.mxu0 0.0
      %539 = vmatpush1.msra.mxu0 %v315
      %540 = vmatprep.subr.mxu0 0.0
      %541 = vmatpush2.msra.mxu0 0.0
      %542 = vmatprep.subr.mxu0 0.0
      %543 = vmatpush2.msra.mxu0 0.0
      %544 = vmatprep.subr.mxu0 0.0
      %545 = vmatpush2.msra.mxu0 0.0
      %546 = vmatprep.subr.mxu0 0.0
      %547 = vmatpush2.msra.mxu0 0.0
      %548 = vmatprep.subr.mxu0 0.0
      %549 = vmatpush2.msra.mxu0 0.0
      %550 = vmatprep.subr.mxu0 0.0
      %551 = vmatpush2.msra.mxu0 0.0
      %552 = vmatprep.subr.mxu0 0.0
      %553 = vmatpush2.msra.mxu0 0.0
      %554 = vmatprep.subr.mxu0 0.0
      %555 = vmatpush2.msra.mxu0 0.0
      %556 = vmatprep.subr.mxu0 0.0
      %557 = vmatpush2.msra.mxu0 0.0
      %558 = vmatprep.subr.mxu0 0.0
      %559 = vmatpush2.msra.mxu0 0.0
      %560 = vmatprep.subr.mxu0 0.0
      %561 = vmatpush2.msra.mxu0 0.0
      %562 = vmatprep.subr.mxu0 0.0
      %563 = vmatpush2.msra.mxu0 0.0
      %564 = vmatprep.subr.mxu0 0.0
      %565 = vmatpush2.msra.mxu0 0.0
      %566 = vmatprep.subr.mxu0 0.0
      %567 = vmatpush2.msra.mxu0 0.0
      %568 = vmatprep.subr.mxu0 0.0
      %569 = vmatpush2.msra.mxu0 0.0
      %570 = vmatprep.subr.mxu0 0.0
      %571 = vmatpush2.msra.mxu0 0.0
      %572 = vmatprep.mubr.f32.mxu0 0.0
      %573 = vmatmul.mubr.f32.gmra.mxu0 %v235
      %v574 = vpop.f32.mrf.mxu0
      %v575 = vadd.f32 %v490, %v574
      %v576 = vpop.f32.mrf.mxu0
      %577 = vmatprep.mubr.f32.mxu0 0.0
      %578 = vmatmul.mubr.f32.gmra.mxu0 %v240
      %v579 = vpop.f32.mrf.mxu0
      %v580 = vadd.f32 %v495, %v579
      %v581 = vpop.f32.mrf.mxu0
      %582 = vmatprep.mubr.f32.mxu0 0.0
      %583 = vmatmul.mubr.f32.gmra.mxu0 %v245
      %v584 = vpop.f32.mrf.mxu0
      %v585 = vadd.f32 %v500, %v584
      %v586 = vpop.f32.mrf.mxu0
      %587 = vmatprep.mubr.f32.mxu0 0.0
      %588 = vmatmul.mubr.f32.gmra.mxu0 %v250
      %v589 = vpop.f32.mrf.mxu0
      %v590 = vadd.f32 %v505, %v589
      %v591 = vpop.f32.mrf.mxu0
      %592 = vdwg.mxu0
      %v593 = vld [vmem:[%s3] sm:$0xff]
      %v594 = vld [vmem:[%s3 + $0x8] sm:$0xff]
      %v595 = vld [vmem:[%s3 + $0x10] sm:$0xff]
      %v596 = vld [vmem:[%s3 + $0x18] sm:$0xff]
      %v597 = vld [vmem:[%s3 + $0x20] sm:$0xff]
      %v598 = vld [vmem:[%s3 + $0x28] sm:$0xff]
      %v599 = vld [vmem:[%s3 + $0x30] sm:$0xff]
      %v600 = vld [vmem:[%s3 + $0x38] sm:$0xff]
      %v601 = vld [vmem:[%s3 + $0x40] sm:$0xff]
      %v602 = vld [vmem:[%s3 + $0x48] sm:$0xff]
      %v603 = vld [vmem:[%s3 + $0x50] sm:$0xff]
      %v604 = vld [vmem:[%s3 + $0x58] sm:$0xff]
      %v605 = vld [vmem:[%s3 + $0x60] sm:$0xff]
      %v606 = vld [vmem:[%s3 + $0x68] sm:$0xff]
      %v607 = vld [vmem:[%s3 + $0x70] sm:$0xff]
      %v608 = vld [vmem:[%s3 + $0x78] sm:$0xff]
      %v609 = vld [vmem:[%s4] sm:$0x1]
      %v611 = vlaneseq
      %v612 = vshrl.u32 %v611, 7
      %v613 = vsub.s32 0, %v612
      %v614 = vrot.slane %v609, %v613
      %616 = vmatprep.subr.mxu0 0.0
      %617 = vmatpush1.msra.mxu0 %v608
      %618 = vmatprep.subr.mxu0 0.0
      %619 = vmatpush1.msra.mxu0 %v607
      %620 = vmatprep.subr.mxu0 0.0
      %621 = vmatpush1.msra.mxu0 %v606
      %622 = vmatprep.subr.mxu0 0.0
      %623 = vmatpush1.msra.mxu0 %v605
      %624 = vmatprep.subr.mxu0 0.0
      %625 = vmatpush1.msra.mxu0 %v604
      %626 = vmatprep.subr.mxu0 0.0
      %627 = vmatpush1.msra.mxu0 %v603
      %628 = vmatprep.subr.mxu0 0.0
      %629 = vmatpush1.msra.mxu0 %v602
      %630 = vmatprep.subr.mxu0 0.0
      %631 = vmatpush1.msra.mxu0 %v601
      %632 = vmatprep.subr.mxu0 0.0
      %633 = vmatpush1.msra.mxu0 %v600
      %634 = vmatprep.subr.mxu0 0.0
      %635 = vmatpush1.msra.mxu0 %v599
      %636 = vmatprep.subr.mxu0 0.0
      %637 = vmatpush1.msra.mxu0 %v598
      %638 = vmatprep.subr.mxu0 0.0
      %639 = vmatpush1.msra.mxu0 %v597
      %640 = vmatprep.subr.mxu0 0.0
      %641 = vmatpush1.msra.mxu0 %v596
      %642 = vmatprep.subr.mxu0 0.0
      %643 = vmatpush1.msra.mxu0 %v595
      %644 = vmatprep.subr.mxu0 0.0
      %645 = vmatpush1.msra.mxu0 %v594
      %646 = vmatprep.subr.mxu0 0.0
      %647 = vmatpush1.msra.mxu0 %v593
      %648 = vmatprep.subr.mxu0 0.0
      %649 = vmatpush2.msra.mxu0 0.0
      %650 = vmatprep.subr.mxu0 0.0
      %651 = vmatpush2.msra.mxu0 0.0
      %652 = vmatprep.subr.mxu0 0.0
      %653 = vmatpush2.msra.mxu0 0.0
      %654 = vmatprep.subr.mxu0 0.0
      %655 = vmatpush2.msra.mxu0 0.0
      %656 = vmatprep.subr.mxu0 0.0
      %657 = vmatpush2.msra.mxu0 0.0
      %658 = vmatprep.subr.mxu0 0.0
      %659 = vmatpush2.msra.mxu0 0.0
      %660 = vmatprep.subr.mxu0 0.0
      %661 = vmatpush2.msra.mxu0 0.0
      %662 = vmatprep.subr.mxu0 0.0
      %663 = vmatpush2.msra.mxu0 0.0
      %664 = vmatprep.subr.mxu0 0.0
      %665 = vmatpush2.msra.mxu0 0.0
      %666 = vmatprep.subr.mxu0 0.0
      %667 = vmatpush2.msra.mxu0 0.0
      %668 = vmatprep.subr.mxu0 0.0
      %669 = vmatpush2.msra.mxu0 0.0
      %670 = vmatprep.subr.mxu0 0.0
      %671 = vmatpush2.msra.mxu0 0.0
      %672 = vmatprep.subr.mxu0 0.0
      %673 = vmatpush2.msra.mxu0 0.0
      %674 = vmatprep.subr.mxu0 0.0
      %675 = vmatpush2.msra.mxu0 0.0
      %676 = vmatprep.subr.mxu0 0.0
      %677 = vmatpush2.msra.mxu0 0.0
      %678 = vmatprep.subr.mxu0 0.0
      %679 = vmatpush2.msra.mxu0 0.0
      %680 = vmatprep.mubr.f32.mxu0 0.0
      %681 = vmatmul.mubr.f32.gmra.mxu0 %v575
      %v682 = vpop.f32.mrf.mxu0
      %v683 = vadd.f32 %v614, %v682
      %v684 = vpop.f32.mrf.mxu0
      %685 = vmatprep.mubr.f32.mxu0 0.0
      %686 = vmatmul.mubr.f32.gmra.mxu0 %v580
      %v687 = vpop.f32.mrf.mxu0
      %v688 = vadd.f32 %v614, %v687
      %v689 = vpop.f32.mrf.mxu0
      %690 = vmatprep.mubr.f32.mxu0 0.0
      %691 = vmatmul.mubr.f32.gmra.mxu0 %v585
      %v692 = vpop.f32.mrf.mxu0
      %v693 = vadd.f32 %v614, %v692
      %v694 = vpop.f32.mrf.mxu0
      %695 = vmatprep.mubr.f32.mxu0 0.0
      %696 = vmatmul.mubr.f32.gmra.mxu0 %v590
      %v697 = vpop.f32.mrf.mxu0
      %v698 = vadd.f32 %v614, %v697
      %v699 = vpop.f32.mrf.mxu0
      %700 = vdwg.mxu0
      %701 = vst [vmem:[%s229] sm:$0xff] %v683
      %702 = vst [vmem:[%s229 + $0x8] sm:$0xff] %v688
      %703 = vst [vmem:[%s229 + $0x10] sm:$0xff] %v693
      %704 = vst [vmem:[%s229 + $0x18] sm:$0xff] %v698
      %s705 = smul.u32 4, %s16
      %p706 = scmp.lt.s32.totalorder %s705, 31
      %s707 = scalar_select %p706, %s705, 31
      %s708 = smul.addr %s707, 8
      %s709 = scalar_lea.vmem %s5, %s708
      // Predicated region
      $region41: #{fwd.17} parent=39 // pred_check
        %p710 = pneg %p144
      $region42: #{fwd.17} parent=39 // pred_check_branch
        %712 = sbr.rel (%p710) target = $region44
      $region43: #{fwd.17} parent=39 // pred_region
        %s713 = smul.u32 4, %s16
      $region44: #{fwd.17} parent=39 // pred_fallthru
        _
    $region40: #{fwd.17} parent=5 // pred_fallthru
      _
    %p714 = scmp.le.s32.totalorder 2, %s11
    // Predicated region
    $region45: #{fwd.17} parent=5 // pred_check
      %p715 = pneg %p714
    $region46: #{fwd.17} parent=5 // pred_check_branch
      %717 = sbr.rel (%p715) target = $region48
    $region47: #{fwd.17} parent=5 // pred_region
      %s718 = ssub.s32 %s11, 2
      // Predicated region
      $region49: #{fwd.17} parent=47 // pred_check
        %p719 = pneg %p150
      $region50: #{fwd.17} parent=47 // pred_check_branch
        %721 = sbr.rel (%p719) target = $region52
      $region51: #{fwd.17} parent=47 // pred_region
        %s722 = smul.u32 4, %s17
        %p723 = scmp.lt.s32.totalorder %s722, 31
        %s724 = scalar_select %p723, %s722, 31
        %s725 = smul.addr %s724, 8
        %s726 = scalar_lea.vmem %s5, %s725
      $region52: #{fwd.17} parent=47 // pred_fallthru
        _
    $region48: #{fwd.17} parent=5 // pred_fallthru
      _
  $region6: #{fwd.17} parent=0 // loop_footer
    %s15 = sadd.s32 1, %s11
  $region7: #{fwd.17} parent=0 // loop_footer_branch
    %10 = sbr.rel target = $region3
  $region8: #{fwd.17} parent=0 // loop_exit
    _

</llo_original>
